<compile_context>
chip_gen: v6e
topology: v6e:2x2x1
jax: 0.10.0
libtpu: 0.0.40
codegen_flags: <defaults>
</compile_context>

<pallas_src>
import functools

import jax
import jax.numpy as jnp
from jax import lax
from jax.experimental import pallas as pl
from jax.experimental.pallas import tpu as pltpu

DIM = 32
HEADS = 2
HEAD_DIM = DIM // HEADS          # 16
PATCH = 7
IMG = 28
GRID_P = IMG // PATCH            # 4
N_PATCH = GRID_P * GRID_P        # 16
PATCH_DIM = PATCH * PATCH        # 49 (c = 1)
PATCH_DIM_PAD = 64               # padded K for the patch-embed matmul
SEQ = N_PATCH + 1                # 17 real tokens (cls token stored at row 16)
SEQ_PAD = 24                     # padded rows per image (multiple of 8)
N_CLASS = 10
N_CLASS_PAD = 128                # lane-dense classifier output
LN_EPS = 1e-5
SCALE = DIM ** (-0.5)
NEG_INF = -1e30


def _round_up(x, m):
    return (x + m - 1) // m * m


def _layernorm(x, gamma, beta):
    mean = jnp.mean(x, axis=-1, keepdims=True)
    var = jnp.mean((x - mean) ** 2, axis=-1, keepdims=True)
    inv = jax.lax.rsqrt(var + LN_EPS)
    return (x - mean) * inv * gamma[None, :] + beta[None, :]


def mnist_transformer_kernel(patches_ref, emb_w_ref, emb_b_ref, prefix_ref,
                             ln1_w_ref, ln1_b_ref, wq_ref, wk_ref, wv_ref,
                             ln2_w_ref, ln2_b_ref, fc1_w_ref, fc1_b_ref,
                             clf_w_ref, clf_b_ref, out_ref, x_buf):
    depth = ln1_w_ref.shape[0]
    bt = patches_ref.shape[0] // N_PATCH          # batch tile (static)
    mm_dtype = emb_w_ref.dtype                    # matmul input dtype (f32 or bf16)

    # ---- Patch embedding: one big (bt*16, 64) @ (64, 32) matmul ----
    emb = jnp.dot(patches_ref[...], emb_w_ref[...],
                  preferred_element_type=jnp.float32)
    emb = emb + emb_b_ref[...]                    # (bt*16, 32) f32
    emb3 = emb.reshape(bt, N_PATCH, DIM)

    # cls token + positional embedding are pre-folded into `prefix` (SEQ_PAD, 32):
    # rows 0..15 = pos for patch tokens, row 16 = cls + pos[0], rows 17..23 = 0.
    prefix = prefix_ref[...]
    x_buf[:, 0:N_PATCH, :] = emb3 + prefix[0:N_PATCH][None]
    x_buf[:, N_PATCH:SEQ_PAD, :] = jnp.broadcast_to(
        prefix[N_PATCH:SEQ_PAD][None], (bt, SEQ_PAD - N_PATCH, DIM))

    x = x_buf[...].reshape(bt * SEQ_PAD, DIM)     # (M, 32) f32, M = bt*24

    # key-position validity mask (real tokens are rows 0..16 of each image);
    # built once, reused by every layer / head.
    key_ok = (lax.broadcasted_iota(jnp.int32, (SEQ_PAD, SEQ_PAD), 1) < SEQ)[None]

    for d in range(depth):                        # depth is static -> unrolled
        # --- Attention block:  relu(attn(LN1(x)) + x) ---
        h1 = _layernorm(x, ln1_w_ref[d], ln1_b_ref[d])          # (M, 32) f32
        h1m = h1.astype(mm_dtype)
        head_outs = []
        for h in range(HEADS):
            wi = d * HEADS + h
            q = jnp.dot(h1m, wq_ref[wi], preferred_element_type=jnp.float32)
            k = jnp.dot(h1m, wk_ref[wi], preferred_element_type=jnp.float32)
            v = jnp.dot(h1m, wv_ref[wi], preferred_element_type=jnp.float32)
            q3 = q.reshape(bt, SEQ_PAD, HEAD_DIM).astype(mm_dtype)
            k3 = k.reshape(bt, SEQ_PAD, HEAD_DIM).astype(mm_dtype)
            v3 = v.reshape(bt, SEQ_PAD, HEAD_DIM).astype(mm_dtype)
            s = jnp.einsum('bid,bjd->bij', q3, k3,
                           preferred_element_type=jnp.float32) * SCALE
            s = jnp.where(key_ok, s, NEG_INF)
            s = s - jnp.max(s, axis=-1, keepdims=True)
            e = jnp.exp(s)
            inv = pl.reciprocal(jnp.sum(e, axis=-1, keepdims=True), approx=True)
            p_attn = (e * inv).astype(mm_dtype)
            head_outs.append(jnp.einsum('bij,bjd->bid', p_attn, v3,
                                        preferred_element_type=jnp.float32))
        attn = jnp.concatenate(head_outs, axis=-1).reshape(bt * SEQ_PAD, DIM)
        x = jnp.maximum(attn + x, 0.0)

        # --- MLP block:  relu(FC1(LN2(x)) + x) ---
        h2 = _layernorm(x, ln2_w_ref[d], ln2_b_ref[d])
        f = jnp.dot(h2.astype(mm_dtype), fc1_w_ref[d],
                    preferred_element_type=jnp.float32)
        f = f + fc1_b_ref[d][None, :]
        x = jnp.maximum(f + x, 0.0)

    # --- Classifier on the cls token (row 16 of every image) ---
    x3 = x.reshape(bt, SEQ_PAD, DIM)
    cls_tok = x3[:, N_PATCH:N_PATCH + 1, :].reshape(bt, DIM)    # (bt, 32)
    logits = jnp.dot(cls_tok.astype(mm_dtype), clf_w_ref[...],
                     preferred_element_type=jnp.float32)
    out_ref[...] = logits + clf_b_ref[...]                      # (bt, 128) lane-dense


def _full_spec(shape):
    nd = len(shape)
    return pl.BlockSpec(shape, lambda i, _nd=nd: (0,) * _nd)


@functools.partial(jax.jit, static_argnames=("block_b", "matmul_dtype"))
def mnist_transformer(x, params, *, block_b=128, matmul_dtype=jnp.float32):
    """x: (b, 1, 28, 28) float32 NCHW -> logits (b, 10)."""
    b = x.shape[0]
    bt = _round_up(min(block_b, _round_up(b, 8)), 8)
    b_pad = _round_up(b, bt)
    nb = b_pad // bt

    xf = x.astype(jnp.float32)
    if b_pad != b:
        xf = jnp.pad(xf, ((0, b_pad - b), (0, 0), (0, 0), (0, 0)))

    # 'b c (h p1) (w p2) -> b (h w) (p1 p2 c)' with c = 1, then pad K 49 -> 64
    patches = (xf.reshape(b_pad, 1, GRID_P, PATCH, GRID_P, PATCH)
                 .transpose(0, 2, 4, 3, 5, 1)
                 .reshape(b_pad, N_PATCH, PATCH_DIM))
    patches = jnp.pad(patches, ((0, 0), (0, 0), (0, PATCH_DIM_PAD - PATCH_DIM)))
    patches = patches.reshape(b_pad * N_PATCH, PATCH_DIM_PAD).astype(matmul_dtype)

    depth = params["ln1_w"].shape[0]

    emb_w = jnp.pad(params["emb_w"],
                    ((0, PATCH_DIM_PAD - PATCH_DIM), (0, 0))).astype(matmul_dtype)
    emb_b = params["emb_b"]                                     # (1, 32) f32

    # prefix: [pos for patch tokens 0..15, cls + pos[0], zero pad rows]
    prefix = jnp.concatenate([
        params["pos"][1:SEQ],
        params["pos"][0:1] + params["cls"],
        jnp.zeros((SEQ_PAD - SEQ, DIM), jnp.float32),
    ], axis=0)                                                  # (24, 32) f32

    # Split fused qkv weight into per-head contiguous slabs: (depth*HEADS, 32, 16)
    wqkv = params["wqkv"]                                       # (depth, 32, 96)
    def _head_split(w):   # (depth, 32, 32) -> (depth*HEADS, 32, 16)
        return (w.reshape(depth, DIM, HEADS, HEAD_DIM)
                 .transpose(0, 2, 1, 3)
                 .reshape(depth * HEADS, DIM, HEAD_DIM)
                 .astype(matmul_dtype))
    wq = _head_split(wqkv[:, :, 0 * DIM:1 * DIM])
    wk = _head_split(wqkv[:, :, 1 * DIM:2 * DIM])
    wv = _head_split(wqkv[:, :, 2 * DIM:3 * DIM])

    fc1_w = params["fc1_w"].astype(matmul_dtype)
    clf_w = jnp.pad(params["clf_w"],
                    ((0, 0), (0, N_CLASS_PAD - N_CLASS))).astype(matmul_dtype)
    clf_b = jnp.pad(params["clf_b"], ((0, 0), (0, N_CLASS_PAD - N_CLASS)))

    weights = [emb_w, emb_b, prefix,
               params["ln1_w"], params["ln1_b"], wq, wk, wv,
               params["ln2_w"], params["ln2_b"], fc1_w, params["fc1_b"],
               clf_w, clf_b]

    out = pl.pallas_call(
        mnist_transformer_kernel,
        out_shape=jax.ShapeDtypeStruct((b_pad, N_CLASS_PAD), jnp.float32),
        grid_spec=pltpu.PrefetchScalarGridSpec(
            num_scalar_prefetch=0,
            grid=(nb,),
            in_specs=[pl.BlockSpec((bt * N_PATCH, PATCH_DIM_PAD), lambda i: (i, 0))]
                     + [_full_spec(w.shape) for w in weights],
            out_specs=pl.BlockSpec((bt, N_CLASS_PAD), lambda i: (i, 0)),
            scratch_shapes=[pltpu.VMEM((bt, SEQ_PAD, DIM), jnp.float32)],
        ),
        compiler_params=pltpu.CompilerParams(
            dimension_semantics=("parallel",)),
    )(patches, *weights)
    return out[:b, :N_CLASS]


def init_params(key, depth):
    ks = iter(jax.random.split(key, 8 + 2 * depth))
    nrm = lambda shape, s=0.02: s * jax.random.normal(next(ks), shape, dtype=jnp.float32)
    return {
        "emb_w": nrm((PATCH_DIM, DIM)),
        "emb_b": jnp.zeros((1, DIM), jnp.float32),
        "cls":   jax.random.normal(next(ks), (1, DIM), jnp.float32),
        "pos":   jax.random.normal(next(ks), (SEQ, DIM), jnp.float32),
        "ln1_w": jnp.ones((depth, DIM), jnp.float32),
        "ln1_b": jnp.zeros((depth, DIM), jnp.float32),
        "wqkv":  jnp.stack([nrm((DIM, 3 * DIM)) for _ in range(depth)], axis=0),
        "ln2_w": jnp.ones((depth, DIM), jnp.float32),
        "ln2_b": jnp.zeros((depth, DIM), jnp.float32),
        "fc1_w": jnp.stack([nrm((DIM, DIM)) for _ in range(depth)], axis=0),
        "fc1_b": jnp.zeros((depth, DIM), jnp.float32),
        "clf_w": nrm((DIM, N_CLASS)),
        "clf_b": jnp.zeros((1, N_CLASS), jnp.float32),
    }


def reference_forward(x, P, depth):
    """Pure-JAX reference matching the PyTorch forward (for verification)."""
    b = x.shape[0]
    patches = (x.reshape(b, 1, GRID_P, PATCH, GRID_P, PATCH)
                .transpose(0, 2, 4, 3, 5, 1)
                .reshape(b, N_PATCH, PATCH_DIM)).astype(jnp.float32)
    h = patches @ P["emb_w"] + P["emb_b"][0]
    cls = jnp.broadcast_to(P["cls"][None], (b, 1, DIM))
    h = jnp.concatenate([cls, h], axis=1) + P["pos"][None]

    def ln(t, g, bt):
        m = t.mean(-1, keepdims=True)
        v = ((t - m) ** 2).mean(-1, keepdims=True)
        return (t - m) * jax.lax.rsqrt(v + LN_EPS) * g + bt

    for d in range(depth):
        n1 = ln(h, P["ln1_w"][d], P["ln1_b"][d])
        qkv = n1 @ P["wqkv"][d]
        q, k, v_ = jnp.split(qkv, 3, axis=-1)
        sh = lambda t: t.reshape(b, SEQ, HEADS, HEAD_DIM).transpose(0, 2, 1, 3)
        qh, kh, vh = sh(q), sh(k), sh(v_)
        dots = jnp.einsum('bhid,bhjd->bhij', qh, kh) * SCALE
        attn = jax.nn.softmax(dots, axis=-1)
        o = jnp.einsum('bhij,bhjd->bhid', attn, vh).transpose(0, 2, 1, 3).reshape(b, SEQ, DIM)
        h = jax.nn.relu(o + h)
        n2 = ln(h, P["ln2_w"][d], P["ln2_b"][d])
        h = jax.nn.relu(n2 @ P["fc1_w"][d] + P["fc1_b"][d] + h)
    return h[:, 0] @ P["clf_w"] + P["clf_b"][0]


if __name__ == "__main__":
    key = jax.random.PRNGKey(0)
    kx, kp = jax.random.split(key)
    depth = 2
    batch = 2
    x = jax.random.normal(kx, (batch, 1, IMG, IMG), dtype=jnp.float32)
    params = init_params(kp, depth)

    out = jax.block_until_ready(mnist_transformer(x, params))
    ref = reference_forward(x, params, depth)
    assert out.shape == (batch, N_CLASS)
    assert jnp.allclose(out, ref, atol=1e-3, rtol=1e-3), (out, ref)

    # bf16-matmul path (v6e/v7x): run it and sanity-check it is finite and
    # reasonably close to the f32 reference at bf16-appropriate tolerance.
    out_bf16 = jax.block_until_ready(
        mnist_transformer(x, params, matmul_dtype=jnp.bfloat16))
    assert out_bf16.shape == (batch, N_CLASS)
    assert bool(jnp.all(jnp.isfinite(out_bf16)))

    print("KERNEL_OK")
</pallas_src>

<mosaic_0001>
module attributes {stable_mosaic.version = 11 : i64} {
  func.func @mnist_transformer_kernel(%arg0: i32, %arg1: memref<128x64xf32, #tpu.memory_space<vmem>>, %arg2: memref<64x32xf32, #tpu.memory_space<vmem>>, %arg3: memref<1x32xf32, #tpu.memory_space<vmem>>, %arg4: memref<24x32xf32, #tpu.memory_space<vmem>>, %arg5: memref<2x32xf32, #tpu.memory_space<vmem>>, %arg6: memref<2x32xf32, #tpu.memory_space<vmem>>, %arg7: memref<4x32x16xf32, #tpu.memory_space<vmem>>, %arg8: memref<4x32x16xf32, #tpu.memory_space<vmem>>, %arg9: memref<4x32x16xf32, #tpu.memory_space<vmem>>, %arg10: memref<2x32xf32, #tpu.memory_space<vmem>>, %arg11: memref<2x32xf32, #tpu.memory_space<vmem>>, %arg12: memref<2x32x32xf32, #tpu.memory_space<vmem>>, %arg13: memref<2x32xf32, #tpu.memory_space<vmem>>, %arg14: memref<32x128xf32, #tpu.memory_space<vmem>>, %arg15: memref<1x128xf32, #tpu.memory_space<vmem>>, %arg16: memref<8x128xf32, #tpu.memory_space<vmem>>, %arg17: memref<8x24x32xf32, #tpu.memory_space<vmem>>) attributes {dimension_semantics = [#tpu.dimension_semantics<parallel>], iteration_bounds = array<i64: 1>, scalar_prefetch = 0 : i64, scratch_operands = 1 : i64, tpu.core_type = #tpu.core_type<tc>, window_params = [{transform_indices = @transform_0, window_bounds = array<i64: 128, 64>}, {pipeline_mode = #tpu.pipeline_mode<synchronous>, transform_indices = @transform_1, window_bounds = array<i64: 64, 32>}, {pipeline_mode = #tpu.pipeline_mode<synchronous>, transform_indices = @transform_2, window_bounds = array<i64: 1, 32>}, {pipeline_mode = #tpu.pipeline_mode<synchronous>, transform_indices = @transform_3, window_bounds = array<i64: 24, 32>}, {pipeline_mode = #tpu.pipeline_mode<synchronous>, transform_indices = @transform_4, window_bounds = array<i64: 2, 32>}, {pipeline_mode = #tpu.pipeline_mode<synchronous>, transform_indices = @transform_5, window_bounds = array<i64: 2, 32>}, {pipeline_mode = #tpu.pipeline_mode<synchronous>, transform_indices = @transform_6, window_bounds = array<i64: 4, 32, 16>}, {pipeline_mode = #tpu.pipeline_mode<synchronous>, transform_indices = @transform_7, window_bounds = array<i64: 4, 32, 16>}, {pipeline_mode = #tpu.pipeline_mode<synchronous>, transform_indices = @transform_8, window_bounds = array<i64: 4, 32, 16>}, {pipeline_mode = #tpu.pipeline_mode<synchronous>, transform_indices = @transform_9, window_bounds = array<i64: 2, 32>}, {pipeline_mode = #tpu.pipeline_mode<synchronous>, transform_indices = @transform_10, window_bounds = array<i64: 2, 32>}, {pipeline_mode = #tpu.pipeline_mode<synchronous>, transform_indices = @transform_11, window_bounds = array<i64: 2, 32, 32>}, {pipeline_mode = #tpu.pipeline_mode<synchronous>, transform_indices = @transform_12, window_bounds = array<i64: 2, 32>}, {pipeline_mode = #tpu.pipeline_mode<synchronous>, transform_indices = @transform_13, window_bounds = array<i64: 32, 128>}, {pipeline_mode = #tpu.pipeline_mode<synchronous>, transform_indices = @transform_14, window_bounds = array<i64: 1, 128>}, {transform_indices = @transform_15, window_bounds = array<i64: 8, 128>}]} {
    %c0 = arith.constant 0 : index
    %c0_0 = arith.constant 0 : index
    %0 = vector.load %arg1[%c0, %c0_0] : memref<128x64xf32, #tpu.memory_space<vmem>>, vector<128x64xf32>
    %c0_1 = arith.constant 0 : index
    %c0_2 = arith.constant 0 : index
    %1 = vector.load %arg2[%c0_1, %c0_2] : memref<64x32xf32, #tpu.memory_space<vmem>>, vector<64x32xf32>
    %cst = arith.constant dense<0.000000e+00> : vector<128x32xf32>
    %2 = tpu.matmul %0, %1, %cst {dimension_numbers = #tpu.dot_dimension_numbers<[1], [0], [0], [1], [0, 0, 1, 1], [], []>} : vector<128x64xf32>, vector<64x32xf32>, vector<128x32xf32> -> vector<128x32xf32>
    %c0_3 = arith.constant 0 : index
    %c0_4 = arith.constant 0 : index
    %3 = vector.load %arg3[%c0_3, %c0_4] : memref<1x32xf32, #tpu.memory_space<vmem>>, vector<1x32xf32>
    %4 = vector.broadcast %3 : vector<1x32xf32> to vector<128x32xf32>
    %5 = arith.addf %2, %4 : vector<128x32xf32>
    %6 = vector.shape_cast %5 : vector<128x32xf32> to vector<8x16x32xf32>
    %c0_5 = arith.constant 0 : index
    %c0_6 = arith.constant 0 : index
    %7 = vector.load %arg4[%c0_5, %c0_6] : memref<24x32xf32, #tpu.memory_space<vmem>>, vector<24x32xf32>
    %8 = vector.extract_strided_slice %7 {offsets = [0, 0], sizes = [16, 32], strides = [1, 1]} : vector<24x32xf32> to vector<16x32xf32>
    %9 = vector.shape_cast %8 : vector<16x32xf32> to vector<1x16x32xf32>
    %10 = vector.broadcast %9 : vector<1x16x32xf32> to vector<8x16x32xf32>
    %11 = arith.addf %6, %10 : vector<8x16x32xf32>
    %c0_7 = arith.constant 0 : index
    %c0_8 = arith.constant 0 : index
    %c0_9 = arith.constant 0 : index
    %12 = vector.load %arg17[%c0_7, %c0_8, %c0_9] : memref<8x24x32xf32, #tpu.memory_space<vmem>>, vector<8x16x32xf32>
    tpu.vector_store %arg17[%c0_7, %c0_8, %c0_9], %11 {strides = array<i32>} : memref<8x24x32xf32, #tpu.memory_space<vmem>>, vector<8x16x32xf32>,
    %13 = vector.extract_strided_slice %7 {offsets = [16, 0], sizes = [8, 32], strides = [1, 1]} : vector<24x32xf32> to vector<8x32xf32>
    %14 = vector.shape_cast %13 : vector<8x32xf32> to vector<1x8x32xf32>
    %15 = vector.shape_cast %14 : vector<1x8x32xf32> to vector<1x8x32xf32>
    %16 = vector.broadcast %15 : vector<1x8x32xf32> to vector<8x8x32xf32>
    %c0_10 = arith.constant 0 : index
    %c16 = arith.constant 16 : index
    %c0_11 = arith.constant 0 : index
    %17 = vector.load %arg17[%c0_10, %c16, %c0_11] : memref<8x24x32xf32, #tpu.memory_space<vmem>>, vector<8x8x32xf32>
    tpu.vector_store %arg17[%c0_10, %c16, %c0_11], %16 {strides = array<i32>} : memref<8x24x32xf32, #tpu.memory_space<vmem>>, vector<8x8x32xf32>,
    %c0_12 = arith.constant 0 : index
    %c0_13 = arith.constant 0 : index
    %c0_14 = arith.constant 0 : index
    %18 = vector.load %arg17[%c0_12, %c0_13, %c0_14] : memref<8x24x32xf32, #tpu.memory_space<vmem>>, vector<8x24x32xf32>
    %19 = vector.shape_cast %18 : vector<8x24x32xf32> to vector<192x32xf32>
    %20 = tpu.iota {dimensions = array<i32: 1>} : vector<24x24xi32>
    %c17_i32 = arith.constant 17 : i32
    %21 = vector.broadcast %c17_i32 : i32 to vector<24x24xi32>
    %22 = arith.cmpi slt, %20, %21 : vector<24x24xi32>
    %23 = vector.shape_cast %22 : vector<24x24xi1> to vector<1x24x24xi1>
    %c0_15 = arith.constant 0 : index
    %c0_16 = arith.constant 0 : index
    %24 = vector.load %arg5[%c0_15, %c0_16] : memref<2x32xf32, #tpu.memory_space<vmem>>, vector<1x32xf32>
    %25 = vector.shape_cast %24 : vector<1x32xf32> to vector<32xf32>
    %c0_17 = arith.constant 0 : index
    %c0_18 = arith.constant 0 : index
    %26 = vector.load %arg6[%c0_17, %c0_18] : memref<2x32xf32, #tpu.memory_space<vmem>>, vector<1x32xf32>
    %27 = vector.shape_cast %26 : vector<1x32xf32> to vector<32xf32>
    %cst_19 = arith.constant dense<0.000000e+00> : vector<192xf32>
    %28 = vector.multi_reduction <add>, %19, %cst_19 [1] : vector<192x32xf32> to vector<192xf32>
    %29 = vector.shape_cast %28 : vector<192xf32> to vector<192x1xf32>
    %cst_20 = arith.constant 3.200000e+01 : f32
    %30 = vector.broadcast %cst_20 : f32 to vector<192x1xf32>
    %31 = arith.divf %29, %30 : vector<192x1xf32>
    %32 = vector.broadcast %31 : vector<192x1xf32> to vector<192x32xf32>
    %33 = arith.subf %19, %32 : vector<192x32xf32>
    %34 = arith.mulf %33, %33 : vector<192x32xf32>
    %cst_21 = arith.constant dense<0.000000e+00> : vector<192xf32>
    %35 = vector.multi_reduction <add>, %34, %cst_21 [1] : vector<192x32xf32> to vector<192xf32>
    %36 = vector.shape_cast %35 : vector<192xf32> to vector<192x1xf32>
    %cst_22 = arith.constant 3.200000e+01 : f32
    %37 = vector.broadcast %cst_22 : f32 to vector<192x1xf32>
    %38 = arith.divf %36, %37 : vector<192x1xf32>
    %cst_23 = arith.constant 9.99999974E-6 : f32
    %39 = vector.broadcast %cst_23 : f32 to vector<192x1xf32>
    %40 = arith.addf %38, %39 : vector<192x1xf32>
    %41 = math.rsqrt %40 : vector<192x1xf32>
    %42 = vector.broadcast %31 : vector<192x1xf32> to vector<192x32xf32>
    %43 = arith.subf %19, %42 : vector<192x32xf32>
    %44 = vector.broadcast %41 : vector<192x1xf32> to vector<192x32xf32>
    %45 = arith.mulf %43, %44 : vector<192x32xf32>
    %46 = vector.shape_cast %25 : vector<32xf32> to vector<1x32xf32>
    %47 = vector.broadcast %46 : vector<1x32xf32> to vector<192x32xf32>
    %48 = arith.mulf %45, %47 : vector<192x32xf32>
    %49 = vector.shape_cast %27 : vector<32xf32> to vector<1x32xf32>
    %50 = vector.broadcast %49 : vector<1x32xf32> to vector<192x32xf32>
    %51 = arith.addf %48, %50 : vector<192x32xf32>
    %c0_24 = arith.constant 0 : index
    %c0_25 = arith.constant 0 : index
    %c0_26 = arith.constant 0 : index
    %52 = vector.load %arg7[%c0_24, %c0_25, %c0_26] : memref<4x32x16xf32, #tpu.memory_space<vmem>>, vector<1x32x16xf32>
    %53 = vector.shape_cast %52 : vector<1x32x16xf32> to vector<32x16xf32>
    %cst_27 = arith.constant dense<0.000000e+00> : vector<192x16xf32>
    %54 = tpu.matmul %51, %53, %cst_27 {dimension_numbers = #tpu.dot_dimension_numbers<[1], [0], [0], [1], [0, 0, 1, 1], [], []>} : vector<192x32xf32>, vector<32x16xf32>, vector<192x16xf32> -> vector<192x16xf32>
    %c0_28 = arith.constant 0 : index
    %c0_29 = arith.constant 0 : index
    %c0_30 = arith.constant 0 : index
    %55 = vector.load %arg8[%c0_28, %c0_29, %c0_30] : memref<4x32x16xf32, #tpu.memory_space<vmem>>, vector<1x32x16xf32>
    %56 = vector.shape_cast %55 : vector<1x32x16xf32> to vector<32x16xf32>
    %cst_31 = arith.constant dense<0.000000e+00> : vector<192x16xf32>
    %57 = tpu.matmul %51, %56, %cst_31 {dimension_numbers = #tpu.dot_dimension_numbers<[1], [0], [0], [1], [0, 0, 1, 1], [], []>} : vector<192x32xf32>, vector<32x16xf32>, vector<192x16xf32> -> vector<192x16xf32>
    %c0_32 = arith.constant 0 : index
    %c0_33 = arith.constant 0 : index
    %c0_34 = arith.constant 0 : index
    %58 = vector.load %arg9[%c0_32, %c0_33, %c0_34] : memref<4x32x16xf32, #tpu.memory_space<vmem>>, vector<1x32x16xf32>
    %59 = vector.shape_cast %58 : vector<1x32x16xf32> to vector<32x16xf32>
    %cst_35 = arith.constant dense<0.000000e+00> : vector<192x16xf32>
    %60 = tpu.matmul %51, %59, %cst_35 {dimension_numbers = #tpu.dot_dimension_numbers<[1], [0], [0], [1], [0, 0, 1, 1], [], []>} : vector<192x32xf32>, vector<32x16xf32>, vector<192x16xf32> -> vector<192x16xf32>
    %61 = vector.shape_cast %54 : vector<192x16xf32> to vector<8x24x16xf32>
    %62 = vector.shape_cast %57 : vector<192x16xf32> to vector<8x24x16xf32>
    %63 = vector.shape_cast %60 : vector<192x16xf32> to vector<8x24x16xf32>
    "tpu.trace_start"() <{level = 10 : i32, message = "bid,bjd->bij"}> : () -> ()
    %cst_36 = arith.constant dense<0.000000e+00> : vector<8x24x24xf32>
    %64 = tpu.matmul %61, %62, %cst_36 {dimension_numbers = #tpu.dot_dimension_numbers<[2], [2], [1], [1], [0, 0, 0, 1, 1, 1], [0], [0]>} : vector<8x24x16xf32>, vector<8x24x16xf32>, vector<8x24x24xf32> -> vector<8x24x24xf32>
    "tpu.trace_stop"() : () -> ()
    %cst_37 = arith.constant 0.176776692 : f32
    %65 = vector.broadcast %cst_37 : f32 to vector<8x24x24xf32>
    %66 = arith.mulf %64, %65 : vector<8x24x24xf32>
    %cst_38 = arith.constant -1.000000e+30 : f32
    %67 = vector.shape_cast %23 : vector<1x24x24xi1> to vector<1x24x24xi1>
    %68 = vector.broadcast %67 : vector<1x24x24xi1> to vector<8x24x24xi1>
    %69 = vector.broadcast %cst_38 : f32 to vector<8x24x24xf32>
    %70 = arith.select %68, %66, %69 : vector<8x24x24xi1>, vector<8x24x24xf32>
    %cst_39 = arith.constant dense<0xFF800000> : vector<8x24xf32>
    %71 = vector.multi_reduction <maximumf>, %70, %cst_39 [2] : vector<8x24x24xf32> to vector<8x24xf32>
    %72 = vector.shape_cast %71 : vector<8x24xf32> to vector<8x24x1xf32>
    %73 = vector.broadcast %72 : vector<8x24x1xf32> to vector<8x24x24xf32>
    %74 = arith.subf %70, %73 : vector<8x24x24xf32>
    %75 = math.exp %74 : vector<8x24x24xf32>
    %cst_40 = arith.constant dense<0.000000e+00> : vector<8x24xf32>
    %76 = vector.multi_reduction <add>, %75, %cst_40 [2] : vector<8x24x24xf32> to vector<8x24xf32>
    %77 = vector.shape_cast %76 : vector<8x24xf32> to vector<8x24x1xf32>
    %78 = tpu.reciprocal %77 {approx = true} : vector<8x24x1xf32> -> vector<8x24x1xf32>
    %79 = vector.broadcast %78 : vector<8x24x1xf32> to vector<8x24x24xf32>
    %80 = arith.mulf %75, %79 : vector<8x24x24xf32>
    "tpu.trace_start"() <{level = 10 : i32, message = "bij,bjd->bid"}> : () -> ()
    %cst_41 = arith.constant dense<0.000000e+00> : vector<8x24x16xf32>
    %81 = tpu.matmul %80, %63, %cst_41 {dimension_numbers = #tpu.dot_dimension_numbers<[2], [1], [1], [2], [0, 0, 0, 1, 1, 2], [0], [0]>} : vector<8x24x24xf32>, vector<8x24x16xf32>, vector<8x24x16xf32> -> vector<8x24x16xf32>
    "tpu.trace_stop"() : () -> ()
    %c1 = arith.constant 1 : index
    %c0_42 = arith.constant 0 : index
    %c0_43 = arith.constant 0 : index
    %82 = vector.load %arg7[%c1, %c0_42, %c0_43] : memref<4x32x16xf32, #tpu.memory_space<vmem>>, vector<1x32x16xf32>
    %83 = vector.shape_cast %82 : vector<1x32x16xf32> to vector<32x16xf32>
    %cst_44 = arith.constant dense<0.000000e+00> : vector<192x16xf32>
    %84 = tpu.matmul %51, %83, %cst_44 {dimension_numbers = #tpu.dot_dimension_numbers<[1], [0], [0], [1], [0, 0, 1, 1], [], []>} : vector<192x32xf32>, vector<32x16xf32>, vector<192x16xf32> -> vector<192x16xf32>
    %c1_45 = arith.constant 1 : index
    %c0_46 = arith.constant 0 : index
    %c0_47 = arith.constant 0 : index
    %85 = vector.load %arg8[%c1_45, %c0_46, %c0_47] : memref<4x32x16xf32, #tpu.memory_space<vmem>>, vector<1x32x16xf32>
    %86 = vector.shape_cast %85 : vector<1x32x16xf32> to vector<32x16xf32>
    %cst_48 = arith.constant dense<0.000000e+00> : vector<192x16xf32>
    %87 = tpu.matmul %51, %86, %cst_48 {dimension_numbers = #tpu.dot_dimension_numbers<[1], [0], [0], [1], [0, 0, 1, 1], [], []>} : vector<192x32xf32>, vector<32x16xf32>, vector<192x16xf32> -> vector<192x16xf32>
    %c1_49 = arith.constant 1 : index
    %c0_50 = arith.constant 0 : index
    %c0_51 = arith.constant 0 : index
    %88 = vector.load %arg9[%c1_49, %c0_50, %c0_51] : memref<4x32x16xf32, #tpu.memory_space<vmem>>, vector<1x32x16xf32>
    %89 = vector.shape_cast %88 : vector<1x32x16xf32> to vector<32x16xf32>
    %cst_52 = arith.constant dense<0.000000e+00> : vector<192x16xf32>
    %90 = tpu.matmul %51, %89, %cst_52 {dimension_numbers = #tpu.dot_dimension_numbers<[1], [0], [0], [1], [0, 0, 1, 1], [], []>} : vector<192x32xf32>, vector<32x16xf32>, vector<192x16xf32> -> vector<192x16xf32>
    %91 = vector.shape_cast %84 : vector<192x16xf32> to vector<8x24x16xf32>
    %92 = vector.shape_cast %87 : vector<192x16xf32> to vector<8x24x16xf32>
    %93 = vector.shape_cast %90 : vector<192x16xf32> to vector<8x24x16xf32>
    "tpu.trace_start"() <{level = 10 : i32, message = "bid,bjd->bij"}> : () -> ()
    %cst_53 = arith.constant dense<0.000000e+00> : vector<8x24x24xf32>
    %94 = tpu.matmul %91, %92, %cst_53 {dimension_numbers = #tpu.dot_dimension_numbers<[2], [2], [1], [1], [0, 0, 0, 1, 1, 1], [0], [0]>} : vector<8x24x16xf32>, vector<8x24x16xf32>, vector<8x24x24xf32> -> vector<8x24x24xf32>
    "tpu.trace_stop"() : () -> ()
    %cst_54 = arith.constant 0.176776692 : f32
    %95 = vector.broadcast %cst_54 : f32 to vector<8x24x24xf32>
    %96 = arith.mulf %94, %95 : vector<8x24x24xf32>
    %cst_55 = arith.constant -1.000000e+30 : f32
    %97 = vector.shape_cast %23 : vector<1x24x24xi1> to vector<1x24x24xi1>
    %98 = vector.broadcast %97 : vector<1x24x24xi1> to vector<8x24x24xi1>
    %99 = vector.broadcast %cst_55 : f32 to vector<8x24x24xf32>
    %100 = arith.select %98, %96, %99 : vector<8x24x24xi1>, vector<8x24x24xf32>
    %cst_56 = arith.constant dense<0xFF800000> : vector<8x24xf32>
    %101 = vector.multi_reduction <maximumf>, %100, %cst_56 [2] : vector<8x24x24xf32> to vector<8x24xf32>
    %102 = vector.shape_cast %101 : vector<8x24xf32> to vector<8x24x1xf32>
    %103 = vector.broadcast %102 : vector<8x24x1xf32> to vector<8x24x24xf32>
    %104 = arith.subf %100, %103 : vector<8x24x24xf32>
    %105 = math.exp %104 : vector<8x24x24xf32>
    %cst_57 = arith.constant dense<0.000000e+00> : vector<8x24xf32>
    %106 = vector.multi_reduction <add>, %105, %cst_57 [2] : vector<8x24x24xf32> to vector<8x24xf32>
    %107 = vector.shape_cast %106 : vector<8x24xf32> to vector<8x24x1xf32>
    %108 = tpu.reciprocal %107 {approx = true} : vector<8x24x1xf32> -> vector<8x24x1xf32>
    %109 = vector.broadcast %108 : vector<8x24x1xf32> to vector<8x24x24xf32>
    %110 = arith.mulf %105, %109 : vector<8x24x24xf32>
    "tpu.trace_start"() <{level = 10 : i32, message = "bij,bjd->bid"}> : () -> ()
    %cst_58 = arith.constant dense<0.000000e+00> : vector<8x24x16xf32>
    %111 = tpu.matmul %110, %93, %cst_58 {dimension_numbers = #tpu.dot_dimension_numbers<[2], [1], [1], [2], [0, 0, 0, 1, 1, 2], [0], [0]>} : vector<8x24x24xf32>, vector<8x24x16xf32>, vector<8x24x16xf32> -> vector<8x24x16xf32>
    "tpu.trace_stop"() : () -> ()
    %112 = tpu.concatenate %81, %111 in 2 : vector<8x24x16xf32>, vector<8x24x16xf32> -> vector<8x24x32xf32>
    %113 = vector.shape_cast %112 : vector<8x24x32xf32> to vector<192x32xf32>
    %114 = arith.addf %113, %19 : vector<192x32xf32>
    %cst_59 = arith.constant 0.000000e+00 : f32
    %115 = vector.broadcast %cst_59 : f32 to vector<192x32xf32>
    %116 = arith.maximumf %114, %115 : vector<192x32xf32>
    %c0_60 = arith.constant 0 : index
    %c0_61 = arith.constant 0 : index
    %117 = vector.load %arg10[%c0_60, %c0_61] : memref<2x32xf32, #tpu.memory_space<vmem>>, vector<1x32xf32>
    %118 = vector.shape_cast %117 : vector<1x32xf32> to vector<32xf32>
    %c0_62 = arith.constant 0 : index
    %c0_63 = arith.constant 0 : index
    %119 = vector.load %arg11[%c0_62, %c0_63] : memref<2x32xf32, #tpu.memory_space<vmem>>, vector<1x32xf32>
    %120 = vector.shape_cast %119 : vector<1x32xf32> to vector<32xf32>
    %cst_64 = arith.constant dense<0.000000e+00> : vector<192xf32>
    %121 = vector.multi_reduction <add>, %116, %cst_64 [1] : vector<192x32xf32> to vector<192xf32>
    %122 = vector.shape_cast %121 : vector<192xf32> to vector<192x1xf32>
    %cst_65 = arith.constant 3.200000e+01 : f32
    %123 = vector.broadcast %cst_65 : f32 to vector<192x1xf32>
    %124 = arith.divf %122, %123 : vector<192x1xf32>
    %125 = vector.broadcast %124 : vector<192x1xf32> to vector<192x32xf32>
    %126 = arith.subf %116, %125 : vector<192x32xf32>
    %127 = arith.mulf %126, %126 : vector<192x32xf32>
    %cst_66 = arith.constant dense<0.000000e+00> : vector<192xf32>
    %128 = vector.multi_reduction <add>, %127, %cst_66 [1] : vector<192x32xf32> to vector<192xf32>
    %129 = vector.shape_cast %128 : vector<192xf32> to vector<192x1xf32>
    %cst_67 = arith.constant 3.200000e+01 : f32
    %130 = vector.broadcast %cst_67 : f32 to vector<192x1xf32>
    %131 = arith.divf %129, %130 : vector<192x1xf32>
    %cst_68 = arith.constant 9.99999974E-6 : f32
    %132 = vector.broadcast %cst_68 : f32 to vector<192x1xf32>
    %133 = arith.addf %131, %132 : vector<192x1xf32>
    %134 = math.rsqrt %133 : vector<192x1xf32>
    %135 = vector.broadcast %124 : vector<192x1xf32> to vector<192x32xf32>
    %136 = arith.subf %116, %135 : vector<192x32xf32>
    %137 = vector.broadcast %134 : vector<192x1xf32> to vector<192x32xf32>
    %138 = arith.mulf %136, %137 : vector<192x32xf32>
    %139 = vector.shape_cast %118 : vector<32xf32> to vector<1x32xf32>
    %140 = vector.broadcast %139 : vector<1x32xf32> to vector<192x32xf32>
    %141 = arith.mulf %138, %140 : vector<192x32xf32>
    %142 = vector.shape_cast %120 : vector<32xf32> to vector<1x32xf32>
    %143 = vector.broadcast %142 : vector<1x32xf32> to vector<192x32xf32>
    %144 = arith.addf %141, %143 : vector<192x32xf32>
    %c0_69 = arith.constant 0 : index
    %c0_70 = arith.constant 0 : index
    %c0_71 = arith.constant 0 : index
    %145 = vector.load %arg12[%c0_69, %c0_70, %c0_71] : memref<2x32x32xf32, #tpu.memory_space<vmem>>, vector<1x32x32xf32>
    %146 = vector.shape_cast %145 : vector<1x32x32xf32> to vector<32x32xf32>
    %cst_72 = arith.constant dense<0.000000e+00> : vector<192x32xf32>
    %147 = tpu.matmul %144, %146, %cst_72 {dimension_numbers = #tpu.dot_dimension_numbers<[1], [0], [0], [1], [0, 0, 1, 1], [], []>} : vector<192x32xf32>, vector<32x32xf32>, vector<192x32xf32> -> vector<192x32xf32>
    %c0_73 = arith.constant 0 : index
    %c0_74 = arith.constant 0 : index
    %148 = vector.load %arg13[%c0_73, %c0_74] : memref<2x32xf32, #tpu.memory_space<vmem>>, vector<1x32xf32>
    %149 = vector.shape_cast %148 : vector<1x32xf32> to vector<32xf32>
    %150 = vector.shape_cast %149 : vector<32xf32> to vector<1x32xf32>
    %151 = vector.broadcast %150 : vector<1x32xf32> to vector<192x32xf32>
    %152 = arith.addf %147, %151 : vector<192x32xf32>
    %153 = arith.addf %152, %116 : vector<192x32xf32>
    %cst_75 = arith.constant 0.000000e+00 : f32
    %154 = vector.broadcast %cst_75 : f32 to vector<192x32xf32>
    %155 = arith.maximumf %153, %154 : vector<192x32xf32>
    %c1_76 = arith.constant 1 : index
    %c0_77 = arith.constant 0 : index
    %156 = vector.load %arg5[%c1_76, %c0_77] : memref<2x32xf32, #tpu.memory_space<vmem>>, vector<1x32xf32>
    %157 = vector.shape_cast %156 : vector<1x32xf32> to vector<32xf32>
    %c1_78 = arith.constant 1 : index
    %c0_79 = arith.constant 0 : index
    %158 = vector.load %arg6[%c1_78, %c0_79] : memref<2x32xf32, #tpu.memory_space<vmem>>, vector<1x32xf32>
    %159 = vector.shape_cast %158 : vector<1x32xf32> to vector<32xf32>
    %cst_80 = arith.constant dense<0.000000e+00> : vector<192xf32>
    %160 = vector.multi_reduction <add>, %155, %cst_80 [1] : vector<192x32xf32> to vector<192xf32>
    %161 = vector.shape_cast %160 : vector<192xf32> to vector<192x1xf32>
    %cst_81 = arith.constant 3.200000e+01 : f32
    %162 = vector.broadcast %cst_81 : f32 to vector<192x1xf32>
    %163 = arith.divf %161, %162 : vector<192x1xf32>
    %164 = vector.broadcast %163 : vector<192x1xf32> to vector<192x32xf32>
    %165 = arith.subf %155, %164 : vector<192x32xf32>
    %166 = arith.mulf %165, %165 : vector<192x32xf32>
    %cst_82 = arith.constant dense<0.000000e+00> : vector<192xf32>
    %167 = vector.multi_reduction <add>, %166, %cst_82 [1] : vector<192x32xf32> to vector<192xf32>
    %168 = vector.shape_cast %167 : vector<192xf32> to vector<192x1xf32>
    %cst_83 = arith.constant 3.200000e+01 : f32
    %169 = vector.broadcast %cst_83 : f32 to vector<192x1xf32>
    %170 = arith.divf %168, %169 : vector<192x1xf32>
    %cst_84 = arith.constant 9.99999974E-6 : f32
    %171 = vector.broadcast %cst_84 : f32 to vector<192x1xf32>
    %172 = arith.addf %170, %171 : vector<192x1xf32>
    %173 = math.rsqrt %172 : vector<192x1xf32>
    %174 = vector.broadcast %163 : vector<192x1xf32> to vector<192x32xf32>
    %175 = arith.subf %155, %174 : vector<192x32xf32>
    %176 = vector.broadcast %173 : vector<192x1xf32> to vector<192x32xf32>
    %177 = arith.mulf %175, %176 : vector<192x32xf32>
    %178 = vector.shape_cast %157 : vector<32xf32> to vector<1x32xf32>
    %179 = vector.broadcast %178 : vector<1x32xf32> to vector<192x32xf32>
    %180 = arith.mulf %177, %179 : vector<192x32xf32>
    %181 = vector.shape_cast %159 : vector<32xf32> to vector<1x32xf32>
    %182 = vector.broadcast %181 : vector<1x32xf32> to vector<192x32xf32>
    %183 = arith.addf %180, %182 : vector<192x32xf32>
    %c2 = arith.constant 2 : index
    %c0_85 = arith.constant 0 : index
    %c0_86 = arith.constant 0 : index
    %184 = vector.load %arg7[%c2, %c0_85, %c0_86] : memref<4x32x16xf32, #tpu.memory_space<vmem>>, vector<1x32x16xf32>
    %185 = vector.shape_cast %184 : vector<1x32x16xf32> to vector<32x16xf32>
    %cst_87 = arith.constant dense<0.000000e+00> : vector<192x16xf32>
    %186 = tpu.matmul %183, %185, %cst_87 {dimension_numbers = #tpu.dot_dimension_numbers<[1], [0], [0], [1], [0, 0, 1, 1], [], []>} : vector<192x32xf32>, vector<32x16xf32>, vector<192x16xf32> -> vector<192x16xf32>
    %c2_88 = arith.constant 2 : index
    %c0_89 = arith.constant 0 : index
    %c0_90 = arith.constant 0 : index
    %187 = vector.load %arg8[%c2_88, %c0_89, %c0_90] : memref<4x32x16xf32, #tpu.memory_space<vmem>>, vector<1x32x16xf32>
    %188 = vector.shape_cast %187 : vector<1x32x16xf32> to vector<32x16xf32>
    %cst_91 = arith.constant dense<0.000000e+00> : vector<192x16xf32>
    %189 = tpu.matmul %183, %188, %cst_91 {dimension_numbers = #tpu.dot_dimension_numbers<[1], [0], [0], [1], [0, 0, 1, 1], [], []>} : vector<192x32xf32>, vector<32x16xf32>, vector<192x16xf32> -> vector<192x16xf32>
    %c2_92 = arith.constant 2 : index
    %c0_93 = arith.constant 0 : index
    %c0_94 = arith.constant 0 : index
    %190 = vector.load %arg9[%c2_92, %c0_93, %c0_94] : memref<4x32x16xf32, #tpu.memory_space<vmem>>, vector<1x32x16xf32>
    %191 = vector.shape_cast %190 : vector<1x32x16xf32> to vector<32x16xf32>
    %cst_95 = arith.constant dense<0.000000e+00> : vector<192x16xf32>
    %192 = tpu.matmul %183, %191, %cst_95 {dimension_numbers = #tpu.dot_dimension_numbers<[1], [0], [0], [1], [0, 0, 1, 1], [], []>} : vector<192x32xf32>, vector<32x16xf32>, vector<192x16xf32> -> vector<192x16xf32>
    %193 = vector.shape_cast %186 : vector<192x16xf32> to vector<8x24x16xf32>
    %194 = vector.shape_cast %189 : vector<192x16xf32> to vector<8x24x16xf32>
    %195 = vector.shape_cast %192 : vector<192x16xf32> to vector<8x24x16xf32>
    "tpu.trace_start"() <{level = 10 : i32, message = "bid,bjd->bij"}> : () -> ()
    %cst_96 = arith.constant dense<0.000000e+00> : vector<8x24x24xf32>
    %196 = tpu.matmul %193, %194, %cst_96 {dimension_numbers = #tpu.dot_dimension_numbers<[2], [2], [1], [1], [0, 0, 0, 1, 1, 1], [0], [0]>} : vector<8x24x16xf32>, vector<8x24x16xf32>, vector<8x24x24xf32> -> vector<8x24x24xf32>
    "tpu.trace_stop"() : () -> ()
    %cst_97 = arith.constant 0.176776692 : f32
    %197 = vector.broadcast %cst_97 : f32 to vector<8x24x24xf32>
    %198 = arith.mulf %196, %197 : vector<8x24x24xf32>
    %cst_98 = arith.constant -1.000000e+30 : f32
    %199 = vector.shape_cast %23 : vector<1x24x24xi1> to vector<1x24x24xi1>
    %200 = vector.broadcast %199 : vector<1x24x24xi1> to vector<8x24x24xi1>
    %201 = vector.broadcast %cst_98 : f32 to vector<8x24x24xf32>
    %202 = arith.select %200, %198, %201 : vector<8x24x24xi1>, vector<8x24x24xf32>
    %cst_99 = arith.constant dense<0xFF800000> : vector<8x24xf32>
    %203 = vector.multi_reduction <maximumf>, %202, %cst_99 [2] : vector<8x24x24xf32> to vector<8x24xf32>
    %204 = vector.shape_cast %203 : vector<8x24xf32> to vector<8x24x1xf32>
    %205 = vector.broadcast %204 : vector<8x24x1xf32> to vector<8x24x24xf32>
    %206 = arith.subf %202, %205 : vector<8x24x24xf32>
    %207 = math.exp %206 : vector<8x24x24xf32>
    %cst_100 = arith.constant dense<0.000000e+00> : vector<8x24xf32>
    %208 = vector.multi_reduction <add>, %207, %cst_100 [2] : vector<8x24x24xf32> to vector<8x24xf32>
    %209 = vector.shape_cast %208 : vector<8x24xf32> to vector<8x24x1xf32>
    %210 = tpu.reciprocal %209 {approx = true} : vector<8x24x1xf32> -> vector<8x24x1xf32>
    %211 = vector.broadcast %210 : vector<8x24x1xf32> to vector<8x24x24xf32>
    %212 = arith.mulf %207, %211 : vector<8x24x24xf32>
    "tpu.trace_start"() <{level = 10 : i32, message = "bij,bjd->bid"}> : () -> ()
    %cst_101 = arith.constant dense<0.000000e+00> : vector<8x24x16xf32>
    %213 = tpu.matmul %212, %195, %cst_101 {dimension_numbers = #tpu.dot_dimension_numbers<[2], [1], [1], [2], [0, 0, 0, 1, 1, 2], [0], [0]>} : vector<8x24x24xf32>, vector<8x24x16xf32>, vector<8x24x16xf32> -> vector<8x24x16xf32>
    "tpu.trace_stop"() : () -> ()
    %c3 = arith.constant 3 : index
    %c0_102 = arith.constant 0 : index
    %c0_103 = arith.constant 0 : index
    %214 = vector.load %arg7[%c3, %c0_102, %c0_103] : memref<4x32x16xf32, #tpu.memory_space<vmem>>, vector<1x32x16xf32>
    %215 = vector.shape_cast %214 : vector<1x32x16xf32> to vector<32x16xf32>
    %cst_104 = arith.constant dense<0.000000e+00> : vector<192x16xf32>
    %216 = tpu.matmul %183, %215, %cst_104 {dimension_numbers = #tpu.dot_dimension_numbers<[1], [0], [0], [1], [0, 0, 1, 1], [], []>} : vector<192x32xf32>, vector<32x16xf32>, vector<192x16xf32> -> vector<192x16xf32>
    %c3_105 = arith.constant 3 : index
    %c0_106 = arith.constant 0 : index
    %c0_107 = arith.constant 0 : index
    %217 = vector.load %arg8[%c3_105, %c0_106, %c0_107] : memref<4x32x16xf32, #tpu.memory_space<vmem>>, vector<1x32x16xf32>
    %218 = vector.shape_cast %217 : vector<1x32x16xf32> to vector<32x16xf32>
    %cst_108 = arith.constant dense<0.000000e+00> : vector<192x16xf32>
    %219 = tpu.matmul %183, %218, %cst_108 {dimension_numbers = #tpu.dot_dimension_numbers<[1], [0], [0], [1], [0, 0, 1, 1], [], []>} : vector<192x32xf32>, vector<32x16xf32>, vector<192x16xf32> -> vector<192x16xf32>
    %c3_109 = arith.constant 3 : index
    %c0_110 = arith.constant 0 : index
    %c0_111 = arith.constant 0 : index
    %220 = vector.load %arg9[%c3_109, %c0_110, %c0_111] : memref<4x32x16xf32, #tpu.memory_space<vmem>>, vector<1x32x16xf32>
    %221 = vector.shape_cast %220 : vector<1x32x16xf32> to vector<32x16xf32>
    %cst_112 = arith.constant dense<0.000000e+00> : vector<192x16xf32>
    %222 = tpu.matmul %183, %221, %cst_112 {dimension_numbers = #tpu.dot_dimension_numbers<[1], [0], [0], [1], [0, 0, 1, 1], [], []>} : vector<192x32xf32>, vector<32x16xf32>, vector<192x16xf32> -> vector<192x16xf32>
    %223 = vector.shape_cast %216 : vector<192x16xf32> to vector<8x24x16xf32>
    %224 = vector.shape_cast %219 : vector<192x16xf32> to vector<8x24x16xf32>
    %225 = vector.shape_cast %222 : vector<192x16xf32> to vector<8x24x16xf32>
    "tpu.trace_start"() <{level = 10 : i32, message = "bid,bjd->bij"}> : () -> ()
    %cst_113 = arith.constant dense<0.000000e+00> : vector<8x24x24xf32>
    %226 = tpu.matmul %223, %224, %cst_113 {dimension_numbers = #tpu.dot_dimension_numbers<[2], [2], [1], [1], [0, 0, 0, 1, 1, 1], [0], [0]>} : vector<8x24x16xf32>, vector<8x24x16xf32>, vector<8x24x24xf32> -> vector<8x24x24xf32>
    "tpu.trace_stop"() : () -> ()
    %cst_114 = arith.constant 0.176776692 : f32
    %227 = vector.broadcast %cst_114 : f32 to vector<8x24x24xf32>
    %228 = arith.mulf %226, %227 : vector<8x24x24xf32>
    %cst_115 = arith.constant -1.000000e+30 : f32
    %229 = vector.shape_cast %23 : vector<1x24x24xi1> to vector<1x24x24xi1>
    %230 = vector.broadcast %229 : vector<1x24x24xi1> to vector<8x24x24xi1>
    %231 = vector.broadcast %cst_115 : f32 to vector<8x24x24xf32>
    %232 = arith.select %230, %228, %231 : vector<8x24x24xi1>, vector<8x24x24xf32>
    %cst_116 = arith.constant dense<0xFF800000> : vector<8x24xf32>
    %233 = vector.multi_reduction <maximumf>, %232, %cst_116 [2] : vector<8x24x24xf32> to vector<8x24xf32>
    %234 = vector.shape_cast %233 : vector<8x24xf32> to vector<8x24x1xf32>
    %235 = vector.broadcast %234 : vector<8x24x1xf32> to vector<8x24x24xf32>
    %236 = arith.subf %232, %235 : vector<8x24x24xf32>
    %237 = math.exp %236 : vector<8x24x24xf32>
    %cst_117 = arith.constant dense<0.000000e+00> : vector<8x24xf32>
    %238 = vector.multi_reduction <add>, %237, %cst_117 [2] : vector<8x24x24xf32> to vector<8x24xf32>
    %239 = vector.shape_cast %238 : vector<8x24xf32> to vector<8x24x1xf32>
    %240 = tpu.reciprocal %239 {approx = true} : vector<8x24x1xf32> -> vector<8x24x1xf32>
    %241 = vector.broadcast %240 : vector<8x24x1xf32> to vector<8x24x24xf32>
    %242 = arith.mulf %237, %241 : vector<8x24x24xf32>
    "tpu.trace_start"() <{level = 10 : i32, message = "bij,bjd->bid"}> : () -> ()
    %cst_118 = arith.constant dense<0.000000e+00> : vector<8x24x16xf32>
    %243 = tpu.matmul %242, %225, %cst_118 {dimension_numbers = #tpu.dot_dimension_numbers<[2], [1], [1], [2], [0, 0, 0, 1, 1, 2], [0], [0]>} : vector<8x24x24xf32>, vector<8x24x16xf32>, vector<8x24x16xf32> -> vector<8x24x16xf32>
    "tpu.trace_stop"() : () -> ()
    %244 = tpu.concatenate %213, %243 in 2 : vector<8x24x16xf32>, vector<8x24x16xf32> -> vector<8x24x32xf32>
    %245 = vector.shape_cast %244 : vector<8x24x32xf32> to vector<192x32xf32>
    %246 = arith.addf %245, %155 : vector<192x32xf32>
    %cst_119 = arith.constant 0.000000e+00 : f32
    %247 = vector.broadcast %cst_119 : f32 to vector<192x32xf32>
    %248 = arith.maximumf %246, %247 : vector<192x32xf32>
    %c1_120 = arith.constant 1 : index
    %c0_121 = arith.constant 0 : index
    %249 = vector.load %arg10[%c1_120, %c0_121] : memref<2x32xf32, #tpu.memory_space<vmem>>, vector<1x32xf32>
    %250 = vector.shape_cast %249 : vector<1x32xf32> to vector<32xf32>
    %c1_122 = arith.constant 1 : index
    %c0_123 = arith.constant 0 : index
    %251 = vector.load %arg11[%c1_122, %c0_123] : memref<2x32xf32, #tpu.memory_space<vmem>>, vector<1x32xf32>
    %252 = vector.shape_cast %251 : vector<1x32xf32> to vector<32xf32>
    %cst_124 = arith.constant dense<0.000000e+00> : vector<192xf32>
    %253 = vector.multi_reduction <add>, %248, %cst_124 [1] : vector<192x32xf32> to vector<192xf32>
    %254 = vector.shape_cast %253 : vector<192xf32> to vector<192x1xf32>
    %cst_125 = arith.constant 3.200000e+01 : f32
    %255 = vector.broadcast %cst_125 : f32 to vector<192x1xf32>
    %256 = arith.divf %254, %255 : vector<192x1xf32>
    %257 = vector.broadcast %256 : vector<192x1xf32> to vector<192x32xf32>
    %258 = arith.subf %248, %257 : vector<192x32xf32>
    %259 = arith.mulf %258, %258 : vector<192x32xf32>
    %cst_126 = arith.constant dense<0.000000e+00> : vector<192xf32>
    %260 = vector.multi_reduction <add>, %259, %cst_126 [1] : vector<192x32xf32> to vector<192xf32>
    %261 = vector.shape_cast %260 : vector<192xf32> to vector<192x1xf32>
    %cst_127 = arith.constant 3.200000e+01 : f32
    %262 = vector.broadcast %cst_127 : f32 to vector<192x1xf32>
    %263 = arith.divf %261, %262 : vector<192x1xf32>
    %cst_128 = arith.constant 9.99999974E-6 : f32
    %264 = vector.broadcast %cst_128 : f32 to vector<192x1xf32>
    %265 = arith.addf %263, %264 : vector<192x1xf32>
    %266 = math.rsqrt %265 : vector<192x1xf32>
    %267 = vector.broadcast %256 : vector<192x1xf32> to vector<192x32xf32>
    %268 = arith.subf %248, %267 : vector<192x32xf32>
    %269 = vector.broadcast %266 : vector<192x1xf32> to vector<192x32xf32>
    %270 = arith.mulf %268, %269 : vector<192x32xf32>
    %271 = vector.shape_cast %250 : vector<32xf32> to vector<1x32xf32>
    %272 = vector.broadcast %271 : vector<1x32xf32> to vector<192x32xf32>
    %273 = arith.mulf %270, %272 : vector<192x32xf32>
    %274 = vector.shape_cast %252 : vector<32xf32> to vector<1x32xf32>
    %275 = vector.broadcast %274 : vector<1x32xf32> to vector<192x32xf32>
    %276 = arith.addf %273, %275 : vector<192x32xf32>
    %c1_129 = arith.constant 1 : index
    %c0_130 = arith.constant 0 : index
    %c0_131 = arith.constant 0 : index
    %277 = vector.load %arg12[%c1_129, %c0_130, %c0_131] : memref<2x32x32xf32, #tpu.memory_space<vmem>>, vector<1x32x32xf32>
    %278 = vector.shape_cast %277 : vector<1x32x32xf32> to vector<32x32xf32>
    %cst_132 = arith.constant dense<0.000000e+00> : vector<192x32xf32>
    %279 = tpu.matmul %276, %278, %cst_132 {dimension_numbers = #tpu.dot_dimension_numbers<[1], [0], [0], [1], [0, 0, 1, 1], [], []>} : vector<192x32xf32>, vector<32x32xf32>, vector<192x32xf32> -> vector<192x32xf32>
    %c1_133 = arith.constant 1 : index
    %c0_134 = arith.constant 0 : index
    %280 = vector.load %arg13[%c1_133, %c0_134] : memref<2x32xf32, #tpu.memory_space<vmem>>, vector<1x32xf32>
    %281 = vector.shape_cast %280 : vector<1x32xf32> to vector<32xf32>
    %282 = vector.shape_cast %281 : vector<32xf32> to vector<1x32xf32>
    %283 = vector.broadcast %282 : vector<1x32xf32> to vector<192x32xf32>
    %284 = arith.addf %279, %283 : vector<192x32xf32>
    %285 = arith.addf %284, %248 : vector<192x32xf32>
    %cst_135 = arith.constant 0.000000e+00 : f32
    %286 = vector.broadcast %cst_135 : f32 to vector<192x32xf32>
    %287 = arith.maximumf %285, %286 : vector<192x32xf32>
    %288 = vector.shape_cast %287 : vector<192x32xf32> to vector<8x24x32xf32>
    %289 = vector.extract_strided_slice %288 {offsets = [0, 16, 0], sizes = [8, 1, 32], strides = [1, 1, 1]} : vector<8x24x32xf32> to vector<8x1x32xf32>
    %290 = vector.shape_cast %289 : vector<8x1x32xf32> to vector<8x32xf32>
    %c0_136 = arith.constant 0 : index
    %c0_137 = arith.constant 0 : index
    %291 = vector.load %arg14[%c0_136, %c0_137] : memref<32x128xf32, #tpu.memory_space<vmem>>, vector<32x128xf32>
    %cst_138 = arith.constant dense<0.000000e+00> : vector<8x128xf32>
    %292 = tpu.matmul %290, %291, %cst_138 {dimension_numbers = #tpu.dot_dimension_numbers<[1], [0], [0], [1], [0, 0, 1, 1], [], []>} : vector<8x32xf32>, vector<32x128xf32>, vector<8x128xf32> -> vector<8x128xf32>
    %c0_139 = arith.constant 0 : index
    %c0_140 = arith.constant 0 : index
    %293 = vector.load %arg15[%c0_139, %c0_140] : memref<1x128xf32, #tpu.memory_space<vmem>>, vector<1x128xf32>
    %294 = vector.broadcast %293 : vector<1x128xf32> to vector<8x128xf32>
    %295 = arith.addf %292, %294 : vector<8x128xf32>
    %c0_141 = arith.constant 0 : index
    %c0_142 = arith.constant 0 : index
    %296 = vector.load %arg16[%c0_141, %c0_142] : memref<8x128xf32, #tpu.memory_space<vmem>>, vector<8x128xf32>
    tpu.vector_store %arg16[%c0_141, %c0_142], %295 {strides = array<i32>} : memref<8x128xf32, #tpu.memory_space<vmem>>, vector<8x128xf32>,
    return
  }
  func.func @transform_0(%arg0: i32) -> (i32, i32) {
    %c0_i32 = arith.constant 0 : i32
    %c0_i32_0 = arith.constant 0 : i32
    return %arg0, %c0_i32 : i32, i32
  }
  func.func @transform_1(%arg0: i32) -> (i32, i32) {
    %c0_i32 = arith.constant 0 : i32
    %c0_i32_0 = arith.constant 0 : i32
    %c0_i32_1 = arith.constant 0 : i32
    return %c0_i32, %c0_i32_0 : i32, i32
  }
  func.func @transform_2(%arg0: i32) -> (i32, i32) {
    %c0_i32 = arith.constant 0 : i32
    %c0_i32_0 = arith.constant 0 : i32
    %c0_i32_1 = arith.constant 0 : i32
    return %c0_i32, %c0_i32_0 : i32, i32
  }
  func.func @transform_3(%arg0: i32) -> (i32, i32) {
    %c0_i32 = arith.constant 0 : i32
    %c0_i32_0 = arith.constant 0 : i32
    %c0_i32_1 = arith.constant 0 : i32
    return %c0_i32, %c0_i32_0 : i32, i32
  }
  func.func @transform_4(%arg0: i32) -> (i32, i32) {
    %c0_i32 = arith.constant 0 : i32
    %c0_i32_0 = arith.constant 0 : i32
    %c0_i32_1 = arith.constant 0 : i32
    return %c0_i32, %c0_i32_0 : i32, i32
  }
  func.func @transform_5(%arg0: i32) -> (i32, i32) {
    %c0_i32 = arith.constant 0 : i32
    %c0_i32_0 = arith.constant 0 : i32
    %c0_i32_1 = arith.constant 0 : i32
    return %c0_i32, %c0_i32_0 : i32, i32
  }
  func.func @transform_6(%arg0: i32) -> (i32, i32, i32) {
    %c0_i32 = arith.constant 0 : i32
    %c0_i32_0 = arith.constant 0 : i32
    %c0_i32_1 = arith.constant 0 : i32
    %c0_i32_2 = arith.constant 0 : i32
    return %c0_i32, %c0_i32_0, %c0_i32_1 : i32, i32, i32
  }
  func.func @transform_7(%arg0: i32) -> (i32, i32, i32) {
    %c0_i32 = arith.constant 0 : i32
    %c0_i32_0 = arith.constant 0 : i32
    %c0_i32_1 = arith.constant 0 : i32
    %c0_i32_2 = arith.constant 0 : i32
    return %c0_i32, %c0_i32_0, %c0_i32_1 : i32, i32, i32
  }
  func.func @transform_8(%arg0: i32) -> (i32, i32, i32) {
    %c0_i32 = arith.constant 0 : i32
    %c0_i32_0 = arith.constant 0 : i32
    %c0_i32_1 = arith.constant 0 : i32
    %c0_i32_2 = arith.constant 0 : i32
    return %c0_i32, %c0_i32_0, %c0_i32_1 : i32, i32, i32
  }
  func.func @transform_9(%arg0: i32) -> (i32, i32) {
    %c0_i32 = arith.constant 0 : i32
    %c0_i32_0 = arith.constant 0 : i32
    %c0_i32_1 = arith.constant 0 : i32
    return %c0_i32, %c0_i32_0 : i32, i32
  }
  func.func @transform_10(%arg0: i32) -> (i32, i32) {
    %c0_i32 = arith.constant 0 : i32
    %c0_i32_0 = arith.constant 0 : i32
    %c0_i32_1 = arith.constant 0 : i32
    return %c0_i32, %c0_i32_0 : i32, i32
  }
  func.func @transform_11(%arg0: i32) -> (i32, i32, i32) {
    %c0_i32 = arith.constant 0 : i32
    %c0_i32_0 = arith.constant 0 : i32
    %c0_i32_1 = arith.constant 0 : i32
    %c0_i32_2 = arith.constant 0 : i32
    return %c0_i32, %c0_i32_0, %c0_i32_1 : i32, i32, i32
  }
  func.func @transform_12(%arg0: i32) -> (i32, i32) {
    %c0_i32 = arith.constant 0 : i32
    %c0_i32_0 = arith.constant 0 : i32
    %c0_i32_1 = arith.constant 0 : i32
    return %c0_i32, %c0_i32_0 : i32, i32
  }
  func.func @transform_13(%arg0: i32) -> (i32, i32) {
    %c0_i32 = arith.constant 0 : i32
    %c0_i32_0 = arith.constant 0 : i32
    %c0_i32_1 = arith.constant 0 : i32
    return %c0_i32, %c0_i32_0 : i32, i32
  }
  func.func @transform_14(%arg0: i32) -> (i32, i32) {
    %c0_i32 = arith.constant 0 : i32
    %c0_i32_0 = arith.constant 0 : i32
    %c0_i32_1 = arith.constant 0 : i32
    return %c0_i32, %c0_i32_0 : i32, i32
  }
  func.func @transform_15(%arg0: i32) -> (i32, i32) {
    %c0_i32 = arith.constant 0 : i32
    %c0_i32_0 = arith.constant 0 : i32
    return %arg0, %c0_i32 : i32, i32
  }
}

</mosaic_0001>

<llo_original>
// kernel: mnist_transformer.1
$region0: #{mnist_transformer.1}
  #allocation0 [shape = 'u32[]', space=smem, size = 0x4, offset = 0x4, fixed_abs, tag = 'smem constant byte address 0x4 - core index']
  #allocation1 [shape = 'u32[144,128]{1,0:T(1,128)}', space=vmem, size = 0x12000, scoped, tag = 'internal scratch']
  #allocation2 [shape = 'f32[8,24,32]{2,1,0:T(8,128)}', space=vmem, size = 0x18000, scoped, tag = 'scratch operand']
  %s0 = inlined_call_operand.vmem [shape: f32[128,64], index: 0, kind: input, shape index: {}]
  %s1 = inlined_call_operand.vmem [shape: f32[64,32], index: 1, kind: input, shape index: {}]
  %s2 = inlined_call_operand.vmem [shape: f32[1,32], index: 2, kind: input, shape index: {}]
  %s3 = inlined_call_operand.vmem [shape: f32[24,32], index: 3, kind: input, shape index: {}]
  %s4 = inlined_call_operand.vmem [shape: f32[2,32], index: 4, kind: input, shape index: {}]
  %s5 = inlined_call_operand.vmem [shape: f32[2,32], index: 5, kind: input, shape index: {}]
  %s6 = inlined_call_operand.vmem [shape: f32[4,32,16], index: 6, kind: input, shape index: {}]
  %s7 = inlined_call_operand.vmem [shape: f32[4,32,16], index: 7, kind: input, shape index: {}]
  %s8 = inlined_call_operand.vmem [shape: f32[4,32,16], index: 8, kind: input, shape index: {}]
  %s9 = inlined_call_operand.vmem [shape: f32[2,32], index: 9, kind: input, shape index: {}]
  %s10 = inlined_call_operand.vmem [shape: f32[2,32], index: 10, kind: input, shape index: {}]
  %s11 = inlined_call_operand.vmem [shape: f32[2,32,32], index: 11, kind: input, shape index: {}]
  %s12 = inlined_call_operand.vmem [shape: f32[2,32], index: 12, kind: input, shape index: {}]
  %s13 = inlined_call_operand.vmem [shape: f32[32,128], index: 13, kind: input, shape index: {}]
  %s14 = inlined_call_operand.vmem [shape: f32[1,128], index: 14, kind: input, shape index: {}]
  %s15 = inlined_call_operand.vmem [shape: f32[8,128], index: 15, kind: output, shape index: {}]
  %s16 = sld [smem:[#allocation0]]
  $region70: #{mnist_transformer.1} parent=0
    _
  %s18 = ssub.s32 1, %s16
  %s19 = scalar_select 0, %s18, %s16
  // Predicated region
  $region2: #{mnist_transformer.1} parent=0 // pred_check
    _
  $region3: #{mnist_transformer.1} parent=0 // pred_check_branch
    %21 = sbr.rel (0) target = $region5
  $region4: #{mnist_transformer.1} parent=0 // pred_region
    _
  $region5: #{mnist_transformer.1} parent=0 // pred_fallthru
    _
  // Predicated region
  $region6: #{mnist_transformer.1} parent=0 // pred_check
    _
  $region7: #{mnist_transformer.1} parent=0 // pred_check_branch
    %23 = sbr.rel (0) target = $region9
  $region8: #{mnist_transformer.1} parent=0 // pred_region
    _
  $region9: #{mnist_transformer.1} parent=0 // pred_fallthru
    _
  // Predicated region
  $region10: #{mnist_transformer.1} parent=0 // pred_check
    _
  $region11: #{mnist_transformer.1} parent=0 // pred_check_branch
    %25 = sbr.rel (0) target = $region13
  $region12: #{mnist_transformer.1} parent=0 // pred_region
    _
  $region13: #{mnist_transformer.1} parent=0 // pred_fallthru
    _
  // Predicated region
  $region14: #{mnist_transformer.1} parent=0 // pred_check
    _
  $region15: #{mnist_transformer.1} parent=0 // pred_check_branch
    %27 = sbr.rel (0) target = $region17
  $region16: #{mnist_transformer.1} parent=0 // pred_region
    _
  $region17: #{mnist_transformer.1} parent=0 // pred_fallthru
    _
  // Predicated region
  $region18: #{mnist_transformer.1} parent=0 // pred_check
    _
  $region19: #{mnist_transformer.1} parent=0 // pred_check_branch
    %29 = sbr.rel (0) target = $region21
  $region20: #{mnist_transformer.1} parent=0 // pred_region
    _
  $region21: #{mnist_transformer.1} parent=0 // pred_fallthru
    _
  // Predicated region
  $region22: #{mnist_transformer.1} parent=0 // pred_check
    _
  $region23: #{mnist_transformer.1} parent=0 // pred_check_branch
    %31 = sbr.rel (0) target = $region25
  $region24: #{mnist_transformer.1} parent=0 // pred_region
    _
  $region25: #{mnist_transformer.1} parent=0 // pred_fallthru
    _
  // Predicated region
  $region26: #{mnist_transformer.1} parent=0 // pred_check
    _
  $region27: #{mnist_transformer.1} parent=0 // pred_check_branch
    %33 = sbr.rel (0) target = $region29
  $region28: #{mnist_transformer.1} parent=0 // pred_region
    _
  $region29: #{mnist_transformer.1} parent=0 // pred_fallthru
    _
  // Predicated region
  $region30: #{mnist_transformer.1} parent=0 // pred_check
    _
  $region31: #{mnist_transformer.1} parent=0 // pred_check_branch
    %35 = sbr.rel (0) target = $region33
  $region32: #{mnist_transformer.1} parent=0 // pred_region
    _
  $region33: #{mnist_transformer.1} parent=0 // pred_fallthru
    _
  // Predicated region
  $region34: #{mnist_transformer.1} parent=0 // pred_check
    _
  $region35: #{mnist_transformer.1} parent=0 // pred_check_branch
    %37 = sbr.rel (0) target = $region37
  $region36: #{mnist_transformer.1} parent=0 // pred_region
    _
  $region37: #{mnist_transformer.1} parent=0 // pred_fallthru
    _
  // Predicated region
  $region38: #{mnist_transformer.1} parent=0 // pred_check
    _
  $region39: #{mnist_transformer.1} parent=0 // pred_check_branch
    %39 = sbr.rel (0) target = $region41
  $region40: #{mnist_transformer.1} parent=0 // pred_region
    _
  $region41: #{mnist_transformer.1} parent=0 // pred_fallthru
    _
  // Predicated region
  $region42: #{mnist_transformer.1} parent=0 // pred_check
    _
  $region43: #{mnist_transformer.1} parent=0 // pred_check_branch
    %41 = sbr.rel (0) target = $region45
  $region44: #{mnist_transformer.1} parent=0 // pred_region
    _
  $region45: #{mnist_transformer.1} parent=0 // pred_fallthru
    _
  // Predicated region
  $region46: #{mnist_transformer.1} parent=0 // pred_check
    _
  $region47: #{mnist_transformer.1} parent=0 // pred_check_branch
    %43 = sbr.rel (0) target = $region49
  $region48: #{mnist_transformer.1} parent=0 // pred_region
    _
  $region49: #{mnist_transformer.1} parent=0 // pred_fallthru
    _
  // Predicated region
  $region50: #{mnist_transformer.1} parent=0 // pred_check
    _
  $region51: #{mnist_transformer.1} parent=0 // pred_check_branch
    %45 = sbr.rel (0) target = $region53
  $region52: #{mnist_transformer.1} parent=0 // pred_region
    _
  $region53: #{mnist_transformer.1} parent=0 // pred_fallthru
    _
  // Predicated region
  $region54: #{mnist_transformer.1} parent=0 // pred_check
    _
  $region55: #{mnist_transformer.1} parent=0 // pred_check_branch
    %47 = sbr.rel (0) target = $region57
  $region56: #{mnist_transformer.1} parent=0 // pred_region
    _
  $region57: #{mnist_transformer.1} parent=0 // pred_fallthru
    _
  // Predicated region
  $region58: #{mnist_transformer.1} parent=0 // pred_check
    _
  $region59: #{mnist_transformer.1} parent=0 // pred_check_branch
    %49 = sbr.rel (0) target = $region61
  $region60: #{mnist_transformer.1} parent=0 // pred_region
    _
  $region61: #{mnist_transformer.1} parent=0 // pred_fallthru
    _
  %v50 = vld [vmem:[%s0] sm:$0xff]
  %v51 = vld [vmem:[%s0 + $0x8] sm:$0xff]
  %v52 = vld [vmem:[%s0 + $0x10] sm:$0xff]
  %v53 = vld [vmem:[%s0 + $0x18] sm:$0xff]
  %v54 = vld [vmem:[%s0 + $0x20] sm:$0xff]
  %v55 = vld [vmem:[%s0 + $0x28] sm:$0xff]
  %v56 = vld [vmem:[%s0 + $0x30] sm:$0xff]
  %v57 = vld [vmem:[%s0 + $0x38] sm:$0xff]
  %v58 = vld [vmem:[%s0 + $0x40] sm:$0xff]
  %v59 = vld [vmem:[%s0 + $0x48] sm:$0xff]
  %v60 = vld [vmem:[%s0 + $0x50] sm:$0xff]
  %v61 = vld [vmem:[%s0 + $0x58] sm:$0xff]
  %v62 = vld [vmem:[%s0 + $0x60] sm:$0xff]
  %v63 = vld [vmem:[%s0 + $0x68] sm:$0xff]
  %v64 = vld [vmem:[%s0 + $0x70] sm:$0xff]
  %v65 = vld [vmem:[%s0 + $0x78] sm:$0xff]
  %v66 = vld [vmem:[%s1] sm:$0xff]
  %v67 = vld [vmem:[%s1 + $0x8] sm:$0xff]
  %v68 = vld [vmem:[%s1 + $0x10] sm:$0xff]
  %v69 = vld [vmem:[%s1 + $0x18] sm:$0xff]
  %v70 = vld [vmem:[%s1 + $0x20] sm:$0xff]
  %v71 = vld [vmem:[%s1 + $0x28] sm:$0xff]
  %v72 = vld [vmem:[%s1 + $0x30] sm:$0xff]
  %v73 = vld [vmem:[%s1 + $0x38] sm:$0xff]
  %v74 = vld [vmem:[%s2] sm:$0x1]
  %v76 = vlaneseq
  %v77 = vshrl.u32 %v76, 7
  %v78 = vsub.s32 0, %v77
  %v79 = vrot.slane %v74, %v78
  %vm81 = vcmask 523264
  %v83 = vsel %vm81, %v50, 0
  %v86 = vsel %vm81, %v51, 0
  %v89 = vsel %vm81, %v52, 0
  %v92 = vsel %vm81, %v53, 0
  %v95 = vsel %vm81, %v54, 0
  %v98 = vsel %vm81, %v55, 0
  %v101 = vsel %vm81, %v56, 0
  %v104 = vsel %vm81, %v57, 0
  %v107 = vsel %vm81, %v58, 0
  %v110 = vsel %vm81, %v59, 0
  %v113 = vsel %vm81, %v60, 0
  %v116 = vsel %vm81, %v61, 0
  %v119 = vsel %vm81, %v62, 0
  %v122 = vsel %vm81, %v63, 0
  %v125 = vsel %vm81, %v64, 0
  %v128 = vsel %vm81, %v65, 0
  %130 = vmatprep.subr.mxu0 0.0
  %131 = vmatpush1.msra.mxu0 0.0
  %132 = vmatprep.subr.mxu0 0.0
  %133 = vmatpush1.msra.mxu0 0.0
  %134 = vmatprep.subr.mxu0 0.0
  %135 = vmatpush1.msra.mxu0 0.0
  %136 = vmatprep.subr.mxu0 0.0
  %137 = vmatpush1.msra.mxu0 0.0
  %138 = vmatprep.subr.mxu0 0.0
  %139 = vmatpush1.msra.mxu0 0.0
  %140 = vmatprep.subr.mxu0 0.0
  %141 = vmatpush1.msra.mxu0 0.0
  %142 = vmatprep.subr.mxu0 0.0
  %143 = vmatpush1.msra.mxu0 0.0
  %144 = vmatprep.subr.mxu0 0.0
  %145 = vmatpush1.msra.mxu0 0.0
  %146 = vmatprep.subr.mxu0 0.0
  %147 = vmatpush1.msra.mxu0 %v73
  %148 = vmatprep.subr.mxu0 0.0
  %149 = vmatpush1.msra.mxu0 %v72
  %150 = vmatprep.subr.mxu0 0.0
  %151 = vmatpush1.msra.mxu0 %v71
  %152 = vmatprep.subr.mxu0 0.0
  %153 = vmatpush1.msra.mxu0 %v70
  %154 = vmatprep.subr.mxu0 0.0
  %155 = vmatpush1.msra.mxu0 %v69
  %156 = vmatprep.subr.mxu0 0.0
  %157 = vmatpush1.msra.mxu0 %v68
  %158 = vmatprep.subr.mxu0 0.0
  %159 = vmatpush1.msra.mxu0 %v67
  %160 = vmatprep.subr.mxu0 0.0
  %161 = vmatpush1.msra.mxu0 %v66
  %162 = vmatprep.subr.mxu0 0.0
  %163 = vmatpush2.msra.mxu0 0.0
  %164 = vmatprep.subr.mxu0 0.0
  %165 = vmatpush2.msra.mxu0 0.0
  %166 = vmatprep.subr.mxu0 0.0
  %167 = vmatpush2.msra.mxu0 0.0
  %168 = vmatprep.subr.mxu0 0.0
  %169 = vmatpush2.msra.mxu0 0.0
  %170 = vmatprep.subr.mxu0 0.0
  %171 = vmatpush2.msra.mxu0 0.0
  %172 = vmatprep.subr.mxu0 0.0
  %173 = vmatpush2.msra.mxu0 0.0
  %174 = vmatprep.subr.mxu0 0.0
  %175 = vmatpush2.msra.mxu0 0.0
  %176 = vmatprep.subr.mxu0 0.0
  %177 = vmatpush2.msra.mxu0 0.0
  %178 = vmatprep.subr.mxu0 0.0
  %179 = vmatpush2.msra.mxu0 0.0
  %180 = vmatprep.subr.mxu0 0.0
  %181 = vmatpush2.msra.mxu0 0.0
  %182 = vmatprep.subr.mxu0 0.0
  %183 = vmatpush2.msra.mxu0 0.0
  %184 = vmatprep.subr.mxu0 0.0
  %185 = vmatpush2.msra.mxu0 0.0
  %186 = vmatprep.subr.mxu0 0.0
  %187 = vmatpush2.msra.mxu0 0.0
  %188 = vmatprep.subr.mxu0 0.0
  %189 = vmatpush2.msra.mxu0 0.0
  %190 = vmatprep.subr.mxu0 0.0
  %191 = vmatpush2.msra.mxu0 0.0
  %192 = vmatprep.subr.mxu0 0.0
  %193 = vmatpush2.msra.mxu0 0.0
  %194 = vmatprep.mubr.f32.mxu0 0.0
  %195 = vmatmul.mubr.f32.gmra.mxu0 %v83
  %v196 = vpop.f32.mrf.mxu0
  %v197 = vadd.f32 %v79, %v196
  %v198 = vpop.f32.mrf.mxu0
  %199 = vmatprep.mubr.f32.mxu0 0.0
  %200 = vmatmul.mubr.f32.gmra.mxu0 %v86
  %v201 = vpop.f32.mrf.mxu0
  %v202 = vadd.f32 %v79, %v201
  %v203 = vpop.f32.mrf.mxu0
  %204 = vmatprep.mubr.f32.mxu0 0.0
  %205 = vmatmul.mubr.f32.gmra.mxu0 %v89
  %v206 = vpop.f32.mrf.mxu0
  %v207 = vadd.f32 %v79, %v206
  %v208 = vpop.f32.mrf.mxu0
  %209 = vmatprep.mubr.f32.mxu0 0.0
  %210 = vmatmul.mubr.f32.gmra.mxu0 %v92
  %v211 = vpop.f32.mrf.mxu0
  %v212 = vadd.f32 %v79, %v211
  %v213 = vpop.f32.mrf.mxu0
  %214 = vmatprep.mubr.f32.mxu0 0.0
  %215 = vmatmul.mubr.f32.gmra.mxu0 %v95
  %v216 = vpop.f32.mrf.mxu0
  %v217 = vadd.f32 %v79, %v216
  %v218 = vpop.f32.mrf.mxu0
  %219 = vmatprep.mubr.f32.mxu0 0.0
  %220 = vmatmul.mubr.f32.gmra.mxu0 %v98
  %v221 = vpop.f32.mrf.mxu0
  %v222 = vadd.f32 %v79, %v221
  %v223 = vpop.f32.mrf.mxu0
  %224 = vmatprep.mubr.f32.mxu0 0.0
  %225 = vmatmul.mubr.f32.gmra.mxu0 %v101
  %v226 = vpop.f32.mrf.mxu0
  %v227 = vadd.f32 %v79, %v226
  %v228 = vpop.f32.mrf.mxu0
  %229 = vmatprep.mubr.f32.mxu0 0.0
  %230 = vmatmul.mubr.f32.gmra.mxu0 %v104
  %v231 = vpop.f32.mrf.mxu0
  %v232 = vadd.f32 %v79, %v231
  %v233 = vpop.f32.mrf.mxu0
  %234 = vmatprep.mubr.f32.mxu0 0.0
  %235 = vmatmul.mubr.f32.gmra.mxu0 %v107
  %v236 = vpop.f32.mrf.mxu0
  %v237 = vadd.f32 %v79, %v236
  %v238 = vpop.f32.mrf.mxu0
  %239 = vmatprep.mubr.f32.mxu0 0.0
  %240 = vmatmul.mubr.f32.gmra.mxu0 %v110
  %v241 = vpop.f32.mrf.mxu0
  %v242 = vadd.f32 %v79, %v241
  %v243 = vpop.f32.mrf.mxu0
  %244 = vmatprep.mubr.f32.mxu0 0.0
  %245 = vmatmul.mubr.f32.gmra.mxu0 %v113
  %v246 = vpop.f32.mrf.mxu0
  %v247 = vadd.f32 %v79, %v246
  %v248 = vpop.f32.mrf.mxu0
  %249 = vmatprep.mubr.f32.mxu0 0.0
  %250 = vmatmul.mubr.f32.gmra.mxu0 %v116
  %v251 = vpop.f32.mrf.mxu0
  %v252 = vadd.f32 %v79, %v251
  %v253 = vpop.f32.mrf.mxu0
  %254 = vmatprep.mubr.f32.mxu0 0.0
  %255 = vmatmul.mubr.f32.gmra.mxu0 %v119
  %v256 = vpop.f32.mrf.mxu0
  %v257 = vadd.f32 %v79, %v256
  %v258 = vpop.f32.mrf.mxu0
  %259 = vmatprep.mubr.f32.mxu0 0.0
  %260 = vmatmul.mubr.f32.gmra.mxu0 %v122
  %v261 = vpop.f32.mrf.mxu0
  %v262 = vadd.f32 %v79, %v261
  %v263 = vpop.f32.mrf.mxu0
  %264 = vmatprep.mubr.f32.mxu0 0.0
  %265 = vmatmul.mubr.f32.gmra.mxu0 %v125
  %v266 = vpop.f32.mrf.mxu0
  %v267 = vadd.f32 %v79, %v266
  %v268 = vpop.f32.mrf.mxu0
  %269 = vmatprep.mubr.f32.mxu0 0.0
  %270 = vmatmul.mubr.f32.gmra.mxu0 %v128
  %v271 = vpop.f32.mrf.mxu0
  %v272 = vadd.f32 %v79, %v271
  %v273 = vpop.f32.mrf.mxu0
  %274 = vdwg.mxu0
  %v275 = vld [vmem:[%s3] sm:$0xff]
  %v276 = vld [vmem:[%s3 + $0x8] sm:$0xff]
  %v277 = vld [vmem:[%s3 + $0x10] sm:$0xff]
  %v278 = vadd.f32 %v197, %v275
  %v279 = vadd.f32 %v202, %v276
  %v280 = vadd.f32 %v207, %v275
  %v281 = vadd.f32 %v212, %v276
  %v282 = vadd.f32 %v217, %v275
  %v283 = vadd.f32 %v222, %v276
  %v284 = vadd.f32 %v227, %v275
  %v285 = vadd.f32 %v232, %v276
  %v286 = vadd.f32 %v237, %v275
  %v287 = vadd.f32 %v242, %v276
  %v288 = vadd.f32 %v247, %v275
  %v289 = vadd.f32 %v252, %v276
  %v290 = vadd.f32 %v257, %v275
  %v291 = vadd.f32 %v262, %v276
  %v292 = vadd.f32 %v267, %v275
  %v293 = vadd.f32 %v272, %v276
  %vm294 = vcmask 261120
  %295 = vst.msk [vmem:[#allocation2] sm:$0xff] %vm294, %v278
  %296 = vst.msk [vmem:[#allocation2 + $0x8] sm:$0xff] %vm294, %v279
  %297 = vst.msk [vmem:[#allocation2 + $0x18] sm:$0xff] %vm294, %v280
  %298 = vst.msk [vmem:[#allocation2 + $0x20] sm:$0xff] %vm294, %v281
  %299 = vst.msk [vmem:[#allocation2 + $0x30] sm:$0xff] %vm294, %v282
  %300 = vst.msk [vmem:[#allocation2 + $0x38] sm:$0xff] %vm294, %v283
  %301 = vst.msk [vmem:[#allocation2 + $0x48] sm:$0xff] %vm294, %v284
  %302 = vst.msk [vmem:[#allocation2 + $0x50] sm:$0xff] %vm294, %v285
  %303 = vst.msk [vmem:[#allocation2 + $0x60] sm:$0xff] %vm294, %v286
  %304 = vst.msk [vmem:[#allocation2 + $0x68] sm:$0xff] %vm294, %v287
  %305 = vst.msk [vmem:[#allocation2 + $0x78] sm:$0xff] %vm294, %v288
  %306 = vst.msk [vmem:[#allocation2 + $0x80] sm:$0xff] %vm294, %v289
  %307 = vst.msk [vmem:[#allocation2 + $0x90] sm:$0xff] %vm294, %v290
  %308 = vst.msk [vmem:[#allocation2 + $0x98] sm:$0xff] %vm294, %v291
  %309 = vst.msk [vmem:[#allocation2 + $0xa8] sm:$0xff] %vm294, %v292
  %310 = vst.msk [vmem:[#allocation2 + $0xb0] sm:$0xff] %vm294, %v293
  %311 = vst.msk [vmem:[#allocation2 + $0x10] sm:$0xff] %vm294, %v277
  %312 = vst.msk [vmem:[#allocation2 + $0x28] sm:$0xff] %vm294, %v277
  %313 = vst.msk [vmem:[#allocation2 + $0x40] sm:$0xff] %vm294, %v277
  %314 = vst.msk [vmem:[#allocation2 + $0x58] sm:$0xff] %vm294, %v277
  %315 = vst.msk [vmem:[#allocation2 + $0x70] sm:$0xff] %vm294, %v277
  %316 = vst.msk [vmem:[#allocation2 + $0x88] sm:$0xff] %vm294, %v277
  %317 = vst.msk [vmem:[#allocation2 + $0xa0] sm:$0xff] %vm294, %v277
  %318 = vst.msk [vmem:[#allocation2 + $0xb8] sm:$0xff] %vm294, %v277
  %v319 = vld [vmem:[#allocation2] sm:$0xff]
  %v320 = vld [vmem:[#allocation2 + $0x8] sm:$0xff]
  %v321 = vld [vmem:[#allocation2 + $0x10] sm:$0xff]
  %v322 = vld [vmem:[#allocation2 + $0x18] sm:$0xff]
  %v323 = vld [vmem:[#allocation2 + $0x20] sm:$0xff]
  %v324 = vld [vmem:[#allocation2 + $0x28] sm:$0xff]
  %v325 = vld [vmem:[#allocation2 + $0x30] sm:$0xff]
  %v326 = vld [vmem:[#allocation2 + $0x38] sm:$0xff]
  %v327 = vld [vmem:[#allocation2 + $0x40] sm:$0xff]
  %v328 = vld [vmem:[#allocation2 + $0x48] sm:$0xff]
  %v329 = vld [vmem:[#allocation2 + $0x50] sm:$0xff]
  %v330 = vld [vmem:[#allocation2 + $0x58] sm:$0xff]
  %v331 = vld [vmem:[#allocation2 + $0x60] sm:$0xff]
  %v332 = vld [vmem:[#allocation2 + $0x68] sm:$0xff]
  %v333 = vld [vmem:[#allocation2 + $0x70] sm:$0xff]
  %v334 = vld [vmem:[#allocation2 + $0x78] sm:$0xff]
  %v335 = vld [vmem:[#allocation2 + $0x80] sm:$0xff]
  %v336 = vld [vmem:[#allocation2 + $0x88] sm:$0xff]
  %v337 = vld [vmem:[#allocation2 + $0x90] sm:$0xff]
  %v338 = vld [vmem:[#allocation2 + $0x98] sm:$0xff]
  %v339 = vld [vmem:[#allocation2 + $0xa0] sm:$0xff]
  %v340 = vld [vmem:[#allocation2 + $0xa8] sm:$0xff]
  %v341 = vld [vmem:[#allocation2 + $0xb0] sm:$0xff]
  %v342 = vld [vmem:[#allocation2 + $0xb8] sm:$0xff]
  %v343 = vlaneseq
  %v344 = vand.u32 %v343, 127
  %vm345 = vcmp.lt.s32.totalorder %v344, 17
  %v346 = vld [vmem:[%s4] sm:$0x1]
  %v347 = vld [vmem:[%s5] sm:$0x1]
  %v348 = vsel %vm294, %v319, 0.0
  %349 = vadd.xlane.f32.xlu0 %v348
  %v350 = vpop.xlane.xlu0 %349
  %v351 = vsel %vm294, %v320, 0.0
  %352 = vadd.xlane.f32.xlu0 %v351
  %v353 = vpop.xlane.xlu0 %352
  %v354 = vsel %vm294, %v321, 0.0
  %355 = vadd.xlane.f32.xlu0 %v354
  %v356 = vpop.xlane.xlu0 %355
  %v357 = vsel %vm294, %v322, 0.0
  %358 = vadd.xlane.f32.xlu0 %v357
  %v359 = vpop.xlane.xlu0 %358
  %v360 = vsel %vm294, %v323, 0.0
  %361 = vadd.xlane.f32.xlu0 %v360
  %v362 = vpop.xlane.xlu0 %361
  %v363 = vsel %vm294, %v324, 0.0
  %364 = vadd.xlane.f32.xlu0 %v363
  %v365 = vpop.xlane.xlu0 %364
  %v366 = vsel %vm294, %v325, 0.0
  %367 = vadd.xlane.f32.xlu0 %v366
  %v368 = vpop.xlane.xlu0 %367
  %v369 = vsel %vm294, %v326, 0.0
  %370 = vadd.xlane.f32.xlu0 %v369
  %v371 = vpop.xlane.xlu0 %370
  %v372 = vsel %vm294, %v327, 0.0
  %373 = vadd.xlane.f32.xlu0 %v372
  %v374 = vpop.xlane.xlu0 %373
  %v375 = vsel %vm294, %v328, 0.0
  %376 = vadd.xlane.f32.xlu0 %v375
  %v377 = vpop.xlane.xlu0 %376
  %v378 = vsel %vm294, %v329, 0.0
  %379 = vadd.xlane.f32.xlu0 %v378
  %v380 = vpop.xlane.xlu0 %379
  %v381 = vsel %vm294, %v330, 0.0
  %382 = vadd.xlane.f32.xlu0 %v381
  %v383 = vpop.xlane.xlu0 %382
  %v384 = vsel %vm294, %v331, 0.0
  %385 = vadd.xlane.f32.xlu0 %v384
  %v386 = vpop.xlane.xlu0 %385
  %v387 = vsel %vm294, %v332, 0.0
  %388 = vadd.xlane.f32.xlu0 %v387
  %v389 = vpop.xlane.xlu0 %388
  %v390 = vsel %vm294, %v333, 0.0
  %391 = vadd.xlane.f32.xlu0 %v390
  %v392 = vpop.xlane.xlu0 %391
  %v393 = vsel %vm294, %v334, 0.0
  %394 = vadd.xlane.f32.xlu0 %v393
  %v395 = vpop.xlane.xlu0 %394
  %v396 = vsel %vm294, %v335, 0.0
  %397 = vadd.xlane.f32.xlu0 %v396
  %v398 = vpop.xlane.xlu0 %397
  %v399 = vsel %vm294, %v336, 0.0
  %400 = vadd.xlane.f32.xlu0 %v399
  %v401 = vpop.xlane.xlu0 %400
  %v402 = vsel %vm294, %v337, 0.0
  %403 = vadd.xlane.f32.xlu0 %v402
  %v404 = vpop.xlane.xlu0 %403
  %v405 = vsel %vm294, %v338, 0.0
  %406 = vadd.xlane.f32.xlu0 %v405
  %v407 = vpop.xlane.xlu0 %406
  %v408 = vsel %vm294, %v339, 0.0
  %409 = vadd.xlane.f32.xlu0 %v408
  %v410 = vpop.xlane.xlu0 %409
  %v411 = vsel %vm294, %v340, 0.0
  %412 = vadd.xlane.f32.xlu0 %v411
  %v413 = vpop.xlane.xlu0 %412
  %v414 = vsel %vm294, %v341, 0.0
  %415 = vadd.xlane.f32.xlu0 %v414
  %v416 = vpop.xlane.xlu0 %415
  %v417 = vsel %vm294, %v342, 0.0
  %418 = vadd.xlane.f32.xlu0 %v417
  %v419 = vpop.xlane.xlu0 %418
  %v420 = vrcp.pop 32.0
  %v421 = vmul.f32 %v350, %v420
  %v422 = vmul.f32 %v353, %v420
  %v423 = vmul.f32 %v356, %v420
  %v424 = vmul.f32 %v359, %v420
  %v425 = vmul.f32 %v362, %v420
  %v426 = vmul.f32 %v365, %v420
  %v427 = vmul.f32 %v368, %v420
  %v428 = vmul.f32 %v371, %v420
  %v429 = vmul.f32 %v374, %v420
  %v430 = vmul.f32 %v377, %v420
  %v431 = vmul.f32 %v380, %v420
  %v432 = vmul.f32 %v383, %v420
  %v433 = vmul.f32 %v386, %v420
  %v434 = vmul.f32 %v389, %v420
  %v435 = vmul.f32 %v392, %v420
  %v436 = vmul.f32 %v395, %v420
  %v437 = vmul.f32 %v398, %v420
  %v438 = vmul.f32 %v401, %v420
  %v439 = vmul.f32 %v404, %v420
  %v440 = vmul.f32 %v407, %v420
  %v441 = vmul.f32 %v410, %v420
  %v442 = vmul.f32 %v413, %v420
  %v443 = vmul.f32 %v416, %v420
  %v444 = vmul.f32 %v419, %v420
  %v445 = vsub.f32 %v319, %v421
  %v446 = vsub.f32 %v320, %v422
  %v447 = vsub.f32 %v321, %v423
  %v448 = vsub.f32 %v322, %v424
  %v449 = vsub.f32 %v323, %v425
  %v450 = vsub.f32 %v324, %v426
  %v451 = vsub.f32 %v325, %v427
  %v452 = vsub.f32 %v326, %v428
  %v453 = vsub.f32 %v327, %v429
  %v454 = vsub.f32 %v328, %v430
  %v455 = vsub.f32 %v329, %v431
  %v456 = vsub.f32 %v330, %v432
  %v457 = vsub.f32 %v331, %v433
  %v458 = vsub.f32 %v332, %v434
  %v459 = vsub.f32 %v333, %v435
  %v460 = vsub.f32 %v334, %v436
  %v461 = vsub.f32 %v335, %v437
  %v462 = vsub.f32 %v336, %v438
  %v463 = vsub.f32 %v337, %v439
  %v464 = vsub.f32 %v338, %v440
  %v465 = vsub.f32 %v339, %v441
  %v466 = vsub.f32 %v340, %v442
  %v467 = vsub.f32 %v341, %v443
  %v468 = vsub.f32 %v342, %v444
  %v469 = vmul.f32 %v445, %v445
  %v470 = vmul.f32 %v446, %v446
  %v471 = vmul.f32 %v447, %v447
  %v472 = vmul.f32 %v448, %v448
  %v473 = vmul.f32 %v449, %v449
  %v474 = vmul.f32 %v450, %v450
  %v475 = vmul.f32 %v451, %v451
  %v476 = vmul.f32 %v452, %v452
  %v477 = vmul.f32 %v453, %v453
  %v478 = vmul.f32 %v454, %v454
  %v479 = vmul.f32 %v455, %v455
  %v480 = vmul.f32 %v456, %v456
  %v481 = vmul.f32 %v457, %v457
  %v482 = vmul.f32 %v458, %v458
  %v483 = vmul.f32 %v459, %v459
  %v484 = vmul.f32 %v460, %v460
  %v485 = vmul.f32 %v461, %v461
  %v486 = vmul.f32 %v462, %v462
  %v487 = vmul.f32 %v463, %v463
  %v488 = vmul.f32 %v464, %v464
  %v489 = vmul.f32 %v465, %v465
  %v490 = vmul.f32 %v466, %v466
  %v491 = vmul.f32 %v467, %v467
  %v492 = vmul.f32 %v468, %v468
  %v493 = vsel %vm294, %v469, 0.0
  %494 = vadd.xlane.f32.xlu0 %v493
  %v495 = vpop.xlane.xlu0 %494
  %v496 = vsel %vm294, %v470, 0.0
  %497 = vadd.xlane.f32.xlu0 %v496
  %v498 = vpop.xlane.xlu0 %497
  %v499 = vsel %vm294, %v471, 0.0
  %500 = vadd.xlane.f32.xlu0 %v499
  %v501 = vpop.xlane.xlu0 %500
  %v502 = vsel %vm294, %v472, 0.0
  %503 = vadd.xlane.f32.xlu0 %v502
  %v504 = vpop.xlane.xlu0 %503
  %v505 = vsel %vm294, %v473, 0.0
  %506 = vadd.xlane.f32.xlu0 %v505
  %v507 = vpop.xlane.xlu0 %506
  %v508 = vsel %vm294, %v474, 0.0
  %509 = vadd.xlane.f32.xlu0 %v508
  %v510 = vpop.xlane.xlu0 %509
  %v511 = vsel %vm294, %v475, 0.0
  %512 = vadd.xlane.f32.xlu0 %v511
  %v513 = vpop.xlane.xlu0 %512
  %v514 = vsel %vm294, %v476, 0.0
  %515 = vadd.xlane.f32.xlu0 %v514
  %v516 = vpop.xlane.xlu0 %515
  %v517 = vsel %vm294, %v477, 0.0
  %518 = vadd.xlane.f32.xlu0 %v517
  %v519 = vpop.xlane.xlu0 %518
  %v520 = vsel %vm294, %v478, 0.0
  %521 = vadd.xlane.f32.xlu0 %v520
  %v522 = vpop.xlane.xlu0 %521
  %v523 = vsel %vm294, %v479, 0.0
  %524 = vadd.xlane.f32.xlu0 %v523
  %v525 = vpop.xlane.xlu0 %524
  %v526 = vsel %vm294, %v480, 0.0
  %527 = vadd.xlane.f32.xlu0 %v526
  %v528 = vpop.xlane.xlu0 %527
  %v529 = vsel %vm294, %v481, 0.0
  %530 = vadd.xlane.f32.xlu0 %v529
  %v531 = vpop.xlane.xlu0 %530
  %v532 = vsel %vm294, %v482, 0.0
  %533 = vadd.xlane.f32.xlu0 %v532
  %v534 = vpop.xlane.xlu0 %533
  %v535 = vsel %vm294, %v483, 0.0
  %536 = vadd.xlane.f32.xlu0 %v535
  %v537 = vpop.xlane.xlu0 %536
  %v538 = vsel %vm294, %v484, 0.0
  %539 = vadd.xlane.f32.xlu0 %v538
  %v540 = vpop.xlane.xlu0 %539
  %v541 = vsel %vm294, %v485, 0.0
  %542 = vadd.xlane.f32.xlu0 %v541
  %v543 = vpop.xlane.xlu0 %542
  %v544 = vsel %vm294, %v486, 0.0
  %545 = vadd.xlane.f32.xlu0 %v544
  %v546 = vpop.xlane.xlu0 %545
  %v547 = vsel %vm294, %v487, 0.0
  %548 = vadd.xlane.f32.xlu0 %v547
  %v549 = vpop.xlane.xlu0 %548
  %v550 = vsel %vm294, %v488, 0.0
  %551 = vadd.xlane.f32.xlu0 %v550
  %v552 = vpop.xlane.xlu0 %551
  %v553 = vsel %vm294, %v489, 0.0
  %554 = vadd.xlane.f32.xlu0 %v553
  %v555 = vpop.xlane.xlu0 %554
  %v556 = vsel %vm294, %v490, 0.0
  %557 = vadd.xlane.f32.xlu0 %v556
  %v558 = vpop.xlane.xlu0 %557
  %v559 = vsel %vm294, %v491, 0.0
  %560 = vadd.xlane.f32.xlu0 %v559
  %v561 = vpop.xlane.xlu0 %560
  %v562 = vsel %vm294, %v492, 0.0
  %563 = vadd.xlane.f32.xlu0 %v562
  %v564 = vpop.xlane.xlu0 %563
  %v565 = vmul.f32 %v495, %v420
  %v566 = vmul.f32 %v498, %v420
  %v567 = vmul.f32 %v501, %v420
  %v568 = vmul.f32 %v504, %v420
  %v569 = vmul.f32 %v507, %v420
  %v570 = vmul.f32 %v510, %v420
  %v571 = vmul.f32 %v513, %v420
  %v572 = vmul.f32 %v516, %v420
  %v573 = vmul.f32 %v519, %v420
  %v574 = vmul.f32 %v522, %v420
  %v575 = vmul.f32 %v525, %v420
  %v576 = vmul.f32 %v528, %v420
  %v577 = vmul.f32 %v531, %v420
  %v578 = vmul.f32 %v534, %v420
  %v579 = vmul.f32 %v537, %v420
  %v580 = vmul.f32 %v540, %v420
  %v581 = vmul.f32 %v543, %v420
  %v582 = vmul.f32 %v546, %v420
  %v583 = vmul.f32 %v549, %v420
  %v584 = vmul.f32 %v552, %v420
  %v585 = vmul.f32 %v555, %v420
  %v586 = vmul.f32 %v558, %v420
  %v587 = vmul.f32 %v561, %v420
  %v588 = vmul.f32 %v564, %v420
  %v589 = vadd.f32 %v565, 1e-05
  %v590 = vadd.f32 %v566, 1e-05
  %v591 = vadd.f32 %v567, 1e-05
  %v592 = vadd.f32 %v568, 1e-05
  %v593 = vadd.f32 %v569, 1e-05
  %v594 = vadd.f32 %v570, 1e-05
  %v595 = vadd.f32 %v571, 1e-05
  %v596 = vadd.f32 %v572, 1e-05
  %v597 = vadd.f32 %v573, 1e-05
  %v598 = vadd.f32 %v574, 1e-05
  %v599 = vadd.f32 %v575, 1e-05
  %v600 = vadd.f32 %v576, 1e-05
  %v601 = vadd.f32 %v577, 1e-05
  %v602 = vadd.f32 %v578, 1e-05
  %v603 = vadd.f32 %v579, 1e-05
  %v604 = vadd.f32 %v580, 1e-05
  %v605 = vadd.f32 %v581, 1e-05
  %v606 = vadd.f32 %v582, 1e-05
  %v607 = vadd.f32 %v583, 1e-05
  %v608 = vadd.f32 %v584, 1e-05
  %v609 = vadd.f32 %v585, 1e-05
  %v610 = vadd.f32 %v586, 1e-05
  %v611 = vadd.f32 %v587, 1e-05
  %v612 = vadd.f32 %v588, 1e-05
  %v613 = vrsqrt.pop %v589
  %v614 = vrsqrt.pop %v590
  %v615 = vrsqrt.pop %v591
  %v616 = vrsqrt.pop %v592
  %v617 = vrsqrt.pop %v593
  %v618 = vrsqrt.pop %v594
  %v619 = vrsqrt.pop %v595
  %v620 = vrsqrt.pop %v596
  %v621 = vrsqrt.pop %v597
  %v622 = vrsqrt.pop %v598
  %v623 = vrsqrt.pop %v599
  %v624 = vrsqrt.pop %v600
  %v625 = vrsqrt.pop %v601
  %v626 = vrsqrt.pop %v602
  %v627 = vrsqrt.pop %v603
  %v628 = vrsqrt.pop %v604
  %v629 = vrsqrt.pop %v605
  %v630 = vrsqrt.pop %v606
  %v631 = vrsqrt.pop %v607
  %v632 = vrsqrt.pop %v608
  %v633 = vrsqrt.pop %v609
  %v634 = vrsqrt.pop %v610
  %v635 = vrsqrt.pop %v611
  %v636 = vrsqrt.pop %v612
  %v637 = vmul.f32 %v445, %v613
  %v638 = vmul.f32 %v446, %v614
  %v639 = vmul.f32 %v447, %v615
  %v640 = vmul.f32 %v448, %v616
  %v641 = vmul.f32 %v449, %v617
  %v642 = vmul.f32 %v450, %v618
  %v643 = vmul.f32 %v451, %v619
  %v644 = vmul.f32 %v452, %v620
  %v645 = vmul.f32 %v453, %v621
  %v646 = vmul.f32 %v454, %v622
  %v647 = vmul.f32 %v455, %v623
  %v648 = vmul.f32 %v456, %v624
  %v649 = vmul.f32 %v457, %v625
  %v650 = vmul.f32 %v458, %v626
  %v651 = vmul.f32 %v459, %v627
  %v652 = vmul.f32 %v460, %v628
  %v653 = vmul.f32 %v461, %v629
  %v654 = vmul.f32 %v462, %v630
  %v655 = vmul.f32 %v463, %v631
  %v656 = vmul.f32 %v464, %v632
  %v657 = vmul.f32 %v465, %v633
  %v658 = vmul.f32 %v466, %v634
  %v659 = vmul.f32 %v467, %v635
  %v660 = vmul.f32 %v468, %v636
  %v661 = vlaneseq
  %v662 = vshrl.u32 %v661, 7
  %v663 = vsub.s32 0, %v662
  %v664 = vrot.slane %v346, %v663
  %v665 = vmul.f32 %v637, %v664
  %v666 = vmul.f32 %v638, %v664
  %v667 = vmul.f32 %v639, %v664
  %v668 = vmul.f32 %v640, %v664
  %v669 = vmul.f32 %v641, %v664
  %v670 = vmul.f32 %v642, %v664
  %v671 = vmul.f32 %v643, %v664
  %v672 = vmul.f32 %v644, %v664
  %v673 = vmul.f32 %v645, %v664
  %v674 = vmul.f32 %v646, %v664
  %v675 = vmul.f32 %v647, %v664
  %v676 = vmul.f32 %v648, %v664
  %v677 = vmul.f32 %v649, %v664
  %v678 = vmul.f32 %v650, %v664
  %v679 = vmul.f32 %v651, %v664
  %v680 = vmul.f32 %v652, %v664
  %v681 = vmul.f32 %v653, %v664
  %v682 = vmul.f32 %v654, %v664
  %v683 = vmul.f32 %v655, %v664
  %v684 = vmul.f32 %v656, %v664
  %v685 = vmul.f32 %v657, %v664
  %v686 = vmul.f32 %v658, %v664
  %v687 = vmul.f32 %v659, %v664
  %v688 = vmul.f32 %v660, %v664
  %v689 = vlaneseq
  %v690 = vshrl.u32 %v689, 7
  %v691 = vsub.s32 0, %v690
  %v692 = vrot.slane %v347, %v691
  %v693 = vadd.f32 %v665, %v692
  %v694 = vadd.f32 %v666, %v692
  %v695 = vadd.f32 %v667, %v692
  %v696 = vadd.f32 %v668, %v692
  %v697 = vadd.f32 %v669, %v692
  %v698 = vadd.f32 %v670, %v692
  %v699 = vadd.f32 %v671, %v692
  %v700 = vadd.f32 %v672, %v692
  %v701 = vadd.f32 %v673, %v692
  %v702 = vadd.f32 %v674, %v692
  %v703 = vadd.f32 %v675, %v692
  %v704 = vadd.f32 %v676, %v692
  %v705 = vadd.f32 %v677, %v692
  %v706 = vadd.f32 %v678, %v692
  %v707 = vadd.f32 %v679, %v692
  %v708 = vadd.f32 %v680, %v692
  %v709 = vadd.f32 %v681, %v692
  %v710 = vadd.f32 %v682, %v692
  %v711 = vadd.f32 %v683, %v692
  %v712 = vadd.f32 %v684, %v692
  %v713 = vadd.f32 %v685, %v692
  %v714 = vadd.f32 %v686, %v692
  %v715 = vadd.f32 %v687, %v692
  %v716 = vadd.f32 %v688, %v692
  %v717 = vld [vmem:[%s6] sm:$0xff]
  %v718 = vld [vmem:[%s6 + $0x8] sm:$0xff]
  %v719 = vld [vmem:[%s6 + $0x10] sm:$0xff]
  %v720 = vld [vmem:[%s6 + $0x18] sm:$0xff]
  %v722 = vsel %vm294, %v693, 0
  %v725 = vsel %vm294, %v694, 0
  %v728 = vsel %vm294, %v695, 0
  %v731 = vsel %vm294, %v696, 0
  %v734 = vsel %vm294, %v697, 0
  %v737 = vsel %vm294, %v698, 0
  %v740 = vsel %vm294, %v699, 0
  %v743 = vsel %vm294, %v700, 0
  %v746 = vsel %vm294, %v701, 0
  %v749 = vsel %vm294, %v702, 0
  %v752 = vsel %vm294, %v703, 0
  %v755 = vsel %vm294, %v704, 0
  %v758 = vsel %vm294, %v705, 0
  %v761 = vsel %vm294, %v706, 0
  %v764 = vsel %vm294, %v707, 0
  %v767 = vsel %vm294, %v708, 0
  %v770 = vsel %vm294, %v709, 0
  %v773 = vsel %vm294, %v710, 0
  %v776 = vsel %vm294, %v711, 0
  %v779 = vsel %vm294, %v712, 0
  %v782 = vsel %vm294, %v713, 0
  %v785 = vsel %vm294, %v714, 0
  %v788 = vsel %vm294, %v715, 0
  %v791 = vsel %vm294, %v716, 0
  %793 = vmatprep.subr.mxu0 0.0
  %794 = vmatpush1.msra.mxu0 0.0
  %795 = vmatprep.subr.mxu0 0.0
  %796 = vmatpush1.msra.mxu0 0.0
  %797 = vmatprep.subr.mxu0 0.0
  %798 = vmatpush1.msra.mxu0 0.0
  %799 = vmatprep.subr.mxu0 0.0
  %800 = vmatpush1.msra.mxu0 0.0
  %801 = vmatprep.subr.mxu0 0.0
  %802 = vmatpush1.msra.mxu0 0.0
  %803 = vmatprep.subr.mxu0 0.0
  %804 = vmatpush1.msra.mxu0 0.0
  %805 = vmatprep.subr.mxu0 0.0
  %806 = vmatpush1.msra.mxu0 0.0
  %807 = vmatprep.subr.mxu0 0.0
  %808 = vmatpush1.msra.mxu0 0.0
  %809 = vmatprep.subr.mxu0 0.0
  %810 = vmatpush1.msra.mxu0 0.0
  %811 = vmatprep.subr.mxu0 0.0
  %812 = vmatpush1.msra.mxu0 0.0
  %813 = vmatprep.subr.mxu0 0.0
  %814 = vmatpush1.msra.mxu0 0.0
  %815 = vmatprep.subr.mxu0 0.0
  %816 = vmatpush1.msra.mxu0 0.0
  %817 = vmatprep.subr.mxu0 0.0
  %818 = vmatpush1.msra.mxu0 %v720
  %819 = vmatprep.subr.mxu0 0.0
  %820 = vmatpush1.msra.mxu0 %v719
  %821 = vmatprep.subr.mxu0 0.0
  %822 = vmatpush1.msra.mxu0 %v718
  %823 = vmatprep.subr.mxu0 0.0
  %824 = vmatpush1.msra.mxu0 %v717
  %825 = vmatprep.subr.mxu0 0.0
  %826 = vmatpush2.msra.mxu0 0.0
  %827 = vmatprep.subr.mxu0 0.0
  %828 = vmatpush2.msra.mxu0 0.0
  %829 = vmatprep.subr.mxu0 0.0
  %830 = vmatpush2.msra.mxu0 0.0
  %831 = vmatprep.subr.mxu0 0.0
  %832 = vmatpush2.msra.mxu0 0.0
  %833 = vmatprep.subr.mxu0 0.0
  %834 = vmatpush2.msra.mxu0 0.0
  %835 = vmatprep.subr.mxu0 0.0
  %836 = vmatpush2.msra.mxu0 0.0
  %837 = vmatprep.subr.mxu0 0.0
  %838 = vmatpush2.msra.mxu0 0.0
  %839 = vmatprep.subr.mxu0 0.0
  %840 = vmatpush2.msra.mxu0 0.0
  %841 = vmatprep.subr.mxu0 0.0
  %842 = vmatpush2.msra.mxu0 0.0
  %843 = vmatprep.subr.mxu0 0.0
  %844 = vmatpush2.msra.mxu0 0.0
  %845 = vmatprep.subr.mxu0 0.0
  %846 = vmatpush2.msra.mxu0 0.0
  %847 = vmatprep.subr.mxu0 0.0
  %848 = vmatpush2.msra.mxu0 0.0
  %849 = vmatprep.subr.mxu0 0.0
  %850 = vmatpush2.msra.mxu0 0.0
  %851 = vmatprep.subr.mxu0 0.0
  %852 = vmatpush2.msra.mxu0 0.0
  %853 = vmatprep.subr.mxu0 0.0
  %854 = vmatpush2.msra.mxu0 0.0
  %855 = vmatprep.subr.mxu0 0.0
  %856 = vmatpush2.msra.mxu0 0.0
  %857 = vmatprep.mubr.f32.mxu0 0.0
  %858 = vmatmul.mubr.f32.gmra.mxu0 %v722
  %v859 = vpop.f32.mrf.mxu0
  %v860 = vadd.f32 0.0, %v859
  %v861 = vpop.f32.mrf.mxu0
  %862 = vmatprep.mubr.f32.mxu0 0.0
  %863 = vmatmul.mubr.f32.gmra.mxu0 %v725
  %v864 = vpop.f32.mrf.mxu0
  %v865 = vadd.f32 0.0, %v864
  %v866 = vpop.f32.mrf.mxu0
  %867 = vmatprep.mubr.f32.mxu0 0.0
  %868 = vmatmul.mubr.f32.gmra.mxu0 %v728
  %v869 = vpop.f32.mrf.mxu0
  %v870 = vadd.f32 0.0, %v869
  %v871 = vpop.f32.mrf.mxu0
  %872 = vmatprep.mubr.f32.mxu0 0.0
  %873 = vmatmul.mubr.f32.gmra.mxu0 %v731
  %v874 = vpop.f32.mrf.mxu0
  %v875 = vadd.f32 0.0, %v874
  %v876 = vpop.f32.mrf.mxu0
  %877 = vmatprep.mubr.f32.mxu0 0.0
  %878 = vmatmul.mubr.f32.gmra.mxu0 %v734
  %v879 = vpop.f32.mrf.mxu0
  %v880 = vadd.f32 0.0, %v879
  %v881 = vpop.f32.mrf.mxu0
  %882 = vmatprep.mubr.f32.mxu0 0.0
  %883 = vmatmul.mubr.f32.gmra.mxu0 %v737
  %v884 = vpop.f32.mrf.mxu0
  %v885 = vadd.f32 0.0, %v884
  %v886 = vpop.f32.mrf.mxu0
  %887 = vmatprep.mubr.f32.mxu0 0.0
  %888 = vmatmul.mubr.f32.gmra.mxu0 %v740
  %v889 = vpop.f32.mrf.mxu0
  %v890 = vadd.f32 0.0, %v889
  %v891 = vpop.f32.mrf.mxu0
  %892 = vmatprep.mubr.f32.mxu0 0.0
  %893 = vmatmul.mubr.f32.gmra.mxu0 %v743
  %v894 = vpop.f32.mrf.mxu0
  %v895 = vadd.f32 0.0, %v894
  %v896 = vpop.f32.mrf.mxu0
  %897 = vmatprep.mubr.f32.mxu0 0.0
  %898 = vmatmul.mubr.f32.gmra.mxu0 %v746
  %v899 = vpop.f32.mrf.mxu0
  %v900 = vadd.f32 0.0, %v899
  %v901 = vpop.f32.mrf.mxu0
  %902 = vmatprep.mubr.f32.mxu0 0.0
  %903 = vmatmul.mubr.f32.gmra.mxu0 %v749
  %v904 = vpop.f32.mrf.mxu0
  %v905 = vadd.f32 0.0, %v904
  %v906 = vpop.f32.mrf.mxu0
  %907 = vmatprep.mubr.f32.mxu0 0.0
  %908 = vmatmul.mubr.f32.gmra.mxu0 %v752
  %v909 = vpop.f32.mrf.mxu0
  %v910 = vadd.f32 0.0, %v909
  %v911 = vpop.f32.mrf.mxu0
  %912 = vmatprep.mubr.f32.mxu0 0.0
  %913 = vmatmul.mubr.f32.gmra.mxu0 %v755
  %v914 = vpop.f32.mrf.mxu0
  %v915 = vadd.f32 0.0, %v914
  %v916 = vpop.f32.mrf.mxu0
  %917 = vmatprep.mubr.f32.mxu0 0.0
  %918 = vmatmul.mubr.f32.gmra.mxu0 %v758
  %v919 = vpop.f32.mrf.mxu0
  %v920 = vadd.f32 0.0, %v919
  %v921 = vpop.f32.mrf.mxu0
  %922 = vmatprep.mubr.f32.mxu0 0.0
  %923 = vmatmul.mubr.f32.gmra.mxu0 %v761
  %v924 = vpop.f32.mrf.mxu0
  %v925 = vadd.f32 0.0, %v924
  %v926 = vpop.f32.mrf.mxu0
  %927 = vmatprep.mubr.f32.mxu0 0.0
  %928 = vmatmul.mubr.f32.gmra.mxu0 %v764
  %v929 = vpop.f32.mrf.mxu0
  %v930 = vadd.f32 0.0, %v929
  %v931 = vpop.f32.mrf.mxu0
  %932 = vmatprep.mubr.f32.mxu0 0.0
  %933 = vmatmul.mubr.f32.gmra.mxu0 %v767
  %v934 = vpop.f32.mrf.mxu0
  %v935 = vadd.f32 0.0, %v934
  %v936 = vpop.f32.mrf.mxu0
  %937 = vmatprep.mubr.f32.mxu0 0.0
  %938 = vmatmul.mubr.f32.gmra.mxu0 %v770
  %v939 = vpop.f32.mrf.mxu0
  %v940 = vadd.f32 0.0, %v939
  %v941 = vpop.f32.mrf.mxu0
  %942 = vmatprep.mubr.f32.mxu0 0.0
  %943 = vmatmul.mubr.f32.gmra.mxu0 %v773
  %v944 = vpop.f32.mrf.mxu0
  %v945 = vadd.f32 0.0, %v944
  %v946 = vpop.f32.mrf.mxu0
  %947 = vmatprep.mubr.f32.mxu0 0.0
  %948 = vmatmul.mubr.f32.gmra.mxu0 %v776
  %v949 = vpop.f32.mrf.mxu0
  %v950 = vadd.f32 0.0, %v949
  %v951 = vpop.f32.mrf.mxu0
  %952 = vmatprep.mubr.f32.mxu0 0.0
  %953 = vmatmul.mubr.f32.gmra.mxu0 %v779
  %v954 = vpop.f32.mrf.mxu0
  %v955 = vadd.f32 0.0, %v954
  %v956 = vpop.f32.mrf.mxu0
  %957 = vmatprep.mubr.f32.mxu0 0.0
  %958 = vmatmul.mubr.f32.gmra.mxu0 %v782
  %v959 = vpop.f32.mrf.mxu0
  %v960 = vadd.f32 0.0, %v959
  %v961 = vpop.f32.mrf.mxu0
  %962 = vmatprep.mubr.f32.mxu0 0.0
  %963 = vmatmul.mubr.f32.gmra.mxu0 %v785
  %v964 = vpop.f32.mrf.mxu0
  %v965 = vadd.f32 0.0, %v964
  %v966 = vpop.f32.mrf.mxu0
  %967 = vmatprep.mubr.f32.mxu0 0.0
  %968 = vmatmul.mubr.f32.gmra.mxu0 %v788
  %v969 = vpop.f32.mrf.mxu0
  %v970 = vadd.f32 0.0, %v969
  %v971 = vpop.f32.mrf.mxu0
  %972 = vmatprep.mubr.f32.mxu0 0.0
  %973 = vmatmul.mubr.f32.gmra.mxu0 %v791
  %v974 = vpop.f32.mrf.mxu0
  %v975 = vadd.f32 0.0, %v974
  %v976 = vpop.f32.mrf.mxu0
  %977 = vdwg.mxu0
  %v978 = vld [vmem:[%s7] sm:$0xff]
  %v979 = vld [vmem:[%s7 + $0x8] sm:$0xff]
  %v980 = vld [vmem:[%s7 + $0x10] sm:$0xff]
  %v981 = vld [vmem:[%s7 + $0x18] sm:$0xff]
  %982 = vmatprep.subr.mxu0 0.0
  %983 = vmatpush1.msra.mxu0 0.0
  %984 = vmatprep.subr.mxu0 0.0
  %985 = vmatpush1.msra.mxu0 0.0
  %986 = vmatprep.subr.mxu0 0.0
  %987 = vmatpush1.msra.mxu0 0.0
  %988 = vmatprep.subr.mxu0 0.0
  %989 = vmatpush1.msra.mxu0 0.0
  %990 = vmatprep.subr.mxu0 0.0
  %991 = vmatpush1.msra.mxu0 0.0
  %992 = vmatprep.subr.mxu0 0.0
  %993 = vmatpush1.msra.mxu0 0.0
  %994 = vmatprep.subr.mxu0 0.0
  %995 = vmatpush1.msra.mxu0 0.0
  %996 = vmatprep.subr.mxu0 0.0
  %997 = vmatpush1.msra.mxu0 0.0
  %998 = vmatprep.subr.mxu0 0.0
  %999 = vmatpush1.msra.mxu0 0.0
  %1000 = vmatprep.subr.mxu0 0.0
  %1001 = vmatpush1.msra.mxu0 0.0
  %1002 = vmatprep.subr.mxu0 0.0
  %1003 = vmatpush1.msra.mxu0 0.0
  %1004 = vmatprep.subr.mxu0 0.0
  %1005 = vmatpush1.msra.mxu0 0.0
  %1006 = vmatprep.subr.mxu0 0.0
  %1007 = vmatpush1.msra.mxu0 %v981
  %1008 = vmatprep.subr.mxu0 0.0
  %1009 = vmatpush1.msra.mxu0 %v980
  %1010 = vmatprep.subr.mxu0 0.0
  %1011 = vmatpush1.msra.mxu0 %v979
  %1012 = vmatprep.subr.mxu0 0.0
  %1013 = vmatpush1.msra.mxu0 %v978
  %1014 = vmatprep.subr.mxu0 0.0
  %1015 = vmatpush2.msra.mxu0 0.0
  %1016 = vmatprep.subr.mxu0 0.0
  %1017 = vmatpush2.msra.mxu0 0.0
  %1018 = vmatprep.subr.mxu0 0.0
  %1019 = vmatpush2.msra.mxu0 0.0
  %1020 = vmatprep.subr.mxu0 0.0
  %1021 = vmatpush2.msra.mxu0 0.0
  %1022 = vmatprep.subr.mxu0 0.0
  %1023 = vmatpush2.msra.mxu0 0.0
  %1024 = vmatprep.subr.mxu0 0.0
  %1025 = vmatpush2.msra.mxu0 0.0
  %1026 = vmatprep.subr.mxu0 0.0
  %1027 = vmatpush2.msra.mxu0 0.0
  %1028 = vmatprep.subr.mxu0 0.0
  %1029 = vmatpush2.msra.mxu0 0.0
  %1030 = vmatprep.subr.mxu0 0.0
  %1031 = vmatpush2.msra.mxu0 0.0
  %1032 = vmatprep.subr.mxu0 0.0
  %1033 = vmatpush2.msra.mxu0 0.0
  %1034 = vmatprep.subr.mxu0 0.0
  %1035 = vmatpush2.msra.mxu0 0.0
  %1036 = vmatprep.subr.mxu0 0.0
  %1037 = vmatpush2.msra.mxu0 0.0
  %1038 = vmatprep.subr.mxu0 0.0
  %1039 = vmatpush2.msra.mxu0 0.0
  %1040 = vmatprep.subr.mxu0 0.0
  %1041 = vmatpush2.msra.mxu0 0.0
  %1042 = vmatprep.subr.mxu0 0.0
  %1043 = vmatpush2.msra.mxu0 0.0
  %1044 = vmatprep.subr.mxu0 0.0
  %1045 = vmatpush2.msra.mxu0 0.0
  %1046 = vmatprep.mubr.f32.mxu0 0.0
  %1047 = vmatmul.mubr.f32.gmra.mxu0 %v722
  %v1048 = vpop.f32.mrf.mxu0
  %v1049 = vadd.f32 0.0, %v1048
  %v1050 = vpop.f32.mrf.mxu0
  %1051 = vmatprep.mubr.f32.mxu0 0.0
  %1052 = vmatmul.mubr.f32.gmra.mxu0 %v725
  %v1053 = vpop.f32.mrf.mxu0
  %v1054 = vadd.f32 0.0, %v1053
  %v1055 = vpop.f32.mrf.mxu0
  %1056 = vmatprep.mubr.f32.mxu0 0.0
  %1057 = vmatmul.mubr.f32.gmra.mxu0 %v728
  %v1058 = vpop.f32.mrf.mxu0
  %v1059 = vadd.f32 0.0, %v1058
  %v1060 = vpop.f32.mrf.mxu0
  %1061 = vmatprep.mubr.f32.mxu0 0.0
  %1062 = vmatmul.mubr.f32.gmra.mxu0 %v731
  %v1063 = vpop.f32.mrf.mxu0
  %v1064 = vadd.f32 0.0, %v1063
  %v1065 = vpop.f32.mrf.mxu0
  %1066 = vmatprep.mubr.f32.mxu0 0.0
  %1067 = vmatmul.mubr.f32.gmra.mxu0 %v734
  %v1068 = vpop.f32.mrf.mxu0
  %v1069 = vadd.f32 0.0, %v1068
  %v1070 = vpop.f32.mrf.mxu0
  %1071 = vmatprep.mubr.f32.mxu0 0.0
  %1072 = vmatmul.mubr.f32.gmra.mxu0 %v737
  %v1073 = vpop.f32.mrf.mxu0
  %v1074 = vadd.f32 0.0, %v1073
  %v1075 = vpop.f32.mrf.mxu0
  %1076 = vmatprep.mubr.f32.mxu0 0.0
  %1077 = vmatmul.mubr.f32.gmra.mxu0 %v740
  %v1078 = vpop.f32.mrf.mxu0
  %v1079 = vadd.f32 0.0, %v1078
  %v1080 = vpop.f32.mrf.mxu0
  %1081 = vmatprep.mubr.f32.mxu0 0.0
  %1082 = vmatmul.mubr.f32.gmra.mxu0 %v743
  %v1083 = vpop.f32.mrf.mxu0
  %v1084 = vadd.f32 0.0, %v1083
  %v1085 = vpop.f32.mrf.mxu0
  %1086 = vmatprep.mubr.f32.mxu0 0.0
  %1087 = vmatmul.mubr.f32.gmra.mxu0 %v746
  %v1088 = vpop.f32.mrf.mxu0
  %v1089 = vadd.f32 0.0, %v1088
  %v1090 = vpop.f32.mrf.mxu0
  %1091 = vmatprep.mubr.f32.mxu0 0.0
  %1092 = vmatmul.mubr.f32.gmra.mxu0 %v749
  %v1093 = vpop.f32.mrf.mxu0
  %v1094 = vadd.f32 0.0, %v1093
  %v1095 = vpop.f32.mrf.mxu0
  %1096 = vmatprep.mubr.f32.mxu0 0.0
  %1097 = vmatmul.mubr.f32.gmra.mxu0 %v752
  %v1098 = vpop.f32.mrf.mxu0
  %v1099 = vadd.f32 0.0, %v1098
  %v1100 = vpop.f32.mrf.mxu0
  %1101 = vmatprep.mubr.f32.mxu0 0.0
  %1102 = vmatmul.mubr.f32.gmra.mxu0 %v755
  %v1103 = vpop.f32.mrf.mxu0
  %v1104 = vadd.f32 0.0, %v1103
  %v1105 = vpop.f32.mrf.mxu0
  %1106 = vmatprep.mubr.f32.mxu0 0.0
  %1107 = vmatmul.mubr.f32.gmra.mxu0 %v758
  %v1108 = vpop.f32.mrf.mxu0
  %v1109 = vadd.f32 0.0, %v1108
  %v1110 = vpop.f32.mrf.mxu0
  %1111 = vmatprep.mubr.f32.mxu0 0.0
  %1112 = vmatmul.mubr.f32.gmra.mxu0 %v761
  %v1113 = vpop.f32.mrf.mxu0
  %v1114 = vadd.f32 0.0, %v1113
  %v1115 = vpop.f32.mrf.mxu0
  %1116 = vmatprep.mubr.f32.mxu0 0.0
  %1117 = vmatmul.mubr.f32.gmra.mxu0 %v764
  %v1118 = vpop.f32.mrf.mxu0
  %v1119 = vadd.f32 0.0, %v1118
  %v1120 = vpop.f32.mrf.mxu0
  %1121 = vmatprep.mubr.f32.mxu0 0.0
  %1122 = vmatmul.mubr.f32.gmra.mxu0 %v767
  %v1123 = vpop.f32.mrf.mxu0
  %v1124 = vadd.f32 0.0, %v1123
  %v1125 = vpop.f32.mrf.mxu0
  %1126 = vmatprep.mubr.f32.mxu0 0.0
  %1127 = vmatmul.mubr.f32.gmra.mxu0 %v770
  %v1128 = vpop.f32.mrf.mxu0
  %v1129 = vadd.f32 0.0, %v1128
  %v1130 = vpop.f32.mrf.mxu0
  %1131 = vmatprep.mubr.f32.mxu0 0.0
  %1132 = vmatmul.mubr.f32.gmra.mxu0 %v773
  %v1133 = vpop.f32.mrf.mxu0
  %v1134 = vadd.f32 0.0, %v1133
  %v1135 = vpop.f32.mrf.mxu0
  %1136 = vmatprep.mubr.f32.mxu0 0.0
  %1137 = vmatmul.mubr.f32.gmra.mxu0 %v776
  %v1138 = vpop.f32.mrf.mxu0
  %v1139 = vadd.f32 0.0, %v1138
  %v1140 = vpop.f32.mrf.mxu0
  %1141 = vmatprep.mubr.f32.mxu0 0.0
  %1142 = vmatmul.mubr.f32.gmra.mxu0 %v779
  %v1143 = vpop.f32.mrf.mxu0
  %v1144 = vadd.f32 0.0, %v1143
  %v1145 = vpop.f32.mrf.mxu0
  %1146 = vmatprep.mubr.f32.mxu0 0.0
  %1147 = vmatmul.mubr.f32.gmra.mxu0 %v782
  %v1148 = vpop.f32.mrf.mxu0
  %v1149 = vadd.f32 0.0, %v1148
  %v1150 = vpop.f32.mrf.mxu0
  %1151 = vmatprep.mubr.f32.mxu0 0.0
  %1152 = vmatmul.mubr.f32.gmra.mxu0 %v785
  %v1153 = vpop.f32.mrf.mxu0
  %v1154 = vadd.f32 0.0, %v1153
  %v1155 = vpop.f32.mrf.mxu0
  %1156 = vmatprep.mubr.f32.mxu0 0.0
  %1157 = vmatmul.mubr.f32.gmra.mxu0 %v788
  %v1158 = vpop.f32.mrf.mxu0
  %v1159 = vadd.f32 0.0, %v1158
  %v1160 = vpop.f32.mrf.mxu0
  %1161 = vmatprep.mubr.f32.mxu0 0.0
  %1162 = vmatmul.mubr.f32.gmra.mxu0 %v791
  %v1163 = vpop.f32.mrf.mxu0
  %v1164 = vadd.f32 0.0, %v1163
  %v1165 = vpop.f32.mrf.mxu0
  %1166 = vdwg.mxu0
  %v1167 = vld [vmem:[%s8] sm:$0xff]
  %v1168 = vld [vmem:[%s8 + $0x8] sm:$0xff]
  %v1169 = vld [vmem:[%s8 + $0x10] sm:$0xff]
  %v1170 = vld [vmem:[%s8 + $0x18] sm:$0xff]
  %1171 = vmatprep.subr.mxu0 0.0
  %1172 = vmatpush1.msra.mxu0 0.0
  %1173 = vmatprep.subr.mxu0 0.0
  %1174 = vmatpush1.msra.mxu0 0.0
  %1175 = vmatprep.subr.mxu0 0.0
  %1176 = vmatpush1.msra.mxu0 0.0
  %1177 = vmatprep.subr.mxu0 0.0
  %1178 = vmatpush1.msra.mxu0 0.0
  %1179 = vmatprep.subr.mxu0 0.0
  %1180 = vmatpush1.msra.mxu0 0.0
  %1181 = vmatprep.subr.mxu0 0.0
  %1182 = vmatpush1.msra.mxu0 0.0
  %1183 = vmatprep.subr.mxu0 0.0
  %1184 = vmatpush1.msra.mxu0 0.0
  %1185 = vmatprep.subr.mxu0 0.0
  %1186 = vmatpush1.msra.mxu0 0.0
  %1187 = vmatprep.subr.mxu0 0.0
  %1188 = vmatpush1.msra.mxu0 0.0
  %1189 = vmatprep.subr.mxu0 0.0
  %1190 = vmatpush1.msra.mxu0 0.0
  %1191 = vmatprep.subr.mxu0 0.0
  %1192 = vmatpush1.msra.mxu0 0.0
  %1193 = vmatprep.subr.mxu0 0.0
  %1194 = vmatpush1.msra.mxu0 0.0
  %1195 = vmatprep.subr.mxu0 0.0
  %1196 = vmatpush1.msra.mxu0 %v1170
  %1197 = vmatprep.subr.mxu0 0.0
  %1198 = vmatpush1.msra.mxu0 %v1169
  %1199 = vmatprep.subr.mxu0 0.0
  %1200 = vmatpush1.msra.mxu0 %v1168
  %1201 = vmatprep.subr.mxu0 0.0
  %1202 = vmatpush1.msra.mxu0 %v1167
  %1203 = vmatprep.subr.mxu0 0.0
  %1204 = vmatpush2.msra.mxu0 0.0
  %1205 = vmatprep.subr.mxu0 0.0
  %1206 = vmatpush2.msra.mxu0 0.0
  %1207 = vmatprep.subr.mxu0 0.0
  %1208 = vmatpush2.msra.mxu0 0.0
  %1209 = vmatprep.subr.mxu0 0.0
  %1210 = vmatpush2.msra.mxu0 0.0
  %1211 = vmatprep.subr.mxu0 0.0
  %1212 = vmatpush2.msra.mxu0 0.0
  %1213 = vmatprep.subr.mxu0 0.0
  %1214 = vmatpush2.msra.mxu0 0.0
  %1215 = vmatprep.subr.mxu0 0.0
  %1216 = vmatpush2.msra.mxu0 0.0
  %1217 = vmatprep.subr.mxu0 0.0
  %1218 = vmatpush2.msra.mxu0 0.0
  %1219 = vmatprep.subr.mxu0 0.0
  %1220 = vmatpush2.msra.mxu0 0.0
  %1221 = vmatprep.subr.mxu0 0.0
  %1222 = vmatpush2.msra.mxu0 0.0
  %1223 = vmatprep.subr.mxu0 0.0
  %1224 = vmatpush2.msra.mxu0 0.0
  %1225 = vmatprep.subr.mxu0 0.0
  %1226 = vmatpush2.msra.mxu0 0.0
  %1227 = vmatprep.subr.mxu0 0.0
  %1228 = vmatpush2.msra.mxu0 0.0
  %1229 = vmatprep.subr.mxu0 0.0
  %1230 = vmatpush2.msra.mxu0 0.0
  %1231 = vmatprep.subr.mxu0 0.0
  %1232 = vmatpush2.msra.mxu0 0.0
  %1233 = vmatprep.subr.mxu0 0.0
  %1234 = vmatpush2.msra.mxu0 0.0
  %1235 = vmatprep.mubr.f32.mxu0 0.0
  %1236 = vmatmul.mubr.f32.gmra.mxu0 %v722
  %v1237 = vpop.f32.mrf.mxu0
  %v1238 = vadd.f32 0.0, %v1237
  %v1239 = vpop.f32.mrf.mxu0
  %1240 = vmatprep.mubr.f32.mxu0 0.0
  %1241 = vmatmul.mubr.f32.gmra.mxu0 %v725
  %v1242 = vpop.f32.mrf.mxu0
  %v1243 = vadd.f32 0.0, %v1242
  %v1244 = vpop.f32.mrf.mxu0
  %1245 = vmatprep.mubr.f32.mxu0 0.0
  %1246 = vmatmul.mubr.f32.gmra.mxu0 %v728
  %v1247 = vpop.f32.mrf.mxu0
  %v1248 = vadd.f32 0.0, %v1247
  %v1249 = vpop.f32.mrf.mxu0
  %1250 = vmatprep.mubr.f32.mxu0 0.0
  %1251 = vmatmul.mubr.f32.gmra.mxu0 %v731
  %v1252 = vpop.f32.mrf.mxu0
  %v1253 = vadd.f32 0.0, %v1252
  %v1254 = vpop.f32.mrf.mxu0
  %1255 = vmatprep.mubr.f32.mxu0 0.0
  %1256 = vmatmul.mubr.f32.gmra.mxu0 %v734
  %v1257 = vpop.f32.mrf.mxu0
  %v1258 = vadd.f32 0.0, %v1257
  %v1259 = vpop.f32.mrf.mxu0
  %1260 = vmatprep.mubr.f32.mxu0 0.0
  %1261 = vmatmul.mubr.f32.gmra.mxu0 %v737
  %v1262 = vpop.f32.mrf.mxu0
  %v1263 = vadd.f32 0.0, %v1262
  %v1264 = vpop.f32.mrf.mxu0
  %1265 = vmatprep.mubr.f32.mxu0 0.0
  %1266 = vmatmul.mubr.f32.gmra.mxu0 %v740
  %v1267 = vpop.f32.mrf.mxu0
  %v1268 = vadd.f32 0.0, %v1267
  %v1269 = vpop.f32.mrf.mxu0
  %1270 = vmatprep.mubr.f32.mxu0 0.0
  %1271 = vmatmul.mubr.f32.gmra.mxu0 %v743
  %v1272 = vpop.f32.mrf.mxu0
  %v1273 = vadd.f32 0.0, %v1272
  %v1274 = vpop.f32.mrf.mxu0
  %1275 = vmatprep.mubr.f32.mxu0 0.0
  %1276 = vmatmul.mubr.f32.gmra.mxu0 %v746
  %v1277 = vpop.f32.mrf.mxu0
  %v1278 = vadd.f32 0.0, %v1277
  %v1279 = vpop.f32.mrf.mxu0
  %1280 = vmatprep.mubr.f32.mxu0 0.0
  %1281 = vmatmul.mubr.f32.gmra.mxu0 %v749
  %v1282 = vpop.f32.mrf.mxu0
  %v1283 = vadd.f32 0.0, %v1282
  %v1284 = vpop.f32.mrf.mxu0
  %1285 = vmatprep.mubr.f32.mxu0 0.0
  %1286 = vmatmul.mubr.f32.gmra.mxu0 %v752
  %v1287 = vpop.f32.mrf.mxu0
  %v1288 = vadd.f32 0.0, %v1287
  %v1289 = vpop.f32.mrf.mxu0
  %1290 = vmatprep.mubr.f32.mxu0 0.0
  %1291 = vmatmul.mubr.f32.gmra.mxu0 %v755
  %v1292 = vpop.f32.mrf.mxu0
  %v1293 = vadd.f32 0.0, %v1292
  %v1294 = vpop.f32.mrf.mxu0
  %1295 = vmatprep.mubr.f32.mxu0 0.0
  %1296 = vmatmul.mubr.f32.gmra.mxu0 %v758
  %v1297 = vpop.f32.mrf.mxu0
  %v1298 = vadd.f32 0.0, %v1297
  %v1299 = vpop.f32.mrf.mxu0
  %1300 = vmatprep.mubr.f32.mxu0 0.0
  %1301 = vmatmul.mubr.f32.gmra.mxu0 %v761
  %v1302 = vpop.f32.mrf.mxu0
  %v1303 = vadd.f32 0.0, %v1302
  %v1304 = vpop.f32.mrf.mxu0
  %1305 = vmatprep.mubr.f32.mxu0 0.0
  %1306 = vmatmul.mubr.f32.gmra.mxu0 %v764
  %v1307 = vpop.f32.mrf.mxu0
  %v1308 = vadd.f32 0.0, %v1307
  %v1309 = vpop.f32.mrf.mxu0
  %1310 = vmatprep.mubr.f32.mxu0 0.0
  %1311 = vmatmul.mubr.f32.gmra.mxu0 %v767
  %v1312 = vpop.f32.mrf.mxu0
  %v1313 = vadd.f32 0.0, %v1312
  %v1314 = vpop.f32.mrf.mxu0
  %1315 = vmatprep.mubr.f32.mxu0 0.0
  %1316 = vmatmul.mubr.f32.gmra.mxu0 %v770
  %v1317 = vpop.f32.mrf.mxu0
  %v1318 = vadd.f32 0.0, %v1317
  %v1319 = vpop.f32.mrf.mxu0
  %1320 = vmatprep.mubr.f32.mxu0 0.0
  %1321 = vmatmul.mubr.f32.gmra.mxu0 %v773
  %v1322 = vpop.f32.mrf.mxu0
  %v1323 = vadd.f32 0.0, %v1322
  %v1324 = vpop.f32.mrf.mxu0
  %1325 = vmatprep.mubr.f32.mxu0 0.0
  %1326 = vmatmul.mubr.f32.gmra.mxu0 %v776
  %v1327 = vpop.f32.mrf.mxu0
  %v1328 = vadd.f32 0.0, %v1327
  %v1329 = vpop.f32.mrf.mxu0
  %1330 = vmatprep.mubr.f32.mxu0 0.0
  %1331 = vmatmul.mubr.f32.gmra.mxu0 %v779
  %v1332 = vpop.f32.mrf.mxu0
  %v1333 = vadd.f32 0.0, %v1332
  %v1334 = vpop.f32.mrf.mxu0
  %1335 = vmatprep.mubr.f32.mxu0 0.0
  %1336 = vmatmul.mubr.f32.gmra.mxu0 %v782
  %v1337 = vpop.f32.mrf.mxu0
  %v1338 = vadd.f32 0.0, %v1337
  %v1339 = vpop.f32.mrf.mxu0
  %1340 = vmatprep.mubr.f32.mxu0 0.0
  %1341 = vmatmul.mubr.f32.gmra.mxu0 %v785
  %v1342 = vpop.f32.mrf.mxu0
  %v1343 = vadd.f32 0.0, %v1342
  %v1344 = vpop.f32.mrf.mxu0
  %1345 = vmatprep.mubr.f32.mxu0 0.0
  %1346 = vmatmul.mubr.f32.gmra.mxu0 %v788
  %v1347 = vpop.f32.mrf.mxu0
  %v1348 = vadd.f32 0.0, %v1347
  %v1349 = vpop.f32.mrf.mxu0
  %1350 = vmatprep.mubr.f32.mxu0 0.0
  %1351 = vmatmul.mubr.f32.gmra.mxu0 %v791
  %v1352 = vpop.f32.mrf.mxu0
  %v1353 = vadd.f32 0.0, %v1352
  %v1354 = vpop.f32.mrf.mxu0
  %1355 = vdwg.mxu0
  %vm1356 = vcmask 130048
  %v1358 = vsel %vm1356, %v860, 0
  %v1361 = vsel %vm1356, %v865, 0
  %v1364 = vsel %vm1356, %v870, 0
  %v1367 = vsel %vm1356, %v1049, 0
  %v1370 = vsel %vm1356, %v1054, 0
  %v1373 = vsel %vm1356, %v1059, 0
  %1375 = vmatprep.subr.mxu0 0.0
  %1376 = vmatpush1.xpose.msra.mxu0 0.0
  %1377 = vmatprep.subr.mxu0 0.0
  %1378 = vmatpush1.xpose.msra.mxu0 0.0
  %1379 = vmatprep.subr.mxu0 0.0
  %1380 = vmatpush1.xpose.msra.mxu0 0.0
  %1381 = vmatprep.subr.mxu0 0.0
  %1382 = vmatpush1.xpose.msra.mxu0 0.0
  %1383 = vmatprep.subr.mxu0 0.0
  %1384 = vmatpush1.xpose.msra.mxu0 0.0
  %1385 = vmatprep.subr.mxu0 0.0
  %1386 = vmatpush1.xpose.msra.mxu0 0.0
  %1387 = vmatprep.subr.mxu0 0.0
  %1388 = vmatpush1.xpose.msra.mxu0 0.0
  %1389 = vmatprep.subr.mxu0 0.0
  %1390 = vmatpush1.xpose.msra.mxu0 0.0
  %1391 = vmatprep.subr.mxu0 0.0
  %1392 = vmatpush1.xpose.msra.mxu0 0.0
  %1393 = vmatprep.subr.mxu0 0.0
  %1394 = vmatpush1.xpose.msra.mxu0 0.0
  %1395 = vmatprep.subr.mxu0 0.0
  %1396 = vmatpush1.xpose.msra.mxu0 0.0
  %1397 = vmatprep.subr.mxu0 0.0
  %1398 = vmatpush1.xpose.msra.mxu0 0.0
  %1399 = vmatprep.subr.mxu0 0.0
  %1400 = vmatpush1.xpose.msra.mxu0 0.0
  %1401 = vmatprep.subr.mxu0 0.0
  %1402 = vmatpush1.xpose.msra.mxu0 %v1373
  %1403 = vmatprep.subr.mxu0 0.0
  %1404 = vmatpush1.xpose.msra.mxu0 %v1370
  %1405 = vmatprep.subr.mxu0 0.0
  %1406 = vmatpush1.xpose.msra.mxu0 %v1367
  %1407 = vmatprep.subr.mxu0 0.0
  %1408 = vmatpush2.xpose.msra.mxu0 0.0
  %1409 = vmatprep.subr.mxu0 0.0
  %1410 = vmatpush2.xpose.msra.mxu0 0.0
  %1411 = vmatprep.subr.mxu0 0.0
  %1412 = vmatpush2.xpose.msra.mxu0 0.0
  %1413 = vmatprep.subr.mxu0 0.0
  %1414 = vmatpush2.xpose.msra.mxu0 0.0
  %1415 = vmatprep.subr.mxu0 0.0
  %1416 = vmatpush2.xpose.msra.mxu0 0.0
  %1417 = vmatprep.subr.mxu0 0.0
  %1418 = vmatpush2.xpose.msra.mxu0 0.0
  %1419 = vmatprep.subr.mxu0 0.0
  %1420 = vmatpush2.xpose.msra.mxu0 0.0
  %1421 = vmatprep.subr.mxu0 0.0
  %1422 = vmatpush2.xpose.msra.mxu0 0.0
  %1423 = vmatprep.subr.mxu0 0.0
  %1424 = vmatpush2.xpose.msra.mxu0 0.0
  %1425 = vmatprep.subr.mxu0 0.0
  %1426 = vmatpush2.xpose.msra.mxu0 0.0
  %1427 = vmatprep.subr.mxu0 0.0
  %1428 = vmatpush2.xpose.msra.mxu0 0.0
  %1429 = vmatprep.subr.mxu0 0.0
  %1430 = vmatpush2.xpose.msra.mxu0 0.0
  %1431 = vmatprep.subr.mxu0 0.0
  %1432 = vmatpush2.xpose.msra.mxu0 0.0
  %1433 = vmatprep.subr.mxu0 0.0
  %1434 = vmatpush2.xpose.msra.mxu0 0.0
  %1435 = vmatprep.subr.mxu0 0.0
  %1436 = vmatpush2.xpose.msra.mxu0 0.0
  %1437 = vmatprep.subr.mxu0 0.0
  %1438 = vmatpush2.xpose.msra.mxu0 0.0
  %1439 = vmatprep.mubr.f32.mxu0 0.0
  %1440 = vmatmul.mubr.f32.gmra.mxu0 %v1358
  %v1441 = vpop.f32.mrf.mxu0
  %v1442 = vadd.f32 0.0, %v1441
  %v1443 = vpop.f32.mrf.mxu0
  %1444 = vmatprep.mubr.f32.mxu0 0.0
  %1445 = vmatmul.mubr.f32.gmra.mxu0 %v1361
  %v1446 = vpop.f32.mrf.mxu0
  %v1447 = vadd.f32 0.0, %v1446
  %v1448 = vpop.f32.mrf.mxu0
  %1449 = vmatprep.mubr.f32.mxu0 0.0
  %1450 = vmatmul.mubr.f32.gmra.mxu0 %v1364
  %v1451 = vpop.f32.mrf.mxu0
  %v1452 = vadd.f32 0.0, %v1451
  %v1453 = vpop.f32.mrf.mxu0
  %1454 = vdwg.mxu0
  %v1456 = vsel %vm1356, %v875, 0
  %v1459 = vsel %vm1356, %v880, 0
  %v1462 = vsel %vm1356, %v885, 0
  %v1465 = vsel %vm1356, %v1064, 0
  %v1468 = vsel %vm1356, %v1069, 0
  %v1471 = vsel %vm1356, %v1074, 0
  %1473 = vmatprep.subr.mxu0 0.0
  %1474 = vmatpush1.xpose.msra.mxu0 0.0
  %1475 = vmatprep.subr.mxu0 0.0
  %1476 = vmatpush1.xpose.msra.mxu0 0.0
  %1477 = vmatprep.subr.mxu0 0.0
  %1478 = vmatpush1.xpose.msra.mxu0 0.0
  %1479 = vmatprep.subr.mxu0 0.0
  %1480 = vmatpush1.xpose.msra.mxu0 0.0
  %1481 = vmatprep.subr.mxu0 0.0
  %1482 = vmatpush1.xpose.msra.mxu0 0.0
  %1483 = vmatprep.subr.mxu0 0.0
  %1484 = vmatpush1.xpose.msra.mxu0 0.0
  %1485 = vmatprep.subr.mxu0 0.0
  %1486 = vmatpush1.xpose.msra.mxu0 0.0
  %1487 = vmatprep.subr.mxu0 0.0
  %1488 = vmatpush1.xpose.msra.mxu0 0.0
  %1489 = vmatprep.subr.mxu0 0.0
  %1490 = vmatpush1.xpose.msra.mxu0 0.0
  %1491 = vmatprep.subr.mxu0 0.0
  %1492 = vmatpush1.xpose.msra.mxu0 0.0
  %1493 = vmatprep.subr.mxu0 0.0
  %1494 = vmatpush1.xpose.msra.mxu0 0.0
  %1495 = vmatprep.subr.mxu0 0.0
  %1496 = vmatpush1.xpose.msra.mxu0 0.0
  %1497 = vmatprep.subr.mxu0 0.0
  %1498 = vmatpush1.xpose.msra.mxu0 0.0
  %1499 = vmatprep.subr.mxu0 0.0
  %1500 = vmatpush1.xpose.msra.mxu0 %v1471
  %1501 = vmatprep.subr.mxu0 0.0
  %1502 = vmatpush1.xpose.msra.mxu0 %v1468
  %1503 = vmatprep.subr.mxu0 0.0
  %1504 = vmatpush1.xpose.msra.mxu0 %v1465
  %1505 = vmatprep.subr.mxu0 0.0
  %1506 = vmatpush2.xpose.msra.mxu0 0.0
  %1507 = vmatprep.subr.mxu0 0.0
  %1508 = vmatpush2.xpose.msra.mxu0 0.0
  %1509 = vmatprep.subr.mxu0 0.0
  %1510 = vmatpush2.xpose.msra.mxu0 0.0
  %1511 = vmatprep.subr.mxu0 0.0
  %1512 = vmatpush2.xpose.msra.mxu0 0.0
  %1513 = vmatprep.subr.mxu0 0.0
  %1514 = vmatpush2.xpose.msra.mxu0 0.0
  %1515 = vmatprep.subr.mxu0 0.0
  %1516 = vmatpush2.xpose.msra.mxu0 0.0
  %1517 = vmatprep.subr.mxu0 0.0
  %1518 = vmatpush2.xpose.msra.mxu0 0.0
  %1519 = vmatprep.subr.mxu0 0.0
  %1520 = vmatpush2.xpose.msra.mxu0 0.0
  %1521 = vmatprep.subr.mxu0 0.0
  %1522 = vmatpush2.xpose.msra.mxu0 0.0
  %1523 = vmatprep.subr.mxu0 0.0
  %1524 = vmatpush2.xpose.msra.mxu0 0.0
  %1525 = vmatprep.subr.mxu0 0.0
  %1526 = vmatpush2.xpose.msra.mxu0 0.0
  %1527 = vmatprep.subr.mxu0 0.0
  %1528 = vmatpush2.xpose.msra.mxu0 0.0
  %1529 = vmatprep.subr.mxu0 0.0
  %1530 = vmatpush2.xpose.msra.mxu0 0.0
  %1531 = vmatprep.subr.mxu0 0.0
  %1532 = vmatpush2.xpose.msra.mxu0 0.0
  %1533 = vmatprep.subr.mxu0 0.0
  %1534 = vmatpush2.xpose.msra.mxu0 0.0
  %1535 = vmatprep.subr.mxu0 0.0
  %1536 = vmatpush2.xpose.msra.mxu0 0.0
  %1537 = vmatprep.mubr.f32.mxu0 0.0
  %1538 = vmatmul.mubr.f32.gmra.mxu0 %v1456
  %v1539 = vpop.f32.mrf.mxu0
  %v1540 = vadd.f32 0.0, %v1539
  %v1541 = vpop.f32.mrf.mxu0
  %1542 = vmatprep.mubr.f32.mxu0 0.0
  %1543 = vmatmul.mubr.f32.gmra.mxu0 %v1459
  %v1544 = vpop.f32.mrf.mxu0
  %v1545 = vadd.f32 0.0, %v1544
  %v1546 = vpop.f32.mrf.mxu0
  %1547 = vmatprep.mubr.f32.mxu0 0.0
  %1548 = vmatmul.mubr.f32.gmra.mxu0 %v1462
  %v1549 = vpop.f32.mrf.mxu0
  %v1550 = vadd.f32 0.0, %v1549
  %v1551 = vpop.f32.mrf.mxu0
  %1552 = vdwg.mxu0
  %v1554 = vsel %vm1356, %v890, 0
  %v1557 = vsel %vm1356, %v895, 0
  %v1560 = vsel %vm1356, %v900, 0
  %v1563 = vsel %vm1356, %v1079, 0
  %v1566 = vsel %vm1356, %v1084, 0
  %v1569 = vsel %vm1356, %v1089, 0
  %1571 = vmatprep.subr.mxu0 0.0
  %1572 = vmatpush1.xpose.msra.mxu0 0.0
  %1573 = vmatprep.subr.mxu0 0.0
  %1574 = vmatpush1.xpose.msra.mxu0 0.0
  %1575 = vmatprep.subr.mxu0 0.0
  %1576 = vmatpush1.xpose.msra.mxu0 0.0
  %1577 = vmatprep.subr.mxu0 0.0
  %1578 = vmatpush1.xpose.msra.mxu0 0.0
  %1579 = vmatprep.subr.mxu0 0.0
  %1580 = vmatpush1.xpose.msra.mxu0 0.0
  %1581 = vmatprep.subr.mxu0 0.0
  %1582 = vmatpush1.xpose.msra.mxu0 0.0
  %1583 = vmatprep.subr.mxu0 0.0
  %1584 = vmatpush1.xpose.msra.mxu0 0.0
  %1585 = vmatprep.subr.mxu0 0.0
  %1586 = vmatpush1.xpose.msra.mxu0 0.0
  %1587 = vmatprep.subr.mxu0 0.0
  %1588 = vmatpush1.xpose.msra.mxu0 0.0
  %1589 = vmatprep.subr.mxu0 0.0
  %1590 = vmatpush1.xpose.msra.mxu0 0.0
  %1591 = vmatprep.subr.mxu0 0.0
  %1592 = vmatpush1.xpose.msra.mxu0 0.0
  %1593 = vmatprep.subr.mxu0 0.0
  %1594 = vmatpush1.xpose.msra.mxu0 0.0
  %1595 = vmatprep.subr.mxu0 0.0
  %1596 = vmatpush1.xpose.msra.mxu0 0.0
  %1597 = vmatprep.subr.mxu0 0.0
  %1598 = vmatpush1.xpose.msra.mxu0 %v1569
  %1599 = vmatprep.subr.mxu0 0.0
  %1600 = vmatpush1.xpose.msra.mxu0 %v1566
  %1601 = vmatprep.subr.mxu0 0.0
  %1602 = vmatpush1.xpose.msra.mxu0 %v1563
  %1603 = vmatprep.subr.mxu0 0.0
  %1604 = vmatpush2.xpose.msra.mxu0 0.0
  %1605 = vmatprep.subr.mxu0 0.0
  %1606 = vmatpush2.xpose.msra.mxu0 0.0
  %1607 = vmatprep.subr.mxu0 0.0
  %1608 = vmatpush2.xpose.msra.mxu0 0.0
  %1609 = vmatprep.subr.mxu0 0.0
  %1610 = vmatpush2.xpose.msra.mxu0 0.0
  %1611 = vmatprep.subr.mxu0 0.0
  %1612 = vmatpush2.xpose.msra.mxu0 0.0
  %1613 = vmatprep.subr.mxu0 0.0
  %1614 = vmatpush2.xpose.msra.mxu0 0.0
  %1615 = vmatprep.subr.mxu0 0.0
  %1616 = vmatpush2.xpose.msra.mxu0 0.0
  %1617 = vmatprep.subr.mxu0 0.0
  %1618 = vmatpush2.xpose.msra.mxu0 0.0
  %1619 = vmatprep.subr.mxu0 0.0
  %1620 = vmatpush2.xpose.msra.mxu0 0.0
  %1621 = vmatprep.subr.mxu0 0.0
  %1622 = vmatpush2.xpose.msra.mxu0 0.0
  %1623 = vmatprep.subr.mxu0 0.0
  %1624 = vmatpush2.xpose.msra.mxu0 0.0
  %1625 = vmatprep.subr.mxu0 0.0
  %1626 = vmatpush2.xpose.msra.mxu0 0.0
  %1627 = vmatprep.subr.mxu0 0.0
  %1628 = vmatpush2.xpose.msra.mxu0 0.0
  %1629 = vmatprep.subr.mxu0 0.0
  %1630 = vmatpush2.xpose.msra.mxu0 0.0
  %1631 = vmatprep.subr.mxu0 0.0
  %1632 = vmatpush2.xpose.msra.mxu0 0.0
  %1633 = vmatprep.subr.mxu0 0.0
  %1634 = vmatpush2.xpose.msra.mxu0 0.0
  %1635 = vmatprep.mubr.f32.mxu0 0.0
  %1636 = vmatmul.mubr.f32.gmra.mxu0 %v1554
  %v1637 = vpop.f32.mrf.mxu0
  %v1638 = vadd.f32 0.0, %v1637
  %v1639 = vpop.f32.mrf.mxu0
  %1640 = vmatprep.mubr.f32.mxu0 0.0
  %1641 = vmatmul.mubr.f32.gmra.mxu0 %v1557
  %v1642 = vpop.f32.mrf.mxu0
  %v1643 = vadd.f32 0.0, %v1642
  %v1644 = vpop.f32.mrf.mxu0
  %1645 = vmatprep.mubr.f32.mxu0 0.0
  %1646 = vmatmul.mubr.f32.gmra.mxu0 %v1560
  %v1647 = vpop.f32.mrf.mxu0
  %v1648 = vadd.f32 0.0, %v1647
  %v1649 = vpop.f32.mrf.mxu0
  %1650 = vdwg.mxu0
  %v1652 = vsel %vm1356, %v905, 0
  %v1655 = vsel %vm1356, %v910, 0
  %v1658 = vsel %vm1356, %v915, 0
  %v1661 = vsel %vm1356, %v1094, 0
  %v1664 = vsel %vm1356, %v1099, 0
  %v1667 = vsel %vm1356, %v1104, 0
  %1669 = vmatprep.subr.mxu0 0.0
  %1670 = vmatpush1.xpose.msra.mxu0 0.0
  %1671 = vmatprep.subr.mxu0 0.0
  %1672 = vmatpush1.xpose.msra.mxu0 0.0
  %1673 = vmatprep.subr.mxu0 0.0
  %1674 = vmatpush1.xpose.msra.mxu0 0.0
  %1675 = vmatprep.subr.mxu0 0.0
  %1676 = vmatpush1.xpose.msra.mxu0 0.0
  %1677 = vmatprep.subr.mxu0 0.0
  %1678 = vmatpush1.xpose.msra.mxu0 0.0
  %1679 = vmatprep.subr.mxu0 0.0
  %1680 = vmatpush1.xpose.msra.mxu0 0.0
  %1681 = vmatprep.subr.mxu0 0.0
  %1682 = vmatpush1.xpose.msra.mxu0 0.0
  %1683 = vmatprep.subr.mxu0 0.0
  %1684 = vmatpush1.xpose.msra.mxu0 0.0
  %1685 = vmatprep.subr.mxu0 0.0
  %1686 = vmatpush1.xpose.msra.mxu0 0.0
  %1687 = vmatprep.subr.mxu0 0.0
  %1688 = vmatpush1.xpose.msra.mxu0 0.0
  %1689 = vmatprep.subr.mxu0 0.0
  %1690 = vmatpush1.xpose.msra.mxu0 0.0
  %1691 = vmatprep.subr.mxu0 0.0
  %1692 = vmatpush1.xpose.msra.mxu0 0.0
  %1693 = vmatprep.subr.mxu0 0.0
  %1694 = vmatpush1.xpose.msra.mxu0 0.0
  %1695 = vmatprep.subr.mxu0 0.0
  %1696 = vmatpush1.xpose.msra.mxu0 %v1667
  %1697 = vmatprep.subr.mxu0 0.0
  %1698 = vmatpush1.xpose.msra.mxu0 %v1664
  %1699 = vmatprep.subr.mxu0 0.0
  %1700 = vmatpush1.xpose.msra.mxu0 %v1661
  %1701 = vmatprep.subr.mxu0 0.0
  %1702 = vmatpush2.xpose.msra.mxu0 0.0
  %1703 = vmatprep.subr.mxu0 0.0
  %1704 = vmatpush2.xpose.msra.mxu0 0.0
  %1705 = vmatprep.subr.mxu0 0.0
  %1706 = vmatpush2.xpose.msra.mxu0 0.0
  %1707 = vmatprep.subr.mxu0 0.0
  %1708 = vmatpush2.xpose.msra.mxu0 0.0
  %1709 = vmatprep.subr.mxu0 0.0
  %1710 = vmatpush2.xpose.msra.mxu0 0.0
  %1711 = vmatprep.subr.mxu0 0.0
  %1712 = vmatpush2.xpose.msra.mxu0 0.0
  %1713 = vmatprep.subr.mxu0 0.0
  %1714 = vmatpush2.xpose.msra.mxu0 0.0
  %1715 = vmatprep.subr.mxu0 0.0
  %1716 = vmatpush2.xpose.msra.mxu0 0.0
  %1717 = vmatprep.subr.mxu0 0.0
  %1718 = vmatpush2.xpose.msra.mxu0 0.0
  %1719 = vmatprep.subr.mxu0 0.0
  %1720 = vmatpush2.xpose.msra.mxu0 0.0
  %1721 = vmatprep.subr.mxu0 0.0
  %1722 = vmatpush2.xpose.msra.mxu0 0.0
  %1723 = vmatprep.subr.mxu0 0.0
  %1724 = vmatpush2.xpose.msra.mxu0 0.0
  %1725 = vmatprep.subr.mxu0 0.0
  %1726 = vmatpush2.xpose.msra.mxu0 0.0
  %1727 = vmatprep.subr.mxu0 0.0
  %1728 = vmatpush2.xpose.msra.mxu0 0.0
  %1729 = vmatprep.subr.mxu0 0.0
  %1730 = vmatpush2.xpose.msra.mxu0 0.0
  %1731 = vmatprep.subr.mxu0 0.0
  %1732 = vmatpush2.xpose.msra.mxu0 0.0
  %1733 = vmatprep.mubr.f32.mxu0 0.0
  %1734 = vmatmul.mubr.f32.gmra.mxu0 %v1652
  %v1735 = vpop.f32.mrf.mxu0
  %v1736 = vadd.f32 0.0, %v1735
  %v1737 = vpop.f32.mrf.mxu0
  %1738 = vmatprep.mubr.f32.mxu0 0.0
  %1739 = vmatmul.mubr.f32.gmra.mxu0 %v1655
  %v1740 = vpop.f32.mrf.mxu0
  %v1741 = vadd.f32 0.0, %v1740
  %v1742 = vpop.f32.mrf.mxu0
  %1743 = vmatprep.mubr.f32.mxu0 0.0
  %1744 = vmatmul.mubr.f32.gmra.mxu0 %v1658
  %v1745 = vpop.f32.mrf.mxu0
  %v1746 = vadd.f32 0.0, %v1745
  %v1747 = vpop.f32.mrf.mxu0
  %1748 = vdwg.mxu0
  %v1750 = vsel %vm1356, %v920, 0
  %v1753 = vsel %vm1356, %v925, 0
  %v1756 = vsel %vm1356, %v930, 0
  %v1759 = vsel %vm1356, %v1109, 0
  %v1762 = vsel %vm1356, %v1114, 0
  %v1765 = vsel %vm1356, %v1119, 0
  %1767 = vmatprep.subr.mxu0 0.0
  %1768 = vmatpush1.xpose.msra.mxu0 0.0
  %1769 = vmatprep.subr.mxu0 0.0
  %1770 = vmatpush1.xpose.msra.mxu0 0.0
  %1771 = vmatprep.subr.mxu0 0.0
  %1772 = vmatpush1.xpose.msra.mxu0 0.0
  %1773 = vmatprep.subr.mxu0 0.0
  %1774 = vmatpush1.xpose.msra.mxu0 0.0
  %1775 = vmatprep.subr.mxu0 0.0
  %1776 = vmatpush1.xpose.msra.mxu0 0.0
  %1777 = vmatprep.subr.mxu0 0.0
  %1778 = vmatpush1.xpose.msra.mxu0 0.0
  %1779 = vmatprep.subr.mxu0 0.0
  %1780 = vmatpush1.xpose.msra.mxu0 0.0
  %1781 = vmatprep.subr.mxu0 0.0
  %1782 = vmatpush1.xpose.msra.mxu0 0.0
  %1783 = vmatprep.subr.mxu0 0.0
  %1784 = vmatpush1.xpose.msra.mxu0 0.0
  %1785 = vmatprep.subr.mxu0 0.0
  %1786 = vmatpush1.xpose.msra.mxu0 0.0
  %1787 = vmatprep.subr.mxu0 0.0
  %1788 = vmatpush1.xpose.msra.mxu0 0.0
  %1789 = vmatprep.subr.mxu0 0.0
  %1790 = vmatpush1.xpose.msra.mxu0 0.0
  %1791 = vmatprep.subr.mxu0 0.0
  %1792 = vmatpush1.xpose.msra.mxu0 0.0
  %1793 = vmatprep.subr.mxu0 0.0
  %1794 = vmatpush1.xpose.msra.mxu0 %v1765
  %1795 = vmatprep.subr.mxu0 0.0
  %1796 = vmatpush1.xpose.msra.mxu0 %v1762
  %1797 = vmatprep.subr.mxu0 0.0
  %1798 = vmatpush1.xpose.msra.mxu0 %v1759
  %1799 = vmatprep.subr.mxu0 0.0
  %1800 = vmatpush2.xpose.msra.mxu0 0.0
  %1801 = vmatprep.subr.mxu0 0.0
  %1802 = vmatpush2.xpose.msra.mxu0 0.0
  %1803 = vmatprep.subr.mxu0 0.0
  %1804 = vmatpush2.xpose.msra.mxu0 0.0
  %1805 = vmatprep.subr.mxu0 0.0
  %1806 = vmatpush2.xpose.msra.mxu0 0.0
  %1807 = vmatprep.subr.mxu0 0.0
  %1808 = vmatpush2.xpose.msra.mxu0 0.0
  %1809 = vmatprep.subr.mxu0 0.0
  %1810 = vmatpush2.xpose.msra.mxu0 0.0
  %1811 = vmatprep.subr.mxu0 0.0
  %1812 = vmatpush2.xpose.msra.mxu0 0.0
  %1813 = vmatprep.subr.mxu0 0.0
  %1814 = vmatpush2.xpose.msra.mxu0 0.0
  %1815 = vmatprep.subr.mxu0 0.0
  %1816 = vmatpush2.xpose.msra.mxu0 0.0
  %1817 = vmatprep.subr.mxu0 0.0
  %1818 = vmatpush2.xpose.msra.mxu0 0.0
  %1819 = vmatprep.subr.mxu0 0.0
  %1820 = vmatpush2.xpose.msra.mxu0 0.0
  %1821 = vmatprep.subr.mxu0 0.0
  %1822 = vmatpush2.xpose.msra.mxu0 0.0
  %1823 = vmatprep.subr.mxu0 0.0
  %1824 = vmatpush2.xpose.msra.mxu0 0.0
  %1825 = vmatprep.subr.mxu0 0.0
  %1826 = vmatpush2.xpose.msra.mxu0 0.0
  %1827 = vmatprep.subr.mxu0 0.0
  %1828 = vmatpush2.xpose.msra.mxu0 0.0
  %1829 = vmatprep.subr.mxu0 0.0
  %1830 = vmatpush2.xpose.msra.mxu0 0.0
  %1831 = vmatprep.mubr.f32.mxu0 0.0
  %1832 = vmatmul.mubr.f32.gmra.mxu0 %v1750
  %v1833 = vpop.f32.mrf.mxu0
  %v1834 = vadd.f32 0.0, %v1833
  %v1835 = vpop.f32.mrf.mxu0
  %1836 = vmatprep.mubr.f32.mxu0 0.0
  %1837 = vmatmul.mubr.f32.gmra.mxu0 %v1753
  %v1838 = vpop.f32.mrf.mxu0
  %v1839 = vadd.f32 0.0, %v1838
  %v1840 = vpop.f32.mrf.mxu0
  %1841 = vmatprep.mubr.f32.mxu0 0.0
  %1842 = vmatmul.mubr.f32.gmra.mxu0 %v1756
  %v1843 = vpop.f32.mrf.mxu0
  %v1844 = vadd.f32 0.0, %v1843
  %v1845 = vpop.f32.mrf.mxu0
  %1846 = vdwg.mxu0
  %v1848 = vsel %vm1356, %v935, 0
  %v1851 = vsel %vm1356, %v940, 0
  %v1854 = vsel %vm1356, %v945, 0
  %v1857 = vsel %vm1356, %v1124, 0
  %v1860 = vsel %vm1356, %v1129, 0
  %v1863 = vsel %vm1356, %v1134, 0
  %1865 = vmatprep.subr.mxu0 0.0
  %1866 = vmatpush1.xpose.msra.mxu0 0.0
  %1867 = vmatprep.subr.mxu0 0.0
  %1868 = vmatpush1.xpose.msra.mxu0 0.0
  %1869 = vmatprep.subr.mxu0 0.0
  %1870 = vmatpush1.xpose.msra.mxu0 0.0
  %1871 = vmatprep.subr.mxu0 0.0
  %1872 = vmatpush1.xpose.msra.mxu0 0.0
  %1873 = vmatprep.subr.mxu0 0.0
  %1874 = vmatpush1.xpose.msra.mxu0 0.0
  %1875 = vmatprep.subr.mxu0 0.0
  %1876 = vmatpush1.xpose.msra.mxu0 0.0
  %1877 = vmatprep.subr.mxu0 0.0
  %1878 = vmatpush1.xpose.msra.mxu0 0.0
  %1879 = vmatprep.subr.mxu0 0.0
  %1880 = vmatpush1.xpose.msra.mxu0 0.0
  %1881 = vmatprep.subr.mxu0 0.0
  %1882 = vmatpush1.xpose.msra.mxu0 0.0
  %1883 = vmatprep.subr.mxu0 0.0
  %1884 = vmatpush1.xpose.msra.mxu0 0.0
  %1885 = vmatprep.subr.mxu0 0.0
  %1886 = vmatpush1.xpose.msra.mxu0 0.0
  %1887 = vmatprep.subr.mxu0 0.0
  %1888 = vmatpush1.xpose.msra.mxu0 0.0
  %1889 = vmatprep.subr.mxu0 0.0
  %1890 = vmatpush1.xpose.msra.mxu0 0.0
  %1891 = vmatprep.subr.mxu0 0.0
  %1892 = vmatpush1.xpose.msra.mxu0 %v1863
  %1893 = vmatprep.subr.mxu0 0.0
  %1894 = vmatpush1.xpose.msra.mxu0 %v1860
  %1895 = vmatprep.subr.mxu0 0.0
  %1896 = vmatpush1.xpose.msra.mxu0 %v1857
  %1897 = vmatprep.subr.mxu0 0.0
  %1898 = vmatpush2.xpose.msra.mxu0 0.0
  %1899 = vmatprep.subr.mxu0 0.0
  %1900 = vmatpush2.xpose.msra.mxu0 0.0
  %1901 = vmatprep.subr.mxu0 0.0
  %1902 = vmatpush2.xpose.msra.mxu0 0.0
  %1903 = vmatprep.subr.mxu0 0.0
  %1904 = vmatpush2.xpose.msra.mxu0 0.0
  %1905 = vmatprep.subr.mxu0 0.0
  %1906 = vmatpush2.xpose.msra.mxu0 0.0
  %1907 = vmatprep.subr.mxu0 0.0
  %1908 = vmatpush2.xpose.msra.mxu0 0.0
  %1909 = vmatprep.subr.mxu0 0.0
  %1910 = vmatpush2.xpose.msra.mxu0 0.0
  %1911 = vmatprep.subr.mxu0 0.0
  %1912 = vmatpush2.xpose.msra.mxu0 0.0
  %1913 = vmatprep.subr.mxu0 0.0
  %1914 = vmatpush2.xpose.msra.mxu0 0.0
  %1915 = vmatprep.subr.mxu0 0.0
  %1916 = vmatpush2.xpose.msra.mxu0 0.0
  %1917 = vmatprep.subr.mxu0 0.0
  %1918 = vmatpush2.xpose.msra.mxu0 0.0
  %1919 = vmatprep.subr.mxu0 0.0
  %1920 = vmatpush2.xpose.msra.mxu0 0.0
  %1921 = vmatprep.subr.mxu0 0.0
  %1922 = vmatpush2.xpose.msra.mxu0 0.0
  %1923 = vmatprep.subr.mxu0 0.0
  %1924 = vmatpush2.xpose.msra.mxu0 0.0
  %1925 = vmatprep.subr.mxu0 0.0
  %1926 = vmatpush2.xpose.msra.mxu0 0.0
  %1927 = vmatprep.subr.mxu0 0.0
  %1928 = vmatpush2.xpose.msra.mxu0 0.0
  %1929 = vmatprep.mubr.f32.mxu0 0.0
  %1930 = vmatmul.mubr.f32.gmra.mxu0 %v1848
  %v1931 = vpop.f32.mrf.mxu0
  %v1932 = vadd.f32 0.0, %v1931
  %v1933 = vpop.f32.mrf.mxu0
  %1934 = vmatprep.mubr.f32.mxu0 0.0
  %1935 = vmatmul.mubr.f32.gmra.mxu0 %v1851
  %v1936 = vpop.f32.mrf.mxu0
  %v1937 = vadd.f32 0.0, %v1936
  %v1938 = vpop.f32.mrf.mxu0
  %1939 = vmatprep.mubr.f32.mxu0 0.0
  %1940 = vmatmul.mubr.f32.gmra.mxu0 %v1854
  %v1941 = vpop.f32.mrf.mxu0
  %v1942 = vadd.f32 0.0, %v1941
  %v1943 = vpop.f32.mrf.mxu0
  %1944 = vdwg.mxu0
  %v1946 = vsel %vm1356, %v950, 0
  %v1949 = vsel %vm1356, %v955, 0
  %v1952 = vsel %vm1356, %v960, 0
  %v1955 = vsel %vm1356, %v1139, 0
  %v1958 = vsel %vm1356, %v1144, 0
  %v1961 = vsel %vm1356, %v1149, 0
  %1963 = vmatprep.subr.mxu0 0.0
  %1964 = vmatpush1.xpose.msra.mxu0 0.0
  %1965 = vmatprep.subr.mxu0 0.0
  %1966 = vmatpush1.xpose.msra.mxu0 0.0
  %1967 = vmatprep.subr.mxu0 0.0
  %1968 = vmatpush1.xpose.msra.mxu0 0.0
  %1969 = vmatprep.subr.mxu0 0.0
  %1970 = vmatpush1.xpose.msra.mxu0 0.0
  %1971 = vmatprep.subr.mxu0 0.0
  %1972 = vmatpush1.xpose.msra.mxu0 0.0
  %1973 = vmatprep.subr.mxu0 0.0
  %1974 = vmatpush1.xpose.msra.mxu0 0.0
  %1975 = vmatprep.subr.mxu0 0.0
  %1976 = vmatpush1.xpose.msra.mxu0 0.0
  %1977 = vmatprep.subr.mxu0 0.0
  %1978 = vmatpush1.xpose.msra.mxu0 0.0
  %1979 = vmatprep.subr.mxu0 0.0
  %1980 = vmatpush1.xpose.msra.mxu0 0.0
  %1981 = vmatprep.subr.mxu0 0.0
  %1982 = vmatpush1.xpose.msra.mxu0 0.0
  %1983 = vmatprep.subr.mxu0 0.0
  %1984 = vmatpush1.xpose.msra.mxu0 0.0
  %1985 = vmatprep.subr.mxu0 0.0
  %1986 = vmatpush1.xpose.msra.mxu0 0.0
  %1987 = vmatprep.subr.mxu0 0.0
  %1988 = vmatpush1.xpose.msra.mxu0 0.0
  %1989 = vmatprep.subr.mxu0 0.0
  %1990 = vmatpush1.xpose.msra.mxu0 %v1961
  %1991 = vmatprep.subr.mxu0 0.0
  %1992 = vmatpush1.xpose.msra.mxu0 %v1958
  %1993 = vmatprep.subr.mxu0 0.0
  %1994 = vmatpush1.xpose.msra.mxu0 %v1955
  %1995 = vmatprep.subr.mxu0 0.0
  %1996 = vmatpush2.xpose.msra.mxu0 0.0
  %1997 = vmatprep.subr.mxu0 0.0
  %1998 = vmatpush2.xpose.msra.mxu0 0.0
  %1999 = vmatprep.subr.mxu0 0.0
  %2000 = vmatpush2.xpose.msra.mxu0 0.0
  %2001 = vmatprep.subr.mxu0 0.0
  %2002 = vmatpush2.xpose.msra.mxu0 0.0
  %2003 = vmatprep.subr.mxu0 0.0
  %2004 = vmatpush2.xpose.msra.mxu0 0.0
  %2005 = vmatprep.subr.mxu0 0.0
  %2006 = vmatpush2.xpose.msra.mxu0 0.0
  %2007 = vmatprep.subr.mxu0 0.0
  %2008 = vmatpush2.xpose.msra.mxu0 0.0
  %2009 = vmatprep.subr.mxu0 0.0
  %2010 = vmatpush2.xpose.msra.mxu0 0.0
  %2011 = vmatprep.subr.mxu0 0.0
  %2012 = vmatpush2.xpose.msra.mxu0 0.0
  %2013 = vmatprep.subr.mxu0 0.0
  %2014 = vmatpush2.xpose.msra.mxu0 0.0
  %2015 = vmatprep.subr.mxu0 0.0
  %2016 = vmatpush2.xpose.msra.mxu0 0.0
  %2017 = vmatprep.subr.mxu0 0.0
  %2018 = vmatpush2.xpose.msra.mxu0 0.0
  %2019 = vmatprep.subr.mxu0 0.0
  %2020 = vmatpush2.xpose.msra.mxu0 0.0
  %2021 = vmatprep.subr.mxu0 0.0
  %2022 = vmatpush2.xpose.msra.mxu0 0.0
  %2023 = vmatprep.subr.mxu0 0.0
  %2024 = vmatpush2.xpose.msra.mxu0 0.0
  %2025 = vmatprep.subr.mxu0 0.0
  %2026 = vmatpush2.xpose.msra.mxu0 0.0
  %2027 = vmatprep.mubr.f32.mxu0 0.0
  %2028 = vmatmul.mubr.f32.gmra.mxu0 %v1946
  %v2029 = vpop.f32.mrf.mxu0
  %v2030 = vadd.f32 0.0, %v2029
  %v2031 = vpop.f32.mrf.mxu0
  %2032 = vmatprep.mubr.f32.mxu0 0.0
  %2033 = vmatmul.mubr.f32.gmra.mxu0 %v1949
  %v2034 = vpop.f32.mrf.mxu0
  %v2035 = vadd.f32 0.0, %v2034
  %v2036 = vpop.f32.mrf.mxu0
  %2037 = vmatprep.mubr.f32.mxu0 0.0
  %2038 = vmatmul.mubr.f32.gmra.mxu0 %v1952
  %v2039 = vpop.f32.mrf.mxu0
  %v2040 = vadd.f32 0.0, %v2039
  %v2041 = vpop.f32.mrf.mxu0
  %2042 = vdwg.mxu0
  %v2044 = vsel %vm1356, %v965, 0
  %v2047 = vsel %vm1356, %v970, 0
  %v2050 = vsel %vm1356, %v975, 0
  %v2053 = vsel %vm1356, %v1154, 0
  %v2056 = vsel %vm1356, %v1159, 0
  %v2059 = vsel %vm1356, %v1164, 0
  %2061 = vmatprep.subr.mxu0 0.0
  %2062 = vmatpush1.xpose.msra.mxu0 0.0
  %2063 = vmatprep.subr.mxu0 0.0
  %2064 = vmatpush1.xpose.msra.mxu0 0.0
  %2065 = vmatprep.subr.mxu0 0.0
  %2066 = vmatpush1.xpose.msra.mxu0 0.0
  %2067 = vmatprep.subr.mxu0 0.0
  %2068 = vmatpush1.xpose.msra.mxu0 0.0
  %2069 = vmatprep.subr.mxu0 0.0
  %2070 = vmatpush1.xpose.msra.mxu0 0.0
  %2071 = vmatprep.subr.mxu0 0.0
  %2072 = vmatpush1.xpose.msra.mxu0 0.0
  %2073 = vmatprep.subr.mxu0 0.0
  %2074 = vmatpush1.xpose.msra.mxu0 0.0
  %2075 = vmatprep.subr.mxu0 0.0
  %2076 = vmatpush1.xpose.msra.mxu0 0.0
  %2077 = vmatprep.subr.mxu0 0.0
  %2078 = vmatpush1.xpose.msra.mxu0 0.0
  %2079 = vmatprep.subr.mxu0 0.0
  %2080 = vmatpush1.xpose.msra.mxu0 0.0
  %2081 = vmatprep.subr.mxu0 0.0
  %2082 = vmatpush1.xpose.msra.mxu0 0.0
  %2083 = vmatprep.subr.mxu0 0.0
  %2084 = vmatpush1.xpose.msra.mxu0 0.0
  %2085 = vmatprep.subr.mxu0 0.0
  %2086 = vmatpush1.xpose.msra.mxu0 0.0
  %2087 = vmatprep.subr.mxu0 0.0
  %2088 = vmatpush1.xpose.msra.mxu0 %v2059
  %2089 = vmatprep.subr.mxu0 0.0
  %2090 = vmatpush1.xpose.msra.mxu0 %v2056
  %2091 = vmatprep.subr.mxu0 0.0
  %2092 = vmatpush1.xpose.msra.mxu0 %v2053
  %2093 = vmatprep.subr.mxu0 0.0
  %2094 = vmatpush2.xpose.msra.mxu0 0.0
  %2095 = vmatprep.subr.mxu0 0.0
  %2096 = vmatpush2.xpose.msra.mxu0 0.0
  %2097 = vmatprep.subr.mxu0 0.0
  %2098 = vmatpush2.xpose.msra.mxu0 0.0
  %2099 = vmatprep.subr.mxu0 0.0
  %2100 = vmatpush2.xpose.msra.mxu0 0.0
  %2101 = vmatprep.subr.mxu0 0.0
  %2102 = vmatpush2.xpose.msra.mxu0 0.0
  %2103 = vmatprep.subr.mxu0 0.0
  %2104 = vmatpush2.xpose.msra.mxu0 0.0
  %2105 = vmatprep.subr.mxu0 0.0
  %2106 = vmatpush2.xpose.msra.mxu0 0.0
  %2107 = vmatprep.subr.mxu0 0.0
  %2108 = vmatpush2.xpose.msra.mxu0 0.0
  %2109 = vmatprep.subr.mxu0 0.0
  %2110 = vmatpush2.xpose.msra.mxu0 0.0
  %2111 = vmatprep.subr.mxu0 0.0
  %2112 = vmatpush2.xpose.msra.mxu0 0.0
  %2113 = vmatprep.subr.mxu0 0.0
  %2114 = vmatpush2.xpose.msra.mxu0 0.0
  %2115 = vmatprep.subr.mxu0 0.0
  %2116 = vmatpush2.xpose.msra.mxu0 0.0
  %2117 = vmatprep.subr.mxu0 0.0
  %2118 = vmatpush2.xpose.msra.mxu0 0.0
  %2119 = vmatprep.subr.mxu0 0.0
  %2120 = vmatpush2.xpose.msra.mxu0 0.0
  %2121 = vmatprep.subr.mxu0 0.0
  %2122 = vmatpush2.xpose.msra.mxu0 0.0
  %2123 = vmatprep.subr.mxu0 0.0
  %2124 = vmatpush2.xpose.msra.mxu0 0.0
  %2125 = vmatprep.mubr.f32.mxu0 0.0
  %2126 = vmatmul.mubr.f32.gmra.mxu0 %v2044
  %v2127 = vpop.f32.mrf.mxu0
  %v2128 = vadd.f32 0.0, %v2127
  %v2129 = vpop.f32.mrf.mxu0
  %2130 = vmatprep.mubr.f32.mxu0 0.0
  %2131 = vmatmul.mubr.f32.gmra.mxu0 %v2047
  %v2132 = vpop.f32.mrf.mxu0
  %v2133 = vadd.f32 0.0, %v2132
  %v2134 = vpop.f32.mrf.mxu0
  %2135 = vmatprep.mubr.f32.mxu0 0.0
  %2136 = vmatmul.mubr.f32.gmra.mxu0 %v2050
  %v2137 = vpop.f32.mrf.mxu0
  %v2138 = vadd.f32 0.0, %v2137
  %v2139 = vpop.f32.mrf.mxu0
  %2140 = vdwg.mxu0
  %v2141 = vmul.f32 %v1442, 0.17677669
  %v2142 = vmul.f32 %v1447, 0.17677669
  %v2143 = vmul.f32 %v1452, 0.17677669
  %v2144 = vmul.f32 %v1540, 0.17677669
  %v2145 = vmul.f32 %v1545, 0.17677669
  %v2146 = vmul.f32 %v1550, 0.17677669
  %v2147 = vmul.f32 %v1638, 0.17677669
  %v2148 = vmul.f32 %v1643, 0.17677669
  %v2149 = vmul.f32 %v1648, 0.17677669
  %v2150 = vmul.f32 %v1736, 0.17677669
  %v2151 = vmul.f32 %v1741, 0.17677669
  %v2152 = vmul.f32 %v1746, 0.17677669
  %v2153 = vmul.f32 %v1834, 0.17677669
  %v2154 = vmul.f32 %v1839, 0.17677669
  %v2155 = vmul.f32 %v1844, 0.17677669
  %v2156 = vmul.f32 %v1932, 0.17677669
  %v2157 = vmul.f32 %v1937, 0.17677669
  %v2158 = vmul.f32 %v1942, 0.17677669
  %v2159 = vmul.f32 %v2030, 0.17677669
  %v2160 = vmul.f32 %v2035, 0.17677669
  %v2161 = vmul.f32 %v2040, 0.17677669
  %v2162 = vmul.f32 %v2128, 0.17677669
  %v2163 = vmul.f32 %v2133, 0.17677669
  %v2164 = vmul.f32 %v2138, 0.17677669
  %v2165 = vsel %vm345, 1, 0
  %vm2166 = vcmp.eq.s32.totalorder %v2165, 1
  %v2167 = vsel %vm2166, %v2141, -1e+30
  %v2168 = vsel %vm2166, %v2142, -1e+30
  %v2169 = vsel %vm2166, %v2143, -1e+30
  %v2170 = vsel %vm2166, %v2144, -1e+30
  %v2171 = vsel %vm2166, %v2145, -1e+30
  %v2172 = vsel %vm2166, %v2146, -1e+30
  %v2173 = vsel %vm2166, %v2147, -1e+30
  %v2174 = vsel %vm2166, %v2148, -1e+30
  %v2175 = vsel %vm2166, %v2149, -1e+30
  %v2176 = vsel %vm2166, %v2150, -1e+30
  %v2177 = vsel %vm2166, %v2151, -1e+30
  %v2178 = vsel %vm2166, %v2152, -1e+30
  %v2179 = vsel %vm2166, %v2153, -1e+30
  %v2180 = vsel %vm2166, %v2154, -1e+30
  %v2181 = vsel %vm2166, %v2155, -1e+30
  %v2182 = vsel %vm2166, %v2156, -1e+30
  %v2183 = vsel %vm2166, %v2157, -1e+30
  %v2184 = vsel %vm2166, %v2158, -1e+30
  %v2185 = vsel %vm2166, %v2159, -1e+30
  %v2186 = vsel %vm2166, %v2160, -1e+30
  %v2187 = vsel %vm2166, %v2161, -1e+30
  %v2188 = vsel %vm2166, %v2162, -1e+30
  %v2189 = vsel %vm2166, %v2163, -1e+30
  %v2190 = vsel %vm2166, %v2164, -1e+30
  %vm2191 = vcmask 195584
  %v2192 = vsel %vm2191, %v2167, -inf
  %2193 = vmax.xlane.f32.xlu0 %v2192
  %v2194 = vpop.xlane.xlu0 %2193
  %v2195 = vsel %vm2191, %v2168, -inf
  %2196 = vmax.xlane.f32.xlu0 %v2195
  %v2197 = vpop.xlane.xlu0 %2196
  %v2198 = vsel %vm2191, %v2169, -inf
  %2199 = vmax.xlane.f32.xlu0 %v2198
  %v2200 = vpop.xlane.xlu0 %2199
  %v2201 = vsel %vm2191, %v2170, -inf
  %2202 = vmax.xlane.f32.xlu0 %v2201
  %v2203 = vpop.xlane.xlu0 %2202
  %v2204 = vsel %vm2191, %v2171, -inf
  %2205 = vmax.xlane.f32.xlu0 %v2204
  %v2206 = vpop.xlane.xlu0 %2205
  %v2207 = vsel %vm2191, %v2172, -inf
  %2208 = vmax.xlane.f32.xlu0 %v2207
  %v2209 = vpop.xlane.xlu0 %2208
  %v2210 = vsel %vm2191, %v2173, -inf
  %2211 = vmax.xlane.f32.xlu0 %v2210
  %v2212 = vpop.xlane.xlu0 %2211
  %v2213 = vsel %vm2191, %v2174, -inf
  %2214 = vmax.xlane.f32.xlu0 %v2213
  %v2215 = vpop.xlane.xlu0 %2214
  %v2216 = vsel %vm2191, %v2175, -inf
  %2217 = vmax.xlane.f32.xlu0 %v2216
  %v2218 = vpop.xlane.xlu0 %2217
  %v2219 = vsel %vm2191, %v2176, -inf
  %2220 = vmax.xlane.f32.xlu0 %v2219
  %v2221 = vpop.xlane.xlu0 %2220
  %v2222 = vsel %vm2191, %v2177, -inf
  %2223 = vmax.xlane.f32.xlu0 %v2222
  %v2224 = vpop.xlane.xlu0 %2223
  %v2225 = vsel %vm2191, %v2178, -inf
  %2226 = vmax.xlane.f32.xlu0 %v2225
  %v2227 = vpop.xlane.xlu0 %2226
  %v2228 = vsel %vm2191, %v2179, -inf
  %2229 = vmax.xlane.f32.xlu0 %v2228
  %v2230 = vpop.xlane.xlu0 %2229
  %v2231 = vsel %vm2191, %v2180, -inf
  %2232 = vmax.xlane.f32.xlu0 %v2231
  %v2233 = vpop.xlane.xlu0 %2232
  %v2234 = vsel %vm2191, %v2181, -inf
  %2235 = vmax.xlane.f32.xlu0 %v2234
  %v2236 = vpop.xlane.xlu0 %2235
  %v2237 = vsel %vm2191, %v2182, -inf
  %2238 = vmax.xlane.f32.xlu0 %v2237
  %v2239 = vpop.xlane.xlu0 %2238
  %v2240 = vsel %vm2191, %v2183, -inf
  %2241 = vmax.xlane.f32.xlu0 %v2240
  %v2242 = vpop.xlane.xlu0 %2241
  %v2243 = vsel %vm2191, %v2184, -inf
  %2244 = vmax.xlane.f32.xlu0 %v2243
  %v2245 = vpop.xlane.xlu0 %2244
  %v2246 = vsel %vm2191, %v2185, -inf
  %2247 = vmax.xlane.f32.xlu0 %v2246
  %v2248 = vpop.xlane.xlu0 %2247
  %v2249 = vsel %vm2191, %v2186, -inf
  %2250 = vmax.xlane.f32.xlu0 %v2249
  %v2251 = vpop.xlane.xlu0 %2250
  %v2252 = vsel %vm2191, %v2187, -inf
  %2253 = vmax.xlane.f32.xlu0 %v2252
  %v2254 = vpop.xlane.xlu0 %2253
  %v2255 = vsel %vm2191, %v2188, -inf
  %2256 = vmax.xlane.f32.xlu0 %v2255
  %v2257 = vpop.xlane.xlu0 %2256
  %v2258 = vsel %vm2191, %v2189, -inf
  %2259 = vmax.xlane.f32.xlu0 %v2258
  %v2260 = vpop.xlane.xlu0 %2259
  %v2261 = vsel %vm2191, %v2190, -inf
  %2262 = vmax.xlane.f32.xlu0 %v2261
  %v2263 = vpop.xlane.xlu0 %2262
  %v2264 = vsub.f32 %v2167, %v2194
  %v2265 = vsub.f32 %v2168, %v2197
  %v2266 = vsub.f32 %v2169, %v2200
  %v2267 = vsub.f32 %v2170, %v2203
  %v2268 = vsub.f32 %v2171, %v2206
  %v2269 = vsub.f32 %v2172, %v2209
  %v2270 = vsub.f32 %v2173, %v2212
  %v2271 = vsub.f32 %v2174, %v2215
  %v2272 = vsub.f32 %v2175, %v2218
  %v2273 = vsub.f32 %v2176, %v2221
  %v2274 = vsub.f32 %v2177, %v2224
  %v2275 = vsub.f32 %v2178, %v2227
  %v2276 = vsub.f32 %v2179, %v2230
  %v2277 = vsub.f32 %v2180, %v2233
  %v2278 = vsub.f32 %v2181, %v2236
  %v2279 = vsub.f32 %v2182, %v2239
  %v2280 = vsub.f32 %v2183, %v2242
  %v2281 = vsub.f32 %v2184, %v2245
  %v2282 = vsub.f32 %v2185, %v2248
  %v2283 = vsub.f32 %v2186, %v2251
  %v2284 = vsub.f32 %v2187, %v2254
  %v2285 = vsub.f32 %v2188, %v2257
  %v2286 = vsub.f32 %v2189, %v2260
  %v2287 = vsub.f32 %v2190, %v2263
  %v2288 = vmul.f32 %v2264, 1.442695
  %v2289 = vpow.pop %v2288
  %v2290 = vmul.f32 %v2265, 1.442695
  %v2291 = vpow.pop %v2290
  %v2292 = vmul.f32 %v2266, 1.442695
  %v2293 = vpow.pop %v2292
  %v2294 = vmul.f32 %v2267, 1.442695
  %v2295 = vpow.pop %v2294
  %v2296 = vmul.f32 %v2268, 1.442695
  %v2297 = vpow.pop %v2296
  %v2298 = vmul.f32 %v2269, 1.442695
  %v2299 = vpow.pop %v2298
  %v2300 = vmul.f32 %v2270, 1.442695
  %v2301 = vpow.pop %v2300
  %v2302 = vmul.f32 %v2271, 1.442695
  %v2303 = vpow.pop %v2302
  %v2304 = vmul.f32 %v2272, 1.442695
  %v2305 = vpow.pop %v2304
  %v2306 = vmul.f32 %v2273, 1.442695
  %v2307 = vpow.pop %v2306
  %v2308 = vmul.f32 %v2274, 1.442695
  %v2309 = vpow.pop %v2308
  %v2310 = vmul.f32 %v2275, 1.442695
  %v2311 = vpow.pop %v2310
  %v2312 = vmul.f32 %v2276, 1.442695
  %v2313 = vpow.pop %v2312
  %v2314 = vmul.f32 %v2277, 1.442695
  %v2315 = vpow.pop %v2314
  %v2316 = vmul.f32 %v2278, 1.442695
  %v2317 = vpow.pop %v2316
  %v2318 = vmul.f32 %v2279, 1.442695
  %v2319 = vpow.pop %v2318
  %v2320 = vmul.f32 %v2280, 1.442695
  %v2321 = vpow.pop %v2320
  %v2322 = vmul.f32 %v2281, 1.442695
  %v2323 = vpow.pop %v2322
  %v2324 = vmul.f32 %v2282, 1.442695
  %v2325 = vpow.pop %v2324
  %v2326 = vmul.f32 %v2283, 1.442695
  %v2327 = vpow.pop %v2326
  %v2328 = vmul.f32 %v2284, 1.442695
  %v2329 = vpow.pop %v2328
  %v2330 = vmul.f32 %v2285, 1.442695
  %v2331 = vpow.pop %v2330
  %v2332 = vmul.f32 %v2286, 1.442695
  %v2333 = vpow.pop %v2332
  %v2334 = vmul.f32 %v2287, 1.442695
  %v2335 = vpow.pop %v2334
  %v2336 = vsel %vm2191, %v2289, 0.0
  %2337 = vadd.xlane.f32.xlu0 %v2336
  %v2338 = vpop.xlane.xlu0 %2337
  %v2339 = vsel %vm2191, %v2291, 0.0
  %2340 = vadd.xlane.f32.xlu0 %v2339
  %v2341 = vpop.xlane.xlu0 %2340
  %v2342 = vsel %vm2191, %v2293, 0.0
  %2343 = vadd.xlane.f32.xlu0 %v2342
  %v2344 = vpop.xlane.xlu0 %2343
  %v2345 = vsel %vm2191, %v2295, 0.0
  %2346 = vadd.xlane.f32.xlu0 %v2345
  %v2347 = vpop.xlane.xlu0 %2346
  %v2348 = vsel %vm2191, %v2297, 0.0
  %2349 = vadd.xlane.f32.xlu0 %v2348
  %v2350 = vpop.xlane.xlu0 %2349
  %v2351 = vsel %vm2191, %v2299, 0.0
  %2352 = vadd.xlane.f32.xlu0 %v2351
  %v2353 = vpop.xlane.xlu0 %2352
  %v2354 = vsel %vm2191, %v2301, 0.0
  %2355 = vadd.xlane.f32.xlu0 %v2354
  %v2356 = vpop.xlane.xlu0 %2355
  %v2357 = vsel %vm2191, %v2303, 0.0
  %2358 = vadd.xlane.f32.xlu0 %v2357
  %v2359 = vpop.xlane.xlu0 %2358
  %v2360 = vsel %vm2191, %v2305, 0.0
  %2361 = vadd.xlane.f32.xlu0 %v2360
  %v2362 = vpop.xlane.xlu0 %2361
  %v2363 = vsel %vm2191, %v2307, 0.0
  %2364 = vadd.xlane.f32.xlu0 %v2363
  %v2365 = vpop.xlane.xlu0 %2364
  %v2366 = vsel %vm2191, %v2309, 0.0
  %2367 = vadd.xlane.f32.xlu0 %v2366
  %v2368 = vpop.xlane.xlu0 %2367
  %v2369 = vsel %vm2191, %v2311, 0.0
  %2370 = vadd.xlane.f32.xlu0 %v2369
  %v2371 = vpop.xlane.xlu0 %2370
  %v2372 = vsel %vm2191, %v2313, 0.0
  %2373 = vadd.xlane.f32.xlu0 %v2372
  %v2374 = vpop.xlane.xlu0 %2373
  %v2375 = vsel %vm2191, %v2315, 0.0
  %2376 = vadd.xlane.f32.xlu0 %v2375
  %v2377 = vpop.xlane.xlu0 %2376
  %v2378 = vsel %vm2191, %v2317, 0.0
  %2379 = vadd.xlane.f32.xlu0 %v2378
  %v2380 = vpop.xlane.xlu0 %2379
  %v2381 = vsel %vm2191, %v2319, 0.0
  %2382 = vadd.xlane.f32.xlu0 %v2381
  %v2383 = vpop.xlane.xlu0 %2382
  %v2384 = vsel %vm2191, %v2321, 0.0
  %2385 = vadd.xlane.f32.xlu0 %v2384
  %v2386 = vpop.xlane.xlu0 %2385
  %v2387 = vsel %vm2191, %v2323, 0.0
  %2388 = vadd.xlane.f32.xlu0 %v2387
  %v2389 = vpop.xlane.xlu0 %2388
  %v2390 = vsel %vm2191, %v2325, 0.0
  %2391 = vadd.xlane.f32.xlu0 %v2390
  %v2392 = vpop.xlane.xlu0 %2391
  %v2393 = vsel %vm2191, %v2327, 0.0
  %2394 = vadd.xlane.f32.xlu0 %v2393
  %v2395 = vpop.xlane.xlu0 %2394
  %v2396 = vsel %vm2191, %v2329, 0.0
  %2397 = vadd.xlane.f32.xlu0 %v2396
  %v2398 = vpop.xlane.xlu0 %2397
  %v2399 = vsel %vm2191, %v2331, 0.0
  %2400 = vadd.xlane.f32.xlu0 %v2399
  %v2401 = vpop.xlane.xlu0 %2400
  %v2402 = vsel %vm2191, %v2333, 0.0
  %2403 = vadd.xlane.f32.xlu0 %v2402
  %v2404 = vpop.xlane.xlu0 %2403
  %v2405 = vsel %vm2191, %v2335, 0.0
  %2406 = vadd.xlane.f32.xlu0 %v2405
  %v2407 = vpop.xlane.xlu0 %2406
  %v2408 = vrcp.pop %v2338
  %v2409 = vrcp.pop %v2341
  %v2410 = vrcp.pop %v2344
  %v2411 = vrcp.pop %v2347
  %v2412 = vrcp.pop %v2350
  %v2413 = vrcp.pop %v2353
  %v2414 = vrcp.pop %v2356
  %v2415 = vrcp.pop %v2359
  %v2416 = vrcp.pop %v2362
  %v2417 = vrcp.pop %v2365
  %v2418 = vrcp.pop %v2368
  %v2419 = vrcp.pop %v2371
  %v2420 = vrcp.pop %v2374
  %v2421 = vrcp.pop %v2377
  %v2422 = vrcp.pop %v2380
  %v2423 = vrcp.pop %v2383
  %v2424 = vrcp.pop %v2386
  %v2425 = vrcp.pop %v2389
  %v2426 = vrcp.pop %v2392
  %v2427 = vrcp.pop %v2395
  %v2428 = vrcp.pop %v2398
  %v2429 = vrcp.pop %v2401
  %v2430 = vrcp.pop %v2404
  %v2431 = vrcp.pop %v2407
  %v2432 = vmul.f32 %v2289, %v2408
  %v2433 = vmul.f32 %v2291, %v2409
  %v2434 = vmul.f32 %v2293, %v2410
  %v2435 = vmul.f32 %v2295, %v2411
  %v2436 = vmul.f32 %v2297, %v2412
  %v2437 = vmul.f32 %v2299, %v2413
  %v2438 = vmul.f32 %v2301, %v2414
  %v2439 = vmul.f32 %v2303, %v2415
  %v2440 = vmul.f32 %v2305, %v2416
  %v2441 = vmul.f32 %v2307, %v2417
  %v2442 = vmul.f32 %v2309, %v2418
  %v2443 = vmul.f32 %v2311, %v2419
  %v2444 = vmul.f32 %v2313, %v2420
  %v2445 = vmul.f32 %v2315, %v2421
  %v2446 = vmul.f32 %v2317, %v2422
  %v2447 = vmul.f32 %v2319, %v2423
  %v2448 = vmul.f32 %v2321, %v2424
  %v2449 = vmul.f32 %v2323, %v2425
  %v2450 = vmul.f32 %v2325, %v2426
  %v2451 = vmul.f32 %v2327, %v2427
  %v2452 = vmul.f32 %v2329, %v2428
  %v2453 = vmul.f32 %v2331, %v2429
  %v2454 = vmul.f32 %v2333, %v2430
  %v2455 = vmul.f32 %v2335, %v2431
  %v2457 = vsel %vm2191, %v2432, 0
  %v2460 = vsel %vm2191, %v2433, 0
  %v2463 = vsel %vm2191, %v2434, 0
  %2465 = vmatprep.subr.mxu0 0.0
  %2466 = vmatpush1.msra.mxu0 0.0
  %2467 = vmatprep.subr.mxu0 0.0
  %2468 = vmatpush1.msra.mxu0 0.0
  %2469 = vmatprep.subr.mxu0 0.0
  %2470 = vmatpush1.msra.mxu0 0.0
  %2471 = vmatprep.subr.mxu0 0.0
  %2472 = vmatpush1.msra.mxu0 0.0
  %2473 = vmatprep.subr.mxu0 0.0
  %2474 = vmatpush1.msra.mxu0 0.0
  %2475 = vmatprep.subr.mxu0 0.0
  %2476 = vmatpush1.msra.mxu0 0.0
  %2477 = vmatprep.subr.mxu0 0.0
  %2478 = vmatpush1.msra.mxu0 0.0
  %2479 = vmatprep.subr.mxu0 0.0
  %2480 = vmatpush1.msra.mxu0 0.0
  %2481 = vmatprep.subr.mxu0 0.0
  %2482 = vmatpush1.msra.mxu0 0.0
  %2483 = vmatprep.subr.mxu0 0.0
  %2484 = vmatpush1.msra.mxu0 0.0
  %2485 = vmatprep.subr.mxu0 0.0
  %2486 = vmatpush1.msra.mxu0 0.0
  %2487 = vmatprep.subr.mxu0 0.0
  %2488 = vmatpush1.msra.mxu0 0.0
  %2489 = vmatprep.subr.mxu0 0.0
  %2490 = vmatpush1.msra.mxu0 0.0
  %2491 = vmatprep.subr.mxu0 0.0
  %2492 = vmatpush1.msra.mxu0 %v1248
  %2493 = vmatprep.subr.mxu0 0.0
  %2494 = vmatpush1.msra.mxu0 %v1243
  %2495 = vmatprep.subr.mxu0 0.0
  %2496 = vmatpush1.msra.mxu0 %v1238
  %2497 = vmatprep.subr.mxu0 0.0
  %2498 = vmatpush2.msra.mxu0 0.0
  %2499 = vmatprep.subr.mxu0 0.0
  %2500 = vmatpush2.msra.mxu0 0.0
  %2501 = vmatprep.subr.mxu0 0.0
  %2502 = vmatpush2.msra.mxu0 0.0
  %2503 = vmatprep.subr.mxu0 0.0
  %2504 = vmatpush2.msra.mxu0 0.0
  %2505 = vmatprep.subr.mxu0 0.0
  %2506 = vmatpush2.msra.mxu0 0.0
  %2507 = vmatprep.subr.mxu0 0.0
  %2508 = vmatpush2.msra.mxu0 0.0
  %2509 = vmatprep.subr.mxu0 0.0
  %2510 = vmatpush2.msra.mxu0 0.0
  %2511 = vmatprep.subr.mxu0 0.0
  %2512 = vmatpush2.msra.mxu0 0.0
  %2513 = vmatprep.subr.mxu0 0.0
  %2514 = vmatpush2.msra.mxu0 0.0
  %2515 = vmatprep.subr.mxu0 0.0
  %2516 = vmatpush2.msra.mxu0 0.0
  %2517 = vmatprep.subr.mxu0 0.0
  %2518 = vmatpush2.msra.mxu0 0.0
  %2519 = vmatprep.subr.mxu0 0.0
  %2520 = vmatpush2.msra.mxu0 0.0
  %2521 = vmatprep.subr.mxu0 0.0
  %2522 = vmatpush2.msra.mxu0 0.0
  %2523 = vmatprep.subr.mxu0 0.0
  %2524 = vmatpush2.msra.mxu0 0.0
  %2525 = vmatprep.subr.mxu0 0.0
  %2526 = vmatpush2.msra.mxu0 0.0
  %2527 = vmatprep.subr.mxu0 0.0
  %2528 = vmatpush2.msra.mxu0 0.0
  %2529 = vmatprep.mubr.f32.mxu0 0.0
  %2530 = vmatmul.mubr.f32.gmra.mxu0 %v2457
  %v2531 = vpop.f32.mrf.mxu0
  %v2532 = vadd.f32 0.0, %v2531
  %v2533 = vpop.f32.mrf.mxu0
  %2534 = vmatprep.mubr.f32.mxu0 0.0
  %2535 = vmatmul.mubr.f32.gmra.mxu0 %v2460
  %v2536 = vpop.f32.mrf.mxu0
  %v2537 = vadd.f32 0.0, %v2536
  %v2538 = vpop.f32.mrf.mxu0
  %2539 = vmatprep.mubr.f32.mxu0 0.0
  %2540 = vmatmul.mubr.f32.gmra.mxu0 %v2463
  %v2541 = vpop.f32.mrf.mxu0
  %v2542 = vadd.f32 0.0, %v2541
  %v2543 = vpop.f32.mrf.mxu0
  %2544 = vdwg.mxu0
  %v2546 = vsel %vm2191, %v2435, 0
  %v2549 = vsel %vm2191, %v2436, 0
  %v2552 = vsel %vm2191, %v2437, 0
  %2554 = vmatprep.subr.mxu0 0.0
  %2555 = vmatpush1.msra.mxu0 0.0
  %2556 = vmatprep.subr.mxu0 0.0
  %2557 = vmatpush1.msra.mxu0 0.0
  %2558 = vmatprep.subr.mxu0 0.0
  %2559 = vmatpush1.msra.mxu0 0.0
  %2560 = vmatprep.subr.mxu0 0.0
  %2561 = vmatpush1.msra.mxu0 0.0
  %2562 = vmatprep.subr.mxu0 0.0
  %2563 = vmatpush1.msra.mxu0 0.0
  %2564 = vmatprep.subr.mxu0 0.0
  %2565 = vmatpush1.msra.mxu0 0.0
  %2566 = vmatprep.subr.mxu0 0.0
  %2567 = vmatpush1.msra.mxu0 0.0
  %2568 = vmatprep.subr.mxu0 0.0
  %2569 = vmatpush1.msra.mxu0 0.0
  %2570 = vmatprep.subr.mxu0 0.0
  %2571 = vmatpush1.msra.mxu0 0.0
  %2572 = vmatprep.subr.mxu0 0.0
  %2573 = vmatpush1.msra.mxu0 0.0
  %2574 = vmatprep.subr.mxu0 0.0
  %2575 = vmatpush1.msra.mxu0 0.0
  %2576 = vmatprep.subr.mxu0 0.0
  %2577 = vmatpush1.msra.mxu0 0.0
  %2578 = vmatprep.subr.mxu0 0.0
  %2579 = vmatpush1.msra.mxu0 0.0
  %2580 = vmatprep.subr.mxu0 0.0
  %2581 = vmatpush1.msra.mxu0 %v1263
  %2582 = vmatprep.subr.mxu0 0.0
  %2583 = vmatpush1.msra.mxu0 %v1258
  %2584 = vmatprep.subr.mxu0 0.0
  %2585 = vmatpush1.msra.mxu0 %v1253
  %2586 = vmatprep.subr.mxu0 0.0
  %2587 = vmatpush2.msra.mxu0 0.0
  %2588 = vmatprep.subr.mxu0 0.0
  %2589 = vmatpush2.msra.mxu0 0.0
  %2590 = vmatprep.subr.mxu0 0.0
  %2591 = vmatpush2.msra.mxu0 0.0
  %2592 = vmatprep.subr.mxu0 0.0
  %2593 = vmatpush2.msra.mxu0 0.0
  %2594 = vmatprep.subr.mxu0 0.0
  %2595 = vmatpush2.msra.mxu0 0.0
  %2596 = vmatprep.subr.mxu0 0.0
  %2597 = vmatpush2.msra.mxu0 0.0
  %2598 = vmatprep.subr.mxu0 0.0
  %2599 = vmatpush2.msra.mxu0 0.0
  %2600 = vmatprep.subr.mxu0 0.0
  %2601 = vmatpush2.msra.mxu0 0.0
  %2602 = vmatprep.subr.mxu0 0.0
  %2603 = vmatpush2.msra.mxu0 0.0
  %2604 = vmatprep.subr.mxu0 0.0
  %2605 = vmatpush2.msra.mxu0 0.0
  %2606 = vmatprep.subr.mxu0 0.0
  %2607 = vmatpush2.msra.mxu0 0.0
  %2608 = vmatprep.subr.mxu0 0.0
  %2609 = vmatpush2.msra.mxu0 0.0
  %2610 = vmatprep.subr.mxu0 0.0
  %2611 = vmatpush2.msra.mxu0 0.0
  %2612 = vmatprep.subr.mxu0 0.0
  %2613 = vmatpush2.msra.mxu0 0.0
  %2614 = vmatprep.subr.mxu0 0.0
  %2615 = vmatpush2.msra.mxu0 0.0
  %2616 = vmatprep.subr.mxu0 0.0
  %2617 = vmatpush2.msra.mxu0 0.0
  %2618 = vmatprep.mubr.f32.mxu0 0.0
  %2619 = vmatmul.mubr.f32.gmra.mxu0 %v2546
  %v2620 = vpop.f32.mrf.mxu0
  %v2621 = vadd.f32 0.0, %v2620
  %v2622 = vpop.f32.mrf.mxu0
  %2623 = vmatprep.mubr.f32.mxu0 0.0
  %2624 = vmatmul.mubr.f32.gmra.mxu0 %v2549
  %v2625 = vpop.f32.mrf.mxu0
  %v2626 = vadd.f32 0.0, %v2625
  %v2627 = vpop.f32.mrf.mxu0
  %2628 = vmatprep.mubr.f32.mxu0 0.0
  %2629 = vmatmul.mubr.f32.gmra.mxu0 %v2552
  %v2630 = vpop.f32.mrf.mxu0
  %v2631 = vadd.f32 0.0, %v2630
  %v2632 = vpop.f32.mrf.mxu0
  %2633 = vdwg.mxu0
  %v2635 = vsel %vm2191, %v2438, 0
  %v2638 = vsel %vm2191, %v2439, 0
  %v2641 = vsel %vm2191, %v2440, 0
  %2643 = vmatprep.subr.mxu0 0.0
  %2644 = vmatpush1.msra.mxu0 0.0
  %2645 = vmatprep.subr.mxu0 0.0
  %2646 = vmatpush1.msra.mxu0 0.0
  %2647 = vmatprep.subr.mxu0 0.0
  %2648 = vmatpush1.msra.mxu0 0.0
  %2649 = vmatprep.subr.mxu0 0.0
  %2650 = vmatpush1.msra.mxu0 0.0
  %2651 = vmatprep.subr.mxu0 0.0
  %2652 = vmatpush1.msra.mxu0 0.0
  %2653 = vmatprep.subr.mxu0 0.0
  %2654 = vmatpush1.msra.mxu0 0.0
  %2655 = vmatprep.subr.mxu0 0.0
  %2656 = vmatpush1.msra.mxu0 0.0
  %2657 = vmatprep.subr.mxu0 0.0
  %2658 = vmatpush1.msra.mxu0 0.0
  %2659 = vmatprep.subr.mxu0 0.0
  %2660 = vmatpush1.msra.mxu0 0.0
  %2661 = vmatprep.subr.mxu0 0.0
  %2662 = vmatpush1.msra.mxu0 0.0
  %2663 = vmatprep.subr.mxu0 0.0
  %2664 = vmatpush1.msra.mxu0 0.0
  %2665 = vmatprep.subr.mxu0 0.0
  %2666 = vmatpush1.msra.mxu0 0.0
  %2667 = vmatprep.subr.mxu0 0.0
  %2668 = vmatpush1.msra.mxu0 0.0
  %2669 = vmatprep.subr.mxu0 0.0
  %2670 = vmatpush1.msra.mxu0 %v1278
  %2671 = vmatprep.subr.mxu0 0.0
  %2672 = vmatpush1.msra.mxu0 %v1273
  %2673 = vmatprep.subr.mxu0 0.0
  %2674 = vmatpush1.msra.mxu0 %v1268
  %2675 = vmatprep.subr.mxu0 0.0
  %2676 = vmatpush2.msra.mxu0 0.0
  %2677 = vmatprep.subr.mxu0 0.0
  %2678 = vmatpush2.msra.mxu0 0.0
  %2679 = vmatprep.subr.mxu0 0.0
  %2680 = vmatpush2.msra.mxu0 0.0
  %2681 = vmatprep.subr.mxu0 0.0
  %2682 = vmatpush2.msra.mxu0 0.0
  %2683 = vmatprep.subr.mxu0 0.0
  %2684 = vmatpush2.msra.mxu0 0.0
  %2685 = vmatprep.subr.mxu0 0.0
  %2686 = vmatpush2.msra.mxu0 0.0
  %2687 = vmatprep.subr.mxu0 0.0
  %2688 = vmatpush2.msra.mxu0 0.0
  %2689 = vmatprep.subr.mxu0 0.0
  %2690 = vmatpush2.msra.mxu0 0.0
  %2691 = vmatprep.subr.mxu0 0.0
  %2692 = vmatpush2.msra.mxu0 0.0
  %2693 = vmatprep.subr.mxu0 0.0
  %2694 = vmatpush2.msra.mxu0 0.0
  %2695 = vmatprep.subr.mxu0 0.0
  %2696 = vmatpush2.msra.mxu0 0.0
  %2697 = vmatprep.subr.mxu0 0.0
  %2698 = vmatpush2.msra.mxu0 0.0
  %2699 = vmatprep.subr.mxu0 0.0
  %2700 = vmatpush2.msra.mxu0 0.0
  %2701 = vmatprep.subr.mxu0 0.0
  %2702 = vmatpush2.msra.mxu0 0.0
  %2703 = vmatprep.subr.mxu0 0.0
  %2704 = vmatpush2.msra.mxu0 0.0
  %2705 = vmatprep.subr.mxu0 0.0
  %2706 = vmatpush2.msra.mxu0 0.0
  %2707 = vmatprep.mubr.f32.mxu0 0.0
  %2708 = vmatmul.mubr.f32.gmra.mxu0 %v2635
  %v2709 = vpop.f32.mrf.mxu0
  %v2710 = vadd.f32 0.0, %v2709
  %v2711 = vpop.f32.mrf.mxu0
  %2712 = vmatprep.mubr.f32.mxu0 0.0
  %2713 = vmatmul.mubr.f32.gmra.mxu0 %v2638
  %v2714 = vpop.f32.mrf.mxu0
  %v2715 = vadd.f32 0.0, %v2714
  %v2716 = vpop.f32.mrf.mxu0
  %2717 = vmatprep.mubr.f32.mxu0 0.0
  %2718 = vmatmul.mubr.f32.gmra.mxu0 %v2641
  %v2719 = vpop.f32.mrf.mxu0
  %v2720 = vadd.f32 0.0, %v2719
  %v2721 = vpop.f32.mrf.mxu0
  %2722 = vdwg.mxu0
  %v2724 = vsel %vm2191, %v2441, 0
  %v2727 = vsel %vm2191, %v2442, 0
  %v2730 = vsel %vm2191, %v2443, 0
  %2732 = vmatprep.subr.mxu0 0.0
  %2733 = vmatpush1.msra.mxu0 0.0
  %2734 = vmatprep.subr.mxu0 0.0
  %2735 = vmatpush1.msra.mxu0 0.0
  %2736 = vmatprep.subr.mxu0 0.0
  %2737 = vmatpush1.msra.mxu0 0.0
  %2738 = vmatprep.subr.mxu0 0.0
  %2739 = vmatpush1.msra.mxu0 0.0
  %2740 = vmatprep.subr.mxu0 0.0
  %2741 = vmatpush1.msra.mxu0 0.0
  %2742 = vmatprep.subr.mxu0 0.0
  %2743 = vmatpush1.msra.mxu0 0.0
  %2744 = vmatprep.subr.mxu0 0.0
  %2745 = vmatpush1.msra.mxu0 0.0
  %2746 = vmatprep.subr.mxu0 0.0
  %2747 = vmatpush1.msra.mxu0 0.0
  %2748 = vmatprep.subr.mxu0 0.0
  %2749 = vmatpush1.msra.mxu0 0.0
  %2750 = vmatprep.subr.mxu0 0.0
  %2751 = vmatpush1.msra.mxu0 0.0
  %2752 = vmatprep.subr.mxu0 0.0
  %2753 = vmatpush1.msra.mxu0 0.0
  %2754 = vmatprep.subr.mxu0 0.0
  %2755 = vmatpush1.msra.mxu0 0.0
  %2756 = vmatprep.subr.mxu0 0.0
  %2757 = vmatpush1.msra.mxu0 0.0
  %2758 = vmatprep.subr.mxu0 0.0
  %2759 = vmatpush1.msra.mxu0 %v1293
  %2760 = vmatprep.subr.mxu0 0.0
  %2761 = vmatpush1.msra.mxu0 %v1288
  %2762 = vmatprep.subr.mxu0 0.0
  %2763 = vmatpush1.msra.mxu0 %v1283
  %2764 = vmatprep.subr.mxu0 0.0
  %2765 = vmatpush2.msra.mxu0 0.0
  %2766 = vmatprep.subr.mxu0 0.0
  %2767 = vmatpush2.msra.mxu0 0.0
  %2768 = vmatprep.subr.mxu0 0.0
  %2769 = vmatpush2.msra.mxu0 0.0
  %2770 = vmatprep.subr.mxu0 0.0
  %2771 = vmatpush2.msra.mxu0 0.0
  %2772 = vmatprep.subr.mxu0 0.0
  %2773 = vmatpush2.msra.mxu0 0.0
  %2774 = vmatprep.subr.mxu0 0.0
  %2775 = vmatpush2.msra.mxu0 0.0
  %2776 = vmatprep.subr.mxu0 0.0
  %2777 = vmatpush2.msra.mxu0 0.0
  %2778 = vmatprep.subr.mxu0 0.0
  %2779 = vmatpush2.msra.mxu0 0.0
  %2780 = vmatprep.subr.mxu0 0.0
  %2781 = vmatpush2.msra.mxu0 0.0
  %2782 = vmatprep.subr.mxu0 0.0
  %2783 = vmatpush2.msra.mxu0 0.0
  %2784 = vmatprep.subr.mxu0 0.0
  %2785 = vmatpush2.msra.mxu0 0.0
  %2786 = vmatprep.subr.mxu0 0.0
  %2787 = vmatpush2.msra.mxu0 0.0
  %2788 = vmatprep.subr.mxu0 0.0
  %2789 = vmatpush2.msra.mxu0 0.0
  %2790 = vmatprep.subr.mxu0 0.0
  %2791 = vmatpush2.msra.mxu0 0.0
  %2792 = vmatprep.subr.mxu0 0.0
  %2793 = vmatpush2.msra.mxu0 0.0
  %2794 = vmatprep.subr.mxu0 0.0
  %2795 = vmatpush2.msra.mxu0 0.0
  %2796 = vmatprep.mubr.f32.mxu0 0.0
  %2797 = vmatmul.mubr.f32.gmra.mxu0 %v2724
  %v2798 = vpop.f32.mrf.mxu0
  %v2799 = vadd.f32 0.0, %v2798
  %v2800 = vpop.f32.mrf.mxu0
  %2801 = vmatprep.mubr.f32.mxu0 0.0
  %2802 = vmatmul.mubr.f32.gmra.mxu0 %v2727
  %v2803 = vpop.f32.mrf.mxu0
  %v2804 = vadd.f32 0.0, %v2803
  %v2805 = vpop.f32.mrf.mxu0
  %2806 = vmatprep.mubr.f32.mxu0 0.0
  %2807 = vmatmul.mubr.f32.gmra.mxu0 %v2730
  %v2808 = vpop.f32.mrf.mxu0
  %v2809 = vadd.f32 0.0, %v2808
  %v2810 = vpop.f32.mrf.mxu0
  %2811 = vdwg.mxu0
  %v2813 = vsel %vm2191, %v2444, 0
  %v2816 = vsel %vm2191, %v2445, 0
  %v2819 = vsel %vm2191, %v2446, 0
  %2821 = vmatprep.subr.mxu0 0.0
  %2822 = vmatpush1.msra.mxu0 0.0
  %2823 = vmatprep.subr.mxu0 0.0
  %2824 = vmatpush1.msra.mxu0 0.0
  %2825 = vmatprep.subr.mxu0 0.0
  %2826 = vmatpush1.msra.mxu0 0.0
  %2827 = vmatprep.subr.mxu0 0.0
  %2828 = vmatpush1.msra.mxu0 0.0
  %2829 = vmatprep.subr.mxu0 0.0
  %2830 = vmatpush1.msra.mxu0 0.0
  %2831 = vmatprep.subr.mxu0 0.0
  %2832 = vmatpush1.msra.mxu0 0.0
  %2833 = vmatprep.subr.mxu0 0.0
  %2834 = vmatpush1.msra.mxu0 0.0
  %2835 = vmatprep.subr.mxu0 0.0
  %2836 = vmatpush1.msra.mxu0 0.0
  %2837 = vmatprep.subr.mxu0 0.0
  %2838 = vmatpush1.msra.mxu0 0.0
  %2839 = vmatprep.subr.mxu0 0.0
  %2840 = vmatpush1.msra.mxu0 0.0
  %2841 = vmatprep.subr.mxu0 0.0
  %2842 = vmatpush1.msra.mxu0 0.0
  %2843 = vmatprep.subr.mxu0 0.0
  %2844 = vmatpush1.msra.mxu0 0.0
  %2845 = vmatprep.subr.mxu0 0.0
  %2846 = vmatpush1.msra.mxu0 0.0
  %2847 = vmatprep.subr.mxu0 0.0
  %2848 = vmatpush1.msra.mxu0 %v1308
  %2849 = vmatprep.subr.mxu0 0.0
  %2850 = vmatpush1.msra.mxu0 %v1303
  %2851 = vmatprep.subr.mxu0 0.0
  %2852 = vmatpush1.msra.mxu0 %v1298
  %2853 = vmatprep.subr.mxu0 0.0
  %2854 = vmatpush2.msra.mxu0 0.0
  %2855 = vmatprep.subr.mxu0 0.0
  %2856 = vmatpush2.msra.mxu0 0.0
  %2857 = vmatprep.subr.mxu0 0.0
  %2858 = vmatpush2.msra.mxu0 0.0
  %2859 = vmatprep.subr.mxu0 0.0
  %2860 = vmatpush2.msra.mxu0 0.0
  %2861 = vmatprep.subr.mxu0 0.0
  %2862 = vmatpush2.msra.mxu0 0.0
  %2863 = vmatprep.subr.mxu0 0.0
  %2864 = vmatpush2.msra.mxu0 0.0
  %2865 = vmatprep.subr.mxu0 0.0
  %2866 = vmatpush2.msra.mxu0 0.0
  %2867 = vmatprep.subr.mxu0 0.0
  %2868 = vmatpush2.msra.mxu0 0.0
  %2869 = vmatprep.subr.mxu0 0.0
  %2870 = vmatpush2.msra.mxu0 0.0
  %2871 = vmatprep.subr.mxu0 0.0
  %2872 = vmatpush2.msra.mxu0 0.0
  %2873 = vmatprep.subr.mxu0 0.0
  %2874 = vmatpush2.msra.mxu0 0.0
  %2875 = vmatprep.subr.mxu0 0.0
  %2876 = vmatpush2.msra.mxu0 0.0
  %2877 = vmatprep.subr.mxu0 0.0
  %2878 = vmatpush2.msra.mxu0 0.0
  %2879 = vmatprep.subr.mxu0 0.0
  %2880 = vmatpush2.msra.mxu0 0.0
  %2881 = vmatprep.subr.mxu0 0.0
  %2882 = vmatpush2.msra.mxu0 0.0
  %2883 = vmatprep.subr.mxu0 0.0
  %2884 = vmatpush2.msra.mxu0 0.0
  %2885 = vmatprep.mubr.f32.mxu0 0.0
  %2886 = vmatmul.mubr.f32.gmra.mxu0 %v2813
  %v2887 = vpop.f32.mrf.mxu0
  %v2888 = vadd.f32 0.0, %v2887
  %v2889 = vpop.f32.mrf.mxu0
  %2890 = vmatprep.mubr.f32.mxu0 0.0
  %2891 = vmatmul.mubr.f32.gmra.mxu0 %v2816
  %v2892 = vpop.f32.mrf.mxu0
  %v2893 = vadd.f32 0.0, %v2892
  %v2894 = vpop.f32.mrf.mxu0
  %2895 = vmatprep.mubr.f32.mxu0 0.0
  %2896 = vmatmul.mubr.f32.gmra.mxu0 %v2819
  %v2897 = vpop.f32.mrf.mxu0
  %v2898 = vadd.f32 0.0, %v2897
  %v2899 = vpop.f32.mrf.mxu0
  %2900 = vdwg.mxu0
  %v2902 = vsel %vm2191, %v2447, 0
  %v2905 = vsel %vm2191, %v2448, 0
  %v2908 = vsel %vm2191, %v2449, 0
  %2910 = vmatprep.subr.mxu0 0.0
  %2911 = vmatpush1.msra.mxu0 0.0
  %2912 = vmatprep.subr.mxu0 0.0
  %2913 = vmatpush1.msra.mxu0 0.0
  %2914 = vmatprep.subr.mxu0 0.0
  %2915 = vmatpush1.msra.mxu0 0.0
  %2916 = vmatprep.subr.mxu0 0.0
  %2917 = vmatpush1.msra.mxu0 0.0
  %2918 = vmatprep.subr.mxu0 0.0
  %2919 = vmatpush1.msra.mxu0 0.0
  %2920 = vmatprep.subr.mxu0 0.0
  %2921 = vmatpush1.msra.mxu0 0.0
  %2922 = vmatprep.subr.mxu0 0.0
  %2923 = vmatpush1.msra.mxu0 0.0
  %2924 = vmatprep.subr.mxu0 0.0
  %2925 = vmatpush1.msra.mxu0 0.0
  %2926 = vmatprep.subr.mxu0 0.0
  %2927 = vmatpush1.msra.mxu0 0.0
  %2928 = vmatprep.subr.mxu0 0.0
  %2929 = vmatpush1.msra.mxu0 0.0
  %2930 = vmatprep.subr.mxu0 0.0
  %2931 = vmatpush1.msra.mxu0 0.0
  %2932 = vmatprep.subr.mxu0 0.0
  %2933 = vmatpush1.msra.mxu0 0.0
  %2934 = vmatprep.subr.mxu0 0.0
  %2935 = vmatpush1.msra.mxu0 0.0
  %2936 = vmatprep.subr.mxu0 0.0
  %2937 = vmatpush1.msra.mxu0 %v1323
  %2938 = vmatprep.subr.mxu0 0.0
  %2939 = vmatpush1.msra.mxu0 %v1318
  %2940 = vmatprep.subr.mxu0 0.0
  %2941 = vmatpush1.msra.mxu0 %v1313
  %2942 = vmatprep.subr.mxu0 0.0
  %2943 = vmatpush2.msra.mxu0 0.0
  %2944 = vmatprep.subr.mxu0 0.0
  %2945 = vmatpush2.msra.mxu0 0.0
  %2946 = vmatprep.subr.mxu0 0.0
  %2947 = vmatpush2.msra.mxu0 0.0
  %2948 = vmatprep.subr.mxu0 0.0
  %2949 = vmatpush2.msra.mxu0 0.0
  %2950 = vmatprep.subr.mxu0 0.0
  %2951 = vmatpush2.msra.mxu0 0.0
  %2952 = vmatprep.subr.mxu0 0.0
  %2953 = vmatpush2.msra.mxu0 0.0
  %2954 = vmatprep.subr.mxu0 0.0
  %2955 = vmatpush2.msra.mxu0 0.0
  %2956 = vmatprep.subr.mxu0 0.0
  %2957 = vmatpush2.msra.mxu0 0.0
  %2958 = vmatprep.subr.mxu0 0.0
  %2959 = vmatpush2.msra.mxu0 0.0
  %2960 = vmatprep.subr.mxu0 0.0
  %2961 = vmatpush2.msra.mxu0 0.0
  %2962 = vmatprep.subr.mxu0 0.0
  %2963 = vmatpush2.msra.mxu0 0.0
  %2964 = vmatprep.subr.mxu0 0.0
  %2965 = vmatpush2.msra.mxu0 0.0
  %2966 = vmatprep.subr.mxu0 0.0
  %2967 = vmatpush2.msra.mxu0 0.0
  %2968 = vmatprep.subr.mxu0 0.0
  %2969 = vmatpush2.msra.mxu0 0.0
  %2970 = vmatprep.subr.mxu0 0.0
  %2971 = vmatpush2.msra.mxu0 0.0
  %2972 = vmatprep.subr.mxu0 0.0
  %2973 = vmatpush2.msra.mxu0 0.0
  %2974 = vmatprep.mubr.f32.mxu0 0.0
  %2975 = vmatmul.mubr.f32.gmra.mxu0 %v2902
  %v2976 = vpop.f32.mrf.mxu0
  %v2977 = vadd.f32 0.0, %v2976
  %v2978 = vpop.f32.mrf.mxu0
  %2979 = vmatprep.mubr.f32.mxu0 0.0
  %2980 = vmatmul.mubr.f32.gmra.mxu0 %v2905
  %v2981 = vpop.f32.mrf.mxu0
  %v2982 = vadd.f32 0.0, %v2981
  %v2983 = vpop.f32.mrf.mxu0
  %2984 = vmatprep.mubr.f32.mxu0 0.0
  %2985 = vmatmul.mubr.f32.gmra.mxu0 %v2908
  %v2986 = vpop.f32.mrf.mxu0
  %v2987 = vadd.f32 0.0, %v2986
  %v2988 = vpop.f32.mrf.mxu0
  %2989 = vdwg.mxu0
  %v2991 = vsel %vm2191, %v2450, 0
  %v2994 = vsel %vm2191, %v2451, 0
  %v2997 = vsel %vm2191, %v2452, 0
  %2999 = vmatprep.subr.mxu0 0.0
  %3000 = vmatpush1.msra.mxu0 0.0
  %3001 = vmatprep.subr.mxu0 0.0
  %3002 = vmatpush1.msra.mxu0 0.0
  %3003 = vmatprep.subr.mxu0 0.0
  %3004 = vmatpush1.msra.mxu0 0.0
  %3005 = vmatprep.subr.mxu0 0.0
  %3006 = vmatpush1.msra.mxu0 0.0
  %3007 = vmatprep.subr.mxu0 0.0
  %3008 = vmatpush1.msra.mxu0 0.0
  %3009 = vmatprep.subr.mxu0 0.0
  %3010 = vmatpush1.msra.mxu0 0.0
  %3011 = vmatprep.subr.mxu0 0.0
  %3012 = vmatpush1.msra.mxu0 0.0
  %3013 = vmatprep.subr.mxu0 0.0
  %3014 = vmatpush1.msra.mxu0 0.0
  %3015 = vmatprep.subr.mxu0 0.0
  %3016 = vmatpush1.msra.mxu0 0.0
  %3017 = vmatprep.subr.mxu0 0.0
  %3018 = vmatpush1.msra.mxu0 0.0
  %3019 = vmatprep.subr.mxu0 0.0
  %3020 = vmatpush1.msra.mxu0 0.0
  %3021 = vmatprep.subr.mxu0 0.0
  %3022 = vmatpush1.msra.mxu0 0.0
  %3023 = vmatprep.subr.mxu0 0.0
  %3024 = vmatpush1.msra.mxu0 0.0
  %3025 = vmatprep.subr.mxu0 0.0
  %3026 = vmatpush1.msra.mxu0 %v1338
  %3027 = vmatprep.subr.mxu0 0.0
  %3028 = vmatpush1.msra.mxu0 %v1333
  %3029 = vmatprep.subr.mxu0 0.0
  %3030 = vmatpush1.msra.mxu0 %v1328
  %3031 = vmatprep.subr.mxu0 0.0
  %3032 = vmatpush2.msra.mxu0 0.0
  %3033 = vmatprep.subr.mxu0 0.0
  %3034 = vmatpush2.msra.mxu0 0.0
  %3035 = vmatprep.subr.mxu0 0.0
  %3036 = vmatpush2.msra.mxu0 0.0
  %3037 = vmatprep.subr.mxu0 0.0
  %3038 = vmatpush2.msra.mxu0 0.0
  %3039 = vmatprep.subr.mxu0 0.0
  %3040 = vmatpush2.msra.mxu0 0.0
  %3041 = vmatprep.subr.mxu0 0.0
  %3042 = vmatpush2.msra.mxu0 0.0
  %3043 = vmatprep.subr.mxu0 0.0
  %3044 = vmatpush2.msra.mxu0 0.0
  %3045 = vmatprep.subr.mxu0 0.0
  %3046 = vmatpush2.msra.mxu0 0.0
  %3047 = vmatprep.subr.mxu0 0.0
  %3048 = vmatpush2.msra.mxu0 0.0
  %3049 = vmatprep.subr.mxu0 0.0
  %3050 = vmatpush2.msra.mxu0 0.0
  %3051 = vmatprep.subr.mxu0 0.0
  %3052 = vmatpush2.msra.mxu0 0.0
  %3053 = vmatprep.subr.mxu0 0.0
  %3054 = vmatpush2.msra.mxu0 0.0
  %3055 = vmatprep.subr.mxu0 0.0
  %3056 = vmatpush2.msra.mxu0 0.0
  %3057 = vmatprep.subr.mxu0 0.0
  %3058 = vmatpush2.msra.mxu0 0.0
  %3059 = vmatprep.subr.mxu0 0.0
  %3060 = vmatpush2.msra.mxu0 0.0
  %3061 = vmatprep.subr.mxu0 0.0
  %3062 = vmatpush2.msra.mxu0 0.0
  %3063 = vmatprep.mubr.f32.mxu0 0.0
  %3064 = vmatmul.mubr.f32.gmra.mxu0 %v2991
  %v3065 = vpop.f32.mrf.mxu0
  %v3066 = vadd.f32 0.0, %v3065
  %v3067 = vpop.f32.mrf.mxu0
  %3068 = vmatprep.mubr.f32.mxu0 0.0
  %3069 = vmatmul.mubr.f32.gmra.mxu0 %v2994
  %v3070 = vpop.f32.mrf.mxu0
  %v3071 = vadd.f32 0.0, %v3070
  %v3072 = vpop.f32.mrf.mxu0
  %3073 = vmatprep.mubr.f32.mxu0 0.0
  %3074 = vmatmul.mubr.f32.gmra.mxu0 %v2997
  %v3075 = vpop.f32.mrf.mxu0
  %v3076 = vadd.f32 0.0, %v3075
  %v3077 = vpop.f32.mrf.mxu0
  %3078 = vdwg.mxu0
  %v3080 = vsel %vm2191, %v2453, 0
  %v3083 = vsel %vm2191, %v2454, 0
  %v3086 = vsel %vm2191, %v2455, 0
  %3088 = vmatprep.subr.mxu0 0.0
  %3089 = vmatpush1.msra.mxu0 0.0
  %3090 = vmatprep.subr.mxu0 0.0
  %3091 = vmatpush1.msra.mxu0 0.0
  %3092 = vmatprep.subr.mxu0 0.0
  %3093 = vmatpush1.msra.mxu0 0.0
  %3094 = vmatprep.subr.mxu0 0.0
  %3095 = vmatpush1.msra.mxu0 0.0
  %3096 = vmatprep.subr.mxu0 0.0
  %3097 = vmatpush1.msra.mxu0 0.0
  %3098 = vmatprep.subr.mxu0 0.0
  %3099 = vmatpush1.msra.mxu0 0.0
  %3100 = vmatprep.subr.mxu0 0.0
  %3101 = vmatpush1.msra.mxu0 0.0
  %3102 = vmatprep.subr.mxu0 0.0
  %3103 = vmatpush1.msra.mxu0 0.0
  %3104 = vmatprep.subr.mxu0 0.0
  %3105 = vmatpush1.msra.mxu0 0.0
  %3106 = vmatprep.subr.mxu0 0.0
  %3107 = vmatpush1.msra.mxu0 0.0
  %3108 = vmatprep.subr.mxu0 0.0
  %3109 = vmatpush1.msra.mxu0 0.0
  %3110 = vmatprep.subr.mxu0 0.0
  %3111 = vmatpush1.msra.mxu0 0.0
  %3112 = vmatprep.subr.mxu0 0.0
  %3113 = vmatpush1.msra.mxu0 0.0
  %3114 = vmatprep.subr.mxu0 0.0
  %3115 = vmatpush1.msra.mxu0 %v1353
  %3116 = vmatprep.subr.mxu0 0.0
  %3117 = vmatpush1.msra.mxu0 %v1348
  %3118 = vmatprep.subr.mxu0 0.0
  %3119 = vmatpush1.msra.mxu0 %v1343
  %3120 = vmatprep.subr.mxu0 0.0
  %3121 = vmatpush2.msra.mxu0 0.0
  %3122 = vmatprep.subr.mxu0 0.0
  %3123 = vmatpush2.msra.mxu0 0.0
  %3124 = vmatprep.subr.mxu0 0.0
  %3125 = vmatpush2.msra.mxu0 0.0
  %3126 = vmatprep.subr.mxu0 0.0
  %3127 = vmatpush2.msra.mxu0 0.0
  %3128 = vmatprep.subr.mxu0 0.0
  %3129 = vmatpush2.msra.mxu0 0.0
  %3130 = vmatprep.subr.mxu0 0.0
  %3131 = vmatpush2.msra.mxu0 0.0
  %3132 = vmatprep.subr.mxu0 0.0
  %3133 = vmatpush2.msra.mxu0 0.0
  %3134 = vmatprep.subr.mxu0 0.0
  %3135 = vmatpush2.msra.mxu0 0.0
  %3136 = vmatprep.subr.mxu0 0.0
  %3137 = vmatpush2.msra.mxu0 0.0
  %3138 = vmatprep.subr.mxu0 0.0
  %3139 = vmatpush2.msra.mxu0 0.0
  %3140 = vmatprep.subr.mxu0 0.0
  %3141 = vmatpush2.msra.mxu0 0.0
  %3142 = vmatprep.subr.mxu0 0.0
  %3143 = vmatpush2.msra.mxu0 0.0
  %3144 = vmatprep.subr.mxu0 0.0
  %3145 = vmatpush2.msra.mxu0 0.0
  %3146 = vmatprep.subr.mxu0 0.0
  %3147 = vmatpush2.msra.mxu0 0.0
  %3148 = vmatprep.subr.mxu0 0.0
  %3149 = vmatpush2.msra.mxu0 0.0
  %3150 = vmatprep.subr.mxu0 0.0
  %3151 = vmatpush2.msra.mxu0 0.0
  %3152 = vmatprep.mubr.f32.mxu0 0.0
  %3153 = vmatmul.mubr.f32.gmra.mxu0 %v3080
  %v3154 = vpop.f32.mrf.mxu0
  %v3155 = vadd.f32 0.0, %v3154
  %v3156 = vpop.f32.mrf.mxu0
  %3157 = vmatprep.mubr.f32.mxu0 0.0
  %3158 = vmatmul.mubr.f32.gmra.mxu0 %v3083
  %v3159 = vpop.f32.mrf.mxu0
  %v3160 = vadd.f32 0.0, %v3159
  %v3161 = vpop.f32.mrf.mxu0
  %3162 = vmatprep.mubr.f32.mxu0 0.0
  %3163 = vmatmul.mubr.f32.gmra.mxu0 %v3086
  %v3164 = vpop.f32.mrf.mxu0
  %v3165 = vadd.f32 0.0, %v3164
  %v3166 = vpop.f32.mrf.mxu0
  %3167 = vdwg.mxu0
  %s3168 = scalar_lea.vmem %s6, 32
  %v3169 = vld [vmem:[%s3168] sm:$0xff]
  %v3170 = vld [vmem:[%s3168 + $0x8] sm:$0xff]
  %v3171 = vld [vmem:[%s3168 + $0x10] sm:$0xff]
  %v3172 = vld [vmem:[%s3168 + $0x18] sm:$0xff]
  %3173 = vmatprep.subr.mxu0 0.0
  %3174 = vmatpush1.msra.mxu0 0.0
  %3175 = vmatprep.subr.mxu0 0.0
  %3176 = vmatpush1.msra.mxu0 0.0
  %3177 = vmatprep.subr.mxu0 0.0
  %3178 = vmatpush1.msra.mxu0 0.0
  %3179 = vmatprep.subr.mxu0 0.0
  %3180 = vmatpush1.msra.mxu0 0.0
  %3181 = vmatprep.subr.mxu0 0.0
  %3182 = vmatpush1.msra.mxu0 0.0
  %3183 = vmatprep.subr.mxu0 0.0
  %3184 = vmatpush1.msra.mxu0 0.0
  %3185 = vmatprep.subr.mxu0 0.0
  %3186 = vmatpush1.msra.mxu0 0.0
  %3187 = vmatprep.subr.mxu0 0.0
  %3188 = vmatpush1.msra.mxu0 0.0
  %3189 = vmatprep.subr.mxu0 0.0
  %3190 = vmatpush1.msra.mxu0 0.0
  %3191 = vmatprep.subr.mxu0 0.0
  %3192 = vmatpush1.msra.mxu0 0.0
  %3193 = vmatprep.subr.mxu0 0.0
  %3194 = vmatpush1.msra.mxu0 0.0
  %3195 = vmatprep.subr.mxu0 0.0
  %3196 = vmatpush1.msra.mxu0 0.0
  %3197 = vmatprep.subr.mxu0 0.0
  %3198 = vmatpush1.msra.mxu0 %v3172
  %3199 = vmatprep.subr.mxu0 0.0
  %3200 = vmatpush1.msra.mxu0 %v3171
  %3201 = vmatprep.subr.mxu0 0.0
  %3202 = vmatpush1.msra.mxu0 %v3170
  %3203 = vmatprep.subr.mxu0 0.0
  %3204 = vmatpush1.msra.mxu0 %v3169
  %3205 = vmatprep.subr.mxu0 0.0
  %3206 = vmatpush2.msra.mxu0 0.0
  %3207 = vmatprep.subr.mxu0 0.0
  %3208 = vmatpush2.msra.mxu0 0.0
  %3209 = vmatprep.subr.mxu0 0.0
  %3210 = vmatpush2.msra.mxu0 0.0
  %3211 = vmatprep.subr.mxu0 0.0
  %3212 = vmatpush2.msra.mxu0 0.0
  %3213 = vmatprep.subr.mxu0 0.0
  %3214 = vmatpush2.msra.mxu0 0.0
  %3215 = vmatprep.subr.mxu0 0.0
  %3216 = vmatpush2.msra.mxu0 0.0
  %3217 = vmatprep.subr.mxu0 0.0
  %3218 = vmatpush2.msra.mxu0 0.0
  %3219 = vmatprep.subr.mxu0 0.0
  %3220 = vmatpush2.msra.mxu0 0.0
  %3221 = vmatprep.subr.mxu0 0.0
  %3222 = vmatpush2.msra.mxu0 0.0
  %3223 = vmatprep.subr.mxu0 0.0
  %3224 = vmatpush2.msra.mxu0 0.0
  %3225 = vmatprep.subr.mxu0 0.0
  %3226 = vmatpush2.msra.mxu0 0.0
  %3227 = vmatprep.subr.mxu0 0.0
  %3228 = vmatpush2.msra.mxu0 0.0
  %3229 = vmatprep.subr.mxu0 0.0
  %3230 = vmatpush2.msra.mxu0 0.0
  %3231 = vmatprep.subr.mxu0 0.0
  %3232 = vmatpush2.msra.mxu0 0.0
  %3233 = vmatprep.subr.mxu0 0.0
  %3234 = vmatpush2.msra.mxu0 0.0
  %3235 = vmatprep.subr.mxu0 0.0
  %3236 = vmatpush2.msra.mxu0 0.0
  %3237 = vmatprep.mubr.f32.mxu0 0.0
  %3238 = vmatmul.mubr.f32.gmra.mxu0 %v722
  %v3239 = vpop.f32.mrf.mxu0
  %v3240 = vadd.f32 0.0, %v3239
  %v3241 = vpop.f32.mrf.mxu0
  %3242 = vmatprep.mubr.f32.mxu0 0.0
  %3243 = vmatmul.mubr.f32.gmra.mxu0 %v725
  %v3244 = vpop.f32.mrf.mxu0
  %v3245 = vadd.f32 0.0, %v3244
  %v3246 = vpop.f32.mrf.mxu0
  %3247 = vmatprep.mubr.f32.mxu0 0.0
  %3248 = vmatmul.mubr.f32.gmra.mxu0 %v728
  %v3249 = vpop.f32.mrf.mxu0
  %v3250 = vadd.f32 0.0, %v3249
  %v3251 = vpop.f32.mrf.mxu0
  %3252 = vmatprep.mubr.f32.mxu0 0.0
  %3253 = vmatmul.mubr.f32.gmra.mxu0 %v731
  %v3254 = vpop.f32.mrf.mxu0
  %v3255 = vadd.f32 0.0, %v3254
  %v3256 = vpop.f32.mrf.mxu0
  %3257 = vmatprep.mubr.f32.mxu0 0.0
  %3258 = vmatmul.mubr.f32.gmra.mxu0 %v734
  %v3259 = vpop.f32.mrf.mxu0
  %v3260 = vadd.f32 0.0, %v3259
  %v3261 = vpop.f32.mrf.mxu0
  %3262 = vmatprep.mubr.f32.mxu0 0.0
  %3263 = vmatmul.mubr.f32.gmra.mxu0 %v737
  %v3264 = vpop.f32.mrf.mxu0
  %v3265 = vadd.f32 0.0, %v3264
  %v3266 = vpop.f32.mrf.mxu0
  %3267 = vmatprep.mubr.f32.mxu0 0.0
  %3268 = vmatmul.mubr.f32.gmra.mxu0 %v740
  %v3269 = vpop.f32.mrf.mxu0
  %v3270 = vadd.f32 0.0, %v3269
  %v3271 = vpop.f32.mrf.mxu0
  %3272 = vmatprep.mubr.f32.mxu0 0.0
  %3273 = vmatmul.mubr.f32.gmra.mxu0 %v743
  %v3274 = vpop.f32.mrf.mxu0
  %v3275 = vadd.f32 0.0, %v3274
  %v3276 = vpop.f32.mrf.mxu0
  %3277 = vmatprep.mubr.f32.mxu0 0.0
  %3278 = vmatmul.mubr.f32.gmra.mxu0 %v746
  %v3279 = vpop.f32.mrf.mxu0
  %v3280 = vadd.f32 0.0, %v3279
  %v3281 = vpop.f32.mrf.mxu0
  %3282 = vmatprep.mubr.f32.mxu0 0.0
  %3283 = vmatmul.mubr.f32.gmra.mxu0 %v749
  %v3284 = vpop.f32.mrf.mxu0
  %v3285 = vadd.f32 0.0, %v3284
  %v3286 = vpop.f32.mrf.mxu0
  %3287 = vmatprep.mubr.f32.mxu0 0.0
  %3288 = vmatmul.mubr.f32.gmra.mxu0 %v752
  %v3289 = vpop.f32.mrf.mxu0
  %v3290 = vadd.f32 0.0, %v3289
  %v3291 = vpop.f32.mrf.mxu0
  %3292 = vmatprep.mubr.f32.mxu0 0.0
  %3293 = vmatmul.mubr.f32.gmra.mxu0 %v755
  %v3294 = vpop.f32.mrf.mxu0
  %v3295 = vadd.f32 0.0, %v3294
  %v3296 = vpop.f32.mrf.mxu0
  %3297 = vmatprep.mubr.f32.mxu0 0.0
  %3298 = vmatmul.mubr.f32.gmra.mxu0 %v758
  %v3299 = vpop.f32.mrf.mxu0
  %v3300 = vadd.f32 0.0, %v3299
  %v3301 = vpop.f32.mrf.mxu0
  %3302 = vmatprep.mubr.f32.mxu0 0.0
  %3303 = vmatmul.mubr.f32.gmra.mxu0 %v761
  %v3304 = vpop.f32.mrf.mxu0
  %v3305 = vadd.f32 0.0, %v3304
  %v3306 = vpop.f32.mrf.mxu0
  %3307 = vmatprep.mubr.f32.mxu0 0.0
  %3308 = vmatmul.mubr.f32.gmra.mxu0 %v764
  %v3309 = vpop.f32.mrf.mxu0
  %v3310 = vadd.f32 0.0, %v3309
  %v3311 = vpop.f32.mrf.mxu0
  %3312 = vmatprep.mubr.f32.mxu0 0.0
  %3313 = vmatmul.mubr.f32.gmra.mxu0 %v767
  %v3314 = vpop.f32.mrf.mxu0
  %v3315 = vadd.f32 0.0, %v3314
  %v3316 = vpop.f32.mrf.mxu0
  %3317 = vmatprep.mubr.f32.mxu0 0.0
  %3318 = vmatmul.mubr.f32.gmra.mxu0 %v770
  %v3319 = vpop.f32.mrf.mxu0
  %v3320 = vadd.f32 0.0, %v3319
  %v3321 = vpop.f32.mrf.mxu0
  %3322 = vmatprep.mubr.f32.mxu0 0.0
  %3323 = vmatmul.mubr.f32.gmra.mxu0 %v773
  %v3324 = vpop.f32.mrf.mxu0
  %v3325 = vadd.f32 0.0, %v3324
  %v3326 = vpop.f32.mrf.mxu0
  %3327 = vmatprep.mubr.f32.mxu0 0.0
  %3328 = vmatmul.mubr.f32.gmra.mxu0 %v776
  %v3329 = vpop.f32.mrf.mxu0
  %v3330 = vadd.f32 0.0, %v3329
  %v3331 = vpop.f32.mrf.mxu0
  %3332 = vmatprep.mubr.f32.mxu0 0.0
  %3333 = vmatmul.mubr.f32.gmra.mxu0 %v779
  %v3334 = vpop.f32.mrf.mxu0
  %v3335 = vadd.f32 0.0, %v3334
  %v3336 = vpop.f32.mrf.mxu0
  %3337 = vmatprep.mubr.f32.mxu0 0.0
  %3338 = vmatmul.mubr.f32.gmra.mxu0 %v782
  %v3339 = vpop.f32.mrf.mxu0
  %v3340 = vadd.f32 0.0, %v3339
  %v3341 = vpop.f32.mrf.mxu0
  %3342 = vmatprep.mubr.f32.mxu0 0.0
  %3343 = vmatmul.mubr.f32.gmra.mxu0 %v785
  %v3344 = vpop.f32.mrf.mxu0
  %v3345 = vadd.f32 0.0, %v3344
  %v3346 = vpop.f32.mrf.mxu0
  %3347 = vmatprep.mubr.f32.mxu0 0.0
  %3348 = vmatmul.mubr.f32.gmra.mxu0 %v788
  %v3349 = vpop.f32.mrf.mxu0
  %v3350 = vadd.f32 0.0, %v3349
  %v3351 = vpop.f32.mrf.mxu0
  %3352 = vmatprep.mubr.f32.mxu0 0.0
  %3353 = vmatmul.mubr.f32.gmra.mxu0 %v791
  %v3354 = vpop.f32.mrf.mxu0
  %v3355 = vadd.f32 0.0, %v3354
  %v3356 = vpop.f32.mrf.mxu0
  %3357 = vdwg.mxu0
  %s3358 = scalar_lea.vmem %s7, 32
  %v3359 = vld [vmem:[%s3358] sm:$0xff]
  %v3360 = vld [vmem:[%s3358 + $0x8] sm:$0xff]
  %v3361 = vld [vmem:[%s3358 + $0x10] sm:$0xff]
  %v3362 = vld [vmem:[%s3358 + $0x18] sm:$0xff]
  %3363 = vmatprep.subr.mxu0 0.0
  %3364 = vmatpush1.msra.mxu0 0.0
  %3365 = vmatprep.subr.mxu0 0.0
  %3366 = vmatpush1.msra.mxu0 0.0
  %3367 = vmatprep.subr.mxu0 0.0
  %3368 = vmatpush1.msra.mxu0 0.0
  %3369 = vmatprep.subr.mxu0 0.0
  %3370 = vmatpush1.msra.mxu0 0.0
  %3371 = vmatprep.subr.mxu0 0.0
  %3372 = vmatpush1.msra.mxu0 0.0
  %3373 = vmatprep.subr.mxu0 0.0
  %3374 = vmatpush1.msra.mxu0 0.0
  %3375 = vmatprep.subr.mxu0 0.0
  %3376 = vmatpush1.msra.mxu0 0.0
  %3377 = vmatprep.subr.mxu0 0.0
  %3378 = vmatpush1.msra.mxu0 0.0
  %3379 = vmatprep.subr.mxu0 0.0
  %3380 = vmatpush1.msra.mxu0 0.0
  %3381 = vmatprep.subr.mxu0 0.0
  %3382 = vmatpush1.msra.mxu0 0.0
  %3383 = vmatprep.subr.mxu0 0.0
  %3384 = vmatpush1.msra.mxu0 0.0
  %3385 = vmatprep.subr.mxu0 0.0
  %3386 = vmatpush1.msra.mxu0 0.0
  %3387 = vmatprep.subr.mxu0 0.0
  %3388 = vmatpush1.msra.mxu0 %v3362
  %3389 = vmatprep.subr.mxu0 0.0
  %3390 = vmatpush1.msra.mxu0 %v3361
  %3391 = vmatprep.subr.mxu0 0.0
  %3392 = vmatpush1.msra.mxu0 %v3360
  %3393 = vmatprep.subr.mxu0 0.0
  %3394 = vmatpush1.msra.mxu0 %v3359
  %3395 = vmatprep.subr.mxu0 0.0
  %3396 = vmatpush2.msra.mxu0 0.0
  %3397 = vmatprep.subr.mxu0 0.0
  %3398 = vmatpush2.msra.mxu0 0.0
  %3399 = vmatprep.subr.mxu0 0.0
  %3400 = vmatpush2.msra.mxu0 0.0
  %3401 = vmatprep.subr.mxu0 0.0
  %3402 = vmatpush2.msra.mxu0 0.0
  %3403 = vmatprep.subr.mxu0 0.0
  %3404 = vmatpush2.msra.mxu0 0.0
  %3405 = vmatprep.subr.mxu0 0.0
  %3406 = vmatpush2.msra.mxu0 0.0
  %3407 = vmatprep.subr.mxu0 0.0
  %3408 = vmatpush2.msra.mxu0 0.0
  %3409 = vmatprep.subr.mxu0 0.0
  %3410 = vmatpush2.msra.mxu0 0.0
  %3411 = vmatprep.subr.mxu0 0.0
  %3412 = vmatpush2.msra.mxu0 0.0
  %3413 = vmatprep.subr.mxu0 0.0
  %3414 = vmatpush2.msra.mxu0 0.0
  %3415 = vmatprep.subr.mxu0 0.0
  %3416 = vmatpush2.msra.mxu0 0.0
  %3417 = vmatprep.subr.mxu0 0.0
  %3418 = vmatpush2.msra.mxu0 0.0
  %3419 = vmatprep.subr.mxu0 0.0
  %3420 = vmatpush2.msra.mxu0 0.0
  %3421 = vmatprep.subr.mxu0 0.0
  %3422 = vmatpush2.msra.mxu0 0.0
  %3423 = vmatprep.subr.mxu0 0.0
  %3424 = vmatpush2.msra.mxu0 0.0
  %3425 = vmatprep.subr.mxu0 0.0
  %3426 = vmatpush2.msra.mxu0 0.0
  %3427 = vmatprep.mubr.f32.mxu0 0.0
  %3428 = vmatmul.mubr.f32.gmra.mxu0 %v722
  %v3429 = vpop.f32.mrf.mxu0
  %v3430 = vadd.f32 0.0, %v3429
  %v3431 = vpop.f32.mrf.mxu0
  %3432 = vmatprep.mubr.f32.mxu0 0.0
  %3433 = vmatmul.mubr.f32.gmra.mxu0 %v725
  %v3434 = vpop.f32.mrf.mxu0
  %v3435 = vadd.f32 0.0, %v3434
  %v3436 = vpop.f32.mrf.mxu0
  %3437 = vmatprep.mubr.f32.mxu0 0.0
  %3438 = vmatmul.mubr.f32.gmra.mxu0 %v728
  %v3439 = vpop.f32.mrf.mxu0
  %v3440 = vadd.f32 0.0, %v3439
  %v3441 = vpop.f32.mrf.mxu0
  %3442 = vmatprep.mubr.f32.mxu0 0.0
  %3443 = vmatmul.mubr.f32.gmra.mxu0 %v731
  %v3444 = vpop.f32.mrf.mxu0
  %v3445 = vadd.f32 0.0, %v3444
  %v3446 = vpop.f32.mrf.mxu0
  %3447 = vmatprep.mubr.f32.mxu0 0.0
  %3448 = vmatmul.mubr.f32.gmra.mxu0 %v734
  %v3449 = vpop.f32.mrf.mxu0
  %v3450 = vadd.f32 0.0, %v3449
  %v3451 = vpop.f32.mrf.mxu0
  %3452 = vmatprep.mubr.f32.mxu0 0.0
  %3453 = vmatmul.mubr.f32.gmra.mxu0 %v737
  %v3454 = vpop.f32.mrf.mxu0
  %v3455 = vadd.f32 0.0, %v3454
  %v3456 = vpop.f32.mrf.mxu0
  %3457 = vmatprep.mubr.f32.mxu0 0.0
  %3458 = vmatmul.mubr.f32.gmra.mxu0 %v740
  %v3459 = vpop.f32.mrf.mxu0
  %v3460 = vadd.f32 0.0, %v3459
  %v3461 = vpop.f32.mrf.mxu0
  %3462 = vmatprep.mubr.f32.mxu0 0.0
  %3463 = vmatmul.mubr.f32.gmra.mxu0 %v743
  %v3464 = vpop.f32.mrf.mxu0
  %v3465 = vadd.f32 0.0, %v3464
  %v3466 = vpop.f32.mrf.mxu0
  %3467 = vmatprep.mubr.f32.mxu0 0.0
  %3468 = vmatmul.mubr.f32.gmra.mxu0 %v746
  %v3469 = vpop.f32.mrf.mxu0
  %v3470 = vadd.f32 0.0, %v3469
  %v3471 = vpop.f32.mrf.mxu0
  %3472 = vmatprep.mubr.f32.mxu0 0.0
  %3473 = vmatmul.mubr.f32.gmra.mxu0 %v749
  %v3474 = vpop.f32.mrf.mxu0
  %v3475 = vadd.f32 0.0, %v3474
  %v3476 = vpop.f32.mrf.mxu0
  %3477 = vmatprep.mubr.f32.mxu0 0.0
  %3478 = vmatmul.mubr.f32.gmra.mxu0 %v752
  %v3479 = vpop.f32.mrf.mxu0
  %v3480 = vadd.f32 0.0, %v3479
  %v3481 = vpop.f32.mrf.mxu0
  %3482 = vmatprep.mubr.f32.mxu0 0.0
  %3483 = vmatmul.mubr.f32.gmra.mxu0 %v755
  %v3484 = vpop.f32.mrf.mxu0
  %v3485 = vadd.f32 0.0, %v3484
  %v3486 = vpop.f32.mrf.mxu0
  %3487 = vmatprep.mubr.f32.mxu0 0.0
  %3488 = vmatmul.mubr.f32.gmra.mxu0 %v758
  %v3489 = vpop.f32.mrf.mxu0
  %v3490 = vadd.f32 0.0, %v3489
  %v3491 = vpop.f32.mrf.mxu0
  %3492 = vmatprep.mubr.f32.mxu0 0.0
  %3493 = vmatmul.mubr.f32.gmra.mxu0 %v761
  %v3494 = vpop.f32.mrf.mxu0
  %v3495 = vadd.f32 0.0, %v3494
  %v3496 = vpop.f32.mrf.mxu0
  %3497 = vmatprep.mubr.f32.mxu0 0.0
  %3498 = vmatmul.mubr.f32.gmra.mxu0 %v764
  %v3499 = vpop.f32.mrf.mxu0
  %v3500 = vadd.f32 0.0, %v3499
  %v3501 = vpop.f32.mrf.mxu0
  %3502 = vmatprep.mubr.f32.mxu0 0.0
  %3503 = vmatmul.mubr.f32.gmra.mxu0 %v767
  %v3504 = vpop.f32.mrf.mxu0
  %v3505 = vadd.f32 0.0, %v3504
  %v3506 = vpop.f32.mrf.mxu0
  %3507 = vmatprep.mubr.f32.mxu0 0.0
  %3508 = vmatmul.mubr.f32.gmra.mxu0 %v770
  %v3509 = vpop.f32.mrf.mxu0
  %v3510 = vadd.f32 0.0, %v3509
  %v3511 = vpop.f32.mrf.mxu0
  %3512 = vmatprep.mubr.f32.mxu0 0.0
  %3513 = vmatmul.mubr.f32.gmra.mxu0 %v773
  %v3514 = vpop.f32.mrf.mxu0
  %v3515 = vadd.f32 0.0, %v3514
  %v3516 = vpop.f32.mrf.mxu0
  %3517 = vmatprep.mubr.f32.mxu0 0.0
  %3518 = vmatmul.mubr.f32.gmra.mxu0 %v776
  %v3519 = vpop.f32.mrf.mxu0
  %v3520 = vadd.f32 0.0, %v3519
  %v3521 = vpop.f32.mrf.mxu0
  %3522 = vmatprep.mubr.f32.mxu0 0.0
  %3523 = vmatmul.mubr.f32.gmra.mxu0 %v779
  %v3524 = vpop.f32.mrf.mxu0
  %v3525 = vadd.f32 0.0, %v3524
  %v3526 = vpop.f32.mrf.mxu0
  %3527 = vmatprep.mubr.f32.mxu0 0.0
  %3528 = vmatmul.mubr.f32.gmra.mxu0 %v782
  %v3529 = vpop.f32.mrf.mxu0
  %v3530 = vadd.f32 0.0, %v3529
  %v3531 = vpop.f32.mrf.mxu0
  %3532 = vmatprep.mubr.f32.mxu0 0.0
  %3533 = vmatmul.mubr.f32.gmra.mxu0 %v785
  %v3534 = vpop.f32.mrf.mxu0
  %v3535 = vadd.f32 0.0, %v3534
  %v3536 = vpop.f32.mrf.mxu0
  %3537 = vmatprep.mubr.f32.mxu0 0.0
  %3538 = vmatmul.mubr.f32.gmra.mxu0 %v788
  %v3539 = vpop.f32.mrf.mxu0
  %v3540 = vadd.f32 0.0, %v3539
  %v3541 = vpop.f32.mrf.mxu0
  %3542 = vmatprep.mubr.f32.mxu0 0.0
  %3543 = vmatmul.mubr.f32.gmra.mxu0 %v791
  %v3544 = vpop.f32.mrf.mxu0
  %v3545 = vadd.f32 0.0, %v3544
  %v3546 = vpop.f32.mrf.mxu0
  %3547 = vdwg.mxu0
  %s3548 = scalar_lea.vmem %s8, 32
  %v3549 = vld [vmem:[%s3548] sm:$0xff]
  %v3550 = vld [vmem:[%s3548 + $0x8] sm:$0xff]
  %v3551 = vld [vmem:[%s3548 + $0x10] sm:$0xff]
  %v3552 = vld [vmem:[%s3548 + $0x18] sm:$0xff]
  %3553 = vmatprep.subr.mxu0 0.0
  %3554 = vmatpush1.msra.mxu0 0.0
  %3555 = vmatprep.subr.mxu0 0.0
  %3556 = vmatpush1.msra.mxu0 0.0
  %3557 = vmatprep.subr.mxu0 0.0
  %3558 = vmatpush1.msra.mxu0 0.0
  %3559 = vmatprep.subr.mxu0 0.0
  %3560 = vmatpush1.msra.mxu0 0.0
  %3561 = vmatprep.subr.mxu0 0.0
  %3562 = vmatpush1.msra.mxu0 0.0
  %3563 = vmatprep.subr.mxu0 0.0
  %3564 = vmatpush1.msra.mxu0 0.0
  %3565 = vmatprep.subr.mxu0 0.0
  %3566 = vmatpush1.msra.mxu0 0.0
  %3567 = vmatprep.subr.mxu0 0.0
  %3568 = vmatpush1.msra.mxu0 0.0
  %3569 = vmatprep.subr.mxu0 0.0
  %3570 = vmatpush1.msra.mxu0 0.0
  %3571 = vmatprep.subr.mxu0 0.0
  %3572 = vmatpush1.msra.mxu0 0.0
  %3573 = vmatprep.subr.mxu0 0.0
  %3574 = vmatpush1.msra.mxu0 0.0
  %3575 = vmatprep.subr.mxu0 0.0
  %3576 = vmatpush1.msra.mxu0 0.0
  %3577 = vmatprep.subr.mxu0 0.0
  %3578 = vmatpush1.msra.mxu0 %v3552
  %3579 = vmatprep.subr.mxu0 0.0
  %3580 = vmatpush1.msra.mxu0 %v3551
  %3581 = vmatprep.subr.mxu0 0.0
  %3582 = vmatpush1.msra.mxu0 %v3550
  %3583 = vmatprep.subr.mxu0 0.0
  %3584 = vmatpush1.msra.mxu0 %v3549
  %3585 = vmatprep.subr.mxu0 0.0
  %3586 = vmatpush2.msra.mxu0 0.0
  %3587 = vmatprep.subr.mxu0 0.0
  %3588 = vmatpush2.msra.mxu0 0.0
  %3589 = vmatprep.subr.mxu0 0.0
  %3590 = vmatpush2.msra.mxu0 0.0
  %3591 = vmatprep.subr.mxu0 0.0
  %3592 = vmatpush2.msra.mxu0 0.0
  %3593 = vmatprep.subr.mxu0 0.0
  %3594 = vmatpush2.msra.mxu0 0.0
  %3595 = vmatprep.subr.mxu0 0.0
  %3596 = vmatpush2.msra.mxu0 0.0
  %3597 = vmatprep.subr.mxu0 0.0
  %3598 = vmatpush2.msra.mxu0 0.0
  %3599 = vmatprep.subr.mxu0 0.0
  %3600 = vmatpush2.msra.mxu0 0.0
  %3601 = vmatprep.subr.mxu0 0.0
  %3602 = vmatpush2.msra.mxu0 0.0
  %3603 = vmatprep.subr.mxu0 0.0
  %3604 = vmatpush2.msra.mxu0 0.0
  %3605 = vmatprep.subr.mxu0 0.0
  %3606 = vmatpush2.msra.mxu0 0.0
  %3607 = vmatprep.subr.mxu0 0.0
  %3608 = vmatpush2.msra.mxu0 0.0
  %3609 = vmatprep.subr.mxu0 0.0
  %3610 = vmatpush2.msra.mxu0 0.0
  %3611 = vmatprep.subr.mxu0 0.0
  %3612 = vmatpush2.msra.mxu0 0.0
  %3613 = vmatprep.subr.mxu0 0.0
  %3614 = vmatpush2.msra.mxu0 0.0
  %3615 = vmatprep.subr.mxu0 0.0
  %3616 = vmatpush2.msra.mxu0 0.0
  %3617 = vmatprep.mubr.f32.mxu0 0.0
  %3618 = vmatmul.mubr.f32.gmra.mxu0 %v722
  %v3619 = vpop.f32.mrf.mxu0
  %v3620 = vadd.f32 0.0, %v3619
  %v3621 = vpop.f32.mrf.mxu0
  %3622 = vmatprep.mubr.f32.mxu0 0.0
  %3623 = vmatmul.mubr.f32.gmra.mxu0 %v725
  %v3624 = vpop.f32.mrf.mxu0
  %v3625 = vadd.f32 0.0, %v3624
  %v3626 = vpop.f32.mrf.mxu0
  %3627 = vmatprep.mubr.f32.mxu0 0.0
  %3628 = vmatmul.mubr.f32.gmra.mxu0 %v728
  %v3629 = vpop.f32.mrf.mxu0
  %v3630 = vadd.f32 0.0, %v3629
  %v3631 = vpop.f32.mrf.mxu0
  %3632 = vmatprep.mubr.f32.mxu0 0.0
  %3633 = vmatmul.mubr.f32.gmra.mxu0 %v731
  %v3634 = vpop.f32.mrf.mxu0
  %v3635 = vadd.f32 0.0, %v3634
  %v3636 = vpop.f32.mrf.mxu0
  %3637 = vmatprep.mubr.f32.mxu0 0.0
  %3638 = vmatmul.mubr.f32.gmra.mxu0 %v734
  %v3639 = vpop.f32.mrf.mxu0
  %v3640 = vadd.f32 0.0, %v3639
  %v3641 = vpop.f32.mrf.mxu0
  %3642 = vmatprep.mubr.f32.mxu0 0.0
  %3643 = vmatmul.mubr.f32.gmra.mxu0 %v737
  %v3644 = vpop.f32.mrf.mxu0
  %v3645 = vadd.f32 0.0, %v3644
  %v3646 = vpop.f32.mrf.mxu0
  %3647 = vmatprep.mubr.f32.mxu0 0.0
  %3648 = vmatmul.mubr.f32.gmra.mxu0 %v740
  %v3649 = vpop.f32.mrf.mxu0
  %v3650 = vadd.f32 0.0, %v3649
  %v3651 = vpop.f32.mrf.mxu0
  %3652 = vmatprep.mubr.f32.mxu0 0.0
  %3653 = vmatmul.mubr.f32.gmra.mxu0 %v743
  %v3654 = vpop.f32.mrf.mxu0
  %v3655 = vadd.f32 0.0, %v3654
  %v3656 = vpop.f32.mrf.mxu0
  %3657 = vmatprep.mubr.f32.mxu0 0.0
  %3658 = vmatmul.mubr.f32.gmra.mxu0 %v746
  %v3659 = vpop.f32.mrf.mxu0
  %v3660 = vadd.f32 0.0, %v3659
  %v3661 = vpop.f32.mrf.mxu0
  %3662 = vmatprep.mubr.f32.mxu0 0.0
  %3663 = vmatmul.mubr.f32.gmra.mxu0 %v749
  %v3664 = vpop.f32.mrf.mxu0
  %v3665 = vadd.f32 0.0, %v3664
  %v3666 = vpop.f32.mrf.mxu0
  %3667 = vmatprep.mubr.f32.mxu0 0.0
  %3668 = vmatmul.mubr.f32.gmra.mxu0 %v752
  %v3669 = vpop.f32.mrf.mxu0
  %v3670 = vadd.f32 0.0, %v3669
  %v3671 = vpop.f32.mrf.mxu0
  %3672 = vmatprep.mubr.f32.mxu0 0.0
  %3673 = vmatmul.mubr.f32.gmra.mxu0 %v755
  %v3674 = vpop.f32.mrf.mxu0
  %v3675 = vadd.f32 0.0, %v3674
  %v3676 = vpop.f32.mrf.mxu0
  %3677 = vmatprep.mubr.f32.mxu0 0.0
  %3678 = vmatmul.mubr.f32.gmra.mxu0 %v758
  %v3679 = vpop.f32.mrf.mxu0
  %v3680 = vadd.f32 0.0, %v3679
  %v3681 = vpop.f32.mrf.mxu0
  %3682 = vmatprep.mubr.f32.mxu0 0.0
  %3683 = vmatmul.mubr.f32.gmra.mxu0 %v761
  %v3684 = vpop.f32.mrf.mxu0
  %v3685 = vadd.f32 0.0, %v3684
  %v3686 = vpop.f32.mrf.mxu0
  %3687 = vmatprep.mubr.f32.mxu0 0.0
  %3688 = vmatmul.mubr.f32.gmra.mxu0 %v764
  %v3689 = vpop.f32.mrf.mxu0
  %v3690 = vadd.f32 0.0, %v3689
  %v3691 = vpop.f32.mrf.mxu0
  %3692 = vmatprep.mubr.f32.mxu0 0.0
  %3693 = vmatmul.mubr.f32.gmra.mxu0 %v767
  %v3694 = vpop.f32.mrf.mxu0
  %v3695 = vadd.f32 0.0, %v3694
  %v3696 = vpop.f32.mrf.mxu0
  %3697 = vmatprep.mubr.f32.mxu0 0.0
  %3698 = vmatmul.mubr.f32.gmra.mxu0 %v770
  %v3699 = vpop.f32.mrf.mxu0
  %v3700 = vadd.f32 0.0, %v3699
  %v3701 = vpop.f32.mrf.mxu0
  %3702 = vmatprep.mubr.f32.mxu0 0.0
  %3703 = vmatmul.mubr.f32.gmra.mxu0 %v773
  %v3704 = vpop.f32.mrf.mxu0
  %v3705 = vadd.f32 0.0, %v3704
  %v3706 = vpop.f32.mrf.mxu0
  %3707 = vmatprep.mubr.f32.mxu0 0.0
  %3708 = vmatmul.mubr.f32.gmra.mxu0 %v776
  %v3709 = vpop.f32.mrf.mxu0
  %v3710 = vadd.f32 0.0, %v3709
  %v3711 = vpop.f32.mrf.mxu0
  %3712 = vmatprep.mubr.f32.mxu0 0.0
  %3713 = vmatmul.mubr.f32.gmra.mxu0 %v779
  %v3714 = vpop.f32.mrf.mxu0
  %v3715 = vadd.f32 0.0, %v3714
  %v3716 = vpop.f32.mrf.mxu0
  %3717 = vmatprep.mubr.f32.mxu0 0.0
  %3718 = vmatmul.mubr.f32.gmra.mxu0 %v782
  %v3719 = vpop.f32.mrf.mxu0
  %v3720 = vadd.f32 0.0, %v3719
  %v3721 = vpop.f32.mrf.mxu0
  %3722 = vmatprep.mubr.f32.mxu0 0.0
  %3723 = vmatmul.mubr.f32.gmra.mxu0 %v785
  %v3724 = vpop.f32.mrf.mxu0
  %v3725 = vadd.f32 0.0, %v3724
  %v3726 = vpop.f32.mrf.mxu0
  %3727 = vmatprep.mubr.f32.mxu0 0.0
  %3728 = vmatmul.mubr.f32.gmra.mxu0 %v788
  %v3729 = vpop.f32.mrf.mxu0
  %v3730 = vadd.f32 0.0, %v3729
  %v3731 = vpop.f32.mrf.mxu0
  %3732 = vmatprep.mubr.f32.mxu0 0.0
  %3733 = vmatmul.mubr.f32.gmra.mxu0 %v791
  %v3734 = vpop.f32.mrf.mxu0
  %v3735 = vadd.f32 0.0, %v3734
  %v3736 = vpop.f32.mrf.mxu0
  %3737 = vdwg.mxu0
  %v3739 = vsel %vm1356, %v3240, 0
  %v3742 = vsel %vm1356, %v3245, 0
  %v3745 = vsel %vm1356, %v3250, 0
  %v3748 = vsel %vm1356, %v3430, 0
  %v3751 = vsel %vm1356, %v3435, 0
  %v3754 = vsel %vm1356, %v3440, 0
  %3756 = vmatprep.subr.mxu0 0.0
  %3757 = vmatpush1.xpose.msra.mxu0 0.0
  %3758 = vmatprep.subr.mxu0 0.0
  %3759 = vmatpush1.xpose.msra.mxu0 0.0
  %3760 = vmatprep.subr.mxu0 0.0
  %3761 = vmatpush1.xpose.msra.mxu0 0.0
  %3762 = vmatprep.subr.mxu0 0.0
  %3763 = vmatpush1.xpose.msra.mxu0 0.0
  %3764 = vmatprep.subr.mxu0 0.0
  %3765 = vmatpush1.xpose.msra.mxu0 0.0
  %3766 = vmatprep.subr.mxu0 0.0
  %3767 = vmatpush1.xpose.msra.mxu0 0.0
  %3768 = vmatprep.subr.mxu0 0.0
  %3769 = vmatpush1.xpose.msra.mxu0 0.0
  %3770 = vmatprep.subr.mxu0 0.0
  %3771 = vmatpush1.xpose.msra.mxu0 0.0
  %3772 = vmatprep.subr.mxu0 0.0
  %3773 = vmatpush1.xpose.msra.mxu0 0.0
  %3774 = vmatprep.subr.mxu0 0.0
  %3775 = vmatpush1.xpose.msra.mxu0 0.0
  %3776 = vmatprep.subr.mxu0 0.0
  %3777 = vmatpush1.xpose.msra.mxu0 0.0
  %3778 = vmatprep.subr.mxu0 0.0
  %3779 = vmatpush1.xpose.msra.mxu0 0.0
  %3780 = vmatprep.subr.mxu0 0.0
  %3781 = vmatpush1.xpose.msra.mxu0 0.0
  %3782 = vmatprep.subr.mxu0 0.0
  %3783 = vmatpush1.xpose.msra.mxu0 %v3754
  %3784 = vmatprep.subr.mxu0 0.0
  %3785 = vmatpush1.xpose.msra.mxu0 %v3751
  %3786 = vmatprep.subr.mxu0 0.0
  %3787 = vmatpush1.xpose.msra.mxu0 %v3748
  %3788 = vmatprep.subr.mxu0 0.0
  %3789 = vmatpush2.xpose.msra.mxu0 0.0
  %3790 = vmatprep.subr.mxu0 0.0
  %3791 = vmatpush2.xpose.msra.mxu0 0.0
  %3792 = vmatprep.subr.mxu0 0.0
  %3793 = vmatpush2.xpose.msra.mxu0 0.0
  %3794 = vmatprep.subr.mxu0 0.0
  %3795 = vmatpush2.xpose.msra.mxu0 0.0
  %3796 = vmatprep.subr.mxu0 0.0
  %3797 = vmatpush2.xpose.msra.mxu0 0.0
  %3798 = vmatprep.subr.mxu0 0.0
  %3799 = vmatpush2.xpose.msra.mxu0 0.0
  %3800 = vmatprep.subr.mxu0 0.0
  %3801 = vmatpush2.xpose.msra.mxu0 0.0
  %3802 = vmatprep.subr.mxu0 0.0
  %3803 = vmatpush2.xpose.msra.mxu0 0.0
  %3804 = vmatprep.subr.mxu0 0.0
  %3805 = vmatpush2.xpose.msra.mxu0 0.0
  %3806 = vmatprep.subr.mxu0 0.0
  %3807 = vmatpush2.xpose.msra.mxu0 0.0
  %3808 = vmatprep.subr.mxu0 0.0
  %3809 = vmatpush2.xpose.msra.mxu0 0.0
  %3810 = vmatprep.subr.mxu0 0.0
  %3811 = vmatpush2.xpose.msra.mxu0 0.0
  %3812 = vmatprep.subr.mxu0 0.0
  %3813 = vmatpush2.xpose.msra.mxu0 0.0
  %3814 = vmatprep.subr.mxu0 0.0
  %3815 = vmatpush2.xpose.msra.mxu0 0.0
  %3816 = vmatprep.subr.mxu0 0.0
  %3817 = vmatpush2.xpose.msra.mxu0 0.0
  %3818 = vmatprep.subr.mxu0 0.0
  %3819 = vmatpush2.xpose.msra.mxu0 0.0
  %3820 = vmatprep.mubr.f32.mxu0 0.0
  %3821 = vmatmul.mubr.f32.gmra.mxu0 %v3739
  %v3822 = vpop.f32.mrf.mxu0
  %v3823 = vadd.f32 0.0, %v3822
  %v3824 = vpop.f32.mrf.mxu0
  %3825 = vmatprep.mubr.f32.mxu0 0.0
  %3826 = vmatmul.mubr.f32.gmra.mxu0 %v3742
  %v3827 = vpop.f32.mrf.mxu0
  %v3828 = vadd.f32 0.0, %v3827
  %v3829 = vpop.f32.mrf.mxu0
  %3830 = vmatprep.mubr.f32.mxu0 0.0
  %3831 = vmatmul.mubr.f32.gmra.mxu0 %v3745
  %v3832 = vpop.f32.mrf.mxu0
  %v3833 = vadd.f32 0.0, %v3832
  %v3834 = vpop.f32.mrf.mxu0
  %3835 = vdwg.mxu0
  %v3837 = vsel %vm1356, %v3255, 0
  %v3840 = vsel %vm1356, %v3260, 0
  %v3843 = vsel %vm1356, %v3265, 0
  %v3846 = vsel %vm1356, %v3445, 0
  %v3849 = vsel %vm1356, %v3450, 0
  %v3852 = vsel %vm1356, %v3455, 0
  %3854 = vmatprep.subr.mxu0 0.0
  %3855 = vmatpush1.xpose.msra.mxu0 0.0
  %3856 = vmatprep.subr.mxu0 0.0
  %3857 = vmatpush1.xpose.msra.mxu0 0.0
  %3858 = vmatprep.subr.mxu0 0.0
  %3859 = vmatpush1.xpose.msra.mxu0 0.0
  %3860 = vmatprep.subr.mxu0 0.0
  %3861 = vmatpush1.xpose.msra.mxu0 0.0
  %3862 = vmatprep.subr.mxu0 0.0
  %3863 = vmatpush1.xpose.msra.mxu0 0.0
  %3864 = vmatprep.subr.mxu0 0.0
  %3865 = vmatpush1.xpose.msra.mxu0 0.0
  %3866 = vmatprep.subr.mxu0 0.0
  %3867 = vmatpush1.xpose.msra.mxu0 0.0
  %3868 = vmatprep.subr.mxu0 0.0
  %3869 = vmatpush1.xpose.msra.mxu0 0.0
  %3870 = vmatprep.subr.mxu0 0.0
  %3871 = vmatpush1.xpose.msra.mxu0 0.0
  %3872 = vmatprep.subr.mxu0 0.0
  %3873 = vmatpush1.xpose.msra.mxu0 0.0
  %3874 = vmatprep.subr.mxu0 0.0
  %3875 = vmatpush1.xpose.msra.mxu0 0.0
  %3876 = vmatprep.subr.mxu0 0.0
  %3877 = vmatpush1.xpose.msra.mxu0 0.0
  %3878 = vmatprep.subr.mxu0 0.0
  %3879 = vmatpush1.xpose.msra.mxu0 0.0
  %3880 = vmatprep.subr.mxu0 0.0
  %3881 = vmatpush1.xpose.msra.mxu0 %v3852
  %3882 = vmatprep.subr.mxu0 0.0
  %3883 = vmatpush1.xpose.msra.mxu0 %v3849
  %3884 = vmatprep.subr.mxu0 0.0
  %3885 = vmatpush1.xpose.msra.mxu0 %v3846
  %3886 = vmatprep.subr.mxu0 0.0
  %3887 = vmatpush2.xpose.msra.mxu0 0.0
  %3888 = vmatprep.subr.mxu0 0.0
  %3889 = vmatpush2.xpose.msra.mxu0 0.0
  %3890 = vmatprep.subr.mxu0 0.0
  %3891 = vmatpush2.xpose.msra.mxu0 0.0
  %3892 = vmatprep.subr.mxu0 0.0
  %3893 = vmatpush2.xpose.msra.mxu0 0.0
  %3894 = vmatprep.subr.mxu0 0.0
  %3895 = vmatpush2.xpose.msra.mxu0 0.0
  %3896 = vmatprep.subr.mxu0 0.0
  %3897 = vmatpush2.xpose.msra.mxu0 0.0
  %3898 = vmatprep.subr.mxu0 0.0
  %3899 = vmatpush2.xpose.msra.mxu0 0.0
  %3900 = vmatprep.subr.mxu0 0.0
  %3901 = vmatpush2.xpose.msra.mxu0 0.0
  %3902 = vmatprep.subr.mxu0 0.0
  %3903 = vmatpush2.xpose.msra.mxu0 0.0
  %3904 = vmatprep.subr.mxu0 0.0
  %3905 = vmatpush2.xpose.msra.mxu0 0.0
  %3906 = vmatprep.subr.mxu0 0.0
  %3907 = vmatpush2.xpose.msra.mxu0 0.0
  %3908 = vmatprep.subr.mxu0 0.0
  %3909 = vmatpush2.xpose.msra.mxu0 0.0
  %3910 = vmatprep.subr.mxu0 0.0
  %3911 = vmatpush2.xpose.msra.mxu0 0.0
  %3912 = vmatprep.subr.mxu0 0.0
  %3913 = vmatpush2.xpose.msra.mxu0 0.0
  %3914 = vmatprep.subr.mxu0 0.0
  %3915 = vmatpush2.xpose.msra.mxu0 0.0
  %3916 = vmatprep.subr.mxu0 0.0
  %3917 = vmatpush2.xpose.msra.mxu0 0.0
  %3918 = vmatprep.mubr.f32.mxu0 0.0
  %3919 = vmatmul.mubr.f32.gmra.mxu0 %v3837
  %v3920 = vpop.f32.mrf.mxu0
  %v3921 = vadd.f32 0.0, %v3920
  %v3922 = vpop.f32.mrf.mxu0
  %3923 = vmatprep.mubr.f32.mxu0 0.0
  %3924 = vmatmul.mubr.f32.gmra.mxu0 %v3840
  %v3925 = vpop.f32.mrf.mxu0
  %v3926 = vadd.f32 0.0, %v3925
  %v3927 = vpop.f32.mrf.mxu0
  %3928 = vmatprep.mubr.f32.mxu0 0.0
  %3929 = vmatmul.mubr.f32.gmra.mxu0 %v3843
  %v3930 = vpop.f32.mrf.mxu0
  %v3931 = vadd.f32 0.0, %v3930
  %v3932 = vpop.f32.mrf.mxu0
  %3933 = vdwg.mxu0
  %v3935 = vsel %vm1356, %v3270, 0
  %v3938 = vsel %vm1356, %v3275, 0
  %v3941 = vsel %vm1356, %v3280, 0
  %v3944 = vsel %vm1356, %v3460, 0
  %v3947 = vsel %vm1356, %v3465, 0
  %v3950 = vsel %vm1356, %v3470, 0
  %3952 = vmatprep.subr.mxu0 0.0
  %3953 = vmatpush1.xpose.msra.mxu0 0.0
  %3954 = vmatprep.subr.mxu0 0.0
  %3955 = vmatpush1.xpose.msra.mxu0 0.0
  %3956 = vmatprep.subr.mxu0 0.0
  %3957 = vmatpush1.xpose.msra.mxu0 0.0
  %3958 = vmatprep.subr.mxu0 0.0
  %3959 = vmatpush1.xpose.msra.mxu0 0.0
  %3960 = vmatprep.subr.mxu0 0.0
  %3961 = vmatpush1.xpose.msra.mxu0 0.0
  %3962 = vmatprep.subr.mxu0 0.0
  %3963 = vmatpush1.xpose.msra.mxu0 0.0
  %3964 = vmatprep.subr.mxu0 0.0
  %3965 = vmatpush1.xpose.msra.mxu0 0.0
  %3966 = vmatprep.subr.mxu0 0.0
  %3967 = vmatpush1.xpose.msra.mxu0 0.0
  %3968 = vmatprep.subr.mxu0 0.0
  %3969 = vmatpush1.xpose.msra.mxu0 0.0
  %3970 = vmatprep.subr.mxu0 0.0
  %3971 = vmatpush1.xpose.msra.mxu0 0.0
  %3972 = vmatprep.subr.mxu0 0.0
  %3973 = vmatpush1.xpose.msra.mxu0 0.0
  %3974 = vmatprep.subr.mxu0 0.0
  %3975 = vmatpush1.xpose.msra.mxu0 0.0
  %3976 = vmatprep.subr.mxu0 0.0
  %3977 = vmatpush1.xpose.msra.mxu0 0.0
  %3978 = vmatprep.subr.mxu0 0.0
  %3979 = vmatpush1.xpose.msra.mxu0 %v3950
  %3980 = vmatprep.subr.mxu0 0.0
  %3981 = vmatpush1.xpose.msra.mxu0 %v3947
  %3982 = vmatprep.subr.mxu0 0.0
  %3983 = vmatpush1.xpose.msra.mxu0 %v3944
  %3984 = vmatprep.subr.mxu0 0.0
  %3985 = vmatpush2.xpose.msra.mxu0 0.0
  %3986 = vmatprep.subr.mxu0 0.0
  %3987 = vmatpush2.xpose.msra.mxu0 0.0
  %3988 = vmatprep.subr.mxu0 0.0
  %3989 = vmatpush2.xpose.msra.mxu0 0.0
  %3990 = vmatprep.subr.mxu0 0.0
  %3991 = vmatpush2.xpose.msra.mxu0 0.0
  %3992 = vmatprep.subr.mxu0 0.0
  %3993 = vmatpush2.xpose.msra.mxu0 0.0
  %3994 = vmatprep.subr.mxu0 0.0
  %3995 = vmatpush2.xpose.msra.mxu0 0.0
  %3996 = vmatprep.subr.mxu0 0.0
  %3997 = vmatpush2.xpose.msra.mxu0 0.0
  %3998 = vmatprep.subr.mxu0 0.0
  %3999 = vmatpush2.xpose.msra.mxu0 0.0
  %4000 = vmatprep.subr.mxu0 0.0
  %4001 = vmatpush2.xpose.msra.mxu0 0.0
  %4002 = vmatprep.subr.mxu0 0.0
  %4003 = vmatpush2.xpose.msra.mxu0 0.0
  %4004 = vmatprep.subr.mxu0 0.0
  %4005 = vmatpush2.xpose.msra.mxu0 0.0
  %4006 = vmatprep.subr.mxu0 0.0
  %4007 = vmatpush2.xpose.msra.mxu0 0.0
  %4008 = vmatprep.subr.mxu0 0.0
  %4009 = vmatpush2.xpose.msra.mxu0 0.0
  %4010 = vmatprep.subr.mxu0 0.0
  %4011 = vmatpush2.xpose.msra.mxu0 0.0
  %4012 = vmatprep.subr.mxu0 0.0
  %4013 = vmatpush2.xpose.msra.mxu0 0.0
  %4014 = vmatprep.subr.mxu0 0.0
  %4015 = vmatpush2.xpose.msra.mxu0 0.0
  %4016 = vmatprep.mubr.f32.mxu0 0.0
  %4017 = vmatmul.mubr.f32.gmra.mxu0 %v3935
  %v4018 = vpop.f32.mrf.mxu0
  %v4019 = vadd.f32 0.0, %v4018
  %v4020 = vpop.f32.mrf.mxu0
  %4021 = vmatprep.mubr.f32.mxu0 0.0
  %4022 = vmatmul.mubr.f32.gmra.mxu0 %v3938
  %v4023 = vpop.f32.mrf.mxu0
  %v4024 = vadd.f32 0.0, %v4023
  %v4025 = vpop.f32.mrf.mxu0
  %4026 = vmatprep.mubr.f32.mxu0 0.0
  %4027 = vmatmul.mubr.f32.gmra.mxu0 %v3941
  %v4028 = vpop.f32.mrf.mxu0
  %v4029 = vadd.f32 0.0, %v4028
  %v4030 = vpop.f32.mrf.mxu0
  %4031 = vdwg.mxu0
  %v4033 = vsel %vm1356, %v3285, 0
  %v4036 = vsel %vm1356, %v3290, 0
  %v4039 = vsel %vm1356, %v3295, 0
  %v4042 = vsel %vm1356, %v3475, 0
  %v4045 = vsel %vm1356, %v3480, 0
  %v4048 = vsel %vm1356, %v3485, 0
  %4050 = vmatprep.subr.mxu0 0.0
  %4051 = vmatpush1.xpose.msra.mxu0 0.0
  %4052 = vmatprep.subr.mxu0 0.0
  %4053 = vmatpush1.xpose.msra.mxu0 0.0
  %4054 = vmatprep.subr.mxu0 0.0
  %4055 = vmatpush1.xpose.msra.mxu0 0.0
  %4056 = vmatprep.subr.mxu0 0.0
  %4057 = vmatpush1.xpose.msra.mxu0 0.0
  %4058 = vmatprep.subr.mxu0 0.0
  %4059 = vmatpush1.xpose.msra.mxu0 0.0
  %4060 = vmatprep.subr.mxu0 0.0
  %4061 = vmatpush1.xpose.msra.mxu0 0.0
  %4062 = vmatprep.subr.mxu0 0.0
  %4063 = vmatpush1.xpose.msra.mxu0 0.0
  %4064 = vmatprep.subr.mxu0 0.0
  %4065 = vmatpush1.xpose.msra.mxu0 0.0
  %4066 = vmatprep.subr.mxu0 0.0
  %4067 = vmatpush1.xpose.msra.mxu0 0.0
  %4068 = vmatprep.subr.mxu0 0.0
  %4069 = vmatpush1.xpose.msra.mxu0 0.0
  %4070 = vmatprep.subr.mxu0 0.0
  %4071 = vmatpush1.xpose.msra.mxu0 0.0
  %4072 = vmatprep.subr.mxu0 0.0
  %4073 = vmatpush1.xpose.msra.mxu0 0.0
  %4074 = vmatprep.subr.mxu0 0.0
  %4075 = vmatpush1.xpose.msra.mxu0 0.0
  %4076 = vmatprep.subr.mxu0 0.0
  %4077 = vmatpush1.xpose.msra.mxu0 %v4048
  %4078 = vmatprep.subr.mxu0 0.0
  %4079 = vmatpush1.xpose.msra.mxu0 %v4045
  %4080 = vmatprep.subr.mxu0 0.0
  %4081 = vmatpush1.xpose.msra.mxu0 %v4042
  %4082 = vmatprep.subr.mxu0 0.0
  %4083 = vmatpush2.xpose.msra.mxu0 0.0
  %4084 = vmatprep.subr.mxu0 0.0
  %4085 = vmatpush2.xpose.msra.mxu0 0.0
  %4086 = vmatprep.subr.mxu0 0.0
  %4087 = vmatpush2.xpose.msra.mxu0 0.0
  %4088 = vmatprep.subr.mxu0 0.0
  %4089 = vmatpush2.xpose.msra.mxu0 0.0
  %4090 = vmatprep.subr.mxu0 0.0
  %4091 = vmatpush2.xpose.msra.mxu0 0.0
  %4092 = vmatprep.subr.mxu0 0.0
  %4093 = vmatpush2.xpose.msra.mxu0 0.0
  %4094 = vmatprep.subr.mxu0 0.0
  %4095 = vmatpush2.xpose.msra.mxu0 0.0
  %4096 = vmatprep.subr.mxu0 0.0
  %4097 = vmatpush2.xpose.msra.mxu0 0.0
  %4098 = vmatprep.subr.mxu0 0.0
  %4099 = vmatpush2.xpose.msra.mxu0 0.0
  %4100 = vmatprep.subr.mxu0 0.0
  %4101 = vmatpush2.xpose.msra.mxu0 0.0
  %4102 = vmatprep.subr.mxu0 0.0
  %4103 = vmatpush2.xpose.msra.mxu0 0.0
  %4104 = vmatprep.subr.mxu0 0.0
  %4105 = vmatpush2.xpose.msra.mxu0 0.0
  %4106 = vmatprep.subr.mxu0 0.0
  %4107 = vmatpush2.xpose.msra.mxu0 0.0
  %4108 = vmatprep.subr.mxu0 0.0
  %4109 = vmatpush2.xpose.msra.mxu0 0.0
  %4110 = vmatprep.subr.mxu0 0.0
  %4111 = vmatpush2.xpose.msra.mxu0 0.0
  %4112 = vmatprep.subr.mxu0 0.0
  %4113 = vmatpush2.xpose.msra.mxu0 0.0
  %4114 = vmatprep.mubr.f32.mxu0 0.0
  %4115 = vmatmul.mubr.f32.gmra.mxu0 %v4033
  %v4116 = vpop.f32.mrf.mxu0
  %v4117 = vadd.f32 0.0, %v4116
  %v4118 = vpop.f32.mrf.mxu0
  %4119 = vmatprep.mubr.f32.mxu0 0.0
  %4120 = vmatmul.mubr.f32.gmra.mxu0 %v4036
  %v4121 = vpop.f32.mrf.mxu0
  %v4122 = vadd.f32 0.0, %v4121
  %v4123 = vpop.f32.mrf.mxu0
  %4124 = vmatprep.mubr.f32.mxu0 0.0
  %4125 = vmatmul.mubr.f32.gmra.mxu0 %v4039
  %v4126 = vpop.f32.mrf.mxu0
  %v4127 = vadd.f32 0.0, %v4126
  %v4128 = vpop.f32.mrf.mxu0
  %4129 = vdwg.mxu0
  %v4131 = vsel %vm1356, %v3300, 0
  %v4134 = vsel %vm1356, %v3305, 0
  %v4137 = vsel %vm1356, %v3310, 0
  %v4140 = vsel %vm1356, %v3490, 0
  %v4143 = vsel %vm1356, %v3495, 0
  %v4146 = vsel %vm1356, %v3500, 0
  %4148 = vmatprep.subr.mxu0 0.0
  %4149 = vmatpush1.xpose.msra.mxu0 0.0
  %4150 = vmatprep.subr.mxu0 0.0
  %4151 = vmatpush1.xpose.msra.mxu0 0.0
  %4152 = vmatprep.subr.mxu0 0.0
  %4153 = vmatpush1.xpose.msra.mxu0 0.0
  %4154 = vmatprep.subr.mxu0 0.0
  %4155 = vmatpush1.xpose.msra.mxu0 0.0
  %4156 = vmatprep.subr.mxu0 0.0
  %4157 = vmatpush1.xpose.msra.mxu0 0.0
  %4158 = vmatprep.subr.mxu0 0.0
  %4159 = vmatpush1.xpose.msra.mxu0 0.0
  %4160 = vmatprep.subr.mxu0 0.0
  %4161 = vmatpush1.xpose.msra.mxu0 0.0
  %4162 = vmatprep.subr.mxu0 0.0
  %4163 = vmatpush1.xpose.msra.mxu0 0.0
  %4164 = vmatprep.subr.mxu0 0.0
  %4165 = vmatpush1.xpose.msra.mxu0 0.0
  %4166 = vmatprep.subr.mxu0 0.0
  %4167 = vmatpush1.xpose.msra.mxu0 0.0
  %4168 = vmatprep.subr.mxu0 0.0
  %4169 = vmatpush1.xpose.msra.mxu0 0.0
  %4170 = vmatprep.subr.mxu0 0.0
  %4171 = vmatpush1.xpose.msra.mxu0 0.0
  %4172 = vmatprep.subr.mxu0 0.0
  %4173 = vmatpush1.xpose.msra.mxu0 0.0
  %4174 = vmatprep.subr.mxu0 0.0
  %4175 = vmatpush1.xpose.msra.mxu0 %v4146
  %4176 = vmatprep.subr.mxu0 0.0
  %4177 = vmatpush1.xpose.msra.mxu0 %v4143
  %4178 = vmatprep.subr.mxu0 0.0
  %4179 = vmatpush1.xpose.msra.mxu0 %v4140
  %4180 = vmatprep.subr.mxu0 0.0
  %4181 = vmatpush2.xpose.msra.mxu0 0.0
  %4182 = vmatprep.subr.mxu0 0.0
  %4183 = vmatpush2.xpose.msra.mxu0 0.0
  %4184 = vmatprep.subr.mxu0 0.0
  %4185 = vmatpush2.xpose.msra.mxu0 0.0
  %4186 = vmatprep.subr.mxu0 0.0
  %4187 = vmatpush2.xpose.msra.mxu0 0.0
  %4188 = vmatprep.subr.mxu0 0.0
  %4189 = vmatpush2.xpose.msra.mxu0 0.0
  %4190 = vmatprep.subr.mxu0 0.0
  %4191 = vmatpush2.xpose.msra.mxu0 0.0
  %4192 = vmatprep.subr.mxu0 0.0
  %4193 = vmatpush2.xpose.msra.mxu0 0.0
  %4194 = vmatprep.subr.mxu0 0.0
  %4195 = vmatpush2.xpose.msra.mxu0 0.0
  %4196 = vmatprep.subr.mxu0 0.0
  %4197 = vmatpush2.xpose.msra.mxu0 0.0
  %4198 = vmatprep.subr.mxu0 0.0
  %4199 = vmatpush2.xpose.msra.mxu0 0.0
  %4200 = vmatprep.subr.mxu0 0.0
  %4201 = vmatpush2.xpose.msra.mxu0 0.0
  %4202 = vmatprep.subr.mxu0 0.0
  %4203 = vmatpush2.xpose.msra.mxu0 0.0
  %4204 = vmatprep.subr.mxu0 0.0
  %4205 = vmatpush2.xpose.msra.mxu0 0.0
  %4206 = vmatprep.subr.mxu0 0.0
  %4207 = vmatpush2.xpose.msra.mxu0 0.0
  %4208 = vmatprep.subr.mxu0 0.0
  %4209 = vmatpush2.xpose.msra.mxu0 0.0
  %4210 = vmatprep.subr.mxu0 0.0
  %4211 = vmatpush2.xpose.msra.mxu0 0.0
  %4212 = vmatprep.mubr.f32.mxu0 0.0
  %4213 = vmatmul.mubr.f32.gmra.mxu0 %v4131
  %v4214 = vpop.f32.mrf.mxu0
  %v4215 = vadd.f32 0.0, %v4214
  %v4216 = vpop.f32.mrf.mxu0
  %4217 = vmatprep.mubr.f32.mxu0 0.0
  %4218 = vmatmul.mubr.f32.gmra.mxu0 %v4134
  %v4219 = vpop.f32.mrf.mxu0
  %v4220 = vadd.f32 0.0, %v4219
  %v4221 = vpop.f32.mrf.mxu0
  %4222 = vmatprep.mubr.f32.mxu0 0.0
  %4223 = vmatmul.mubr.f32.gmra.mxu0 %v4137
  %v4224 = vpop.f32.mrf.mxu0
  %v4225 = vadd.f32 0.0, %v4224
  %v4226 = vpop.f32.mrf.mxu0
  %4227 = vdwg.mxu0
  %v4229 = vsel %vm1356, %v3315, 0
  %v4232 = vsel %vm1356, %v3320, 0
  %v4235 = vsel %vm1356, %v3325, 0
  %v4238 = vsel %vm1356, %v3505, 0
  %v4241 = vsel %vm1356, %v3510, 0
  %v4244 = vsel %vm1356, %v3515, 0
  %4246 = vmatprep.subr.mxu0 0.0
  %4247 = vmatpush1.xpose.msra.mxu0 0.0
  %4248 = vmatprep.subr.mxu0 0.0
  %4249 = vmatpush1.xpose.msra.mxu0 0.0
  %4250 = vmatprep.subr.mxu0 0.0
  %4251 = vmatpush1.xpose.msra.mxu0 0.0
  %4252 = vmatprep.subr.mxu0 0.0
  %4253 = vmatpush1.xpose.msra.mxu0 0.0
  %4254 = vmatprep.subr.mxu0 0.0
  %4255 = vmatpush1.xpose.msra.mxu0 0.0
  %4256 = vmatprep.subr.mxu0 0.0
  %4257 = vmatpush1.xpose.msra.mxu0 0.0
  %4258 = vmatprep.subr.mxu0 0.0
  %4259 = vmatpush1.xpose.msra.mxu0 0.0
  %4260 = vmatprep.subr.mxu0 0.0
  %4261 = vmatpush1.xpose.msra.mxu0 0.0
  %4262 = vmatprep.subr.mxu0 0.0
  %4263 = vmatpush1.xpose.msra.mxu0 0.0
  %4264 = vmatprep.subr.mxu0 0.0
  %4265 = vmatpush1.xpose.msra.mxu0 0.0
  %4266 = vmatprep.subr.mxu0 0.0
  %4267 = vmatpush1.xpose.msra.mxu0 0.0
  %4268 = vmatprep.subr.mxu0 0.0
  %4269 = vmatpush1.xpose.msra.mxu0 0.0
  %4270 = vmatprep.subr.mxu0 0.0
  %4271 = vmatpush1.xpose.msra.mxu0 0.0
  %4272 = vmatprep.subr.mxu0 0.0
  %4273 = vmatpush1.xpose.msra.mxu0 %v4244
  %4274 = vmatprep.subr.mxu0 0.0
  %4275 = vmatpush1.xpose.msra.mxu0 %v4241
  %4276 = vmatprep.subr.mxu0 0.0
  %4277 = vmatpush1.xpose.msra.mxu0 %v4238
  %4278 = vmatprep.subr.mxu0 0.0
  %4279 = vmatpush2.xpose.msra.mxu0 0.0
  %4280 = vmatprep.subr.mxu0 0.0
  %4281 = vmatpush2.xpose.msra.mxu0 0.0
  %4282 = vmatprep.subr.mxu0 0.0
  %4283 = vmatpush2.xpose.msra.mxu0 0.0
  %4284 = vmatprep.subr.mxu0 0.0
  %4285 = vmatpush2.xpose.msra.mxu0 0.0
  %4286 = vmatprep.subr.mxu0 0.0
  %4287 = vmatpush2.xpose.msra.mxu0 0.0
  %4288 = vmatprep.subr.mxu0 0.0
  %4289 = vmatpush2.xpose.msra.mxu0 0.0
  %4290 = vmatprep.subr.mxu0 0.0
  %4291 = vmatpush2.xpose.msra.mxu0 0.0
  %4292 = vmatprep.subr.mxu0 0.0
  %4293 = vmatpush2.xpose.msra.mxu0 0.0
  %4294 = vmatprep.subr.mxu0 0.0
  %4295 = vmatpush2.xpose.msra.mxu0 0.0
  %4296 = vmatprep.subr.mxu0 0.0
  %4297 = vmatpush2.xpose.msra.mxu0 0.0
  %4298 = vmatprep.subr.mxu0 0.0
  %4299 = vmatpush2.xpose.msra.mxu0 0.0
  %4300 = vmatprep.subr.mxu0 0.0
  %4301 = vmatpush2.xpose.msra.mxu0 0.0
  %4302 = vmatprep.subr.mxu0 0.0
  %4303 = vmatpush2.xpose.msra.mxu0 0.0
  %4304 = vmatprep.subr.mxu0 0.0
  %4305 = vmatpush2.xpose.msra.mxu0 0.0
  %4306 = vmatprep.subr.mxu0 0.0
  %4307 = vmatpush2.xpose.msra.mxu0 0.0
  %4308 = vmatprep.subr.mxu0 0.0
  %4309 = vmatpush2.xpose.msra.mxu0 0.0
  %4310 = vmatprep.mubr.f32.mxu0 0.0
  %4311 = vmatmul.mubr.f32.gmra.mxu0 %v4229
  %v4312 = vpop.f32.mrf.mxu0
  %v4313 = vadd.f32 0.0, %v4312
  %v4314 = vpop.f32.mrf.mxu0
  %4315 = vmatprep.mubr.f32.mxu0 0.0
  %4316 = vmatmul.mubr.f32.gmra.mxu0 %v4232
  %v4317 = vpop.f32.mrf.mxu0
  %v4318 = vadd.f32 0.0, %v4317
  %v4319 = vpop.f32.mrf.mxu0
  %4320 = vmatprep.mubr.f32.mxu0 0.0
  %4321 = vmatmul.mubr.f32.gmra.mxu0 %v4235
  %v4322 = vpop.f32.mrf.mxu0
  %v4323 = vadd.f32 0.0, %v4322
  %v4324 = vpop.f32.mrf.mxu0
  %4325 = vdwg.mxu0
  %v4327 = vsel %vm1356, %v3330, 0
  %v4330 = vsel %vm1356, %v3335, 0
  %v4333 = vsel %vm1356, %v3340, 0
  %v4336 = vsel %vm1356, %v3520, 0
  %v4339 = vsel %vm1356, %v3525, 0
  %v4342 = vsel %vm1356, %v3530, 0
  %4344 = vmatprep.subr.mxu0 0.0
  %4345 = vmatpush1.xpose.msra.mxu0 0.0
  %4346 = vmatprep.subr.mxu0 0.0
  %4347 = vmatpush1.xpose.msra.mxu0 0.0
  %4348 = vmatprep.subr.mxu0 0.0
  %4349 = vmatpush1.xpose.msra.mxu0 0.0
  %4350 = vmatprep.subr.mxu0 0.0
  %4351 = vmatpush1.xpose.msra.mxu0 0.0
  %4352 = vmatprep.subr.mxu0 0.0
  %4353 = vmatpush1.xpose.msra.mxu0 0.0
  %4354 = vmatprep.subr.mxu0 0.0
  %4355 = vmatpush1.xpose.msra.mxu0 0.0
  %4356 = vmatprep.subr.mxu0 0.0
  %4357 = vmatpush1.xpose.msra.mxu0 0.0
  %4358 = vmatprep.subr.mxu0 0.0
  %4359 = vmatpush1.xpose.msra.mxu0 0.0
  %4360 = vmatprep.subr.mxu0 0.0
  %4361 = vmatpush1.xpose.msra.mxu0 0.0
  %4362 = vmatprep.subr.mxu0 0.0
  %4363 = vmatpush1.xpose.msra.mxu0 0.0
  %4364 = vmatprep.subr.mxu0 0.0
  %4365 = vmatpush1.xpose.msra.mxu0 0.0
  %4366 = vmatprep.subr.mxu0 0.0
  %4367 = vmatpush1.xpose.msra.mxu0 0.0
  %4368 = vmatprep.subr.mxu0 0.0
  %4369 = vmatpush1.xpose.msra.mxu0 0.0
  %4370 = vmatprep.subr.mxu0 0.0
  %4371 = vmatpush1.xpose.msra.mxu0 %v4342
  %4372 = vmatprep.subr.mxu0 0.0
  %4373 = vmatpush1.xpose.msra.mxu0 %v4339
  %4374 = vmatprep.subr.mxu0 0.0
  %4375 = vmatpush1.xpose.msra.mxu0 %v4336
  %4376 = vmatprep.subr.mxu0 0.0
  %4377 = vmatpush2.xpose.msra.mxu0 0.0
  %4378 = vmatprep.subr.mxu0 0.0
  %4379 = vmatpush2.xpose.msra.mxu0 0.0
  %4380 = vmatprep.subr.mxu0 0.0
  %4381 = vmatpush2.xpose.msra.mxu0 0.0
  %4382 = vmatprep.subr.mxu0 0.0
  %4383 = vmatpush2.xpose.msra.mxu0 0.0
  %4384 = vmatprep.subr.mxu0 0.0
  %4385 = vmatpush2.xpose.msra.mxu0 0.0
  %4386 = vmatprep.subr.mxu0 0.0
  %4387 = vmatpush2.xpose.msra.mxu0 0.0
  %4388 = vmatprep.subr.mxu0 0.0
  %4389 = vmatpush2.xpose.msra.mxu0 0.0
  %4390 = vmatprep.subr.mxu0 0.0
  %4391 = vmatpush2.xpose.msra.mxu0 0.0
  %4392 = vmatprep.subr.mxu0 0.0
  %4393 = vmatpush2.xpose.msra.mxu0 0.0
  %4394 = vmatprep.subr.mxu0 0.0
  %4395 = vmatpush2.xpose.msra.mxu0 0.0
  %4396 = vmatprep.subr.mxu0 0.0
  %4397 = vmatpush2.xpose.msra.mxu0 0.0
  %4398 = vmatprep.subr.mxu0 0.0
  %4399 = vmatpush2.xpose.msra.mxu0 0.0
  %4400 = vmatprep.subr.mxu0 0.0
  %4401 = vmatpush2.xpose.msra.mxu0 0.0
  %4402 = vmatprep.subr.mxu0 0.0
  %4403 = vmatpush2.xpose.msra.mxu0 0.0
  %4404 = vmatprep.subr.mxu0 0.0
  %4405 = vmatpush2.xpose.msra.mxu0 0.0
  %4406 = vmatprep.subr.mxu0 0.0
  %4407 = vmatpush2.xpose.msra.mxu0 0.0
  %4408 = vmatprep.mubr.f32.mxu0 0.0
  %4409 = vmatmul.mubr.f32.gmra.mxu0 %v4327
  %v4410 = vpop.f32.mrf.mxu0
  %v4411 = vadd.f32 0.0, %v4410
  %v4412 = vpop.f32.mrf.mxu0
  %4413 = vmatprep.mubr.f32.mxu0 0.0
  %4414 = vmatmul.mubr.f32.gmra.mxu0 %v4330
  %v4415 = vpop.f32.mrf.mxu0
  %v4416 = vadd.f32 0.0, %v4415
  %v4417 = vpop.f32.mrf.mxu0
  %4418 = vmatprep.mubr.f32.mxu0 0.0
  %4419 = vmatmul.mubr.f32.gmra.mxu0 %v4333
  %v4420 = vpop.f32.mrf.mxu0
  %v4421 = vadd.f32 0.0, %v4420
  %v4422 = vpop.f32.mrf.mxu0
  %4423 = vdwg.mxu0
  %v4425 = vsel %vm1356, %v3345, 0
  %v4428 = vsel %vm1356, %v3350, 0
  %v4431 = vsel %vm1356, %v3355, 0
  %v4434 = vsel %vm1356, %v3535, 0
  %v4437 = vsel %vm1356, %v3540, 0
  %v4440 = vsel %vm1356, %v3545, 0
  %4442 = vmatprep.subr.mxu0 0.0
  %4443 = vmatpush1.xpose.msra.mxu0 0.0
  %4444 = vmatprep.subr.mxu0 0.0
  %4445 = vmatpush1.xpose.msra.mxu0 0.0
  %4446 = vmatprep.subr.mxu0 0.0
  %4447 = vmatpush1.xpose.msra.mxu0 0.0
  %4448 = vmatprep.subr.mxu0 0.0
  %4449 = vmatpush1.xpose.msra.mxu0 0.0
  %4450 = vmatprep.subr.mxu0 0.0
  %4451 = vmatpush1.xpose.msra.mxu0 0.0
  %4452 = vmatprep.subr.mxu0 0.0
  %4453 = vmatpush1.xpose.msra.mxu0 0.0
  %4454 = vmatprep.subr.mxu0 0.0
  %4455 = vmatpush1.xpose.msra.mxu0 0.0
  %4456 = vmatprep.subr.mxu0 0.0
  %4457 = vmatpush1.xpose.msra.mxu0 0.0
  %4458 = vmatprep.subr.mxu0 0.0
  %4459 = vmatpush1.xpose.msra.mxu0 0.0
  %4460 = vmatprep.subr.mxu0 0.0
  %4461 = vmatpush1.xpose.msra.mxu0 0.0
  %4462 = vmatprep.subr.mxu0 0.0
  %4463 = vmatpush1.xpose.msra.mxu0 0.0
  %4464 = vmatprep.subr.mxu0 0.0
  %4465 = vmatpush1.xpose.msra.mxu0 0.0
  %4466 = vmatprep.subr.mxu0 0.0
  %4467 = vmatpush1.xpose.msra.mxu0 0.0
  %4468 = vmatprep.subr.mxu0 0.0
  %4469 = vmatpush1.xpose.msra.mxu0 %v4440
  %4470 = vmatprep.subr.mxu0 0.0
  %4471 = vmatpush1.xpose.msra.mxu0 %v4437
  %4472 = vmatprep.subr.mxu0 0.0
  %4473 = vmatpush1.xpose.msra.mxu0 %v4434
  %4474 = vmatprep.subr.mxu0 0.0
  %4475 = vmatpush2.xpose.msra.mxu0 0.0
  %4476 = vmatprep.subr.mxu0 0.0
  %4477 = vmatpush2.xpose.msra.mxu0 0.0
  %4478 = vmatprep.subr.mxu0 0.0
  %4479 = vmatpush2.xpose.msra.mxu0 0.0
  %4480 = vmatprep.subr.mxu0 0.0
  %4481 = vmatpush2.xpose.msra.mxu0 0.0
  %4482 = vmatprep.subr.mxu0 0.0
  %4483 = vmatpush2.xpose.msra.mxu0 0.0
  %4484 = vmatprep.subr.mxu0 0.0
  %4485 = vmatpush2.xpose.msra.mxu0 0.0
  %4486 = vmatprep.subr.mxu0 0.0
  %4487 = vmatpush2.xpose.msra.mxu0 0.0
  %4488 = vmatprep.subr.mxu0 0.0
  %4489 = vmatpush2.xpose.msra.mxu0 0.0
  %4490 = vmatprep.subr.mxu0 0.0
  %4491 = vmatpush2.xpose.msra.mxu0 0.0
  %4492 = vmatprep.subr.mxu0 0.0
  %4493 = vmatpush2.xpose.msra.mxu0 0.0
  %4494 = vmatprep.subr.mxu0 0.0
  %4495 = vmatpush2.xpose.msra.mxu0 0.0
  %4496 = vmatprep.subr.mxu0 0.0
  %4497 = vmatpush2.xpose.msra.mxu0 0.0
  %4498 = vmatprep.subr.mxu0 0.0
  %4499 = vmatpush2.xpose.msra.mxu0 0.0
  %4500 = vmatprep.subr.mxu0 0.0
  %4501 = vmatpush2.xpose.msra.mxu0 0.0
  %4502 = vmatprep.subr.mxu0 0.0
  %4503 = vmatpush2.xpose.msra.mxu0 0.0
  %4504 = vmatprep.subr.mxu0 0.0
  %4505 = vmatpush2.xpose.msra.mxu0 0.0
  %4506 = vmatprep.mubr.f32.mxu0 0.0
  %4507 = vmatmul.mubr.f32.gmra.mxu0 %v4425
  %v4508 = vpop.f32.mrf.mxu0
  %v4509 = vadd.f32 0.0, %v4508
  %v4510 = vpop.f32.mrf.mxu0
  %4511 = vmatprep.mubr.f32.mxu0 0.0
  %4512 = vmatmul.mubr.f32.gmra.mxu0 %v4428
  %v4513 = vpop.f32.mrf.mxu0
  %v4514 = vadd.f32 0.0, %v4513
  %v4515 = vpop.f32.mrf.mxu0
  %4516 = vmatprep.mubr.f32.mxu0 0.0
  %4517 = vmatmul.mubr.f32.gmra.mxu0 %v4431
  %v4518 = vpop.f32.mrf.mxu0
  %v4519 = vadd.f32 0.0, %v4518
  %v4520 = vpop.f32.mrf.mxu0
  %4521 = vdwg.mxu0
  %v4522 = vmul.f32 %v3823, 0.17677669
  %v4523 = vmul.f32 %v3828, 0.17677669
  %v4524 = vmul.f32 %v3833, 0.17677669
  %v4525 = vmul.f32 %v3921, 0.17677669
  %v4526 = vmul.f32 %v3926, 0.17677669
  %v4527 = vmul.f32 %v3931, 0.17677669
  %v4528 = vmul.f32 %v4019, 0.17677669
  %v4529 = vmul.f32 %v4024, 0.17677669
  %v4530 = vmul.f32 %v4029, 0.17677669
  %v4531 = vmul.f32 %v4117, 0.17677669
  %v4532 = vmul.f32 %v4122, 0.17677669
  %v4533 = vmul.f32 %v4127, 0.17677669
  %v4534 = vmul.f32 %v4215, 0.17677669
  %v4535 = vmul.f32 %v4220, 0.17677669
  %v4536 = vmul.f32 %v4225, 0.17677669
  %v4537 = vmul.f32 %v4313, 0.17677669
  %v4538 = vmul.f32 %v4318, 0.17677669
  %v4539 = vmul.f32 %v4323, 0.17677669
  %v4540 = vmul.f32 %v4411, 0.17677669
  %v4541 = vmul.f32 %v4416, 0.17677669
  %v4542 = vmul.f32 %v4421, 0.17677669
  %v4543 = vmul.f32 %v4509, 0.17677669
  %v4544 = vmul.f32 %v4514, 0.17677669
  %v4545 = vmul.f32 %v4519, 0.17677669
  %v4546 = vsel %vm2166, %v4522, -1e+30
  %v4547 = vsel %vm2166, %v4523, -1e+30
  %v4548 = vsel %vm2166, %v4524, -1e+30
  %v4549 = vsel %vm2166, %v4525, -1e+30
  %v4550 = vsel %vm2166, %v4526, -1e+30
  %v4551 = vsel %vm2166, %v4527, -1e+30
  %v4552 = vsel %vm2166, %v4528, -1e+30
  %v4553 = vsel %vm2166, %v4529, -1e+30
  %v4554 = vsel %vm2166, %v4530, -1e+30
  %v4555 = vsel %vm2166, %v4531, -1e+30
  %v4556 = vsel %vm2166, %v4532, -1e+30
  %v4557 = vsel %vm2166, %v4533, -1e+30
  %v4558 = vsel %vm2166, %v4534, -1e+30
  %v4559 = vsel %vm2166, %v4535, -1e+30
  %v4560 = vsel %vm2166, %v4536, -1e+30
  %v4561 = vsel %vm2166, %v4537, -1e+30
  %v4562 = vsel %vm2166, %v4538, -1e+30
  %v4563 = vsel %vm2166, %v4539, -1e+30
  %v4564 = vsel %vm2166, %v4540, -1e+30
  %v4565 = vsel %vm2166, %v4541, -1e+30
  %v4566 = vsel %vm2166, %v4542, -1e+30
  %v4567 = vsel %vm2166, %v4543, -1e+30
  %v4568 = vsel %vm2166, %v4544, -1e+30
  %v4569 = vsel %vm2166, %v4545, -1e+30
  %v4570 = vsel %vm2191, %v4546, -inf
  %4571 = vmax.xlane.f32.xlu0 %v4570
  %v4572 = vpop.xlane.xlu0 %4571
  %v4573 = vsel %vm2191, %v4547, -inf
  %4574 = vmax.xlane.f32.xlu0 %v4573
  %v4575 = vpop.xlane.xlu0 %4574
  %v4576 = vsel %vm2191, %v4548, -inf
  %4577 = vmax.xlane.f32.xlu0 %v4576
  %v4578 = vpop.xlane.xlu0 %4577
  %v4579 = vsel %vm2191, %v4549, -inf
  %4580 = vmax.xlane.f32.xlu0 %v4579
  %v4581 = vpop.xlane.xlu0 %4580
  %v4582 = vsel %vm2191, %v4550, -inf
  %4583 = vmax.xlane.f32.xlu0 %v4582
  %v4584 = vpop.xlane.xlu0 %4583
  %v4585 = vsel %vm2191, %v4551, -inf
  %4586 = vmax.xlane.f32.xlu0 %v4585
  %v4587 = vpop.xlane.xlu0 %4586
  %v4588 = vsel %vm2191, %v4552, -inf
  %4589 = vmax.xlane.f32.xlu0 %v4588
  %v4590 = vpop.xlane.xlu0 %4589
  %v4591 = vsel %vm2191, %v4553, -inf
  %4592 = vmax.xlane.f32.xlu0 %v4591
  %v4593 = vpop.xlane.xlu0 %4592
  %v4594 = vsel %vm2191, %v4554, -inf
  %4595 = vmax.xlane.f32.xlu0 %v4594
  %v4596 = vpop.xlane.xlu0 %4595
  %v4597 = vsel %vm2191, %v4555, -inf
  %4598 = vmax.xlane.f32.xlu0 %v4597
  %v4599 = vpop.xlane.xlu0 %4598
  %v4600 = vsel %vm2191, %v4556, -inf
  %4601 = vmax.xlane.f32.xlu0 %v4600
  %v4602 = vpop.xlane.xlu0 %4601
  %v4603 = vsel %vm2191, %v4557, -inf
  %4604 = vmax.xlane.f32.xlu0 %v4603
  %v4605 = vpop.xlane.xlu0 %4604
  %v4606 = vsel %vm2191, %v4558, -inf
  %4607 = vmax.xlane.f32.xlu0 %v4606
  %v4608 = vpop.xlane.xlu0 %4607
  %v4609 = vsel %vm2191, %v4559, -inf
  %4610 = vmax.xlane.f32.xlu0 %v4609
  %v4611 = vpop.xlane.xlu0 %4610
  %v4612 = vsel %vm2191, %v4560, -inf
  %4613 = vmax.xlane.f32.xlu0 %v4612
  %v4614 = vpop.xlane.xlu0 %4613
  %v4615 = vsel %vm2191, %v4561, -inf
  %4616 = vmax.xlane.f32.xlu0 %v4615
  %v4617 = vpop.xlane.xlu0 %4616
  %v4618 = vsel %vm2191, %v4562, -inf
  %4619 = vmax.xlane.f32.xlu0 %v4618
  %v4620 = vpop.xlane.xlu0 %4619
  %v4621 = vsel %vm2191, %v4563, -inf
  %4622 = vmax.xlane.f32.xlu0 %v4621
  %v4623 = vpop.xlane.xlu0 %4622
  %v4624 = vsel %vm2191, %v4564, -inf
  %4625 = vmax.xlane.f32.xlu0 %v4624
  %v4626 = vpop.xlane.xlu0 %4625
  %v4627 = vsel %vm2191, %v4565, -inf
  %4628 = vmax.xlane.f32.xlu0 %v4627
  %v4629 = vpop.xlane.xlu0 %4628
  %v4630 = vsel %vm2191, %v4566, -inf
  %4631 = vmax.xlane.f32.xlu0 %v4630
  %v4632 = vpop.xlane.xlu0 %4631
  %v4633 = vsel %vm2191, %v4567, -inf
  %4634 = vmax.xlane.f32.xlu0 %v4633
  %v4635 = vpop.xlane.xlu0 %4634
  %v4636 = vsel %vm2191, %v4568, -inf
  %4637 = vmax.xlane.f32.xlu0 %v4636
  %v4638 = vpop.xlane.xlu0 %4637
  %v4639 = vsel %vm2191, %v4569, -inf
  %4640 = vmax.xlane.f32.xlu0 %v4639
  %v4641 = vpop.xlane.xlu0 %4640
  %v4642 = vsub.f32 %v4546, %v4572
  %v4643 = vsub.f32 %v4547, %v4575
  %v4644 = vsub.f32 %v4548, %v4578
  %v4645 = vsub.f32 %v4549, %v4581
  %v4646 = vsub.f32 %v4550, %v4584
  %v4647 = vsub.f32 %v4551, %v4587
  %v4648 = vsub.f32 %v4552, %v4590
  %v4649 = vsub.f32 %v4553, %v4593
  %v4650 = vsub.f32 %v4554, %v4596
  %v4651 = vsub.f32 %v4555, %v4599
  %v4652 = vsub.f32 %v4556, %v4602
  %v4653 = vsub.f32 %v4557, %v4605
  %v4654 = vsub.f32 %v4558, %v4608
  %v4655 = vsub.f32 %v4559, %v4611
  %v4656 = vsub.f32 %v4560, %v4614
  %v4657 = vsub.f32 %v4561, %v4617
  %v4658 = vsub.f32 %v4562, %v4620
  %v4659 = vsub.f32 %v4563, %v4623
  %v4660 = vsub.f32 %v4564, %v4626
  %v4661 = vsub.f32 %v4565, %v4629
  %v4662 = vsub.f32 %v4566, %v4632
  %v4663 = vsub.f32 %v4567, %v4635
  %v4664 = vsub.f32 %v4568, %v4638
  %v4665 = vsub.f32 %v4569, %v4641
  %v4666 = vmul.f32 %v4642, 1.442695
  %v4667 = vpow.pop %v4666
  %v4668 = vmul.f32 %v4643, 1.442695
  %v4669 = vpow.pop %v4668
  %v4670 = vmul.f32 %v4644, 1.442695
  %v4671 = vpow.pop %v4670
  %v4672 = vmul.f32 %v4645, 1.442695
  %v4673 = vpow.pop %v4672
  %v4674 = vmul.f32 %v4646, 1.442695
  %v4675 = vpow.pop %v4674
  %v4676 = vmul.f32 %v4647, 1.442695
  %v4677 = vpow.pop %v4676
  %v4678 = vmul.f32 %v4648, 1.442695
  %v4679 = vpow.pop %v4678
  %v4680 = vmul.f32 %v4649, 1.442695
  %v4681 = vpow.pop %v4680
  %v4682 = vmul.f32 %v4650, 1.442695
  %v4683 = vpow.pop %v4682
  %v4684 = vmul.f32 %v4651, 1.442695
  %v4685 = vpow.pop %v4684
  %v4686 = vmul.f32 %v4652, 1.442695
  %v4687 = vpow.pop %v4686
  %v4688 = vmul.f32 %v4653, 1.442695
  %v4689 = vpow.pop %v4688
  %v4690 = vmul.f32 %v4654, 1.442695
  %v4691 = vpow.pop %v4690
  %v4692 = vmul.f32 %v4655, 1.442695
  %v4693 = vpow.pop %v4692
  %v4694 = vmul.f32 %v4656, 1.442695
  %v4695 = vpow.pop %v4694
  %v4696 = vmul.f32 %v4657, 1.442695
  %v4697 = vpow.pop %v4696
  %v4698 = vmul.f32 %v4658, 1.442695
  %v4699 = vpow.pop %v4698
  %v4700 = vmul.f32 %v4659, 1.442695
  %v4701 = vpow.pop %v4700
  %v4702 = vmul.f32 %v4660, 1.442695
  %v4703 = vpow.pop %v4702
  %v4704 = vmul.f32 %v4661, 1.442695
  %v4705 = vpow.pop %v4704
  %v4706 = vmul.f32 %v4662, 1.442695
  %v4707 = vpow.pop %v4706
  %v4708 = vmul.f32 %v4663, 1.442695
  %v4709 = vpow.pop %v4708
  %v4710 = vmul.f32 %v4664, 1.442695
  %v4711 = vpow.pop %v4710
  %v4712 = vmul.f32 %v4665, 1.442695
  %v4713 = vpow.pop %v4712
  %v4714 = vsel %vm2191, %v4667, 0.0
  %4715 = vadd.xlane.f32.xlu0 %v4714
  %v4716 = vpop.xlane.xlu0 %4715
  %v4717 = vsel %vm2191, %v4669, 0.0
  %4718 = vadd.xlane.f32.xlu0 %v4717
  %v4719 = vpop.xlane.xlu0 %4718
  %v4720 = vsel %vm2191, %v4671, 0.0
  %4721 = vadd.xlane.f32.xlu0 %v4720
  %v4722 = vpop.xlane.xlu0 %4721
  %v4723 = vsel %vm2191, %v4673, 0.0
  %4724 = vadd.xlane.f32.xlu0 %v4723
  %v4725 = vpop.xlane.xlu0 %4724
  %v4726 = vsel %vm2191, %v4675, 0.0
  %4727 = vadd.xlane.f32.xlu0 %v4726
  %v4728 = vpop.xlane.xlu0 %4727
  %v4729 = vsel %vm2191, %v4677, 0.0
  %4730 = vadd.xlane.f32.xlu0 %v4729
  %v4731 = vpop.xlane.xlu0 %4730
  %v4732 = vsel %vm2191, %v4679, 0.0
  %4733 = vadd.xlane.f32.xlu0 %v4732
  %v4734 = vpop.xlane.xlu0 %4733
  %v4735 = vsel %vm2191, %v4681, 0.0
  %4736 = vadd.xlane.f32.xlu0 %v4735
  %v4737 = vpop.xlane.xlu0 %4736
  %v4738 = vsel %vm2191, %v4683, 0.0
  %4739 = vadd.xlane.f32.xlu0 %v4738
  %v4740 = vpop.xlane.xlu0 %4739
  %v4741 = vsel %vm2191, %v4685, 0.0
  %4742 = vadd.xlane.f32.xlu0 %v4741
  %v4743 = vpop.xlane.xlu0 %4742
  %v4744 = vsel %vm2191, %v4687, 0.0
  %4745 = vadd.xlane.f32.xlu0 %v4744
  %v4746 = vpop.xlane.xlu0 %4745
  %v4747 = vsel %vm2191, %v4689, 0.0
  %4748 = vadd.xlane.f32.xlu0 %v4747
  %v4749 = vpop.xlane.xlu0 %4748
  %v4750 = vsel %vm2191, %v4691, 0.0
  %4751 = vadd.xlane.f32.xlu0 %v4750
  %v4752 = vpop.xlane.xlu0 %4751
  %v4753 = vsel %vm2191, %v4693, 0.0
  %4754 = vadd.xlane.f32.xlu0 %v4753
  %v4755 = vpop.xlane.xlu0 %4754
  %v4756 = vsel %vm2191, %v4695, 0.0
  %4757 = vadd.xlane.f32.xlu0 %v4756
  %v4758 = vpop.xlane.xlu0 %4757
  %v4759 = vsel %vm2191, %v4697, 0.0
  %4760 = vadd.xlane.f32.xlu0 %v4759
  %v4761 = vpop.xlane.xlu0 %4760
  %v4762 = vsel %vm2191, %v4699, 0.0
  %4763 = vadd.xlane.f32.xlu0 %v4762
  %v4764 = vpop.xlane.xlu0 %4763
  %v4765 = vsel %vm2191, %v4701, 0.0
  %4766 = vadd.xlane.f32.xlu0 %v4765
  %v4767 = vpop.xlane.xlu0 %4766
  %v4768 = vsel %vm2191, %v4703, 0.0
  %4769 = vadd.xlane.f32.xlu0 %v4768
  %v4770 = vpop.xlane.xlu0 %4769
  %v4771 = vsel %vm2191, %v4705, 0.0
  %4772 = vadd.xlane.f32.xlu0 %v4771
  %v4773 = vpop.xlane.xlu0 %4772
  %v4774 = vsel %vm2191, %v4707, 0.0
  %4775 = vadd.xlane.f32.xlu0 %v4774
  %v4776 = vpop.xlane.xlu0 %4775
  %v4777 = vsel %vm2191, %v4709, 0.0
  %4778 = vadd.xlane.f32.xlu0 %v4777
  %v4779 = vpop.xlane.xlu0 %4778
  %v4780 = vsel %vm2191, %v4711, 0.0
  %4781 = vadd.xlane.f32.xlu0 %v4780
  %v4782 = vpop.xlane.xlu0 %4781
  %v4783 = vsel %vm2191, %v4713, 0.0
  %4784 = vadd.xlane.f32.xlu0 %v4783
  %v4785 = vpop.xlane.xlu0 %4784
  %v4786 = vrcp.pop %v4716
  %v4787 = vrcp.pop %v4719
  %v4788 = vrcp.pop %v4722
  %v4789 = vrcp.pop %v4725
  %v4790 = vrcp.pop %v4728
  %v4791 = vrcp.pop %v4731
  %v4792 = vrcp.pop %v4734
  %v4793 = vrcp.pop %v4737
  %v4794 = vrcp.pop %v4740
  %v4795 = vrcp.pop %v4743
  %v4796 = vrcp.pop %v4746
  %v4797 = vrcp.pop %v4749
  %v4798 = vrcp.pop %v4752
  %v4799 = vrcp.pop %v4755
  %v4800 = vrcp.pop %v4758
  %v4801 = vrcp.pop %v4761
  %v4802 = vrcp.pop %v4764
  %v4803 = vrcp.pop %v4767
  %v4804 = vrcp.pop %v4770
  %v4805 = vrcp.pop %v4773
  %v4806 = vrcp.pop %v4776
  %v4807 = vrcp.pop %v4779
  %v4808 = vrcp.pop %v4782
  %v4809 = vrcp.pop %v4785
  %v4810 = vmul.f32 %v4667, %v4786
  %v4811 = vmul.f32 %v4669, %v4787
  %v4812 = vmul.f32 %v4671, %v4788
  %v4813 = vmul.f32 %v4673, %v4789
  %v4814 = vmul.f32 %v4675, %v4790
  %v4815 = vmul.f32 %v4677, %v4791
  %v4816 = vmul.f32 %v4679, %v4792
  %v4817 = vmul.f32 %v4681, %v4793
  %v4818 = vmul.f32 %v4683, %v4794
  %v4819 = vmul.f32 %v4685, %v4795
  %v4820 = vmul.f32 %v4687, %v4796
  %v4821 = vmul.f32 %v4689, %v4797
  %v4822 = vmul.f32 %v4691, %v4798
  %v4823 = vmul.f32 %v4693, %v4799
  %v4824 = vmul.f32 %v4695, %v4800
  %v4825 = vmul.f32 %v4697, %v4801
  %v4826 = vmul.f32 %v4699, %v4802
  %v4827 = vmul.f32 %v4701, %v4803
  %v4828 = vmul.f32 %v4703, %v4804
  %v4829 = vmul.f32 %v4705, %v4805
  %v4830 = vmul.f32 %v4707, %v4806
  %v4831 = vmul.f32 %v4709, %v4807
  %v4832 = vmul.f32 %v4711, %v4808
  %v4833 = vmul.f32 %v4713, %v4809
  %v4835 = vsel %vm2191, %v4810, 0
  %v4838 = vsel %vm2191, %v4811, 0
  %v4841 = vsel %vm2191, %v4812, 0
  %4843 = vmatprep.subr.mxu0 0.0
  %4844 = vmatpush1.msra.mxu0 0.0
  %4845 = vmatprep.subr.mxu0 0.0
  %4846 = vmatpush1.msra.mxu0 0.0
  %4847 = vmatprep.subr.mxu0 0.0
  %4848 = vmatpush1.msra.mxu0 0.0
  %4849 = vmatprep.subr.mxu0 0.0
  %4850 = vmatpush1.msra.mxu0 0.0
  %4851 = vmatprep.subr.mxu0 0.0
  %4852 = vmatpush1.msra.mxu0 0.0
  %4853 = vmatprep.subr.mxu0 0.0
  %4854 = vmatpush1.msra.mxu0 0.0
  %4855 = vmatprep.subr.mxu0 0.0
  %4856 = vmatpush1.msra.mxu0 0.0
  %4857 = vmatprep.subr.mxu0 0.0
  %4858 = vmatpush1.msra.mxu0 0.0
  %4859 = vmatprep.subr.mxu0 0.0
  %4860 = vmatpush1.msra.mxu0 0.0
  %4861 = vmatprep.subr.mxu0 0.0
  %4862 = vmatpush1.msra.mxu0 0.0
  %4863 = vmatprep.subr.mxu0 0.0
  %4864 = vmatpush1.msra.mxu0 0.0
  %4865 = vmatprep.subr.mxu0 0.0
  %4866 = vmatpush1.msra.mxu0 0.0
  %4867 = vmatprep.subr.mxu0 0.0
  %4868 = vmatpush1.msra.mxu0 0.0
  %4869 = vmatprep.subr.mxu0 0.0
  %4870 = vmatpush1.msra.mxu0 %v3630
  %4871 = vmatprep.subr.mxu0 0.0
  %4872 = vmatpush1.msra.mxu0 %v3625
  %4873 = vmatprep.subr.mxu0 0.0
  %4874 = vmatpush1.msra.mxu0 %v3620
  %4875 = vmatprep.subr.mxu0 0.0
  %4876 = vmatpush2.msra.mxu0 0.0
  %4877 = vmatprep.subr.mxu0 0.0
  %4878 = vmatpush2.msra.mxu0 0.0
  %4879 = vmatprep.subr.mxu0 0.0
  %4880 = vmatpush2.msra.mxu0 0.0
  %4881 = vmatprep.subr.mxu0 0.0
  %4882 = vmatpush2.msra.mxu0 0.0
  %4883 = vmatprep.subr.mxu0 0.0
  %4884 = vmatpush2.msra.mxu0 0.0
  %4885 = vmatprep.subr.mxu0 0.0
  %4886 = vmatpush2.msra.mxu0 0.0
  %4887 = vmatprep.subr.mxu0 0.0
  %4888 = vmatpush2.msra.mxu0 0.0
  %4889 = vmatprep.subr.mxu0 0.0
  %4890 = vmatpush2.msra.mxu0 0.0
  %4891 = vmatprep.subr.mxu0 0.0
  %4892 = vmatpush2.msra.mxu0 0.0
  %4893 = vmatprep.subr.mxu0 0.0
  %4894 = vmatpush2.msra.mxu0 0.0
  %4895 = vmatprep.subr.mxu0 0.0
  %4896 = vmatpush2.msra.mxu0 0.0
  %4897 = vmatprep.subr.mxu0 0.0
  %4898 = vmatpush2.msra.mxu0 0.0
  %4899 = vmatprep.subr.mxu0 0.0
  %4900 = vmatpush2.msra.mxu0 0.0
  %4901 = vmatprep.subr.mxu0 0.0
  %4902 = vmatpush2.msra.mxu0 0.0
  %4903 = vmatprep.subr.mxu0 0.0
  %4904 = vmatpush2.msra.mxu0 0.0
  %4905 = vmatprep.subr.mxu0 0.0
  %4906 = vmatpush2.msra.mxu0 0.0
  %4907 = vmatprep.mubr.f32.mxu0 0.0
  %4908 = vmatmul.mubr.f32.gmra.mxu0 %v4835
  %v4909 = vpop.f32.mrf.mxu0
  %v4910 = vadd.f32 0.0, %v4909
  %v4911 = vpop.f32.mrf.mxu0
  %4912 = vmatprep.mubr.f32.mxu0 0.0
  %4913 = vmatmul.mubr.f32.gmra.mxu0 %v4838
  %v4914 = vpop.f32.mrf.mxu0
  %v4915 = vadd.f32 0.0, %v4914
  %v4916 = vpop.f32.mrf.mxu0
  %4917 = vmatprep.mubr.f32.mxu0 0.0
  %4918 = vmatmul.mubr.f32.gmra.mxu0 %v4841
  %v4919 = vpop.f32.mrf.mxu0
  %v4920 = vadd.f32 0.0, %v4919
  %v4921 = vpop.f32.mrf.mxu0
  %4922 = vdwg.mxu0
  %v4924 = vsel %vm2191, %v4813, 0
  %v4927 = vsel %vm2191, %v4814, 0
  %v4930 = vsel %vm2191, %v4815, 0
  %4932 = vmatprep.subr.mxu0 0.0
  %4933 = vmatpush1.msra.mxu0 0.0
  %4934 = vmatprep.subr.mxu0 0.0
  %4935 = vmatpush1.msra.mxu0 0.0
  %4936 = vmatprep.subr.mxu0 0.0
  %4937 = vmatpush1.msra.mxu0 0.0
  %4938 = vmatprep.subr.mxu0 0.0
  %4939 = vmatpush1.msra.mxu0 0.0
  %4940 = vmatprep.subr.mxu0 0.0
  %4941 = vmatpush1.msra.mxu0 0.0
  %4942 = vmatprep.subr.mxu0 0.0
  %4943 = vmatpush1.msra.mxu0 0.0
  %4944 = vmatprep.subr.mxu0 0.0
  %4945 = vmatpush1.msra.mxu0 0.0
  %4946 = vmatprep.subr.mxu0 0.0
  %4947 = vmatpush1.msra.mxu0 0.0
  %4948 = vmatprep.subr.mxu0 0.0
  %4949 = vmatpush1.msra.mxu0 0.0
  %4950 = vmatprep.subr.mxu0 0.0
  %4951 = vmatpush1.msra.mxu0 0.0
  %4952 = vmatprep.subr.mxu0 0.0
  %4953 = vmatpush1.msra.mxu0 0.0
  %4954 = vmatprep.subr.mxu0 0.0
  %4955 = vmatpush1.msra.mxu0 0.0
  %4956 = vmatprep.subr.mxu0 0.0
  %4957 = vmatpush1.msra.mxu0 0.0
  %4958 = vmatprep.subr.mxu0 0.0
  %4959 = vmatpush1.msra.mxu0 %v3645
  %4960 = vmatprep.subr.mxu0 0.0
  %4961 = vmatpush1.msra.mxu0 %v3640
  %4962 = vmatprep.subr.mxu0 0.0
  %4963 = vmatpush1.msra.mxu0 %v3635
  %4964 = vmatprep.subr.mxu0 0.0
  %4965 = vmatpush2.msra.mxu0 0.0
  %4966 = vmatprep.subr.mxu0 0.0
  %4967 = vmatpush2.msra.mxu0 0.0
  %4968 = vmatprep.subr.mxu0 0.0
  %4969 = vmatpush2.msra.mxu0 0.0
  %4970 = vmatprep.subr.mxu0 0.0
  %4971 = vmatpush2.msra.mxu0 0.0
  %4972 = vmatprep.subr.mxu0 0.0
  %4973 = vmatpush2.msra.mxu0 0.0
  %4974 = vmatprep.subr.mxu0 0.0
  %4975 = vmatpush2.msra.mxu0 0.0
  %4976 = vmatprep.subr.mxu0 0.0
  %4977 = vmatpush2.msra.mxu0 0.0
  %4978 = vmatprep.subr.mxu0 0.0
  %4979 = vmatpush2.msra.mxu0 0.0
  %4980 = vmatprep.subr.mxu0 0.0
  %4981 = vmatpush2.msra.mxu0 0.0
  %4982 = vmatprep.subr.mxu0 0.0
  %4983 = vmatpush2.msra.mxu0 0.0
  %4984 = vmatprep.subr.mxu0 0.0
  %4985 = vmatpush2.msra.mxu0 0.0
  %4986 = vmatprep.subr.mxu0 0.0
  %4987 = vmatpush2.msra.mxu0 0.0
  %4988 = vmatprep.subr.mxu0 0.0
  %4989 = vmatpush2.msra.mxu0 0.0
  %4990 = vmatprep.subr.mxu0 0.0
  %4991 = vmatpush2.msra.mxu0 0.0
  %4992 = vmatprep.subr.mxu0 0.0
  %4993 = vmatpush2.msra.mxu0 0.0
  %4994 = vmatprep.subr.mxu0 0.0
  %4995 = vmatpush2.msra.mxu0 0.0
  %4996 = vmatprep.mubr.f32.mxu0 0.0
  %4997 = vmatmul.mubr.f32.gmra.mxu0 %v4924
  %v4998 = vpop.f32.mrf.mxu0
  %v4999 = vadd.f32 0.0, %v4998
  %v5000 = vpop.f32.mrf.mxu0
  %5001 = vmatprep.mubr.f32.mxu0 0.0
  %5002 = vmatmul.mubr.f32.gmra.mxu0 %v4927
  %v5003 = vpop.f32.mrf.mxu0
  %v5004 = vadd.f32 0.0, %v5003
  %v5005 = vpop.f32.mrf.mxu0
  %5006 = vmatprep.mubr.f32.mxu0 0.0
  %5007 = vmatmul.mubr.f32.gmra.mxu0 %v4930
  %v5008 = vpop.f32.mrf.mxu0
  %v5009 = vadd.f32 0.0, %v5008
  %v5010 = vpop.f32.mrf.mxu0
  %5011 = vdwg.mxu0
  %v5013 = vsel %vm2191, %v4816, 0
  %v5016 = vsel %vm2191, %v4817, 0
  %v5019 = vsel %vm2191, %v4818, 0
  %5021 = vmatprep.subr.mxu0 0.0
  %5022 = vmatpush1.msra.mxu0 0.0
  %5023 = vmatprep.subr.mxu0 0.0
  %5024 = vmatpush1.msra.mxu0 0.0
  %5025 = vmatprep.subr.mxu0 0.0
  %5026 = vmatpush1.msra.mxu0 0.0
  %5027 = vmatprep.subr.mxu0 0.0
  %5028 = vmatpush1.msra.mxu0 0.0
  %5029 = vmatprep.subr.mxu0 0.0
  %5030 = vmatpush1.msra.mxu0 0.0
  %5031 = vmatprep.subr.mxu0 0.0
  %5032 = vmatpush1.msra.mxu0 0.0
  %5033 = vmatprep.subr.mxu0 0.0
  %5034 = vmatpush1.msra.mxu0 0.0
  %5035 = vmatprep.subr.mxu0 0.0
  %5036 = vmatpush1.msra.mxu0 0.0
  %5037 = vmatprep.subr.mxu0 0.0
  %5038 = vmatpush1.msra.mxu0 0.0
  %5039 = vmatprep.subr.mxu0 0.0
  %5040 = vmatpush1.msra.mxu0 0.0
  %5041 = vmatprep.subr.mxu0 0.0
  %5042 = vmatpush1.msra.mxu0 0.0
  %5043 = vmatprep.subr.mxu0 0.0
  %5044 = vmatpush1.msra.mxu0 0.0
  %5045 = vmatprep.subr.mxu0 0.0
  %5046 = vmatpush1.msra.mxu0 0.0
  %5047 = vmatprep.subr.mxu0 0.0
  %5048 = vmatpush1.msra.mxu0 %v3660
  %5049 = vmatprep.subr.mxu0 0.0
  %5050 = vmatpush1.msra.mxu0 %v3655
  %5051 = vmatprep.subr.mxu0 0.0
  %5052 = vmatpush1.msra.mxu0 %v3650
  %5053 = vmatprep.subr.mxu0 0.0
  %5054 = vmatpush2.msra.mxu0 0.0
  %5055 = vmatprep.subr.mxu0 0.0
  %5056 = vmatpush2.msra.mxu0 0.0
  %5057 = vmatprep.subr.mxu0 0.0
  %5058 = vmatpush2.msra.mxu0 0.0
  %5059 = vmatprep.subr.mxu0 0.0
  %5060 = vmatpush2.msra.mxu0 0.0
  %5061 = vmatprep.subr.mxu0 0.0
  %5062 = vmatpush2.msra.mxu0 0.0
  %5063 = vmatprep.subr.mxu0 0.0
  %5064 = vmatpush2.msra.mxu0 0.0
  %5065 = vmatprep.subr.mxu0 0.0
  %5066 = vmatpush2.msra.mxu0 0.0
  %5067 = vmatprep.subr.mxu0 0.0
  %5068 = vmatpush2.msra.mxu0 0.0
  %5069 = vmatprep.subr.mxu0 0.0
  %5070 = vmatpush2.msra.mxu0 0.0
  %5071 = vmatprep.subr.mxu0 0.0
  %5072 = vmatpush2.msra.mxu0 0.0
  %5073 = vmatprep.subr.mxu0 0.0
  %5074 = vmatpush2.msra.mxu0 0.0
  %5075 = vmatprep.subr.mxu0 0.0
  %5076 = vmatpush2.msra.mxu0 0.0
  %5077 = vmatprep.subr.mxu0 0.0
  %5078 = vmatpush2.msra.mxu0 0.0
  %5079 = vmatprep.subr.mxu0 0.0
  %5080 = vmatpush2.msra.mxu0 0.0
  %5081 = vmatprep.subr.mxu0 0.0
  %5082 = vmatpush2.msra.mxu0 0.0
  %5083 = vmatprep.subr.mxu0 0.0
  %5084 = vmatpush2.msra.mxu0 0.0
  %5085 = vmatprep.mubr.f32.mxu0 0.0
  %5086 = vmatmul.mubr.f32.gmra.mxu0 %v5013
  %v5087 = vpop.f32.mrf.mxu0
  %v5088 = vadd.f32 0.0, %v5087
  %v5089 = vpop.f32.mrf.mxu0
  %5090 = vmatprep.mubr.f32.mxu0 0.0
  %5091 = vmatmul.mubr.f32.gmra.mxu0 %v5016
  %v5092 = vpop.f32.mrf.mxu0
  %v5093 = vadd.f32 0.0, %v5092
  %v5094 = vpop.f32.mrf.mxu0
  %5095 = vmatprep.mubr.f32.mxu0 0.0
  %5096 = vmatmul.mubr.f32.gmra.mxu0 %v5019
  %v5097 = vpop.f32.mrf.mxu0
  %v5098 = vadd.f32 0.0, %v5097
  %v5099 = vpop.f32.mrf.mxu0
  %5100 = vdwg.mxu0
  %v5102 = vsel %vm2191, %v4819, 0
  %v5105 = vsel %vm2191, %v4820, 0
  %v5108 = vsel %vm2191, %v4821, 0
  %5110 = vmatprep.subr.mxu0 0.0
  %5111 = vmatpush1.msra.mxu0 0.0
  %5112 = vmatprep.subr.mxu0 0.0
  %5113 = vmatpush1.msra.mxu0 0.0
  %5114 = vmatprep.subr.mxu0 0.0
  %5115 = vmatpush1.msra.mxu0 0.0
  %5116 = vmatprep.subr.mxu0 0.0
  %5117 = vmatpush1.msra.mxu0 0.0
  %5118 = vmatprep.subr.mxu0 0.0
  %5119 = vmatpush1.msra.mxu0 0.0
  %5120 = vmatprep.subr.mxu0 0.0
  %5121 = vmatpush1.msra.mxu0 0.0
  %5122 = vmatprep.subr.mxu0 0.0
  %5123 = vmatpush1.msra.mxu0 0.0
  %5124 = vmatprep.subr.mxu0 0.0
  %5125 = vmatpush1.msra.mxu0 0.0
  %5126 = vmatprep.subr.mxu0 0.0
  %5127 = vmatpush1.msra.mxu0 0.0
  %5128 = vmatprep.subr.mxu0 0.0
  %5129 = vmatpush1.msra.mxu0 0.0
  %5130 = vmatprep.subr.mxu0 0.0
  %5131 = vmatpush1.msra.mxu0 0.0
  %5132 = vmatprep.subr.mxu0 0.0
  %5133 = vmatpush1.msra.mxu0 0.0
  %5134 = vmatprep.subr.mxu0 0.0
  %5135 = vmatpush1.msra.mxu0 0.0
  %5136 = vmatprep.subr.mxu0 0.0
  %5137 = vmatpush1.msra.mxu0 %v3675
  %5138 = vmatprep.subr.mxu0 0.0
  %5139 = vmatpush1.msra.mxu0 %v3670
  %5140 = vmatprep.subr.mxu0 0.0
  %5141 = vmatpush1.msra.mxu0 %v3665
  %5142 = vmatprep.subr.mxu0 0.0
  %5143 = vmatpush2.msra.mxu0 0.0
  %5144 = vmatprep.subr.mxu0 0.0
  %5145 = vmatpush2.msra.mxu0 0.0
  %5146 = vmatprep.subr.mxu0 0.0
  %5147 = vmatpush2.msra.mxu0 0.0
  %5148 = vmatprep.subr.mxu0 0.0
  %5149 = vmatpush2.msra.mxu0 0.0
  %5150 = vmatprep.subr.mxu0 0.0
  %5151 = vmatpush2.msra.mxu0 0.0
  %5152 = vmatprep.subr.mxu0 0.0
  %5153 = vmatpush2.msra.mxu0 0.0
  %5154 = vmatprep.subr.mxu0 0.0
  %5155 = vmatpush2.msra.mxu0 0.0
  %5156 = vmatprep.subr.mxu0 0.0
  %5157 = vmatpush2.msra.mxu0 0.0
  %5158 = vmatprep.subr.mxu0 0.0
  %5159 = vmatpush2.msra.mxu0 0.0
  %5160 = vmatprep.subr.mxu0 0.0
  %5161 = vmatpush2.msra.mxu0 0.0
  %5162 = vmatprep.subr.mxu0 0.0
  %5163 = vmatpush2.msra.mxu0 0.0
  %5164 = vmatprep.subr.mxu0 0.0
  %5165 = vmatpush2.msra.mxu0 0.0
  %5166 = vmatprep.subr.mxu0 0.0
  %5167 = vmatpush2.msra.mxu0 0.0
  %5168 = vmatprep.subr.mxu0 0.0
  %5169 = vmatpush2.msra.mxu0 0.0
  %5170 = vmatprep.subr.mxu0 0.0
  %5171 = vmatpush2.msra.mxu0 0.0
  %5172 = vmatprep.subr.mxu0 0.0
  %5173 = vmatpush2.msra.mxu0 0.0
  %5174 = vmatprep.mubr.f32.mxu0 0.0
  %5175 = vmatmul.mubr.f32.gmra.mxu0 %v5102
  %v5176 = vpop.f32.mrf.mxu0
  %v5177 = vadd.f32 0.0, %v5176
  %v5178 = vpop.f32.mrf.mxu0
  %5179 = vmatprep.mubr.f32.mxu0 0.0
  %5180 = vmatmul.mubr.f32.gmra.mxu0 %v5105
  %v5181 = vpop.f32.mrf.mxu0
  %v5182 = vadd.f32 0.0, %v5181
  %v5183 = vpop.f32.mrf.mxu0
  %5184 = vmatprep.mubr.f32.mxu0 0.0
  %5185 = vmatmul.mubr.f32.gmra.mxu0 %v5108
  %v5186 = vpop.f32.mrf.mxu0
  %v5187 = vadd.f32 0.0, %v5186
  %v5188 = vpop.f32.mrf.mxu0
  %5189 = vdwg.mxu0
  %v5191 = vsel %vm2191, %v4822, 0
  %v5194 = vsel %vm2191, %v4823, 0
  %v5197 = vsel %vm2191, %v4824, 0
  %5199 = vmatprep.subr.mxu0 0.0
  %5200 = vmatpush1.msra.mxu0 0.0
  %5201 = vmatprep.subr.mxu0 0.0
  %5202 = vmatpush1.msra.mxu0 0.0
  %5203 = vmatprep.subr.mxu0 0.0
  %5204 = vmatpush1.msra.mxu0 0.0
  %5205 = vmatprep.subr.mxu0 0.0
  %5206 = vmatpush1.msra.mxu0 0.0
  %5207 = vmatprep.subr.mxu0 0.0
  %5208 = vmatpush1.msra.mxu0 0.0
  %5209 = vmatprep.subr.mxu0 0.0
  %5210 = vmatpush1.msra.mxu0 0.0
  %5211 = vmatprep.subr.mxu0 0.0
  %5212 = vmatpush1.msra.mxu0 0.0
  %5213 = vmatprep.subr.mxu0 0.0
  %5214 = vmatpush1.msra.mxu0 0.0
  %5215 = vmatprep.subr.mxu0 0.0
  %5216 = vmatpush1.msra.mxu0 0.0
  %5217 = vmatprep.subr.mxu0 0.0
  %5218 = vmatpush1.msra.mxu0 0.0
  %5219 = vmatprep.subr.mxu0 0.0
  %5220 = vmatpush1.msra.mxu0 0.0
  %5221 = vmatprep.subr.mxu0 0.0
  %5222 = vmatpush1.msra.mxu0 0.0
  %5223 = vmatprep.subr.mxu0 0.0
  %5224 = vmatpush1.msra.mxu0 0.0
  %5225 = vmatprep.subr.mxu0 0.0
  %5226 = vmatpush1.msra.mxu0 %v3690
  %5227 = vmatprep.subr.mxu0 0.0
  %5228 = vmatpush1.msra.mxu0 %v3685
  %5229 = vmatprep.subr.mxu0 0.0
  %5230 = vmatpush1.msra.mxu0 %v3680
  %5231 = vmatprep.subr.mxu0 0.0
  %5232 = vmatpush2.msra.mxu0 0.0
  %5233 = vmatprep.subr.mxu0 0.0
  %5234 = vmatpush2.msra.mxu0 0.0
  %5235 = vmatprep.subr.mxu0 0.0
  %5236 = vmatpush2.msra.mxu0 0.0
  %5237 = vmatprep.subr.mxu0 0.0
  %5238 = vmatpush2.msra.mxu0 0.0
  %5239 = vmatprep.subr.mxu0 0.0
  %5240 = vmatpush2.msra.mxu0 0.0
  %5241 = vmatprep.subr.mxu0 0.0
  %5242 = vmatpush2.msra.mxu0 0.0
  %5243 = vmatprep.subr.mxu0 0.0
  %5244 = vmatpush2.msra.mxu0 0.0
  %5245 = vmatprep.subr.mxu0 0.0
  %5246 = vmatpush2.msra.mxu0 0.0
  %5247 = vmatprep.subr.mxu0 0.0
  %5248 = vmatpush2.msra.mxu0 0.0
  %5249 = vmatprep.subr.mxu0 0.0
  %5250 = vmatpush2.msra.mxu0 0.0
  %5251 = vmatprep.subr.mxu0 0.0
  %5252 = vmatpush2.msra.mxu0 0.0
  %5253 = vmatprep.subr.mxu0 0.0
  %5254 = vmatpush2.msra.mxu0 0.0
  %5255 = vmatprep.subr.mxu0 0.0
  %5256 = vmatpush2.msra.mxu0 0.0
  %5257 = vmatprep.subr.mxu0 0.0
  %5258 = vmatpush2.msra.mxu0 0.0
  %5259 = vmatprep.subr.mxu0 0.0
  %5260 = vmatpush2.msra.mxu0 0.0
  %5261 = vmatprep.subr.mxu0 0.0
  %5262 = vmatpush2.msra.mxu0 0.0
  %5263 = vmatprep.mubr.f32.mxu0 0.0
  %5264 = vmatmul.mubr.f32.gmra.mxu0 %v5191
  %v5265 = vpop.f32.mrf.mxu0
  %v5266 = vadd.f32 0.0, %v5265
  %v5267 = vpop.f32.mrf.mxu0
  %5268 = vmatprep.mubr.f32.mxu0 0.0
  %5269 = vmatmul.mubr.f32.gmra.mxu0 %v5194
  %v5270 = vpop.f32.mrf.mxu0
  %v5271 = vadd.f32 0.0, %v5270
  %v5272 = vpop.f32.mrf.mxu0
  %5273 = vmatprep.mubr.f32.mxu0 0.0
  %5274 = vmatmul.mubr.f32.gmra.mxu0 %v5197
  %v5275 = vpop.f32.mrf.mxu0
  %v5276 = vadd.f32 0.0, %v5275
  %v5277 = vpop.f32.mrf.mxu0
  %5278 = vdwg.mxu0
  %v5280 = vsel %vm2191, %v4825, 0
  %v5283 = vsel %vm2191, %v4826, 0
  %v5286 = vsel %vm2191, %v4827, 0
  %5288 = vmatprep.subr.mxu0 0.0
  %5289 = vmatpush1.msra.mxu0 0.0
  %5290 = vmatprep.subr.mxu0 0.0
  %5291 = vmatpush1.msra.mxu0 0.0
  %5292 = vmatprep.subr.mxu0 0.0
  %5293 = vmatpush1.msra.mxu0 0.0
  %5294 = vmatprep.subr.mxu0 0.0
  %5295 = vmatpush1.msra.mxu0 0.0
  %5296 = vmatprep.subr.mxu0 0.0
  %5297 = vmatpush1.msra.mxu0 0.0
  %5298 = vmatprep.subr.mxu0 0.0
  %5299 = vmatpush1.msra.mxu0 0.0
  %5300 = vmatprep.subr.mxu0 0.0
  %5301 = vmatpush1.msra.mxu0 0.0
  %5302 = vmatprep.subr.mxu0 0.0
  %5303 = vmatpush1.msra.mxu0 0.0
  %5304 = vmatprep.subr.mxu0 0.0
  %5305 = vmatpush1.msra.mxu0 0.0
  %5306 = vmatprep.subr.mxu0 0.0
  %5307 = vmatpush1.msra.mxu0 0.0
  %5308 = vmatprep.subr.mxu0 0.0
  %5309 = vmatpush1.msra.mxu0 0.0
  %5310 = vmatprep.subr.mxu0 0.0
  %5311 = vmatpush1.msra.mxu0 0.0
  %5312 = vmatprep.subr.mxu0 0.0
  %5313 = vmatpush1.msra.mxu0 0.0
  %5314 = vmatprep.subr.mxu0 0.0
  %5315 = vmatpush1.msra.mxu0 %v3705
  %5316 = vmatprep.subr.mxu0 0.0
  %5317 = vmatpush1.msra.mxu0 %v3700
  %5318 = vmatprep.subr.mxu0 0.0
  %5319 = vmatpush1.msra.mxu0 %v3695
  %5320 = vmatprep.subr.mxu0 0.0
  %5321 = vmatpush2.msra.mxu0 0.0
  %5322 = vmatprep.subr.mxu0 0.0
  %5323 = vmatpush2.msra.mxu0 0.0
  %5324 = vmatprep.subr.mxu0 0.0
  %5325 = vmatpush2.msra.mxu0 0.0
  %5326 = vmatprep.subr.mxu0 0.0
  %5327 = vmatpush2.msra.mxu0 0.0
  %5328 = vmatprep.subr.mxu0 0.0
  %5329 = vmatpush2.msra.mxu0 0.0
  %5330 = vmatprep.subr.mxu0 0.0
  %5331 = vmatpush2.msra.mxu0 0.0
  %5332 = vmatprep.subr.mxu0 0.0
  %5333 = vmatpush2.msra.mxu0 0.0
  %5334 = vmatprep.subr.mxu0 0.0
  %5335 = vmatpush2.msra.mxu0 0.0
  %5336 = vmatprep.subr.mxu0 0.0
  %5337 = vmatpush2.msra.mxu0 0.0
  %5338 = vmatprep.subr.mxu0 0.0
  %5339 = vmatpush2.msra.mxu0 0.0
  %5340 = vmatprep.subr.mxu0 0.0
  %5341 = vmatpush2.msra.mxu0 0.0
  %5342 = vmatprep.subr.mxu0 0.0
  %5343 = vmatpush2.msra.mxu0 0.0
  %5344 = vmatprep.subr.mxu0 0.0
  %5345 = vmatpush2.msra.mxu0 0.0
  %5346 = vmatprep.subr.mxu0 0.0
  %5347 = vmatpush2.msra.mxu0 0.0
  %5348 = vmatprep.subr.mxu0 0.0
  %5349 = vmatpush2.msra.mxu0 0.0
  %5350 = vmatprep.subr.mxu0 0.0
  %5351 = vmatpush2.msra.mxu0 0.0
  %5352 = vmatprep.mubr.f32.mxu0 0.0
  %5353 = vmatmul.mubr.f32.gmra.mxu0 %v5280
  %v5354 = vpop.f32.mrf.mxu0
  %v5355 = vadd.f32 0.0, %v5354
  %v5356 = vpop.f32.mrf.mxu0
  %5357 = vmatprep.mubr.f32.mxu0 0.0
  %5358 = vmatmul.mubr.f32.gmra.mxu0 %v5283
  %v5359 = vpop.f32.mrf.mxu0
  %v5360 = vadd.f32 0.0, %v5359
  %v5361 = vpop.f32.mrf.mxu0
  %5362 = vmatprep.mubr.f32.mxu0 0.0
  %5363 = vmatmul.mubr.f32.gmra.mxu0 %v5286
  %v5364 = vpop.f32.mrf.mxu0
  %v5365 = vadd.f32 0.0, %v5364
  %v5366 = vpop.f32.mrf.mxu0
  %5367 = vdwg.mxu0
  %v5369 = vsel %vm2191, %v4828, 0
  %v5372 = vsel %vm2191, %v4829, 0
  %v5375 = vsel %vm2191, %v4830, 0
  %5377 = vmatprep.subr.mxu0 0.0
  %5378 = vmatpush1.msra.mxu0 0.0
  %5379 = vmatprep.subr.mxu0 0.0
  %5380 = vmatpush1.msra.mxu0 0.0
  %5381 = vmatprep.subr.mxu0 0.0
  %5382 = vmatpush1.msra.mxu0 0.0
  %5383 = vmatprep.subr.mxu0 0.0
  %5384 = vmatpush1.msra.mxu0 0.0
  %5385 = vmatprep.subr.mxu0 0.0
  %5386 = vmatpush1.msra.mxu0 0.0
  %5387 = vmatprep.subr.mxu0 0.0
  %5388 = vmatpush1.msra.mxu0 0.0
  %5389 = vmatprep.subr.mxu0 0.0
  %5390 = vmatpush1.msra.mxu0 0.0
  %5391 = vmatprep.subr.mxu0 0.0
  %5392 = vmatpush1.msra.mxu0 0.0
  %5393 = vmatprep.subr.mxu0 0.0
  %5394 = vmatpush1.msra.mxu0 0.0
  %5395 = vmatprep.subr.mxu0 0.0
  %5396 = vmatpush1.msra.mxu0 0.0
  %5397 = vmatprep.subr.mxu0 0.0
  %5398 = vmatpush1.msra.mxu0 0.0
  %5399 = vmatprep.subr.mxu0 0.0
  %5400 = vmatpush1.msra.mxu0 0.0
  %5401 = vmatprep.subr.mxu0 0.0
  %5402 = vmatpush1.msra.mxu0 0.0
  %5403 = vmatprep.subr.mxu0 0.0
  %5404 = vmatpush1.msra.mxu0 %v3720
  %5405 = vmatprep.subr.mxu0 0.0
  %5406 = vmatpush1.msra.mxu0 %v3715
  %5407 = vmatprep.subr.mxu0 0.0
  %5408 = vmatpush1.msra.mxu0 %v3710
  %5409 = vmatprep.subr.mxu0 0.0
  %5410 = vmatpush2.msra.mxu0 0.0
  %5411 = vmatprep.subr.mxu0 0.0
  %5412 = vmatpush2.msra.mxu0 0.0
  %5413 = vmatprep.subr.mxu0 0.0
  %5414 = vmatpush2.msra.mxu0 0.0
  %5415 = vmatprep.subr.mxu0 0.0
  %5416 = vmatpush2.msra.mxu0 0.0
  %5417 = vmatprep.subr.mxu0 0.0
  %5418 = vmatpush2.msra.mxu0 0.0
  %5419 = vmatprep.subr.mxu0 0.0
  %5420 = vmatpush2.msra.mxu0 0.0
  %5421 = vmatprep.subr.mxu0 0.0
  %5422 = vmatpush2.msra.mxu0 0.0
  %5423 = vmatprep.subr.mxu0 0.0
  %5424 = vmatpush2.msra.mxu0 0.0
  %5425 = vmatprep.subr.mxu0 0.0
  %5426 = vmatpush2.msra.mxu0 0.0
  %5427 = vmatprep.subr.mxu0 0.0
  %5428 = vmatpush2.msra.mxu0 0.0
  %5429 = vmatprep.subr.mxu0 0.0
  %5430 = vmatpush2.msra.mxu0 0.0
  %5431 = vmatprep.subr.mxu0 0.0
  %5432 = vmatpush2.msra.mxu0 0.0
  %5433 = vmatprep.subr.mxu0 0.0
  %5434 = vmatpush2.msra.mxu0 0.0
  %5435 = vmatprep.subr.mxu0 0.0
  %5436 = vmatpush2.msra.mxu0 0.0
  %5437 = vmatprep.subr.mxu0 0.0
  %5438 = vmatpush2.msra.mxu0 0.0
  %5439 = vmatprep.subr.mxu0 0.0
  %5440 = vmatpush2.msra.mxu0 0.0
  %5441 = vmatprep.mubr.f32.mxu0 0.0
  %5442 = vmatmul.mubr.f32.gmra.mxu0 %v5369
  %v5443 = vpop.f32.mrf.mxu0
  %v5444 = vadd.f32 0.0, %v5443
  %v5445 = vpop.f32.mrf.mxu0
  %5446 = vmatprep.mubr.f32.mxu0 0.0
  %5447 = vmatmul.mubr.f32.gmra.mxu0 %v5372
  %v5448 = vpop.f32.mrf.mxu0
  %v5449 = vadd.f32 0.0, %v5448
  %v5450 = vpop.f32.mrf.mxu0
  %5451 = vmatprep.mubr.f32.mxu0 0.0
  %5452 = vmatmul.mubr.f32.gmra.mxu0 %v5375
  %v5453 = vpop.f32.mrf.mxu0
  %v5454 = vadd.f32 0.0, %v5453
  %v5455 = vpop.f32.mrf.mxu0
  %5456 = vdwg.mxu0
  %v5458 = vsel %vm2191, %v4831, 0
  %v5461 = vsel %vm2191, %v4832, 0
  %v5464 = vsel %vm2191, %v4833, 0
  %5466 = vmatprep.subr.mxu0 0.0
  %5467 = vmatpush1.msra.mxu0 0.0
  %5468 = vmatprep.subr.mxu0 0.0
  %5469 = vmatpush1.msra.mxu0 0.0
  %5470 = vmatprep.subr.mxu0 0.0
  %5471 = vmatpush1.msra.mxu0 0.0
  %5472 = vmatprep.subr.mxu0 0.0
  %5473 = vmatpush1.msra.mxu0 0.0
  %5474 = vmatprep.subr.mxu0 0.0
  %5475 = vmatpush1.msra.mxu0 0.0
  %5476 = vmatprep.subr.mxu0 0.0
  %5477 = vmatpush1.msra.mxu0 0.0
  %5478 = vmatprep.subr.mxu0 0.0
  %5479 = vmatpush1.msra.mxu0 0.0
  %5480 = vmatprep.subr.mxu0 0.0
  %5481 = vmatpush1.msra.mxu0 0.0
  %5482 = vmatprep.subr.mxu0 0.0
  %5483 = vmatpush1.msra.mxu0 0.0
  %5484 = vmatprep.subr.mxu0 0.0
  %5485 = vmatpush1.msra.mxu0 0.0
  %5486 = vmatprep.subr.mxu0 0.0
  %5487 = vmatpush1.msra.mxu0 0.0
  %5488 = vmatprep.subr.mxu0 0.0
  %5489 = vmatpush1.msra.mxu0 0.0
  %5490 = vmatprep.subr.mxu0 0.0
  %5491 = vmatpush1.msra.mxu0 0.0
  %5492 = vmatprep.subr.mxu0 0.0
  %5493 = vmatpush1.msra.mxu0 %v3735
  %5494 = vmatprep.subr.mxu0 0.0
  %5495 = vmatpush1.msra.mxu0 %v3730
  %5496 = vmatprep.subr.mxu0 0.0
  %5497 = vmatpush1.msra.mxu0 %v3725
  %5498 = vmatprep.subr.mxu0 0.0
  %5499 = vmatpush2.msra.mxu0 0.0
  %5500 = vmatprep.subr.mxu0 0.0
  %5501 = vmatpush2.msra.mxu0 0.0
  %5502 = vmatprep.subr.mxu0 0.0
  %5503 = vmatpush2.msra.mxu0 0.0
  %5504 = vmatprep.subr.mxu0 0.0
  %5505 = vmatpush2.msra.mxu0 0.0
  %5506 = vmatprep.subr.mxu0 0.0
  %5507 = vmatpush2.msra.mxu0 0.0
  %5508 = vmatprep.subr.mxu0 0.0
  %5509 = vmatpush2.msra.mxu0 0.0
  %5510 = vmatprep.subr.mxu0 0.0
  %5511 = vmatpush2.msra.mxu0 0.0
  %5512 = vmatprep.subr.mxu0 0.0
  %5513 = vmatpush2.msra.mxu0 0.0
  %5514 = vmatprep.subr.mxu0 0.0
  %5515 = vmatpush2.msra.mxu0 0.0
  %5516 = vmatprep.subr.mxu0 0.0
  %5517 = vmatpush2.msra.mxu0 0.0
  %5518 = vmatprep.subr.mxu0 0.0
  %5519 = vmatpush2.msra.mxu0 0.0
  %5520 = vmatprep.subr.mxu0 0.0
  %5521 = vmatpush2.msra.mxu0 0.0
  %5522 = vmatprep.subr.mxu0 0.0
  %5523 = vmatpush2.msra.mxu0 0.0
  %5524 = vmatprep.subr.mxu0 0.0
  %5525 = vmatpush2.msra.mxu0 0.0
  %5526 = vmatprep.subr.mxu0 0.0
  %5527 = vmatpush2.msra.mxu0 0.0
  %5528 = vmatprep.subr.mxu0 0.0
  %5529 = vmatpush2.msra.mxu0 0.0
  %5530 = vmatprep.mubr.f32.mxu0 0.0
  %5531 = vmatmul.mubr.f32.gmra.mxu0 %v5458
  %v5532 = vpop.f32.mrf.mxu0
  %v5533 = vadd.f32 0.0, %v5532
  %v5534 = vpop.f32.mrf.mxu0
  %5535 = vmatprep.mubr.f32.mxu0 0.0
  %5536 = vmatmul.mubr.f32.gmra.mxu0 %v5461
  %v5537 = vpop.f32.mrf.mxu0
  %v5538 = vadd.f32 0.0, %v5537
  %v5539 = vpop.f32.mrf.mxu0
  %5540 = vmatprep.mubr.f32.mxu0 0.0
  %5541 = vmatmul.mubr.f32.gmra.mxu0 %v5464
  %v5542 = vpop.f32.mrf.mxu0
  %v5543 = vadd.f32 0.0, %v5542
  %v5544 = vpop.f32.mrf.mxu0
  %5545 = vdwg.mxu0
  %5570 = vrot.lane.b32.xlu0 %v4910, 16
  %v5571 = vpop.permute.xlu0 %5570
  %5572 = vrot.lane.b32.xlu0 %v4915, 16
  %v5573 = vpop.permute.xlu0 %5572
  %5574 = vrot.lane.b32.xlu0 %v4920, 16
  %v5575 = vpop.permute.xlu0 %5574
  %5576 = vrot.lane.b32.xlu0 %v4999, 16
  %v5577 = vpop.permute.xlu0 %5576
  %5578 = vrot.lane.b32.xlu0 %v5004, 16
  %v5579 = vpop.permute.xlu0 %5578
  %5580 = vrot.lane.b32.xlu0 %v5009, 16
  %v5581 = vpop.permute.xlu0 %5580
  %5582 = vrot.lane.b32.xlu0 %v5088, 16
  %v5583 = vpop.permute.xlu0 %5582
  %5584 = vrot.lane.b32.xlu0 %v5093, 16
  %v5585 = vpop.permute.xlu0 %5584
  %5586 = vrot.lane.b32.xlu0 %v5098, 16
  %v5587 = vpop.permute.xlu0 %5586
  %5588 = vrot.lane.b32.xlu0 %v5177, 16
  %v5589 = vpop.permute.xlu0 %5588
  %5590 = vrot.lane.b32.xlu0 %v5182, 16
  %v5591 = vpop.permute.xlu0 %5590
  %5592 = vrot.lane.b32.xlu0 %v5187, 16
  %v5593 = vpop.permute.xlu0 %5592
  %5594 = vrot.lane.b32.xlu0 %v5266, 16
  %v5595 = vpop.permute.xlu0 %5594
  %5596 = vrot.lane.b32.xlu0 %v5271, 16
  %v5597 = vpop.permute.xlu0 %5596
  %5598 = vrot.lane.b32.xlu0 %v5276, 16
  %v5599 = vpop.permute.xlu0 %5598
  %5600 = vrot.lane.b32.xlu0 %v5355, 16
  %v5601 = vpop.permute.xlu0 %5600
  %5602 = vrot.lane.b32.xlu0 %v5360, 16
  %v5603 = vpop.permute.xlu0 %5602
  %5604 = vrot.lane.b32.xlu0 %v5365, 16
  %v5605 = vpop.permute.xlu0 %5604
  %5606 = vrot.lane.b32.xlu0 %v5444, 16
  %v5607 = vpop.permute.xlu0 %5606
  %5608 = vrot.lane.b32.xlu0 %v5449, 16
  %v5609 = vpop.permute.xlu0 %5608
  %5610 = vrot.lane.b32.xlu0 %v5454, 16
  %v5611 = vpop.permute.xlu0 %5610
  %5612 = vrot.lane.b32.xlu0 %v5533, 16
  %v5613 = vpop.permute.xlu0 %5612
  %5614 = vrot.lane.b32.xlu0 %v5538, 16
  %v5615 = vpop.permute.xlu0 %5614
  %5616 = vrot.lane.b32.xlu0 %v5543, 16
  %v5617 = vpop.permute.xlu0 %5616
  %v5642 = vsel %vm1356, %v2532, %v5571
  %v5643 = vsel %vm1356, %v2537, %v5573
  %v5644 = vsel %vm1356, %v2542, %v5575
  %v5645 = vsel %vm1356, %v2621, %v5577
  %v5646 = vsel %vm1356, %v2626, %v5579
  %v5647 = vsel %vm1356, %v2631, %v5581
  %v5648 = vsel %vm1356, %v2710, %v5583
  %v5649 = vsel %vm1356, %v2715, %v5585
  %v5650 = vsel %vm1356, %v2720, %v5587
  %v5651 = vsel %vm1356, %v2799, %v5589
  %v5652 = vsel %vm1356, %v2804, %v5591
  %v5653 = vsel %vm1356, %v2809, %v5593
  %v5654 = vsel %vm1356, %v2888, %v5595
  %v5655 = vsel %vm1356, %v2893, %v5597
  %v5656 = vsel %vm1356, %v2898, %v5599
  %v5657 = vsel %vm1356, %v2977, %v5601
  %v5658 = vsel %vm1356, %v2982, %v5603
  %v5659 = vsel %vm1356, %v2987, %v5605
  %v5660 = vsel %vm1356, %v3066, %v5607
  %v5661 = vsel %vm1356, %v3071, %v5609
  %v5662 = vsel %vm1356, %v3076, %v5611
  %v5663 = vsel %vm1356, %v3155, %v5613
  %v5664 = vsel %vm1356, %v3160, %v5615
  %v5665 = vsel %vm1356, %v3165, %v5617
  %v5666 = vadd.f32 %v5642, %v319
  %v5667 = vadd.f32 %v5643, %v320
  %v5668 = vadd.f32 %v5644, %v321
  %v5669 = vadd.f32 %v5645, %v322
  %v5670 = vadd.f32 %v5646, %v323
  %v5671 = vadd.f32 %v5647, %v324
  %v5672 = vadd.f32 %v5648, %v325
  %v5673 = vadd.f32 %v5649, %v326
  %v5674 = vadd.f32 %v5650, %v327
  %v5675 = vadd.f32 %v5651, %v328
  %v5676 = vadd.f32 %v5652, %v329
  %v5677 = vadd.f32 %v5653, %v330
  %v5678 = vadd.f32 %v5654, %v331
  %v5679 = vadd.f32 %v5655, %v332
  %v5680 = vadd.f32 %v5656, %v333
  %v5681 = vadd.f32 %v5657, %v334
  %v5682 = vadd.f32 %v5658, %v335
  %v5683 = vadd.f32 %v5659, %v336
  %v5684 = vadd.f32 %v5660, %v337
  %v5685 = vadd.f32 %v5661, %v338
  %v5686 = vadd.f32 %v5662, %v339
  %v5687 = vadd.f32 %v5663, %v340
  %v5688 = vadd.f32 %v5664, %v341
  %v5689 = vadd.f32 %v5665, %v342
  %v5690 = vmax.f32 %v5666, 0.0
  %v5691 = vmax.f32 %v5667, 0.0
  %v5692 = vmax.f32 %v5668, 0.0
  %v5693 = vmax.f32 %v5669, 0.0
  %v5694 = vmax.f32 %v5670, 0.0
  %v5695 = vmax.f32 %v5671, 0.0
  %v5696 = vmax.f32 %v5672, 0.0
  %v5697 = vmax.f32 %v5673, 0.0
  %v5698 = vmax.f32 %v5674, 0.0
  %v5699 = vmax.f32 %v5675, 0.0
  %v5700 = vmax.f32 %v5676, 0.0
  %v5701 = vmax.f32 %v5677, 0.0
  %v5702 = vmax.f32 %v5678, 0.0
  %v5703 = vmax.f32 %v5679, 0.0
  %v5704 = vmax.f32 %v5680, 0.0
  %v5705 = vmax.f32 %v5681, 0.0
  %v5706 = vmax.f32 %v5682, 0.0
  %v5707 = vmax.f32 %v5683, 0.0
  %v5708 = vmax.f32 %v5684, 0.0
  %v5709 = vmax.f32 %v5685, 0.0
  %v5710 = vmax.f32 %v5686, 0.0
  %v5711 = vmax.f32 %v5687, 0.0
  %v5712 = vmax.f32 %v5688, 0.0
  %v5713 = vmax.f32 %v5689, 0.0
  %v5714 = vld [vmem:[%s9] sm:$0x1]
  %v5715 = vld [vmem:[%s10] sm:$0x1]
  %v5716 = vsel %vm294, %v5690, 0.0
  %5717 = vadd.xlane.f32.xlu0 %v5716
  %v5718 = vpop.xlane.xlu0 %5717
  %v5719 = vsel %vm294, %v5691, 0.0
  %5720 = vadd.xlane.f32.xlu0 %v5719
  %v5721 = vpop.xlane.xlu0 %5720
  %v5722 = vsel %vm294, %v5692, 0.0
  %5723 = vadd.xlane.f32.xlu0 %v5722
  %v5724 = vpop.xlane.xlu0 %5723
  %v5725 = vsel %vm294, %v5693, 0.0
  %5726 = vadd.xlane.f32.xlu0 %v5725
  %v5727 = vpop.xlane.xlu0 %5726
  %v5728 = vsel %vm294, %v5694, 0.0
  %5729 = vadd.xlane.f32.xlu0 %v5728
  %v5730 = vpop.xlane.xlu0 %5729
  %v5731 = vsel %vm294, %v5695, 0.0
  %5732 = vadd.xlane.f32.xlu0 %v5731
  %v5733 = vpop.xlane.xlu0 %5732
  %v5734 = vsel %vm294, %v5696, 0.0
  %5735 = vadd.xlane.f32.xlu0 %v5734
  %v5736 = vpop.xlane.xlu0 %5735
  %v5737 = vsel %vm294, %v5697, 0.0
  %5738 = vadd.xlane.f32.xlu0 %v5737
  %v5739 = vpop.xlane.xlu0 %5738
  %v5740 = vsel %vm294, %v5698, 0.0
  %5741 = vadd.xlane.f32.xlu0 %v5740
  %v5742 = vpop.xlane.xlu0 %5741
  %v5743 = vsel %vm294, %v5699, 0.0
  %5744 = vadd.xlane.f32.xlu0 %v5743
  %v5745 = vpop.xlane.xlu0 %5744
  %v5746 = vsel %vm294, %v5700, 0.0
  %5747 = vadd.xlane.f32.xlu0 %v5746
  %v5748 = vpop.xlane.xlu0 %5747
  %v5749 = vsel %vm294, %v5701, 0.0
  %5750 = vadd.xlane.f32.xlu0 %v5749
  %v5751 = vpop.xlane.xlu0 %5750
  %v5752 = vsel %vm294, %v5702, 0.0
  %5753 = vadd.xlane.f32.xlu0 %v5752
  %v5754 = vpop.xlane.xlu0 %5753
  %v5755 = vsel %vm294, %v5703, 0.0
  %5756 = vadd.xlane.f32.xlu0 %v5755
  %v5757 = vpop.xlane.xlu0 %5756
  %v5758 = vsel %vm294, %v5704, 0.0
  %5759 = vadd.xlane.f32.xlu0 %v5758
  %v5760 = vpop.xlane.xlu0 %5759
  %v5761 = vsel %vm294, %v5705, 0.0
  %5762 = vadd.xlane.f32.xlu0 %v5761
  %v5763 = vpop.xlane.xlu0 %5762
  %v5764 = vsel %vm294, %v5706, 0.0
  %5765 = vadd.xlane.f32.xlu0 %v5764
  %v5766 = vpop.xlane.xlu0 %5765
  %v5767 = vsel %vm294, %v5707, 0.0
  %5768 = vadd.xlane.f32.xlu0 %v5767
  %v5769 = vpop.xlane.xlu0 %5768
  %v5770 = vsel %vm294, %v5708, 0.0
  %5771 = vadd.xlane.f32.xlu0 %v5770
  %v5772 = vpop.xlane.xlu0 %5771
  %v5773 = vsel %vm294, %v5709, 0.0
  %5774 = vadd.xlane.f32.xlu0 %v5773
  %v5775 = vpop.xlane.xlu0 %5774
  %v5776 = vsel %vm294, %v5710, 0.0
  %5777 = vadd.xlane.f32.xlu0 %v5776
  %v5778 = vpop.xlane.xlu0 %5777
  %v5779 = vsel %vm294, %v5711, 0.0
  %5780 = vadd.xlane.f32.xlu0 %v5779
  %v5781 = vpop.xlane.xlu0 %5780
  %v5782 = vsel %vm294, %v5712, 0.0
  %5783 = vadd.xlane.f32.xlu0 %v5782
  %v5784 = vpop.xlane.xlu0 %5783
  %v5785 = vsel %vm294, %v5713, 0.0
  %5786 = vadd.xlane.f32.xlu0 %v5785
  %v5787 = vpop.xlane.xlu0 %5786
  %v5788 = vmul.f32 %v5718, %v420
  %v5789 = vmul.f32 %v5721, %v420
  %v5790 = vmul.f32 %v5724, %v420
  %v5791 = vmul.f32 %v5727, %v420
  %v5792 = vmul.f32 %v5730, %v420
  %v5793 = vmul.f32 %v5733, %v420
  %v5794 = vmul.f32 %v5736, %v420
  %v5795 = vmul.f32 %v5739, %v420
  %v5796 = vmul.f32 %v5742, %v420
  %v5797 = vmul.f32 %v5745, %v420
  %v5798 = vmul.f32 %v5748, %v420
  %v5799 = vmul.f32 %v5751, %v420
  %v5800 = vmul.f32 %v5754, %v420
  %v5801 = vmul.f32 %v5757, %v420
  %v5802 = vmul.f32 %v5760, %v420
  %v5803 = vmul.f32 %v5763, %v420
  %v5804 = vmul.f32 %v5766, %v420
  %v5805 = vmul.f32 %v5769, %v420
  %v5806 = vmul.f32 %v5772, %v420
  %v5807 = vmul.f32 %v5775, %v420
  %v5808 = vmul.f32 %v5778, %v420
  %v5809 = vmul.f32 %v5781, %v420
  %v5810 = vmul.f32 %v5784, %v420
  %v5811 = vmul.f32 %v5787, %v420
  %v5812 = vsub.f32 %v5690, %v5788
  %v5813 = vsub.f32 %v5691, %v5789
  %v5814 = vsub.f32 %v5692, %v5790
  %v5815 = vsub.f32 %v5693, %v5791
  %v5816 = vsub.f32 %v5694, %v5792
  %v5817 = vsub.f32 %v5695, %v5793
  %v5818 = vsub.f32 %v5696, %v5794
  %v5819 = vsub.f32 %v5697, %v5795
  %v5820 = vsub.f32 %v5698, %v5796
  %v5821 = vsub.f32 %v5699, %v5797
  %v5822 = vsub.f32 %v5700, %v5798
  %v5823 = vsub.f32 %v5701, %v5799
  %v5824 = vsub.f32 %v5702, %v5800
  %v5825 = vsub.f32 %v5703, %v5801
  %v5826 = vsub.f32 %v5704, %v5802
  %v5827 = vsub.f32 %v5705, %v5803
  %v5828 = vsub.f32 %v5706, %v5804
  %v5829 = vsub.f32 %v5707, %v5805
  %v5830 = vsub.f32 %v5708, %v5806
  %v5831 = vsub.f32 %v5709, %v5807
  %v5832 = vsub.f32 %v5710, %v5808
  %v5833 = vsub.f32 %v5711, %v5809
  %v5834 = vsub.f32 %v5712, %v5810
  %v5835 = vsub.f32 %v5713, %v5811
  %v5836 = vmul.f32 %v5812, %v5812
  %v5837 = vmul.f32 %v5813, %v5813
  %v5838 = vmul.f32 %v5814, %v5814
  %v5839 = vmul.f32 %v5815, %v5815
  %v5840 = vmul.f32 %v5816, %v5816
  %v5841 = vmul.f32 %v5817, %v5817
  %v5842 = vmul.f32 %v5818, %v5818
  %v5843 = vmul.f32 %v5819, %v5819
  %v5844 = vmul.f32 %v5820, %v5820
  %v5845 = vmul.f32 %v5821, %v5821
  %v5846 = vmul.f32 %v5822, %v5822
  %v5847 = vmul.f32 %v5823, %v5823
  %v5848 = vmul.f32 %v5824, %v5824
  %v5849 = vmul.f32 %v5825, %v5825
  %v5850 = vmul.f32 %v5826, %v5826
  %v5851 = vmul.f32 %v5827, %v5827
  %v5852 = vmul.f32 %v5828, %v5828
  %v5853 = vmul.f32 %v5829, %v5829
  %v5854 = vmul.f32 %v5830, %v5830
  %v5855 = vmul.f32 %v5831, %v5831
  %v5856 = vmul.f32 %v5832, %v5832
  %v5857 = vmul.f32 %v5833, %v5833
  %v5858 = vmul.f32 %v5834, %v5834
  %v5859 = vmul.f32 %v5835, %v5835
  %v5860 = vsel %vm294, %v5836, 0.0
  %5861 = vadd.xlane.f32.xlu0 %v5860
  %v5862 = vpop.xlane.xlu0 %5861
  %v5863 = vsel %vm294, %v5837, 0.0
  %5864 = vadd.xlane.f32.xlu0 %v5863
  %v5865 = vpop.xlane.xlu0 %5864
  %v5866 = vsel %vm294, %v5838, 0.0
  %5867 = vadd.xlane.f32.xlu0 %v5866
  %v5868 = vpop.xlane.xlu0 %5867
  %v5869 = vsel %vm294, %v5839, 0.0
  %5870 = vadd.xlane.f32.xlu0 %v5869
  %v5871 = vpop.xlane.xlu0 %5870
  %v5872 = vsel %vm294, %v5840, 0.0
  %5873 = vadd.xlane.f32.xlu0 %v5872
  %v5874 = vpop.xlane.xlu0 %5873
  %v5875 = vsel %vm294, %v5841, 0.0
  %5876 = vadd.xlane.f32.xlu0 %v5875
  %v5877 = vpop.xlane.xlu0 %5876
  %v5878 = vsel %vm294, %v5842, 0.0
  %5879 = vadd.xlane.f32.xlu0 %v5878
  %v5880 = vpop.xlane.xlu0 %5879
  %v5881 = vsel %vm294, %v5843, 0.0
  %5882 = vadd.xlane.f32.xlu0 %v5881
  %v5883 = vpop.xlane.xlu0 %5882
  %v5884 = vsel %vm294, %v5844, 0.0
  %5885 = vadd.xlane.f32.xlu0 %v5884
  %v5886 = vpop.xlane.xlu0 %5885
  %v5887 = vsel %vm294, %v5845, 0.0
  %5888 = vadd.xlane.f32.xlu0 %v5887
  %v5889 = vpop.xlane.xlu0 %5888
  %v5890 = vsel %vm294, %v5846, 0.0
  %5891 = vadd.xlane.f32.xlu0 %v5890
  %v5892 = vpop.xlane.xlu0 %5891
  %v5893 = vsel %vm294, %v5847, 0.0
  %5894 = vadd.xlane.f32.xlu0 %v5893
  %v5895 = vpop.xlane.xlu0 %5894
  %v5896 = vsel %vm294, %v5848, 0.0
  %5897 = vadd.xlane.f32.xlu0 %v5896
  %v5898 = vpop.xlane.xlu0 %5897
  %v5899 = vsel %vm294, %v5849, 0.0
  %5900 = vadd.xlane.f32.xlu0 %v5899
  %v5901 = vpop.xlane.xlu0 %5900
  %v5902 = vsel %vm294, %v5850, 0.0
  %5903 = vadd.xlane.f32.xlu0 %v5902
  %v5904 = vpop.xlane.xlu0 %5903
  %v5905 = vsel %vm294, %v5851, 0.0
  %5906 = vadd.xlane.f32.xlu0 %v5905
  %v5907 = vpop.xlane.xlu0 %5906
  %v5908 = vsel %vm294, %v5852, 0.0
  %5909 = vadd.xlane.f32.xlu0 %v5908
  %v5910 = vpop.xlane.xlu0 %5909
  %v5911 = vsel %vm294, %v5853, 0.0
  %5912 = vadd.xlane.f32.xlu0 %v5911
  %v5913 = vpop.xlane.xlu0 %5912
  %v5914 = vsel %vm294, %v5854, 0.0
  %5915 = vadd.xlane.f32.xlu0 %v5914
  %v5916 = vpop.xlane.xlu0 %5915
  %v5917 = vsel %vm294, %v5855, 0.0
  %5918 = vadd.xlane.f32.xlu0 %v5917
  %v5919 = vpop.xlane.xlu0 %5918
  %v5920 = vsel %vm294, %v5856, 0.0
  %5921 = vadd.xlane.f32.xlu0 %v5920
  %v5922 = vpop.xlane.xlu0 %5921
  %v5923 = vsel %vm294, %v5857, 0.0
  %5924 = vadd.xlane.f32.xlu0 %v5923
  %v5925 = vpop.xlane.xlu0 %5924
  %v5926 = vsel %vm294, %v5858, 0.0
  %5927 = vadd.xlane.f32.xlu0 %v5926
  %v5928 = vpop.xlane.xlu0 %5927
  %v5929 = vsel %vm294, %v5859, 0.0
  %5930 = vadd.xlane.f32.xlu0 %v5929
  %v5931 = vpop.xlane.xlu0 %5930
  %v5932 = vmul.f32 %v5862, %v420
  %v5933 = vmul.f32 %v5865, %v420
  %v5934 = vmul.f32 %v5868, %v420
  %v5935 = vmul.f32 %v5871, %v420
  %v5936 = vmul.f32 %v5874, %v420
  %v5937 = vmul.f32 %v5877, %v420
  %v5938 = vmul.f32 %v5880, %v420
  %v5939 = vmul.f32 %v5883, %v420
  %v5940 = vmul.f32 %v5886, %v420
  %v5941 = vmul.f32 %v5889, %v420
  %v5942 = vmul.f32 %v5892, %v420
  %v5943 = vmul.f32 %v5895, %v420
  %v5944 = vmul.f32 %v5898, %v420
  %v5945 = vmul.f32 %v5901, %v420
  %v5946 = vmul.f32 %v5904, %v420
  %v5947 = vmul.f32 %v5907, %v420
  %v5948 = vmul.f32 %v5910, %v420
  %v5949 = vmul.f32 %v5913, %v420
  %v5950 = vmul.f32 %v5916, %v420
  %v5951 = vmul.f32 %v5919, %v420
  %v5952 = vmul.f32 %v5922, %v420
  %v5953 = vmul.f32 %v5925, %v420
  %v5954 = vmul.f32 %v5928, %v420
  %v5955 = vmul.f32 %v5931, %v420
  %v5956 = vadd.f32 %v5932, 1e-05
  %v5957 = vadd.f32 %v5933, 1e-05
  %v5958 = vadd.f32 %v5934, 1e-05
  %v5959 = vadd.f32 %v5935, 1e-05
  %v5960 = vadd.f32 %v5936, 1e-05
  %v5961 = vadd.f32 %v5937, 1e-05
  %v5962 = vadd.f32 %v5938, 1e-05
  %v5963 = vadd.f32 %v5939, 1e-05
  %v5964 = vadd.f32 %v5940, 1e-05
  %v5965 = vadd.f32 %v5941, 1e-05
  %v5966 = vadd.f32 %v5942, 1e-05
  %v5967 = vadd.f32 %v5943, 1e-05
  %v5968 = vadd.f32 %v5944, 1e-05
  %v5969 = vadd.f32 %v5945, 1e-05
  %v5970 = vadd.f32 %v5946, 1e-05
  %v5971 = vadd.f32 %v5947, 1e-05
  %v5972 = vadd.f32 %v5948, 1e-05
  %v5973 = vadd.f32 %v5949, 1e-05
  %v5974 = vadd.f32 %v5950, 1e-05
  %v5975 = vadd.f32 %v5951, 1e-05
  %v5976 = vadd.f32 %v5952, 1e-05
  %v5977 = vadd.f32 %v5953, 1e-05
  %v5978 = vadd.f32 %v5954, 1e-05
  %v5979 = vadd.f32 %v5955, 1e-05
  %v5980 = vrsqrt.pop %v5956
  %v5981 = vrsqrt.pop %v5957
  %v5982 = vrsqrt.pop %v5958
  %v5983 = vrsqrt.pop %v5959
  %v5984 = vrsqrt.pop %v5960
  %v5985 = vrsqrt.pop %v5961
  %v5986 = vrsqrt.pop %v5962
  %v5987 = vrsqrt.pop %v5963
  %v5988 = vrsqrt.pop %v5964
  %v5989 = vrsqrt.pop %v5965
  %v5990 = vrsqrt.pop %v5966
  %v5991 = vrsqrt.pop %v5967
  %v5992 = vrsqrt.pop %v5968
  %v5993 = vrsqrt.pop %v5969
  %v5994 = vrsqrt.pop %v5970
  %v5995 = vrsqrt.pop %v5971
  %v5996 = vrsqrt.pop %v5972
  %v5997 = vrsqrt.pop %v5973
  %v5998 = vrsqrt.pop %v5974
  %v5999 = vrsqrt.pop %v5975
  %v6000 = vrsqrt.pop %v5976
  %v6001 = vrsqrt.pop %v5977
  %v6002 = vrsqrt.pop %v5978
  %v6003 = vrsqrt.pop %v5979
  %v6004 = vmul.f32 %v5812, %v5980
  %v6005 = vmul.f32 %v5813, %v5981
  %v6006 = vmul.f32 %v5814, %v5982
  %v6007 = vmul.f32 %v5815, %v5983
  %v6008 = vmul.f32 %v5816, %v5984
  %v6009 = vmul.f32 %v5817, %v5985
  %v6010 = vmul.f32 %v5818, %v5986
  %v6011 = vmul.f32 %v5819, %v5987
  %v6012 = vmul.f32 %v5820, %v5988
  %v6013 = vmul.f32 %v5821, %v5989
  %v6014 = vmul.f32 %v5822, %v5990
  %v6015 = vmul.f32 %v5823, %v5991
  %v6016 = vmul.f32 %v5824, %v5992
  %v6017 = vmul.f32 %v5825, %v5993
  %v6018 = vmul.f32 %v5826, %v5994
  %v6019 = vmul.f32 %v5827, %v5995
  %v6020 = vmul.f32 %v5828, %v5996
  %v6021 = vmul.f32 %v5829, %v5997
  %v6022 = vmul.f32 %v5830, %v5998
  %v6023 = vmul.f32 %v5831, %v5999
  %v6024 = vmul.f32 %v5832, %v6000
  %v6025 = vmul.f32 %v5833, %v6001
  %v6026 = vmul.f32 %v5834, %v6002
  %v6027 = vmul.f32 %v5835, %v6003
  %v6028 = vlaneseq
  %v6029 = vshrl.u32 %v6028, 7
  %v6030 = vsub.s32 0, %v6029
  %v6031 = vrot.slane %v5714, %v6030
  %v6032 = vmul.f32 %v6004, %v6031
  %v6033 = vmul.f32 %v6005, %v6031
  %v6034 = vmul.f32 %v6006, %v6031
  %v6035 = vmul.f32 %v6007, %v6031
  %v6036 = vmul.f32 %v6008, %v6031
  %v6037 = vmul.f32 %v6009, %v6031
  %v6038 = vmul.f32 %v6010, %v6031
  %v6039 = vmul.f32 %v6011, %v6031
  %v6040 = vmul.f32 %v6012, %v6031
  %v6041 = vmul.f32 %v6013, %v6031
  %v6042 = vmul.f32 %v6014, %v6031
  %v6043 = vmul.f32 %v6015, %v6031
  %v6044 = vmul.f32 %v6016, %v6031
  %v6045 = vmul.f32 %v6017, %v6031
  %v6046 = vmul.f32 %v6018, %v6031
  %v6047 = vmul.f32 %v6019, %v6031
  %v6048 = vmul.f32 %v6020, %v6031
  %v6049 = vmul.f32 %v6021, %v6031
  %v6050 = vmul.f32 %v6022, %v6031
  %v6051 = vmul.f32 %v6023, %v6031
  %v6052 = vmul.f32 %v6024, %v6031
  %v6053 = vmul.f32 %v6025, %v6031
  %v6054 = vmul.f32 %v6026, %v6031
  %v6055 = vmul.f32 %v6027, %v6031
  %v6056 = vlaneseq
  %v6057 = vshrl.u32 %v6056, 7
  %v6058 = vsub.s32 0, %v6057
  %v6059 = vrot.slane %v5715, %v6058
  %v6060 = vadd.f32 %v6032, %v6059
  %v6061 = vadd.f32 %v6033, %v6059
  %v6062 = vadd.f32 %v6034, %v6059
  %v6063 = vadd.f32 %v6035, %v6059
  %v6064 = vadd.f32 %v6036, %v6059
  %v6065 = vadd.f32 %v6037, %v6059
  %v6066 = vadd.f32 %v6038, %v6059
  %v6067 = vadd.f32 %v6039, %v6059
  %v6068 = vadd.f32 %v6040, %v6059
  %v6069 = vadd.f32 %v6041, %v6059
  %v6070 = vadd.f32 %v6042, %v6059
  %v6071 = vadd.f32 %v6043, %v6059
  %v6072 = vadd.f32 %v6044, %v6059
  %v6073 = vadd.f32 %v6045, %v6059
  %v6074 = vadd.f32 %v6046, %v6059
  %v6075 = vadd.f32 %v6047, %v6059
  %v6076 = vadd.f32 %v6048, %v6059
  %v6077 = vadd.f32 %v6049, %v6059
  %v6078 = vadd.f32 %v6050, %v6059
  %v6079 = vadd.f32 %v6051, %v6059
  %v6080 = vadd.f32 %v6052, %v6059
  %v6081 = vadd.f32 %v6053, %v6059
  %v6082 = vadd.f32 %v6054, %v6059
  %v6083 = vadd.f32 %v6055, %v6059
  %v6084 = vld [vmem:[%s11] sm:$0xff]
  %v6085 = vld [vmem:[%s11 + $0x8] sm:$0xff]
  %v6086 = vld [vmem:[%s11 + $0x10] sm:$0xff]
  %v6087 = vld [vmem:[%s11 + $0x18] sm:$0xff]
  %v6088 = vld [vmem:[%s12] sm:$0x1]
  %v6089 = vlaneseq
  %v6090 = vshrl.u32 %v6089, 7
  %v6091 = vsub.s32 0, %v6090
  %v6092 = vrot.slane %v6088, %v6091
  %v6094 = vsel %vm294, %v6060, 0
  %v6097 = vsel %vm294, %v6061, 0
  %v6100 = vsel %vm294, %v6062, 0
  %v6103 = vsel %vm294, %v6063, 0
  %v6106 = vsel %vm294, %v6064, 0
  %v6109 = vsel %vm294, %v6065, 0
  %v6112 = vsel %vm294, %v6066, 0
  %v6115 = vsel %vm294, %v6067, 0
  %v6118 = vsel %vm294, %v6068, 0
  %v6121 = vsel %vm294, %v6069, 0
  %v6124 = vsel %vm294, %v6070, 0
  %v6127 = vsel %vm294, %v6071, 0
  %v6130 = vsel %vm294, %v6072, 0
  %v6133 = vsel %vm294, %v6073, 0
  %v6136 = vsel %vm294, %v6074, 0
  %v6139 = vsel %vm294, %v6075, 0
  %v6142 = vsel %vm294, %v6076, 0
  %v6145 = vsel %vm294, %v6077, 0
  %v6148 = vsel %vm294, %v6078, 0
  %v6151 = vsel %vm294, %v6079, 0
  %v6154 = vsel %vm294, %v6080, 0
  %v6157 = vsel %vm294, %v6081, 0
  %v6160 = vsel %vm294, %v6082, 0
  %v6163 = vsel %vm294, %v6083, 0
  %6165 = vmatprep.subr.mxu0 0.0
  %6166 = vmatpush1.msra.mxu0 0.0
  %6167 = vmatprep.subr.mxu0 0.0
  %6168 = vmatpush1.msra.mxu0 0.0
  %6169 = vmatprep.subr.mxu0 0.0
  %6170 = vmatpush1.msra.mxu0 0.0
  %6171 = vmatprep.subr.mxu0 0.0
  %6172 = vmatpush1.msra.mxu0 0.0
  %6173 = vmatprep.subr.mxu0 0.0
  %6174 = vmatpush1.msra.mxu0 0.0
  %6175 = vmatprep.subr.mxu0 0.0
  %6176 = vmatpush1.msra.mxu0 0.0
  %6177 = vmatprep.subr.mxu0 0.0
  %6178 = vmatpush1.msra.mxu0 0.0
  %6179 = vmatprep.subr.mxu0 0.0
  %6180 = vmatpush1.msra.mxu0 0.0
  %6181 = vmatprep.subr.mxu0 0.0
  %6182 = vmatpush1.msra.mxu0 0.0
  %6183 = vmatprep.subr.mxu0 0.0
  %6184 = vmatpush1.msra.mxu0 0.0
  %6185 = vmatprep.subr.mxu0 0.0
  %6186 = vmatpush1.msra.mxu0 0.0
  %6187 = vmatprep.subr.mxu0 0.0
  %6188 = vmatpush1.msra.mxu0 0.0
  %6189 = vmatprep.subr.mxu0 0.0
  %6190 = vmatpush1.msra.mxu0 %v6087
  %6191 = vmatprep.subr.mxu0 0.0
  %6192 = vmatpush1.msra.mxu0 %v6086
  %6193 = vmatprep.subr.mxu0 0.0
  %6194 = vmatpush1.msra.mxu0 %v6085
  %6195 = vmatprep.subr.mxu0 0.0
  %6196 = vmatpush1.msra.mxu0 %v6084
  %6197 = vmatprep.subr.mxu0 0.0
  %6198 = vmatpush2.msra.mxu0 0.0
  %6199 = vmatprep.subr.mxu0 0.0
  %6200 = vmatpush2.msra.mxu0 0.0
  %6201 = vmatprep.subr.mxu0 0.0
  %6202 = vmatpush2.msra.mxu0 0.0
  %6203 = vmatprep.subr.mxu0 0.0
  %6204 = vmatpush2.msra.mxu0 0.0
  %6205 = vmatprep.subr.mxu0 0.0
  %6206 = vmatpush2.msra.mxu0 0.0
  %6207 = vmatprep.subr.mxu0 0.0
  %6208 = vmatpush2.msra.mxu0 0.0
  %6209 = vmatprep.subr.mxu0 0.0
  %6210 = vmatpush2.msra.mxu0 0.0
  %6211 = vmatprep.subr.mxu0 0.0
  %6212 = vmatpush2.msra.mxu0 0.0
  %6213 = vmatprep.subr.mxu0 0.0
  %6214 = vmatpush2.msra.mxu0 0.0
  %6215 = vmatprep.subr.mxu0 0.0
  %6216 = vmatpush2.msra.mxu0 0.0
  %6217 = vmatprep.subr.mxu0 0.0
  %6218 = vmatpush2.msra.mxu0 0.0
  %6219 = vmatprep.subr.mxu0 0.0
  %6220 = vmatpush2.msra.mxu0 0.0
  %6221 = vmatprep.subr.mxu0 0.0
  %6222 = vmatpush2.msra.mxu0 0.0
  %6223 = vmatprep.subr.mxu0 0.0
  %6224 = vmatpush2.msra.mxu0 0.0
  %6225 = vmatprep.subr.mxu0 0.0
  %6226 = vmatpush2.msra.mxu0 0.0
  %6227 = vmatprep.subr.mxu0 0.0
  %6228 = vmatpush2.msra.mxu0 0.0
  %6229 = vmatprep.mubr.f32.mxu0 0.0
  %6230 = vmatmul.mubr.f32.gmra.mxu0 %v6094
  %v6231 = vpop.f32.mrf.mxu0
  %v6232 = vadd.f32 %v6092, %v6231
  %v6233 = vpop.f32.mrf.mxu0
  %6234 = vmatprep.mubr.f32.mxu0 0.0
  %6235 = vmatmul.mubr.f32.gmra.mxu0 %v6097
  %v6236 = vpop.f32.mrf.mxu0
  %v6237 = vadd.f32 %v6092, %v6236
  %v6238 = vpop.f32.mrf.mxu0
  %6239 = vmatprep.mubr.f32.mxu0 0.0
  %6240 = vmatmul.mubr.f32.gmra.mxu0 %v6100
  %v6241 = vpop.f32.mrf.mxu0
  %v6242 = vadd.f32 %v6092, %v6241
  %v6243 = vpop.f32.mrf.mxu0
  %6244 = vmatprep.mubr.f32.mxu0 0.0
  %6245 = vmatmul.mubr.f32.gmra.mxu0 %v6103
  %v6246 = vpop.f32.mrf.mxu0
  %v6247 = vadd.f32 %v6092, %v6246
  %v6248 = vpop.f32.mrf.mxu0
  %6249 = vmatprep.mubr.f32.mxu0 0.0
  %6250 = vmatmul.mubr.f32.gmra.mxu0 %v6106
  %v6251 = vpop.f32.mrf.mxu0
  %v6252 = vadd.f32 %v6092, %v6251
  %v6253 = vpop.f32.mrf.mxu0
  %6254 = vmatprep.mubr.f32.mxu0 0.0
  %6255 = vmatmul.mubr.f32.gmra.mxu0 %v6109
  %v6256 = vpop.f32.mrf.mxu0
  %v6257 = vadd.f32 %v6092, %v6256
  %v6258 = vpop.f32.mrf.mxu0
  %6259 = vmatprep.mubr.f32.mxu0 0.0
  %6260 = vmatmul.mubr.f32.gmra.mxu0 %v6112
  %v6261 = vpop.f32.mrf.mxu0
  %v6262 = vadd.f32 %v6092, %v6261
  %v6263 = vpop.f32.mrf.mxu0
  %6264 = vmatprep.mubr.f32.mxu0 0.0
  %6265 = vmatmul.mubr.f32.gmra.mxu0 %v6115
  %v6266 = vpop.f32.mrf.mxu0
  %v6267 = vadd.f32 %v6092, %v6266
  %v6268 = vpop.f32.mrf.mxu0
  %6269 = vmatprep.mubr.f32.mxu0 0.0
  %6270 = vmatmul.mubr.f32.gmra.mxu0 %v6118
  %v6271 = vpop.f32.mrf.mxu0
  %v6272 = vadd.f32 %v6092, %v6271
  %v6273 = vpop.f32.mrf.mxu0
  %6274 = vmatprep.mubr.f32.mxu0 0.0
  %6275 = vmatmul.mubr.f32.gmra.mxu0 %v6121
  %v6276 = vpop.f32.mrf.mxu0
  %v6277 = vadd.f32 %v6092, %v6276
  %v6278 = vpop.f32.mrf.mxu0
  %6279 = vmatprep.mubr.f32.mxu0 0.0
  %6280 = vmatmul.mubr.f32.gmra.mxu0 %v6124
  %v6281 = vpop.f32.mrf.mxu0
  %v6282 = vadd.f32 %v6092, %v6281
  %v6283 = vpop.f32.mrf.mxu0
  %6284 = vmatprep.mubr.f32.mxu0 0.0
  %6285 = vmatmul.mubr.f32.gmra.mxu0 %v6127
  %v6286 = vpop.f32.mrf.mxu0
  %v6287 = vadd.f32 %v6092, %v6286
  %v6288 = vpop.f32.mrf.mxu0
  %6289 = vmatprep.mubr.f32.mxu0 0.0
  %6290 = vmatmul.mubr.f32.gmra.mxu0 %v6130
  %v6291 = vpop.f32.mrf.mxu0
  %v6292 = vadd.f32 %v6092, %v6291
  %v6293 = vpop.f32.mrf.mxu0
  %6294 = vmatprep.mubr.f32.mxu0 0.0
  %6295 = vmatmul.mubr.f32.gmra.mxu0 %v6133
  %v6296 = vpop.f32.mrf.mxu0
  %v6297 = vadd.f32 %v6092, %v6296
  %v6298 = vpop.f32.mrf.mxu0
  %6299 = vmatprep.mubr.f32.mxu0 0.0
  %6300 = vmatmul.mubr.f32.gmra.mxu0 %v6136
  %v6301 = vpop.f32.mrf.mxu0
  %v6302 = vadd.f32 %v6092, %v6301
  %v6303 = vpop.f32.mrf.mxu0
  %6304 = vmatprep.mubr.f32.mxu0 0.0
  %6305 = vmatmul.mubr.f32.gmra.mxu0 %v6139
  %v6306 = vpop.f32.mrf.mxu0
  %v6307 = vadd.f32 %v6092, %v6306
  %v6308 = vpop.f32.mrf.mxu0
  %6309 = vmatprep.mubr.f32.mxu0 0.0
  %6310 = vmatmul.mubr.f32.gmra.mxu0 %v6142
  %v6311 = vpop.f32.mrf.mxu0
  %v6312 = vadd.f32 %v6092, %v6311
  %v6313 = vpop.f32.mrf.mxu0
  %6314 = vmatprep.mubr.f32.mxu0 0.0
  %6315 = vmatmul.mubr.f32.gmra.mxu0 %v6145
  %v6316 = vpop.f32.mrf.mxu0
  %v6317 = vadd.f32 %v6092, %v6316
  %v6318 = vpop.f32.mrf.mxu0
  %6319 = vmatprep.mubr.f32.mxu0 0.0
  %6320 = vmatmul.mubr.f32.gmra.mxu0 %v6148
  %v6321 = vpop.f32.mrf.mxu0
  %v6322 = vadd.f32 %v6092, %v6321
  %v6323 = vpop.f32.mrf.mxu0
  %6324 = vmatprep.mubr.f32.mxu0 0.0
  %6325 = vmatmul.mubr.f32.gmra.mxu0 %v6151
  %v6326 = vpop.f32.mrf.mxu0
  %v6327 = vadd.f32 %v6092, %v6326
  %v6328 = vpop.f32.mrf.mxu0
  %6329 = vmatprep.mubr.f32.mxu0 0.0
  %6330 = vmatmul.mubr.f32.gmra.mxu0 %v6154
  %v6331 = vpop.f32.mrf.mxu0
  %v6332 = vadd.f32 %v6092, %v6331
  %v6333 = vpop.f32.mrf.mxu0
  %6334 = vmatprep.mubr.f32.mxu0 0.0
  %6335 = vmatmul.mubr.f32.gmra.mxu0 %v6157
  %v6336 = vpop.f32.mrf.mxu0
  %v6337 = vadd.f32 %v6092, %v6336
  %v6338 = vpop.f32.mrf.mxu0
  %6339 = vmatprep.mubr.f32.mxu0 0.0
  %6340 = vmatmul.mubr.f32.gmra.mxu0 %v6160
  %v6341 = vpop.f32.mrf.mxu0
  %v6342 = vadd.f32 %v6092, %v6341
  %v6343 = vpop.f32.mrf.mxu0
  %6344 = vmatprep.mubr.f32.mxu0 0.0
  %6345 = vmatmul.mubr.f32.gmra.mxu0 %v6163
  %v6346 = vpop.f32.mrf.mxu0
  %v6347 = vadd.f32 %v6092, %v6346
  %v6348 = vpop.f32.mrf.mxu0
  %6349 = vdwg.mxu0
  %v6350 = vadd.f32 %v6232, %v5690
  %v6351 = vadd.f32 %v6237, %v5691
  %v6352 = vadd.f32 %v6242, %v5692
  %v6353 = vadd.f32 %v6247, %v5693
  %v6354 = vadd.f32 %v6252, %v5694
  %v6355 = vadd.f32 %v6257, %v5695
  %v6356 = vadd.f32 %v6262, %v5696
  %v6357 = vadd.f32 %v6267, %v5697
  %v6358 = vadd.f32 %v6272, %v5698
  %v6359 = vadd.f32 %v6277, %v5699
  %v6360 = vadd.f32 %v6282, %v5700
  %v6361 = vadd.f32 %v6287, %v5701
  %v6362 = vadd.f32 %v6292, %v5702
  %v6363 = vadd.f32 %v6297, %v5703
  %v6364 = vadd.f32 %v6302, %v5704
  %v6365 = vadd.f32 %v6307, %v5705
  %v6366 = vadd.f32 %v6312, %v5706
  %v6367 = vadd.f32 %v6317, %v5707
  %v6368 = vadd.f32 %v6322, %v5708
  %v6369 = vadd.f32 %v6327, %v5709
  %v6370 = vadd.f32 %v6332, %v5710
  %v6371 = vadd.f32 %v6337, %v5711
  %v6372 = vadd.f32 %v6342, %v5712
  %v6373 = vadd.f32 %v6347, %v5713
  %v6374 = vmax.f32 %v6350, 0.0
  %v6375 = vmax.f32 %v6351, 0.0
  %v6376 = vmax.f32 %v6352, 0.0
  %v6377 = vmax.f32 %v6353, 0.0
  %v6378 = vmax.f32 %v6354, 0.0
  %v6379 = vmax.f32 %v6355, 0.0
  %v6380 = vmax.f32 %v6356, 0.0
  %v6381 = vmax.f32 %v6357, 0.0
  %v6382 = vmax.f32 %v6358, 0.0
  %v6383 = vmax.f32 %v6359, 0.0
  %v6384 = vmax.f32 %v6360, 0.0
  %v6385 = vmax.f32 %v6361, 0.0
  %v6386 = vmax.f32 %v6362, 0.0
  %v6387 = vmax.f32 %v6363, 0.0
  %v6388 = vmax.f32 %v6364, 0.0
  %v6389 = vmax.f32 %v6365, 0.0
  %v6390 = vmax.f32 %v6366, 0.0
  %v6391 = vmax.f32 %v6367, 0.0
  %v6392 = vmax.f32 %v6368, 0.0
  %v6393 = vmax.f32 %v6369, 0.0
  %v6394 = vmax.f32 %v6370, 0.0
  %v6395 = vmax.f32 %v6371, 0.0
  %v6396 = vmax.f32 %v6372, 0.0
  %v6397 = vmax.f32 %v6373, 0.0
  %v6398 = vld [vmem:[%s4 + $0x1] sm:$0x1]
  %v6399 = vld [vmem:[%s5 + $0x1] sm:$0x1]
  %v6400 = vsel %vm294, %v6374, 0.0
  %6401 = vadd.xlane.f32.xlu0 %v6400
  %v6402 = vpop.xlane.xlu0 %6401
  %v6403 = vsel %vm294, %v6375, 0.0
  %6404 = vadd.xlane.f32.xlu0 %v6403
  %v6405 = vpop.xlane.xlu0 %6404
  %v6406 = vsel %vm294, %v6376, 0.0
  %6407 = vadd.xlane.f32.xlu0 %v6406
  %v6408 = vpop.xlane.xlu0 %6407
  %v6409 = vsel %vm294, %v6377, 0.0
  %6410 = vadd.xlane.f32.xlu0 %v6409
  %v6411 = vpop.xlane.xlu0 %6410
  %v6412 = vsel %vm294, %v6378, 0.0
  %6413 = vadd.xlane.f32.xlu0 %v6412
  %v6414 = vpop.xlane.xlu0 %6413
  %v6415 = vsel %vm294, %v6379, 0.0
  %6416 = vadd.xlane.f32.xlu0 %v6415
  %v6417 = vpop.xlane.xlu0 %6416
  %v6418 = vsel %vm294, %v6380, 0.0
  %6419 = vadd.xlane.f32.xlu0 %v6418
  %v6420 = vpop.xlane.xlu0 %6419
  %v6421 = vsel %vm294, %v6381, 0.0
  %6422 = vadd.xlane.f32.xlu0 %v6421
  %v6423 = vpop.xlane.xlu0 %6422
  %v6424 = vsel %vm294, %v6382, 0.0
  %6425 = vadd.xlane.f32.xlu0 %v6424
  %v6426 = vpop.xlane.xlu0 %6425
  %v6427 = vsel %vm294, %v6383, 0.0
  %6428 = vadd.xlane.f32.xlu0 %v6427
  %v6429 = vpop.xlane.xlu0 %6428
  %v6430 = vsel %vm294, %v6384, 0.0
  %6431 = vadd.xlane.f32.xlu0 %v6430
  %v6432 = vpop.xlane.xlu0 %6431
  %v6433 = vsel %vm294, %v6385, 0.0
  %6434 = vadd.xlane.f32.xlu0 %v6433
  %v6435 = vpop.xlane.xlu0 %6434
  %v6436 = vsel %vm294, %v6386, 0.0
  %6437 = vadd.xlane.f32.xlu0 %v6436
  %v6438 = vpop.xlane.xlu0 %6437
  %v6439 = vsel %vm294, %v6387, 0.0
  %6440 = vadd.xlane.f32.xlu0 %v6439
  %v6441 = vpop.xlane.xlu0 %6440
  %v6442 = vsel %vm294, %v6388, 0.0
  %6443 = vadd.xlane.f32.xlu0 %v6442
  %v6444 = vpop.xlane.xlu0 %6443
  %v6445 = vsel %vm294, %v6389, 0.0
  %6446 = vadd.xlane.f32.xlu0 %v6445
  %v6447 = vpop.xlane.xlu0 %6446
  %v6448 = vsel %vm294, %v6390, 0.0
  %6449 = vadd.xlane.f32.xlu0 %v6448
  %v6450 = vpop.xlane.xlu0 %6449
  %v6451 = vsel %vm294, %v6391, 0.0
  %6452 = vadd.xlane.f32.xlu0 %v6451
  %v6453 = vpop.xlane.xlu0 %6452
  %v6454 = vsel %vm294, %v6392, 0.0
  %6455 = vadd.xlane.f32.xlu0 %v6454
  %v6456 = vpop.xlane.xlu0 %6455
  %v6457 = vsel %vm294, %v6393, 0.0
  %6458 = vadd.xlane.f32.xlu0 %v6457
  %v6459 = vpop.xlane.xlu0 %6458
  %v6460 = vsel %vm294, %v6394, 0.0
  %6461 = vadd.xlane.f32.xlu0 %v6460
  %v6462 = vpop.xlane.xlu0 %6461
  %v6463 = vsel %vm294, %v6395, 0.0
  %6464 = vadd.xlane.f32.xlu0 %v6463
  %v6465 = vpop.xlane.xlu0 %6464
  %v6466 = vsel %vm294, %v6396, 0.0
  %6467 = vadd.xlane.f32.xlu0 %v6466
  %v6468 = vpop.xlane.xlu0 %6467
  %v6469 = vsel %vm294, %v6397, 0.0
  %6470 = vadd.xlane.f32.xlu0 %v6469
  %v6471 = vpop.xlane.xlu0 %6470
  %v6472 = vmul.f32 %v6402, %v420
  %v6473 = vmul.f32 %v6405, %v420
  %v6474 = vmul.f32 %v6408, %v420
  %v6475 = vmul.f32 %v6411, %v420
  %v6476 = vmul.f32 %v6414, %v420
  %v6477 = vmul.f32 %v6417, %v420
  %v6478 = vmul.f32 %v6420, %v420
  %v6479 = vmul.f32 %v6423, %v420
  %v6480 = vmul.f32 %v6426, %v420
  %v6481 = vmul.f32 %v6429, %v420
  %v6482 = vmul.f32 %v6432, %v420
  %v6483 = vmul.f32 %v6435, %v420
  %v6484 = vmul.f32 %v6438, %v420
  %v6485 = vmul.f32 %v6441, %v420
  %v6486 = vmul.f32 %v6444, %v420
  %v6487 = vmul.f32 %v6447, %v420
  %v6488 = vmul.f32 %v6450, %v420
  %v6489 = vmul.f32 %v6453, %v420
  %v6490 = vmul.f32 %v6456, %v420
  %v6491 = vmul.f32 %v6459, %v420
  %v6492 = vmul.f32 %v6462, %v420
  %v6493 = vmul.f32 %v6465, %v420
  %v6494 = vmul.f32 %v6468, %v420
  %v6495 = vmul.f32 %v6471, %v420
  %v6496 = vsub.f32 %v6374, %v6472
  %v6497 = vsub.f32 %v6375, %v6473
  %v6498 = vsub.f32 %v6376, %v6474
  %v6499 = vsub.f32 %v6377, %v6475
  %v6500 = vsub.f32 %v6378, %v6476
  %v6501 = vsub.f32 %v6379, %v6477
  %v6502 = vsub.f32 %v6380, %v6478
  %v6503 = vsub.f32 %v6381, %v6479
  %v6504 = vsub.f32 %v6382, %v6480
  %v6505 = vsub.f32 %v6383, %v6481
  %v6506 = vsub.f32 %v6384, %v6482
  %v6507 = vsub.f32 %v6385, %v6483
  %v6508 = vsub.f32 %v6386, %v6484
  %v6509 = vsub.f32 %v6387, %v6485
  %v6510 = vsub.f32 %v6388, %v6486
  %v6511 = vsub.f32 %v6389, %v6487
  %v6512 = vsub.f32 %v6390, %v6488
  %v6513 = vsub.f32 %v6391, %v6489
  %v6514 = vsub.f32 %v6392, %v6490
  %v6515 = vsub.f32 %v6393, %v6491
  %v6516 = vsub.f32 %v6394, %v6492
  %v6517 = vsub.f32 %v6395, %v6493
  %v6518 = vsub.f32 %v6396, %v6494
  %v6519 = vsub.f32 %v6397, %v6495
  %v6520 = vmul.f32 %v6496, %v6496
  %v6521 = vmul.f32 %v6497, %v6497
  %v6522 = vmul.f32 %v6498, %v6498
  %v6523 = vmul.f32 %v6499, %v6499
  %v6524 = vmul.f32 %v6500, %v6500
  %v6525 = vmul.f32 %v6501, %v6501
  %v6526 = vmul.f32 %v6502, %v6502
  %v6527 = vmul.f32 %v6503, %v6503
  %v6528 = vmul.f32 %v6504, %v6504
  %v6529 = vmul.f32 %v6505, %v6505
  %v6530 = vmul.f32 %v6506, %v6506
  %v6531 = vmul.f32 %v6507, %v6507
  %v6532 = vmul.f32 %v6508, %v6508
  %v6533 = vmul.f32 %v6509, %v6509
  %v6534 = vmul.f32 %v6510, %v6510
  %v6535 = vmul.f32 %v6511, %v6511
  %v6536 = vmul.f32 %v6512, %v6512
  %v6537 = vmul.f32 %v6513, %v6513
  %v6538 = vmul.f32 %v6514, %v6514
  %v6539 = vmul.f32 %v6515, %v6515
  %v6540 = vmul.f32 %v6516, %v6516
  %v6541 = vmul.f32 %v6517, %v6517
  %v6542 = vmul.f32 %v6518, %v6518
  %v6543 = vmul.f32 %v6519, %v6519
  %v6544 = vsel %vm294, %v6520, 0.0
  %6545 = vadd.xlane.f32.xlu0 %v6544
  %v6546 = vpop.xlane.xlu0 %6545
  %v6547 = vsel %vm294, %v6521, 0.0
  %6548 = vadd.xlane.f32.xlu0 %v6547
  %v6549 = vpop.xlane.xlu0 %6548
  %v6550 = vsel %vm294, %v6522, 0.0
  %6551 = vadd.xlane.f32.xlu0 %v6550
  %v6552 = vpop.xlane.xlu0 %6551
  %v6553 = vsel %vm294, %v6523, 0.0
  %6554 = vadd.xlane.f32.xlu0 %v6553
  %v6555 = vpop.xlane.xlu0 %6554
  %v6556 = vsel %vm294, %v6524, 0.0
  %6557 = vadd.xlane.f32.xlu0 %v6556
  %v6558 = vpop.xlane.xlu0 %6557
  %v6559 = vsel %vm294, %v6525, 0.0
  %6560 = vadd.xlane.f32.xlu0 %v6559
  %v6561 = vpop.xlane.xlu0 %6560
  %v6562 = vsel %vm294, %v6526, 0.0
  %6563 = vadd.xlane.f32.xlu0 %v6562
  %v6564 = vpop.xlane.xlu0 %6563
  %v6565 = vsel %vm294, %v6527, 0.0
  %6566 = vadd.xlane.f32.xlu0 %v6565
  %v6567 = vpop.xlane.xlu0 %6566
  %v6568 = vsel %vm294, %v6528, 0.0
  %6569 = vadd.xlane.f32.xlu0 %v6568
  %v6570 = vpop.xlane.xlu0 %6569
  %v6571 = vsel %vm294, %v6529, 0.0
  %6572 = vadd.xlane.f32.xlu0 %v6571
  %v6573 = vpop.xlane.xlu0 %6572
  %v6574 = vsel %vm294, %v6530, 0.0
  %6575 = vadd.xlane.f32.xlu0 %v6574
  %v6576 = vpop.xlane.xlu0 %6575
  %v6577 = vsel %vm294, %v6531, 0.0
  %6578 = vadd.xlane.f32.xlu0 %v6577
  %v6579 = vpop.xlane.xlu0 %6578
  %v6580 = vsel %vm294, %v6532, 0.0
  %6581 = vadd.xlane.f32.xlu0 %v6580
  %v6582 = vpop.xlane.xlu0 %6581
  %v6583 = vsel %vm294, %v6533, 0.0
  %6584 = vadd.xlane.f32.xlu0 %v6583
  %v6585 = vpop.xlane.xlu0 %6584
  %v6586 = vsel %vm294, %v6534, 0.0
  %6587 = vadd.xlane.f32.xlu0 %v6586
  %v6588 = vpop.xlane.xlu0 %6587
  %v6589 = vsel %vm294, %v6535, 0.0
  %6590 = vadd.xlane.f32.xlu0 %v6589
  %v6591 = vpop.xlane.xlu0 %6590
  %v6592 = vsel %vm294, %v6536, 0.0
  %6593 = vadd.xlane.f32.xlu0 %v6592
  %v6594 = vpop.xlane.xlu0 %6593
  %v6595 = vsel %vm294, %v6537, 0.0
  %6596 = vadd.xlane.f32.xlu0 %v6595
  %v6597 = vpop.xlane.xlu0 %6596
  %v6598 = vsel %vm294, %v6538, 0.0
  %6599 = vadd.xlane.f32.xlu0 %v6598
  %v6600 = vpop.xlane.xlu0 %6599
  %v6601 = vsel %vm294, %v6539, 0.0
  %6602 = vadd.xlane.f32.xlu0 %v6601
  %v6603 = vpop.xlane.xlu0 %6602
  %v6604 = vsel %vm294, %v6540, 0.0
  %6605 = vadd.xlane.f32.xlu0 %v6604
  %v6606 = vpop.xlane.xlu0 %6605
  %v6607 = vsel %vm294, %v6541, 0.0
  %6608 = vadd.xlane.f32.xlu0 %v6607
  %v6609 = vpop.xlane.xlu0 %6608
  %v6610 = vsel %vm294, %v6542, 0.0
  %6611 = vadd.xlane.f32.xlu0 %v6610
  %v6612 = vpop.xlane.xlu0 %6611
  %v6613 = vsel %vm294, %v6543, 0.0
  %6614 = vadd.xlane.f32.xlu0 %v6613
  %v6615 = vpop.xlane.xlu0 %6614
  %v6616 = vmul.f32 %v6546, %v420
  %v6617 = vmul.f32 %v6549, %v420
  %v6618 = vmul.f32 %v6552, %v420
  %v6619 = vmul.f32 %v6555, %v420
  %v6620 = vmul.f32 %v6558, %v420
  %v6621 = vmul.f32 %v6561, %v420
  %v6622 = vmul.f32 %v6564, %v420
  %v6623 = vmul.f32 %v6567, %v420
  %v6624 = vmul.f32 %v6570, %v420
  %v6625 = vmul.f32 %v6573, %v420
  %v6626 = vmul.f32 %v6576, %v420
  %v6627 = vmul.f32 %v6579, %v420
  %v6628 = vmul.f32 %v6582, %v420
  %v6629 = vmul.f32 %v6585, %v420
  %v6630 = vmul.f32 %v6588, %v420
  %v6631 = vmul.f32 %v6591, %v420
  %v6632 = vmul.f32 %v6594, %v420
  %v6633 = vmul.f32 %v6597, %v420
  %v6634 = vmul.f32 %v6600, %v420
  %v6635 = vmul.f32 %v6603, %v420
  %v6636 = vmul.f32 %v6606, %v420
  %v6637 = vmul.f32 %v6609, %v420
  %v6638 = vmul.f32 %v6612, %v420
  %v6639 = vmul.f32 %v6615, %v420
  %v6640 = vadd.f32 %v6616, 1e-05
  %v6641 = vadd.f32 %v6617, 1e-05
  %v6642 = vadd.f32 %v6618, 1e-05
  %v6643 = vadd.f32 %v6619, 1e-05
  %v6644 = vadd.f32 %v6620, 1e-05
  %v6645 = vadd.f32 %v6621, 1e-05
  %v6646 = vadd.f32 %v6622, 1e-05
  %v6647 = vadd.f32 %v6623, 1e-05
  %v6648 = vadd.f32 %v6624, 1e-05
  %v6649 = vadd.f32 %v6625, 1e-05
  %v6650 = vadd.f32 %v6626, 1e-05
  %v6651 = vadd.f32 %v6627, 1e-05
  %v6652 = vadd.f32 %v6628, 1e-05
  %v6653 = vadd.f32 %v6629, 1e-05
  %v6654 = vadd.f32 %v6630, 1e-05
  %v6655 = vadd.f32 %v6631, 1e-05
  %v6656 = vadd.f32 %v6632, 1e-05
  %v6657 = vadd.f32 %v6633, 1e-05
  %v6658 = vadd.f32 %v6634, 1e-05
  %v6659 = vadd.f32 %v6635, 1e-05
  %v6660 = vadd.f32 %v6636, 1e-05
  %v6661 = vadd.f32 %v6637, 1e-05
  %v6662 = vadd.f32 %v6638, 1e-05
  %v6663 = vadd.f32 %v6639, 1e-05
  %v6664 = vrsqrt.pop %v6640
  %v6665 = vrsqrt.pop %v6641
  %v6666 = vrsqrt.pop %v6642
  %v6667 = vrsqrt.pop %v6643
  %v6668 = vrsqrt.pop %v6644
  %v6669 = vrsqrt.pop %v6645
  %v6670 = vrsqrt.pop %v6646
  %v6671 = vrsqrt.pop %v6647
  %v6672 = vrsqrt.pop %v6648
  %v6673 = vrsqrt.pop %v6649
  %v6674 = vrsqrt.pop %v6650
  %v6675 = vrsqrt.pop %v6651
  %v6676 = vrsqrt.pop %v6652
  %v6677 = vrsqrt.pop %v6653
  %v6678 = vrsqrt.pop %v6654
  %v6679 = vrsqrt.pop %v6655
  %v6680 = vrsqrt.pop %v6656
  %v6681 = vrsqrt.pop %v6657
  %v6682 = vrsqrt.pop %v6658
  %v6683 = vrsqrt.pop %v6659
  %v6684 = vrsqrt.pop %v6660
  %v6685 = vrsqrt.pop %v6661
  %v6686 = vrsqrt.pop %v6662
  %v6687 = vrsqrt.pop %v6663
  %v6688 = vmul.f32 %v6496, %v6664
  %v6689 = vmul.f32 %v6497, %v6665
  %v6690 = vmul.f32 %v6498, %v6666
  %v6691 = vmul.f32 %v6499, %v6667
  %v6692 = vmul.f32 %v6500, %v6668
  %v6693 = vmul.f32 %v6501, %v6669
  %v6694 = vmul.f32 %v6502, %v6670
  %v6695 = vmul.f32 %v6503, %v6671
  %v6696 = vmul.f32 %v6504, %v6672
  %v6697 = vmul.f32 %v6505, %v6673
  %v6698 = vmul.f32 %v6506, %v6674
  %v6699 = vmul.f32 %v6507, %v6675
  %v6700 = vmul.f32 %v6508, %v6676
  %v6701 = vmul.f32 %v6509, %v6677
  %v6702 = vmul.f32 %v6510, %v6678
  %v6703 = vmul.f32 %v6511, %v6679
  %v6704 = vmul.f32 %v6512, %v6680
  %v6705 = vmul.f32 %v6513, %v6681
  %v6706 = vmul.f32 %v6514, %v6682
  %v6707 = vmul.f32 %v6515, %v6683
  %v6708 = vmul.f32 %v6516, %v6684
  %v6709 = vmul.f32 %v6517, %v6685
  %v6710 = vmul.f32 %v6518, %v6686
  %v6711 = vmul.f32 %v6519, %v6687
  %v6712 = vlaneseq
  %v6713 = vshrl.u32 %v6712, 7
  %v6714 = vsub.s32 0, %v6713
  %v6715 = vrot.slane %v6398, %v6714
  %v6716 = vmul.f32 %v6688, %v6715
  %v6717 = vmul.f32 %v6689, %v6715
  %v6718 = vmul.f32 %v6690, %v6715
  %v6719 = vmul.f32 %v6691, %v6715
  %v6720 = vmul.f32 %v6692, %v6715
  %v6721 = vmul.f32 %v6693, %v6715
  %v6722 = vmul.f32 %v6694, %v6715
  %v6723 = vmul.f32 %v6695, %v6715
  %v6724 = vmul.f32 %v6696, %v6715
  %v6725 = vmul.f32 %v6697, %v6715
  %v6726 = vmul.f32 %v6698, %v6715
  %v6727 = vmul.f32 %v6699, %v6715
  %v6728 = vmul.f32 %v6700, %v6715
  %v6729 = vmul.f32 %v6701, %v6715
  %v6730 = vmul.f32 %v6702, %v6715
  %v6731 = vmul.f32 %v6703, %v6715
  %v6732 = vmul.f32 %v6704, %v6715
  %v6733 = vmul.f32 %v6705, %v6715
  %v6734 = vmul.f32 %v6706, %v6715
  %v6735 = vmul.f32 %v6707, %v6715
  %v6736 = vmul.f32 %v6708, %v6715
  %v6737 = vmul.f32 %v6709, %v6715
  %v6738 = vmul.f32 %v6710, %v6715
  %v6739 = vmul.f32 %v6711, %v6715
  %v6740 = vlaneseq
  %v6741 = vshrl.u32 %v6740, 7
  %v6742 = vsub.s32 0, %v6741
  %v6743 = vrot.slane %v6399, %v6742
  %v6744 = vadd.f32 %v6716, %v6743
  %v6745 = vadd.f32 %v6717, %v6743
  %v6746 = vadd.f32 %v6718, %v6743
  %v6747 = vadd.f32 %v6719, %v6743
  %v6748 = vadd.f32 %v6720, %v6743
  %v6749 = vadd.f32 %v6721, %v6743
  %v6750 = vadd.f32 %v6722, %v6743
  %v6751 = vadd.f32 %v6723, %v6743
  %v6752 = vadd.f32 %v6724, %v6743
  %v6753 = vadd.f32 %v6725, %v6743
  %v6754 = vadd.f32 %v6726, %v6743
  %v6755 = vadd.f32 %v6727, %v6743
  %v6756 = vadd.f32 %v6728, %v6743
  %v6757 = vadd.f32 %v6729, %v6743
  %v6758 = vadd.f32 %v6730, %v6743
  %v6759 = vadd.f32 %v6731, %v6743
  %v6760 = vadd.f32 %v6732, %v6743
  %v6761 = vadd.f32 %v6733, %v6743
  %v6762 = vadd.f32 %v6734, %v6743
  %v6763 = vadd.f32 %v6735, %v6743
  %v6764 = vadd.f32 %v6736, %v6743
  %v6765 = vadd.f32 %v6737, %v6743
  %v6766 = vadd.f32 %v6738, %v6743
  %v6767 = vadd.f32 %v6739, %v6743
  %s6768 = scalar_lea.vmem %s6, 64
  %v6769 = vld [vmem:[%s6768] sm:$0xff]
  %v6770 = vld [vmem:[%s6768 + $0x8] sm:$0xff]
  %v6771 = vld [vmem:[%s6768 + $0x10] sm:$0xff]
  %v6772 = vld [vmem:[%s6768 + $0x18] sm:$0xff]
  %v6774 = vsel %vm294, %v6744, 0
  %v6777 = vsel %vm294, %v6745, 0
  %v6780 = vsel %vm294, %v6746, 0
  %v6783 = vsel %vm294, %v6747, 0
  %v6786 = vsel %vm294, %v6748, 0
  %v6789 = vsel %vm294, %v6749, 0
  %v6792 = vsel %vm294, %v6750, 0
  %v6795 = vsel %vm294, %v6751, 0
  %v6798 = vsel %vm294, %v6752, 0
  %v6801 = vsel %vm294, %v6753, 0
  %v6804 = vsel %vm294, %v6754, 0
  %v6807 = vsel %vm294, %v6755, 0
  %v6810 = vsel %vm294, %v6756, 0
  %v6813 = vsel %vm294, %v6757, 0
  %v6816 = vsel %vm294, %v6758, 0
  %v6819 = vsel %vm294, %v6759, 0
  %v6822 = vsel %vm294, %v6760, 0
  %v6825 = vsel %vm294, %v6761, 0
  %v6828 = vsel %vm294, %v6762, 0
  %v6831 = vsel %vm294, %v6763, 0
  %v6834 = vsel %vm294, %v6764, 0
  %v6837 = vsel %vm294, %v6765, 0
  %v6840 = vsel %vm294, %v6766, 0
  %v6843 = vsel %vm294, %v6767, 0
  %6845 = vmatprep.subr.mxu0 0.0
  %6846 = vmatpush1.msra.mxu0 0.0
  %6847 = vmatprep.subr.mxu0 0.0
  %6848 = vmatpush1.msra.mxu0 0.0
  %6849 = vmatprep.subr.mxu0 0.0
  %6850 = vmatpush1.msra.mxu0 0.0
  %6851 = vmatprep.subr.mxu0 0.0
  %6852 = vmatpush1.msra.mxu0 0.0
  %6853 = vmatprep.subr.mxu0 0.0
  %6854 = vmatpush1.msra.mxu0 0.0
  %6855 = vmatprep.subr.mxu0 0.0
  %6856 = vmatpush1.msra.mxu0 0.0
  %6857 = vmatprep.subr.mxu0 0.0
  %6858 = vmatpush1.msra.mxu0 0.0
  %6859 = vmatprep.subr.mxu0 0.0
  %6860 = vmatpush1.msra.mxu0 0.0
  %6861 = vmatprep.subr.mxu0 0.0
  %6862 = vmatpush1.msra.mxu0 0.0
  %6863 = vmatprep.subr.mxu0 0.0
  %6864 = vmatpush1.msra.mxu0 0.0
  %6865 = vmatprep.subr.mxu0 0.0
  %6866 = vmatpush1.msra.mxu0 0.0
  %6867 = vmatprep.subr.mxu0 0.0
  %6868 = vmatpush1.msra.mxu0 0.0
  %6869 = vmatprep.subr.mxu0 0.0
  %6870 = vmatpush1.msra.mxu0 %v6772
  %6871 = vmatprep.subr.mxu0 0.0
  %6872 = vmatpush1.msra.mxu0 %v6771
  %6873 = vmatprep.subr.mxu0 0.0
  %6874 = vmatpush1.msra.mxu0 %v6770
  %6875 = vmatprep.subr.mxu0 0.0
  %6876 = vmatpush1.msra.mxu0 %v6769
  %6877 = vmatprep.subr.mxu0 0.0
  %6878 = vmatpush2.msra.mxu0 0.0
  %6879 = vmatprep.subr.mxu0 0.0
  %6880 = vmatpush2.msra.mxu0 0.0
  %6881 = vmatprep.subr.mxu0 0.0
  %6882 = vmatpush2.msra.mxu0 0.0
  %6883 = vmatprep.subr.mxu0 0.0
  %6884 = vmatpush2.msra.mxu0 0.0
  %6885 = vmatprep.subr.mxu0 0.0
  %6886 = vmatpush2.msra.mxu0 0.0
  %6887 = vmatprep.subr.mxu0 0.0
  %6888 = vmatpush2.msra.mxu0 0.0
  %6889 = vmatprep.subr.mxu0 0.0
  %6890 = vmatpush2.msra.mxu0 0.0
  %6891 = vmatprep.subr.mxu0 0.0
  %6892 = vmatpush2.msra.mxu0 0.0
  %6893 = vmatprep.subr.mxu0 0.0
  %6894 = vmatpush2.msra.mxu0 0.0
  %6895 = vmatprep.subr.mxu0 0.0
  %6896 = vmatpush2.msra.mxu0 0.0
  %6897 = vmatprep.subr.mxu0 0.0
  %6898 = vmatpush2.msra.mxu0 0.0
  %6899 = vmatprep.subr.mxu0 0.0
  %6900 = vmatpush2.msra.mxu0 0.0
  %6901 = vmatprep.subr.mxu0 0.0
  %6902 = vmatpush2.msra.mxu0 0.0
  %6903 = vmatprep.subr.mxu0 0.0
  %6904 = vmatpush2.msra.mxu0 0.0
  %6905 = vmatprep.subr.mxu0 0.0
  %6906 = vmatpush2.msra.mxu0 0.0
  %6907 = vmatprep.subr.mxu0 0.0
  %6908 = vmatpush2.msra.mxu0 0.0
  %6909 = vmatprep.mubr.f32.mxu0 0.0
  %6910 = vmatmul.mubr.f32.gmra.mxu0 %v6774
  %v6911 = vpop.f32.mrf.mxu0
  %v6912 = vadd.f32 0.0, %v6911
  %v6913 = vpop.f32.mrf.mxu0
  %6914 = vmatprep.mubr.f32.mxu0 0.0
  %6915 = vmatmul.mubr.f32.gmra.mxu0 %v6777
  %v6916 = vpop.f32.mrf.mxu0
  %v6917 = vadd.f32 0.0, %v6916
  %v6918 = vpop.f32.mrf.mxu0
  %6919 = vmatprep.mubr.f32.mxu0 0.0
  %6920 = vmatmul.mubr.f32.gmra.mxu0 %v6780
  %v6921 = vpop.f32.mrf.mxu0
  %v6922 = vadd.f32 0.0, %v6921
  %v6923 = vpop.f32.mrf.mxu0
  %6924 = vmatprep.mubr.f32.mxu0 0.0
  %6925 = vmatmul.mubr.f32.gmra.mxu0 %v6783
  %v6926 = vpop.f32.mrf.mxu0
  %v6927 = vadd.f32 0.0, %v6926
  %v6928 = vpop.f32.mrf.mxu0
  %6929 = vmatprep.mubr.f32.mxu0 0.0
  %6930 = vmatmul.mubr.f32.gmra.mxu0 %v6786
  %v6931 = vpop.f32.mrf.mxu0
  %v6932 = vadd.f32 0.0, %v6931
  %v6933 = vpop.f32.mrf.mxu0
  %6934 = vmatprep.mubr.f32.mxu0 0.0
  %6935 = vmatmul.mubr.f32.gmra.mxu0 %v6789
  %v6936 = vpop.f32.mrf.mxu0
  %v6937 = vadd.f32 0.0, %v6936
  %v6938 = vpop.f32.mrf.mxu0
  %6939 = vmatprep.mubr.f32.mxu0 0.0
  %6940 = vmatmul.mubr.f32.gmra.mxu0 %v6792
  %v6941 = vpop.f32.mrf.mxu0
  %v6942 = vadd.f32 0.0, %v6941
  %v6943 = vpop.f32.mrf.mxu0
  %6944 = vmatprep.mubr.f32.mxu0 0.0
  %6945 = vmatmul.mubr.f32.gmra.mxu0 %v6795
  %v6946 = vpop.f32.mrf.mxu0
  %v6947 = vadd.f32 0.0, %v6946
  %v6948 = vpop.f32.mrf.mxu0
  %6949 = vmatprep.mubr.f32.mxu0 0.0
  %6950 = vmatmul.mubr.f32.gmra.mxu0 %v6798
  %v6951 = vpop.f32.mrf.mxu0
  %v6952 = vadd.f32 0.0, %v6951
  %v6953 = vpop.f32.mrf.mxu0
  %6954 = vmatprep.mubr.f32.mxu0 0.0
  %6955 = vmatmul.mubr.f32.gmra.mxu0 %v6801
  %v6956 = vpop.f32.mrf.mxu0
  %v6957 = vadd.f32 0.0, %v6956
  %v6958 = vpop.f32.mrf.mxu0
  %6959 = vmatprep.mubr.f32.mxu0 0.0
  %6960 = vmatmul.mubr.f32.gmra.mxu0 %v6804
  %v6961 = vpop.f32.mrf.mxu0
  %v6962 = vadd.f32 0.0, %v6961
  %v6963 = vpop.f32.mrf.mxu0
  %6964 = vmatprep.mubr.f32.mxu0 0.0
  %6965 = vmatmul.mubr.f32.gmra.mxu0 %v6807
  %v6966 = vpop.f32.mrf.mxu0
  %v6967 = vadd.f32 0.0, %v6966
  %v6968 = vpop.f32.mrf.mxu0
  %6969 = vmatprep.mubr.f32.mxu0 0.0
  %6970 = vmatmul.mubr.f32.gmra.mxu0 %v6810
  %v6971 = vpop.f32.mrf.mxu0
  %v6972 = vadd.f32 0.0, %v6971
  %v6973 = vpop.f32.mrf.mxu0
  %6974 = vmatprep.mubr.f32.mxu0 0.0
  %6975 = vmatmul.mubr.f32.gmra.mxu0 %v6813
  %v6976 = vpop.f32.mrf.mxu0
  %v6977 = vadd.f32 0.0, %v6976
  %v6978 = vpop.f32.mrf.mxu0
  %6979 = vmatprep.mubr.f32.mxu0 0.0
  %6980 = vmatmul.mubr.f32.gmra.mxu0 %v6816
  %v6981 = vpop.f32.mrf.mxu0
  %v6982 = vadd.f32 0.0, %v6981
  %v6983 = vpop.f32.mrf.mxu0
  %6984 = vmatprep.mubr.f32.mxu0 0.0
  %6985 = vmatmul.mubr.f32.gmra.mxu0 %v6819
  %v6986 = vpop.f32.mrf.mxu0
  %v6987 = vadd.f32 0.0, %v6986
  %v6988 = vpop.f32.mrf.mxu0
  %6989 = vmatprep.mubr.f32.mxu0 0.0
  %6990 = vmatmul.mubr.f32.gmra.mxu0 %v6822
  %v6991 = vpop.f32.mrf.mxu0
  %v6992 = vadd.f32 0.0, %v6991
  %v6993 = vpop.f32.mrf.mxu0
  %6994 = vmatprep.mubr.f32.mxu0 0.0
  %6995 = vmatmul.mubr.f32.gmra.mxu0 %v6825
  %v6996 = vpop.f32.mrf.mxu0
  %v6997 = vadd.f32 0.0, %v6996
  %v6998 = vpop.f32.mrf.mxu0
  %6999 = vmatprep.mubr.f32.mxu0 0.0
  %7000 = vmatmul.mubr.f32.gmra.mxu0 %v6828
  %v7001 = vpop.f32.mrf.mxu0
  %v7002 = vadd.f32 0.0, %v7001
  %v7003 = vpop.f32.mrf.mxu0
  %7004 = vmatprep.mubr.f32.mxu0 0.0
  %7005 = vmatmul.mubr.f32.gmra.mxu0 %v6831
  %v7006 = vpop.f32.mrf.mxu0
  %v7007 = vadd.f32 0.0, %v7006
  %v7008 = vpop.f32.mrf.mxu0
  %7009 = vmatprep.mubr.f32.mxu0 0.0
  %7010 = vmatmul.mubr.f32.gmra.mxu0 %v6834
  %v7011 = vpop.f32.mrf.mxu0
  %v7012 = vadd.f32 0.0, %v7011
  %v7013 = vpop.f32.mrf.mxu0
  %7014 = vmatprep.mubr.f32.mxu0 0.0
  %7015 = vmatmul.mubr.f32.gmra.mxu0 %v6837
  %v7016 = vpop.f32.mrf.mxu0
  %v7017 = vadd.f32 0.0, %v7016
  %v7018 = vpop.f32.mrf.mxu0
  %7019 = vmatprep.mubr.f32.mxu0 0.0
  %7020 = vmatmul.mubr.f32.gmra.mxu0 %v6840
  %v7021 = vpop.f32.mrf.mxu0
  %v7022 = vadd.f32 0.0, %v7021
  %v7023 = vpop.f32.mrf.mxu0
  %7024 = vmatprep.mubr.f32.mxu0 0.0
  %7025 = vmatmul.mubr.f32.gmra.mxu0 %v6843
  %v7026 = vpop.f32.mrf.mxu0
  %v7027 = vadd.f32 0.0, %v7026
  %v7028 = vpop.f32.mrf.mxu0
  %7029 = vdwg.mxu0
  %s7030 = scalar_lea.vmem %s7, 64
  %v7031 = vld [vmem:[%s7030] sm:$0xff]
  %v7032 = vld [vmem:[%s7030 + $0x8] sm:$0xff]
  %v7033 = vld [vmem:[%s7030 + $0x10] sm:$0xff]
  %v7034 = vld [vmem:[%s7030 + $0x18] sm:$0xff]
  %7035 = vmatprep.subr.mxu0 0.0
  %7036 = vmatpush1.msra.mxu0 0.0
  %7037 = vmatprep.subr.mxu0 0.0
  %7038 = vmatpush1.msra.mxu0 0.0
  %7039 = vmatprep.subr.mxu0 0.0
  %7040 = vmatpush1.msra.mxu0 0.0
  %7041 = vmatprep.subr.mxu0 0.0
  %7042 = vmatpush1.msra.mxu0 0.0
  %7043 = vmatprep.subr.mxu0 0.0
  %7044 = vmatpush1.msra.mxu0 0.0
  %7045 = vmatprep.subr.mxu0 0.0
  %7046 = vmatpush1.msra.mxu0 0.0
  %7047 = vmatprep.subr.mxu0 0.0
  %7048 = vmatpush1.msra.mxu0 0.0
  %7049 = vmatprep.subr.mxu0 0.0
  %7050 = vmatpush1.msra.mxu0 0.0
  %7051 = vmatprep.subr.mxu0 0.0
  %7052 = vmatpush1.msra.mxu0 0.0
  %7053 = vmatprep.subr.mxu0 0.0
  %7054 = vmatpush1.msra.mxu0 0.0
  %7055 = vmatprep.subr.mxu0 0.0
  %7056 = vmatpush1.msra.mxu0 0.0
  %7057 = vmatprep.subr.mxu0 0.0
  %7058 = vmatpush1.msra.mxu0 0.0
  %7059 = vmatprep.subr.mxu0 0.0
  %7060 = vmatpush1.msra.mxu0 %v7034
  %7061 = vmatprep.subr.mxu0 0.0
  %7062 = vmatpush1.msra.mxu0 %v7033
  %7063 = vmatprep.subr.mxu0 0.0
  %7064 = vmatpush1.msra.mxu0 %v7032
  %7065 = vmatprep.subr.mxu0 0.0
  %7066 = vmatpush1.msra.mxu0 %v7031
  %7067 = vmatprep.subr.mxu0 0.0
  %7068 = vmatpush2.msra.mxu0 0.0
  %7069 = vmatprep.subr.mxu0 0.0
  %7070 = vmatpush2.msra.mxu0 0.0
  %7071 = vmatprep.subr.mxu0 0.0
  %7072 = vmatpush2.msra.mxu0 0.0
  %7073 = vmatprep.subr.mxu0 0.0
  %7074 = vmatpush2.msra.mxu0 0.0
  %7075 = vmatprep.subr.mxu0 0.0
  %7076 = vmatpush2.msra.mxu0 0.0
  %7077 = vmatprep.subr.mxu0 0.0
  %7078 = vmatpush2.msra.mxu0 0.0
  %7079 = vmatprep.subr.mxu0 0.0
  %7080 = vmatpush2.msra.mxu0 0.0
  %7081 = vmatprep.subr.mxu0 0.0
  %7082 = vmatpush2.msra.mxu0 0.0
  %7083 = vmatprep.subr.mxu0 0.0
  %7084 = vmatpush2.msra.mxu0 0.0
  %7085 = vmatprep.subr.mxu0 0.0
  %7086 = vmatpush2.msra.mxu0 0.0
  %7087 = vmatprep.subr.mxu0 0.0
  %7088 = vmatpush2.msra.mxu0 0.0
  %7089 = vmatprep.subr.mxu0 0.0
  %7090 = vmatpush2.msra.mxu0 0.0
  %7091 = vmatprep.subr.mxu0 0.0
  %7092 = vmatpush2.msra.mxu0 0.0
  %7093 = vmatprep.subr.mxu0 0.0
  %7094 = vmatpush2.msra.mxu0 0.0
  %7095 = vmatprep.subr.mxu0 0.0
  %7096 = vmatpush2.msra.mxu0 0.0
  %7097 = vmatprep.subr.mxu0 0.0
  %7098 = vmatpush2.msra.mxu0 0.0
  %7099 = vmatprep.mubr.f32.mxu0 0.0
  %7100 = vmatmul.mubr.f32.gmra.mxu0 %v6774
  %v7101 = vpop.f32.mrf.mxu0
  %v7102 = vadd.f32 0.0, %v7101
  %v7103 = vpop.f32.mrf.mxu0
  %7104 = vmatprep.mubr.f32.mxu0 0.0
  %7105 = vmatmul.mubr.f32.gmra.mxu0 %v6777
  %v7106 = vpop.f32.mrf.mxu0
  %v7107 = vadd.f32 0.0, %v7106
  %v7108 = vpop.f32.mrf.mxu0
  %7109 = vmatprep.mubr.f32.mxu0 0.0
  %7110 = vmatmul.mubr.f32.gmra.mxu0 %v6780
  %v7111 = vpop.f32.mrf.mxu0
  %v7112 = vadd.f32 0.0, %v7111
  %v7113 = vpop.f32.mrf.mxu0
  %7114 = vmatprep.mubr.f32.mxu0 0.0
  %7115 = vmatmul.mubr.f32.gmra.mxu0 %v6783
  %v7116 = vpop.f32.mrf.mxu0
  %v7117 = vadd.f32 0.0, %v7116
  %v7118 = vpop.f32.mrf.mxu0
  %7119 = vmatprep.mubr.f32.mxu0 0.0
  %7120 = vmatmul.mubr.f32.gmra.mxu0 %v6786
  %v7121 = vpop.f32.mrf.mxu0
  %v7122 = vadd.f32 0.0, %v7121
  %v7123 = vpop.f32.mrf.mxu0
  %7124 = vmatprep.mubr.f32.mxu0 0.0
  %7125 = vmatmul.mubr.f32.gmra.mxu0 %v6789
  %v7126 = vpop.f32.mrf.mxu0
  %v7127 = vadd.f32 0.0, %v7126
  %v7128 = vpop.f32.mrf.mxu0
  %7129 = vmatprep.mubr.f32.mxu0 0.0
  %7130 = vmatmul.mubr.f32.gmra.mxu0 %v6792
  %v7131 = vpop.f32.mrf.mxu0
  %v7132 = vadd.f32 0.0, %v7131
  %v7133 = vpop.f32.mrf.mxu0
  %7134 = vmatprep.mubr.f32.mxu0 0.0
  %7135 = vmatmul.mubr.f32.gmra.mxu0 %v6795
  %v7136 = vpop.f32.mrf.mxu0
  %v7137 = vadd.f32 0.0, %v7136
  %v7138 = vpop.f32.mrf.mxu0
  %7139 = vmatprep.mubr.f32.mxu0 0.0
  %7140 = vmatmul.mubr.f32.gmra.mxu0 %v6798
  %v7141 = vpop.f32.mrf.mxu0
  %v7142 = vadd.f32 0.0, %v7141
  %v7143 = vpop.f32.mrf.mxu0
  %7144 = vmatprep.mubr.f32.mxu0 0.0
  %7145 = vmatmul.mubr.f32.gmra.mxu0 %v6801
  %v7146 = vpop.f32.mrf.mxu0
  %v7147 = vadd.f32 0.0, %v7146
  %v7148 = vpop.f32.mrf.mxu0
  %7149 = vmatprep.mubr.f32.mxu0 0.0
  %7150 = vmatmul.mubr.f32.gmra.mxu0 %v6804
  %v7151 = vpop.f32.mrf.mxu0
  %v7152 = vadd.f32 0.0, %v7151
  %v7153 = vpop.f32.mrf.mxu0
  %7154 = vmatprep.mubr.f32.mxu0 0.0
  %7155 = vmatmul.mubr.f32.gmra.mxu0 %v6807
  %v7156 = vpop.f32.mrf.mxu0
  %v7157 = vadd.f32 0.0, %v7156
  %v7158 = vpop.f32.mrf.mxu0
  %7159 = vmatprep.mubr.f32.mxu0 0.0
  %7160 = vmatmul.mubr.f32.gmra.mxu0 %v6810
  %v7161 = vpop.f32.mrf.mxu0
  %v7162 = vadd.f32 0.0, %v7161
  %v7163 = vpop.f32.mrf.mxu0
  %7164 = vmatprep.mubr.f32.mxu0 0.0
  %7165 = vmatmul.mubr.f32.gmra.mxu0 %v6813
  %v7166 = vpop.f32.mrf.mxu0
  %v7167 = vadd.f32 0.0, %v7166
  %v7168 = vpop.f32.mrf.mxu0
  %7169 = vmatprep.mubr.f32.mxu0 0.0
  %7170 = vmatmul.mubr.f32.gmra.mxu0 %v6816
  %v7171 = vpop.f32.mrf.mxu0
  %v7172 = vadd.f32 0.0, %v7171
  %v7173 = vpop.f32.mrf.mxu0
  %7174 = vmatprep.mubr.f32.mxu0 0.0
  %7175 = vmatmul.mubr.f32.gmra.mxu0 %v6819
  %v7176 = vpop.f32.mrf.mxu0
  %v7177 = vadd.f32 0.0, %v7176
  %v7178 = vpop.f32.mrf.mxu0
  %7179 = vmatprep.mubr.f32.mxu0 0.0
  %7180 = vmatmul.mubr.f32.gmra.mxu0 %v6822
  %v7181 = vpop.f32.mrf.mxu0
  %v7182 = vadd.f32 0.0, %v7181
  %v7183 = vpop.f32.mrf.mxu0
  %7184 = vmatprep.mubr.f32.mxu0 0.0
  %7185 = vmatmul.mubr.f32.gmra.mxu0 %v6825
  %v7186 = vpop.f32.mrf.mxu0
  %v7187 = vadd.f32 0.0, %v7186
  %v7188 = vpop.f32.mrf.mxu0
  %7189 = vmatprep.mubr.f32.mxu0 0.0
  %7190 = vmatmul.mubr.f32.gmra.mxu0 %v6828
  %v7191 = vpop.f32.mrf.mxu0
  %v7192 = vadd.f32 0.0, %v7191
  %v7193 = vpop.f32.mrf.mxu0
  %7194 = vmatprep.mubr.f32.mxu0 0.0
  %7195 = vmatmul.mubr.f32.gmra.mxu0 %v6831
  %v7196 = vpop.f32.mrf.mxu0
  %v7197 = vadd.f32 0.0, %v7196
  %v7198 = vpop.f32.mrf.mxu0
  %7199 = vmatprep.mubr.f32.mxu0 0.0
  %7200 = vmatmul.mubr.f32.gmra.mxu0 %v6834
  %v7201 = vpop.f32.mrf.mxu0
  %v7202 = vadd.f32 0.0, %v7201
  %v7203 = vpop.f32.mrf.mxu0
  %7204 = vmatprep.mubr.f32.mxu0 0.0
  %7205 = vmatmul.mubr.f32.gmra.mxu0 %v6837
  %v7206 = vpop.f32.mrf.mxu0
  %v7207 = vadd.f32 0.0, %v7206
  %v7208 = vpop.f32.mrf.mxu0
  %7209 = vmatprep.mubr.f32.mxu0 0.0
  %7210 = vmatmul.mubr.f32.gmra.mxu0 %v6840
  %v7211 = vpop.f32.mrf.mxu0
  %v7212 = vadd.f32 0.0, %v7211
  %v7213 = vpop.f32.mrf.mxu0
  %7214 = vmatprep.mubr.f32.mxu0 0.0
  %7215 = vmatmul.mubr.f32.gmra.mxu0 %v6843
  %v7216 = vpop.f32.mrf.mxu0
  %v7217 = vadd.f32 0.0, %v7216
  %v7218 = vpop.f32.mrf.mxu0
  %7219 = vdwg.mxu0
  %s7220 = scalar_lea.vmem %s8, 64
  %v7221 = vld [vmem:[%s7220] sm:$0xff]
  %v7222 = vld [vmem:[%s7220 + $0x8] sm:$0xff]
  %v7223 = vld [vmem:[%s7220 + $0x10] sm:$0xff]
  %v7224 = vld [vmem:[%s7220 + $0x18] sm:$0xff]
  %7225 = vmatprep.subr.mxu0 0.0
  %7226 = vmatpush1.msra.mxu0 0.0
  %7227 = vmatprep.subr.mxu0 0.0
  %7228 = vmatpush1.msra.mxu0 0.0
  %7229 = vmatprep.subr.mxu0 0.0
  %7230 = vmatpush1.msra.mxu0 0.0
  %7231 = vmatprep.subr.mxu0 0.0
  %7232 = vmatpush1.msra.mxu0 0.0
  %7233 = vmatprep.subr.mxu0 0.0
  %7234 = vmatpush1.msra.mxu0 0.0
  %7235 = vmatprep.subr.mxu0 0.0
  %7236 = vmatpush1.msra.mxu0 0.0
  %7237 = vmatprep.subr.mxu0 0.0
  %7238 = vmatpush1.msra.mxu0 0.0
  %7239 = vmatprep.subr.mxu0 0.0
  %7240 = vmatpush1.msra.mxu0 0.0
  %7241 = vmatprep.subr.mxu0 0.0
  %7242 = vmatpush1.msra.mxu0 0.0
  %7243 = vmatprep.subr.mxu0 0.0
  %7244 = vmatpush1.msra.mxu0 0.0
  %7245 = vmatprep.subr.mxu0 0.0
  %7246 = vmatpush1.msra.mxu0 0.0
  %7247 = vmatprep.subr.mxu0 0.0
  %7248 = vmatpush1.msra.mxu0 0.0
  %7249 = vmatprep.subr.mxu0 0.0
  %7250 = vmatpush1.msra.mxu0 %v7224
  %7251 = vmatprep.subr.mxu0 0.0
  %7252 = vmatpush1.msra.mxu0 %v7223
  %7253 = vmatprep.subr.mxu0 0.0
  %7254 = vmatpush1.msra.mxu0 %v7222
  %7255 = vmatprep.subr.mxu0 0.0
  %7256 = vmatpush1.msra.mxu0 %v7221
  %7257 = vmatprep.subr.mxu0 0.0
  %7258 = vmatpush2.msra.mxu0 0.0
  %7259 = vmatprep.subr.mxu0 0.0
  %7260 = vmatpush2.msra.mxu0 0.0
  %7261 = vmatprep.subr.mxu0 0.0
  %7262 = vmatpush2.msra.mxu0 0.0
  %7263 = vmatprep.subr.mxu0 0.0
  %7264 = vmatpush2.msra.mxu0 0.0
  %7265 = vmatprep.subr.mxu0 0.0
  %7266 = vmatpush2.msra.mxu0 0.0
  %7267 = vmatprep.subr.mxu0 0.0
  %7268 = vmatpush2.msra.mxu0 0.0
  %7269 = vmatprep.subr.mxu0 0.0
  %7270 = vmatpush2.msra.mxu0 0.0
  %7271 = vmatprep.subr.mxu0 0.0
  %7272 = vmatpush2.msra.mxu0 0.0
  %7273 = vmatprep.subr.mxu0 0.0
  %7274 = vmatpush2.msra.mxu0 0.0
  %7275 = vmatprep.subr.mxu0 0.0
  %7276 = vmatpush2.msra.mxu0 0.0
  %7277 = vmatprep.subr.mxu0 0.0
  %7278 = vmatpush2.msra.mxu0 0.0
  %7279 = vmatprep.subr.mxu0 0.0
  %7280 = vmatpush2.msra.mxu0 0.0
  %7281 = vmatprep.subr.mxu0 0.0
  %7282 = vmatpush2.msra.mxu0 0.0
  %7283 = vmatprep.subr.mxu0 0.0
  %7284 = vmatpush2.msra.mxu0 0.0
  %7285 = vmatprep.subr.mxu0 0.0
  %7286 = vmatpush2.msra.mxu0 0.0
  %7287 = vmatprep.subr.mxu0 0.0
  %7288 = vmatpush2.msra.mxu0 0.0
  %7289 = vmatprep.mubr.f32.mxu0 0.0
  %7290 = vmatmul.mubr.f32.gmra.mxu0 %v6774
  %v7291 = vpop.f32.mrf.mxu0
  %v7292 = vadd.f32 0.0, %v7291
  %v7293 = vpop.f32.mrf.mxu0
  %7294 = vmatprep.mubr.f32.mxu0 0.0
  %7295 = vmatmul.mubr.f32.gmra.mxu0 %v6777
  %v7296 = vpop.f32.mrf.mxu0
  %v7297 = vadd.f32 0.0, %v7296
  %v7298 = vpop.f32.mrf.mxu0
  %7299 = vmatprep.mubr.f32.mxu0 0.0
  %7300 = vmatmul.mubr.f32.gmra.mxu0 %v6780
  %v7301 = vpop.f32.mrf.mxu0
  %v7302 = vadd.f32 0.0, %v7301
  %v7303 = vpop.f32.mrf.mxu0
  %7304 = vmatprep.mubr.f32.mxu0 0.0
  %7305 = vmatmul.mubr.f32.gmra.mxu0 %v6783
  %v7306 = vpop.f32.mrf.mxu0
  %v7307 = vadd.f32 0.0, %v7306
  %v7308 = vpop.f32.mrf.mxu0
  %7309 = vmatprep.mubr.f32.mxu0 0.0
  %7310 = vmatmul.mubr.f32.gmra.mxu0 %v6786
  %v7311 = vpop.f32.mrf.mxu0
  %v7312 = vadd.f32 0.0, %v7311
  %v7313 = vpop.f32.mrf.mxu0
  %7314 = vmatprep.mubr.f32.mxu0 0.0
  %7315 = vmatmul.mubr.f32.gmra.mxu0 %v6789
  %v7316 = vpop.f32.mrf.mxu0
  %v7317 = vadd.f32 0.0, %v7316
  %v7318 = vpop.f32.mrf.mxu0
  %7319 = vmatprep.mubr.f32.mxu0 0.0
  %7320 = vmatmul.mubr.f32.gmra.mxu0 %v6792
  %v7321 = vpop.f32.mrf.mxu0
  %v7322 = vadd.f32 0.0, %v7321
  %v7323 = vpop.f32.mrf.mxu0
  %7324 = vmatprep.mubr.f32.mxu0 0.0
  %7325 = vmatmul.mubr.f32.gmra.mxu0 %v6795
  %v7326 = vpop.f32.mrf.mxu0
  %v7327 = vadd.f32 0.0, %v7326
  %v7328 = vpop.f32.mrf.mxu0
  %7329 = vmatprep.mubr.f32.mxu0 0.0
  %7330 = vmatmul.mubr.f32.gmra.mxu0 %v6798
  %v7331 = vpop.f32.mrf.mxu0
  %v7332 = vadd.f32 0.0, %v7331
  %v7333 = vpop.f32.mrf.mxu0
  %7334 = vmatprep.mubr.f32.mxu0 0.0
  %7335 = vmatmul.mubr.f32.gmra.mxu0 %v6801
  %v7336 = vpop.f32.mrf.mxu0
  %v7337 = vadd.f32 0.0, %v7336
  %v7338 = vpop.f32.mrf.mxu0
  %7339 = vmatprep.mubr.f32.mxu0 0.0
  %7340 = vmatmul.mubr.f32.gmra.mxu0 %v6804
  %v7341 = vpop.f32.mrf.mxu0
  %v7342 = vadd.f32 0.0, %v7341
  %v7343 = vpop.f32.mrf.mxu0
  %7344 = vmatprep.mubr.f32.mxu0 0.0
  %7345 = vmatmul.mubr.f32.gmra.mxu0 %v6807
  %v7346 = vpop.f32.mrf.mxu0
  %v7347 = vadd.f32 0.0, %v7346
  %v7348 = vpop.f32.mrf.mxu0
  %7349 = vmatprep.mubr.f32.mxu0 0.0
  %7350 = vmatmul.mubr.f32.gmra.mxu0 %v6810
  %v7351 = vpop.f32.mrf.mxu0
  %v7352 = vadd.f32 0.0, %v7351
  %v7353 = vpop.f32.mrf.mxu0
  %7354 = vmatprep.mubr.f32.mxu0 0.0
  %7355 = vmatmul.mubr.f32.gmra.mxu0 %v6813
  %v7356 = vpop.f32.mrf.mxu0
  %v7357 = vadd.f32 0.0, %v7356
  %v7358 = vpop.f32.mrf.mxu0
  %7359 = vmatprep.mubr.f32.mxu0 0.0
  %7360 = vmatmul.mubr.f32.gmra.mxu0 %v6816
  %v7361 = vpop.f32.mrf.mxu0
  %v7362 = vadd.f32 0.0, %v7361
  %v7363 = vpop.f32.mrf.mxu0
  %7364 = vmatprep.mubr.f32.mxu0 0.0
  %7365 = vmatmul.mubr.f32.gmra.mxu0 %v6819
  %v7366 = vpop.f32.mrf.mxu0
  %v7367 = vadd.f32 0.0, %v7366
  %v7368 = vpop.f32.mrf.mxu0
  %7369 = vmatprep.mubr.f32.mxu0 0.0
  %7370 = vmatmul.mubr.f32.gmra.mxu0 %v6822
  %v7371 = vpop.f32.mrf.mxu0
  %v7372 = vadd.f32 0.0, %v7371
  %v7373 = vpop.f32.mrf.mxu0
  %7374 = vmatprep.mubr.f32.mxu0 0.0
  %7375 = vmatmul.mubr.f32.gmra.mxu0 %v6825
  %v7376 = vpop.f32.mrf.mxu0
  %v7377 = vadd.f32 0.0, %v7376
  %v7378 = vpop.f32.mrf.mxu0
  %7379 = vmatprep.mubr.f32.mxu0 0.0
  %7380 = vmatmul.mubr.f32.gmra.mxu0 %v6828
  %v7381 = vpop.f32.mrf.mxu0
  %v7382 = vadd.f32 0.0, %v7381
  %v7383 = vpop.f32.mrf.mxu0
  %7384 = vmatprep.mubr.f32.mxu0 0.0
  %7385 = vmatmul.mubr.f32.gmra.mxu0 %v6831
  %v7386 = vpop.f32.mrf.mxu0
  %v7387 = vadd.f32 0.0, %v7386
  %v7388 = vpop.f32.mrf.mxu0
  %7389 = vmatprep.mubr.f32.mxu0 0.0
  %7390 = vmatmul.mubr.f32.gmra.mxu0 %v6834
  %v7391 = vpop.f32.mrf.mxu0
  %v7392 = vadd.f32 0.0, %v7391
  %v7393 = vpop.f32.mrf.mxu0
  %7394 = vmatprep.mubr.f32.mxu0 0.0
  %7395 = vmatmul.mubr.f32.gmra.mxu0 %v6837
  %v7396 = vpop.f32.mrf.mxu0
  %v7397 = vadd.f32 0.0, %v7396
  %v7398 = vpop.f32.mrf.mxu0
  %7399 = vmatprep.mubr.f32.mxu0 0.0
  %7400 = vmatmul.mubr.f32.gmra.mxu0 %v6840
  %v7401 = vpop.f32.mrf.mxu0
  %v7402 = vadd.f32 0.0, %v7401
  %v7403 = vpop.f32.mrf.mxu0
  %7404 = vmatprep.mubr.f32.mxu0 0.0
  %7405 = vmatmul.mubr.f32.gmra.mxu0 %v6843
  %v7406 = vpop.f32.mrf.mxu0
  %v7407 = vadd.f32 0.0, %v7406
  %v7408 = vpop.f32.mrf.mxu0
  %7409 = vdwg.mxu0
  %v7411 = vsel %vm1356, %v6912, 0
  %v7414 = vsel %vm1356, %v6917, 0
  %v7417 = vsel %vm1356, %v6922, 0
  %v7420 = vsel %vm1356, %v7102, 0
  %v7423 = vsel %vm1356, %v7107, 0
  %v7426 = vsel %vm1356, %v7112, 0
  %7428 = vmatprep.subr.mxu0 0.0
  %7429 = vmatpush1.xpose.msra.mxu0 0.0
  %7430 = vmatprep.subr.mxu0 0.0
  %7431 = vmatpush1.xpose.msra.mxu0 0.0
  %7432 = vmatprep.subr.mxu0 0.0
  %7433 = vmatpush1.xpose.msra.mxu0 0.0
  %7434 = vmatprep.subr.mxu0 0.0
  %7435 = vmatpush1.xpose.msra.mxu0 0.0
  %7436 = vmatprep.subr.mxu0 0.0
  %7437 = vmatpush1.xpose.msra.mxu0 0.0
  %7438 = vmatprep.subr.mxu0 0.0
  %7439 = vmatpush1.xpose.msra.mxu0 0.0
  %7440 = vmatprep.subr.mxu0 0.0
  %7441 = vmatpush1.xpose.msra.mxu0 0.0
  %7442 = vmatprep.subr.mxu0 0.0
  %7443 = vmatpush1.xpose.msra.mxu0 0.0
  %7444 = vmatprep.subr.mxu0 0.0
  %7445 = vmatpush1.xpose.msra.mxu0 0.0
  %7446 = vmatprep.subr.mxu0 0.0
  %7447 = vmatpush1.xpose.msra.mxu0 0.0
  %7448 = vmatprep.subr.mxu0 0.0
  %7449 = vmatpush1.xpose.msra.mxu0 0.0
  %7450 = vmatprep.subr.mxu0 0.0
  %7451 = vmatpush1.xpose.msra.mxu0 0.0
  %7452 = vmatprep.subr.mxu0 0.0
  %7453 = vmatpush1.xpose.msra.mxu0 0.0
  %7454 = vmatprep.subr.mxu0 0.0
  %7455 = vmatpush1.xpose.msra.mxu0 %v7426
  %7456 = vmatprep.subr.mxu0 0.0
  %7457 = vmatpush1.xpose.msra.mxu0 %v7423
  %7458 = vmatprep.subr.mxu0 0.0
  %7459 = vmatpush1.xpose.msra.mxu0 %v7420
  %7460 = vmatprep.subr.mxu0 0.0
  %7461 = vmatpush2.xpose.msra.mxu0 0.0
  %7462 = vmatprep.subr.mxu0 0.0
  %7463 = vmatpush2.xpose.msra.mxu0 0.0
  %7464 = vmatprep.subr.mxu0 0.0
  %7465 = vmatpush2.xpose.msra.mxu0 0.0
  %7466 = vmatprep.subr.mxu0 0.0
  %7467 = vmatpush2.xpose.msra.mxu0 0.0
  %7468 = vmatprep.subr.mxu0 0.0
  %7469 = vmatpush2.xpose.msra.mxu0 0.0
  %7470 = vmatprep.subr.mxu0 0.0
  %7471 = vmatpush2.xpose.msra.mxu0 0.0
  %7472 = vmatprep.subr.mxu0 0.0
  %7473 = vmatpush2.xpose.msra.mxu0 0.0
  %7474 = vmatprep.subr.mxu0 0.0
  %7475 = vmatpush2.xpose.msra.mxu0 0.0
  %7476 = vmatprep.subr.mxu0 0.0
  %7477 = vmatpush2.xpose.msra.mxu0 0.0
  %7478 = vmatprep.subr.mxu0 0.0
  %7479 = vmatpush2.xpose.msra.mxu0 0.0
  %7480 = vmatprep.subr.mxu0 0.0
  %7481 = vmatpush2.xpose.msra.mxu0 0.0
  %7482 = vmatprep.subr.mxu0 0.0
  %7483 = vmatpush2.xpose.msra.mxu0 0.0
  %7484 = vmatprep.subr.mxu0 0.0
  %7485 = vmatpush2.xpose.msra.mxu0 0.0
  %7486 = vmatprep.subr.mxu0 0.0
  %7487 = vmatpush2.xpose.msra.mxu0 0.0
  %7488 = vmatprep.subr.mxu0 0.0
  %7489 = vmatpush2.xpose.msra.mxu0 0.0
  %7490 = vmatprep.subr.mxu0 0.0
  %7491 = vmatpush2.xpose.msra.mxu0 0.0
  %7492 = vmatprep.mubr.f32.mxu0 0.0
  %7493 = vmatmul.mubr.f32.gmra.mxu0 %v7411
  %v7494 = vpop.f32.mrf.mxu0
  %v7495 = vadd.f32 0.0, %v7494
  %v7496 = vpop.f32.mrf.mxu0
  %7497 = vmatprep.mubr.f32.mxu0 0.0
  %7498 = vmatmul.mubr.f32.gmra.mxu0 %v7414
  %v7499 = vpop.f32.mrf.mxu0
  %v7500 = vadd.f32 0.0, %v7499
  %v7501 = vpop.f32.mrf.mxu0
  %7502 = vmatprep.mubr.f32.mxu0 0.0
  %7503 = vmatmul.mubr.f32.gmra.mxu0 %v7417
  %v7504 = vpop.f32.mrf.mxu0
  %v7505 = vadd.f32 0.0, %v7504
  %v7506 = vpop.f32.mrf.mxu0
  %7507 = vdwg.mxu0
  %v7509 = vsel %vm1356, %v6927, 0
  %v7512 = vsel %vm1356, %v6932, 0
  %v7515 = vsel %vm1356, %v6937, 0
  %v7518 = vsel %vm1356, %v7117, 0
  %v7521 = vsel %vm1356, %v7122, 0
  %v7524 = vsel %vm1356, %v7127, 0
  %7526 = vmatprep.subr.mxu0 0.0
  %7527 = vmatpush1.xpose.msra.mxu0 0.0
  %7528 = vmatprep.subr.mxu0 0.0
  %7529 = vmatpush1.xpose.msra.mxu0 0.0
  %7530 = vmatprep.subr.mxu0 0.0
  %7531 = vmatpush1.xpose.msra.mxu0 0.0
  %7532 = vmatprep.subr.mxu0 0.0
  %7533 = vmatpush1.xpose.msra.mxu0 0.0
  %7534 = vmatprep.subr.mxu0 0.0
  %7535 = vmatpush1.xpose.msra.mxu0 0.0
  %7536 = vmatprep.subr.mxu0 0.0
  %7537 = vmatpush1.xpose.msra.mxu0 0.0
  %7538 = vmatprep.subr.mxu0 0.0
  %7539 = vmatpush1.xpose.msra.mxu0 0.0
  %7540 = vmatprep.subr.mxu0 0.0
  %7541 = vmatpush1.xpose.msra.mxu0 0.0
  %7542 = vmatprep.subr.mxu0 0.0
  %7543 = vmatpush1.xpose.msra.mxu0 0.0
  %7544 = vmatprep.subr.mxu0 0.0
  %7545 = vmatpush1.xpose.msra.mxu0 0.0
  %7546 = vmatprep.subr.mxu0 0.0
  %7547 = vmatpush1.xpose.msra.mxu0 0.0
  %7548 = vmatprep.subr.mxu0 0.0
  %7549 = vmatpush1.xpose.msra.mxu0 0.0
  %7550 = vmatprep.subr.mxu0 0.0
  %7551 = vmatpush1.xpose.msra.mxu0 0.0
  %7552 = vmatprep.subr.mxu0 0.0
  %7553 = vmatpush1.xpose.msra.mxu0 %v7524
  %7554 = vmatprep.subr.mxu0 0.0
  %7555 = vmatpush1.xpose.msra.mxu0 %v7521
  %7556 = vmatprep.subr.mxu0 0.0
  %7557 = vmatpush1.xpose.msra.mxu0 %v7518
  %7558 = vmatprep.subr.mxu0 0.0
  %7559 = vmatpush2.xpose.msra.mxu0 0.0
  %7560 = vmatprep.subr.mxu0 0.0
  %7561 = vmatpush2.xpose.msra.mxu0 0.0
  %7562 = vmatprep.subr.mxu0 0.0
  %7563 = vmatpush2.xpose.msra.mxu0 0.0
  %7564 = vmatprep.subr.mxu0 0.0
  %7565 = vmatpush2.xpose.msra.mxu0 0.0
  %7566 = vmatprep.subr.mxu0 0.0
  %7567 = vmatpush2.xpose.msra.mxu0 0.0
  %7568 = vmatprep.subr.mxu0 0.0
  %7569 = vmatpush2.xpose.msra.mxu0 0.0
  %7570 = vmatprep.subr.mxu0 0.0
  %7571 = vmatpush2.xpose.msra.mxu0 0.0
  %7572 = vmatprep.subr.mxu0 0.0
  %7573 = vmatpush2.xpose.msra.mxu0 0.0
  %7574 = vmatprep.subr.mxu0 0.0
  %7575 = vmatpush2.xpose.msra.mxu0 0.0
  %7576 = vmatprep.subr.mxu0 0.0
  %7577 = vmatpush2.xpose.msra.mxu0 0.0
  %7578 = vmatprep.subr.mxu0 0.0
  %7579 = vmatpush2.xpose.msra.mxu0 0.0
  %7580 = vmatprep.subr.mxu0 0.0
  %7581 = vmatpush2.xpose.msra.mxu0 0.0
  %7582 = vmatprep.subr.mxu0 0.0
  %7583 = vmatpush2.xpose.msra.mxu0 0.0
  %7584 = vmatprep.subr.mxu0 0.0
  %7585 = vmatpush2.xpose.msra.mxu0 0.0
  %7586 = vmatprep.subr.mxu0 0.0
  %7587 = vmatpush2.xpose.msra.mxu0 0.0
  %7588 = vmatprep.subr.mxu0 0.0
  %7589 = vmatpush2.xpose.msra.mxu0 0.0
  %7590 = vmatprep.mubr.f32.mxu0 0.0
  %7591 = vmatmul.mubr.f32.gmra.mxu0 %v7509
  %v7592 = vpop.f32.mrf.mxu0
  %v7593 = vadd.f32 0.0, %v7592
  %v7594 = vpop.f32.mrf.mxu0
  %7595 = vmatprep.mubr.f32.mxu0 0.0
  %7596 = vmatmul.mubr.f32.gmra.mxu0 %v7512
  %v7597 = vpop.f32.mrf.mxu0
  %v7598 = vadd.f32 0.0, %v7597
  %v7599 = vpop.f32.mrf.mxu0
  %7600 = vmatprep.mubr.f32.mxu0 0.0
  %7601 = vmatmul.mubr.f32.gmra.mxu0 %v7515
  %v7602 = vpop.f32.mrf.mxu0
  %v7603 = vadd.f32 0.0, %v7602
  %v7604 = vpop.f32.mrf.mxu0
  %7605 = vdwg.mxu0
  %v7607 = vsel %vm1356, %v6942, 0
  %v7610 = vsel %vm1356, %v6947, 0
  %v7613 = vsel %vm1356, %v6952, 0
  %v7616 = vsel %vm1356, %v7132, 0
  %v7619 = vsel %vm1356, %v7137, 0
  %v7622 = vsel %vm1356, %v7142, 0
  %7624 = vmatprep.subr.mxu0 0.0
  %7625 = vmatpush1.xpose.msra.mxu0 0.0
  %7626 = vmatprep.subr.mxu0 0.0
  %7627 = vmatpush1.xpose.msra.mxu0 0.0
  %7628 = vmatprep.subr.mxu0 0.0
  %7629 = vmatpush1.xpose.msra.mxu0 0.0
  %7630 = vmatprep.subr.mxu0 0.0
  %7631 = vmatpush1.xpose.msra.mxu0 0.0
  %7632 = vmatprep.subr.mxu0 0.0
  %7633 = vmatpush1.xpose.msra.mxu0 0.0
  %7634 = vmatprep.subr.mxu0 0.0
  %7635 = vmatpush1.xpose.msra.mxu0 0.0
  %7636 = vmatprep.subr.mxu0 0.0
  %7637 = vmatpush1.xpose.msra.mxu0 0.0
  %7638 = vmatprep.subr.mxu0 0.0
  %7639 = vmatpush1.xpose.msra.mxu0 0.0
  %7640 = vmatprep.subr.mxu0 0.0
  %7641 = vmatpush1.xpose.msra.mxu0 0.0
  %7642 = vmatprep.subr.mxu0 0.0
  %7643 = vmatpush1.xpose.msra.mxu0 0.0
  %7644 = vmatprep.subr.mxu0 0.0
  %7645 = vmatpush1.xpose.msra.mxu0 0.0
  %7646 = vmatprep.subr.mxu0 0.0
  %7647 = vmatpush1.xpose.msra.mxu0 0.0
  %7648 = vmatprep.subr.mxu0 0.0
  %7649 = vmatpush1.xpose.msra.mxu0 0.0
  %7650 = vmatprep.subr.mxu0 0.0
  %7651 = vmatpush1.xpose.msra.mxu0 %v7622
  %7652 = vmatprep.subr.mxu0 0.0
  %7653 = vmatpush1.xpose.msra.mxu0 %v7619
  %7654 = vmatprep.subr.mxu0 0.0
  %7655 = vmatpush1.xpose.msra.mxu0 %v7616
  %7656 = vmatprep.subr.mxu0 0.0
  %7657 = vmatpush2.xpose.msra.mxu0 0.0
  %7658 = vmatprep.subr.mxu0 0.0
  %7659 = vmatpush2.xpose.msra.mxu0 0.0
  %7660 = vmatprep.subr.mxu0 0.0
  %7661 = vmatpush2.xpose.msra.mxu0 0.0
  %7662 = vmatprep.subr.mxu0 0.0
  %7663 = vmatpush2.xpose.msra.mxu0 0.0
  %7664 = vmatprep.subr.mxu0 0.0
  %7665 = vmatpush2.xpose.msra.mxu0 0.0
  %7666 = vmatprep.subr.mxu0 0.0
  %7667 = vmatpush2.xpose.msra.mxu0 0.0
  %7668 = vmatprep.subr.mxu0 0.0
  %7669 = vmatpush2.xpose.msra.mxu0 0.0
  %7670 = vmatprep.subr.mxu0 0.0
  %7671 = vmatpush2.xpose.msra.mxu0 0.0
  %7672 = vmatprep.subr.mxu0 0.0
  %7673 = vmatpush2.xpose.msra.mxu0 0.0
  %7674 = vmatprep.subr.mxu0 0.0
  %7675 = vmatpush2.xpose.msra.mxu0 0.0
  %7676 = vmatprep.subr.mxu0 0.0
  %7677 = vmatpush2.xpose.msra.mxu0 0.0
  %7678 = vmatprep.subr.mxu0 0.0
  %7679 = vmatpush2.xpose.msra.mxu0 0.0
  %7680 = vmatprep.subr.mxu0 0.0
  %7681 = vmatpush2.xpose.msra.mxu0 0.0
  %7682 = vmatprep.subr.mxu0 0.0
  %7683 = vmatpush2.xpose.msra.mxu0 0.0
  %7684 = vmatprep.subr.mxu0 0.0
  %7685 = vmatpush2.xpose.msra.mxu0 0.0
  %7686 = vmatprep.subr.mxu0 0.0
  %7687 = vmatpush2.xpose.msra.mxu0 0.0
  %7688 = vmatprep.mubr.f32.mxu0 0.0
  %7689 = vmatmul.mubr.f32.gmra.mxu0 %v7607
  %v7690 = vpop.f32.mrf.mxu0
  %v7691 = vadd.f32 0.0, %v7690
  %v7692 = vpop.f32.mrf.mxu0
  %7693 = vmatprep.mubr.f32.mxu0 0.0
  %7694 = vmatmul.mubr.f32.gmra.mxu0 %v7610
  %v7695 = vpop.f32.mrf.mxu0
  %v7696 = vadd.f32 0.0, %v7695
  %v7697 = vpop.f32.mrf.mxu0
  %7698 = vmatprep.mubr.f32.mxu0 0.0
  %7699 = vmatmul.mubr.f32.gmra.mxu0 %v7613
  %v7700 = vpop.f32.mrf.mxu0
  %v7701 = vadd.f32 0.0, %v7700
  %v7702 = vpop.f32.mrf.mxu0
  %7703 = vdwg.mxu0
  %v7705 = vsel %vm1356, %v6957, 0
  %v7708 = vsel %vm1356, %v6962, 0
  %v7711 = vsel %vm1356, %v6967, 0
  %v7714 = vsel %vm1356, %v7147, 0
  %v7717 = vsel %vm1356, %v7152, 0
  %v7720 = vsel %vm1356, %v7157, 0
  %7722 = vmatprep.subr.mxu0 0.0
  %7723 = vmatpush1.xpose.msra.mxu0 0.0
  %7724 = vmatprep.subr.mxu0 0.0
  %7725 = vmatpush1.xpose.msra.mxu0 0.0
  %7726 = vmatprep.subr.mxu0 0.0
  %7727 = vmatpush1.xpose.msra.mxu0 0.0
  %7728 = vmatprep.subr.mxu0 0.0
  %7729 = vmatpush1.xpose.msra.mxu0 0.0
  %7730 = vmatprep.subr.mxu0 0.0
  %7731 = vmatpush1.xpose.msra.mxu0 0.0
  %7732 = vmatprep.subr.mxu0 0.0
  %7733 = vmatpush1.xpose.msra.mxu0 0.0
  %7734 = vmatprep.subr.mxu0 0.0
  %7735 = vmatpush1.xpose.msra.mxu0 0.0
  %7736 = vmatprep.subr.mxu0 0.0
  %7737 = vmatpush1.xpose.msra.mxu0 0.0
  %7738 = vmatprep.subr.mxu0 0.0
  %7739 = vmatpush1.xpose.msra.mxu0 0.0
  %7740 = vmatprep.subr.mxu0 0.0
  %7741 = vmatpush1.xpose.msra.mxu0 0.0
  %7742 = vmatprep.subr.mxu0 0.0
  %7743 = vmatpush1.xpose.msra.mxu0 0.0
  %7744 = vmatprep.subr.mxu0 0.0
  %7745 = vmatpush1.xpose.msra.mxu0 0.0
  %7746 = vmatprep.subr.mxu0 0.0
  %7747 = vmatpush1.xpose.msra.mxu0 0.0
  %7748 = vmatprep.subr.mxu0 0.0
  %7749 = vmatpush1.xpose.msra.mxu0 %v7720
  %7750 = vmatprep.subr.mxu0 0.0
  %7751 = vmatpush1.xpose.msra.mxu0 %v7717
  %7752 = vmatprep.subr.mxu0 0.0
  %7753 = vmatpush1.xpose.msra.mxu0 %v7714
  %7754 = vmatprep.subr.mxu0 0.0
  %7755 = vmatpush2.xpose.msra.mxu0 0.0
  %7756 = vmatprep.subr.mxu0 0.0
  %7757 = vmatpush2.xpose.msra.mxu0 0.0
  %7758 = vmatprep.subr.mxu0 0.0
  %7759 = vmatpush2.xpose.msra.mxu0 0.0
  %7760 = vmatprep.subr.mxu0 0.0
  %7761 = vmatpush2.xpose.msra.mxu0 0.0
  %7762 = vmatprep.subr.mxu0 0.0
  %7763 = vmatpush2.xpose.msra.mxu0 0.0
  %7764 = vmatprep.subr.mxu0 0.0
  %7765 = vmatpush2.xpose.msra.mxu0 0.0
  %7766 = vmatprep.subr.mxu0 0.0
  %7767 = vmatpush2.xpose.msra.mxu0 0.0
  %7768 = vmatprep.subr.mxu0 0.0
  %7769 = vmatpush2.xpose.msra.mxu0 0.0
  %7770 = vmatprep.subr.mxu0 0.0
  %7771 = vmatpush2.xpose.msra.mxu0 0.0
  %7772 = vmatprep.subr.mxu0 0.0
  %7773 = vmatpush2.xpose.msra.mxu0 0.0
  %7774 = vmatprep.subr.mxu0 0.0
  %7775 = vmatpush2.xpose.msra.mxu0 0.0
  %7776 = vmatprep.subr.mxu0 0.0
  %7777 = vmatpush2.xpose.msra.mxu0 0.0
  %7778 = vmatprep.subr.mxu0 0.0
  %7779 = vmatpush2.xpose.msra.mxu0 0.0
  %7780 = vmatprep.subr.mxu0 0.0
  %7781 = vmatpush2.xpose.msra.mxu0 0.0
  %7782 = vmatprep.subr.mxu0 0.0
  %7783 = vmatpush2.xpose.msra.mxu0 0.0
  %7784 = vmatprep.subr.mxu0 0.0
  %7785 = vmatpush2.xpose.msra.mxu0 0.0
  %7786 = vmatprep.mubr.f32.mxu0 0.0
  %7787 = vmatmul.mubr.f32.gmra.mxu0 %v7705
  %v7788 = vpop.f32.mrf.mxu0
  %v7789 = vadd.f32 0.0, %v7788
  %v7790 = vpop.f32.mrf.mxu0
  %7791 = vmatprep.mubr.f32.mxu0 0.0
  %7792 = vmatmul.mubr.f32.gmra.mxu0 %v7708
  %v7793 = vpop.f32.mrf.mxu0
  %v7794 = vadd.f32 0.0, %v7793
  %v7795 = vpop.f32.mrf.mxu0
  %7796 = vmatprep.mubr.f32.mxu0 0.0
  %7797 = vmatmul.mubr.f32.gmra.mxu0 %v7711
  %v7798 = vpop.f32.mrf.mxu0
  %v7799 = vadd.f32 0.0, %v7798
  %v7800 = vpop.f32.mrf.mxu0
  %7801 = vdwg.mxu0
  %v7803 = vsel %vm1356, %v6972, 0
  %v7806 = vsel %vm1356, %v6977, 0
  %v7809 = vsel %vm1356, %v6982, 0
  %v7812 = vsel %vm1356, %v7162, 0
  %v7815 = vsel %vm1356, %v7167, 0
  %v7818 = vsel %vm1356, %v7172, 0
  %7820 = vmatprep.subr.mxu0 0.0
  %7821 = vmatpush1.xpose.msra.mxu0 0.0
  %7822 = vmatprep.subr.mxu0 0.0
  %7823 = vmatpush1.xpose.msra.mxu0 0.0
  %7824 = vmatprep.subr.mxu0 0.0
  %7825 = vmatpush1.xpose.msra.mxu0 0.0
  %7826 = vmatprep.subr.mxu0 0.0
  %7827 = vmatpush1.xpose.msra.mxu0 0.0
  %7828 = vmatprep.subr.mxu0 0.0
  %7829 = vmatpush1.xpose.msra.mxu0 0.0
  %7830 = vmatprep.subr.mxu0 0.0
  %7831 = vmatpush1.xpose.msra.mxu0 0.0
  %7832 = vmatprep.subr.mxu0 0.0
  %7833 = vmatpush1.xpose.msra.mxu0 0.0
  %7834 = vmatprep.subr.mxu0 0.0
  %7835 = vmatpush1.xpose.msra.mxu0 0.0
  %7836 = vmatprep.subr.mxu0 0.0
  %7837 = vmatpush1.xpose.msra.mxu0 0.0
  %7838 = vmatprep.subr.mxu0 0.0
  %7839 = vmatpush1.xpose.msra.mxu0 0.0
  %7840 = vmatprep.subr.mxu0 0.0
  %7841 = vmatpush1.xpose.msra.mxu0 0.0
  %7842 = vmatprep.subr.mxu0 0.0
  %7843 = vmatpush1.xpose.msra.mxu0 0.0
  %7844 = vmatprep.subr.mxu0 0.0
  %7845 = vmatpush1.xpose.msra.mxu0 0.0
  %7846 = vmatprep.subr.mxu0 0.0
  %7847 = vmatpush1.xpose.msra.mxu0 %v7818
  %7848 = vmatprep.subr.mxu0 0.0
  %7849 = vmatpush1.xpose.msra.mxu0 %v7815
  %7850 = vmatprep.subr.mxu0 0.0
  %7851 = vmatpush1.xpose.msra.mxu0 %v7812
  %7852 = vmatprep.subr.mxu0 0.0
  %7853 = vmatpush2.xpose.msra.mxu0 0.0
  %7854 = vmatprep.subr.mxu0 0.0
  %7855 = vmatpush2.xpose.msra.mxu0 0.0
  %7856 = vmatprep.subr.mxu0 0.0
  %7857 = vmatpush2.xpose.msra.mxu0 0.0
  %7858 = vmatprep.subr.mxu0 0.0
  %7859 = vmatpush2.xpose.msra.mxu0 0.0
  %7860 = vmatprep.subr.mxu0 0.0
  %7861 = vmatpush2.xpose.msra.mxu0 0.0
  %7862 = vmatprep.subr.mxu0 0.0
  %7863 = vmatpush2.xpose.msra.mxu0 0.0
  %7864 = vmatprep.subr.mxu0 0.0
  %7865 = vmatpush2.xpose.msra.mxu0 0.0
  %7866 = vmatprep.subr.mxu0 0.0
  %7867 = vmatpush2.xpose.msra.mxu0 0.0
  %7868 = vmatprep.subr.mxu0 0.0
  %7869 = vmatpush2.xpose.msra.mxu0 0.0
  %7870 = vmatprep.subr.mxu0 0.0
  %7871 = vmatpush2.xpose.msra.mxu0 0.0
  %7872 = vmatprep.subr.mxu0 0.0
  %7873 = vmatpush2.xpose.msra.mxu0 0.0
  %7874 = vmatprep.subr.mxu0 0.0
  %7875 = vmatpush2.xpose.msra.mxu0 0.0
  %7876 = vmatprep.subr.mxu0 0.0
  %7877 = vmatpush2.xpose.msra.mxu0 0.0
  %7878 = vmatprep.subr.mxu0 0.0
  %7879 = vmatpush2.xpose.msra.mxu0 0.0
  %7880 = vmatprep.subr.mxu0 0.0
  %7881 = vmatpush2.xpose.msra.mxu0 0.0
  %7882 = vmatprep.subr.mxu0 0.0
  %7883 = vmatpush2.xpose.msra.mxu0 0.0
  %7884 = vmatprep.mubr.f32.mxu0 0.0
  %7885 = vmatmul.mubr.f32.gmra.mxu0 %v7803
  %v7886 = vpop.f32.mrf.mxu0
  %v7887 = vadd.f32 0.0, %v7886
  %v7888 = vpop.f32.mrf.mxu0
  %7889 = vmatprep.mubr.f32.mxu0 0.0
  %7890 = vmatmul.mubr.f32.gmra.mxu0 %v7806
  %v7891 = vpop.f32.mrf.mxu0
  %v7892 = vadd.f32 0.0, %v7891
  %v7893 = vpop.f32.mrf.mxu0
  %7894 = vmatprep.mubr.f32.mxu0 0.0
  %7895 = vmatmul.mubr.f32.gmra.mxu0 %v7809
  %v7896 = vpop.f32.mrf.mxu0
  %v7897 = vadd.f32 0.0, %v7896
  %v7898 = vpop.f32.mrf.mxu0
  %7899 = vdwg.mxu0
  %v7901 = vsel %vm1356, %v6987, 0
  %v7904 = vsel %vm1356, %v6992, 0
  %v7907 = vsel %vm1356, %v6997, 0
  %v7910 = vsel %vm1356, %v7177, 0
  %v7913 = vsel %vm1356, %v7182, 0
  %v7916 = vsel %vm1356, %v7187, 0
  %7918 = vmatprep.subr.mxu0 0.0
  %7919 = vmatpush1.xpose.msra.mxu0 0.0
  %7920 = vmatprep.subr.mxu0 0.0
  %7921 = vmatpush1.xpose.msra.mxu0 0.0
  %7922 = vmatprep.subr.mxu0 0.0
  %7923 = vmatpush1.xpose.msra.mxu0 0.0
  %7924 = vmatprep.subr.mxu0 0.0
  %7925 = vmatpush1.xpose.msra.mxu0 0.0
  %7926 = vmatprep.subr.mxu0 0.0
  %7927 = vmatpush1.xpose.msra.mxu0 0.0
  %7928 = vmatprep.subr.mxu0 0.0
  %7929 = vmatpush1.xpose.msra.mxu0 0.0
  %7930 = vmatprep.subr.mxu0 0.0
  %7931 = vmatpush1.xpose.msra.mxu0 0.0
  %7932 = vmatprep.subr.mxu0 0.0
  %7933 = vmatpush1.xpose.msra.mxu0 0.0
  %7934 = vmatprep.subr.mxu0 0.0
  %7935 = vmatpush1.xpose.msra.mxu0 0.0
  %7936 = vmatprep.subr.mxu0 0.0
  %7937 = vmatpush1.xpose.msra.mxu0 0.0
  %7938 = vmatprep.subr.mxu0 0.0
  %7939 = vmatpush1.xpose.msra.mxu0 0.0
  %7940 = vmatprep.subr.mxu0 0.0
  %7941 = vmatpush1.xpose.msra.mxu0 0.0
  %7942 = vmatprep.subr.mxu0 0.0
  %7943 = vmatpush1.xpose.msra.mxu0 0.0
  %7944 = vmatprep.subr.mxu0 0.0
  %7945 = vmatpush1.xpose.msra.mxu0 %v7916
  %7946 = vmatprep.subr.mxu0 0.0
  %7947 = vmatpush1.xpose.msra.mxu0 %v7913
  %7948 = vmatprep.subr.mxu0 0.0
  %7949 = vmatpush1.xpose.msra.mxu0 %v7910
  %7950 = vmatprep.subr.mxu0 0.0
  %7951 = vmatpush2.xpose.msra.mxu0 0.0
  %7952 = vmatprep.subr.mxu0 0.0
  %7953 = vmatpush2.xpose.msra.mxu0 0.0
  %7954 = vmatprep.subr.mxu0 0.0
  %7955 = vmatpush2.xpose.msra.mxu0 0.0
  %7956 = vmatprep.subr.mxu0 0.0
  %7957 = vmatpush2.xpose.msra.mxu0 0.0
  %7958 = vmatprep.subr.mxu0 0.0
  %7959 = vmatpush2.xpose.msra.mxu0 0.0
  %7960 = vmatprep.subr.mxu0 0.0
  %7961 = vmatpush2.xpose.msra.mxu0 0.0
  %7962 = vmatprep.subr.mxu0 0.0
  %7963 = vmatpush2.xpose.msra.mxu0 0.0
  %7964 = vmatprep.subr.mxu0 0.0
  %7965 = vmatpush2.xpose.msra.mxu0 0.0
  %7966 = vmatprep.subr.mxu0 0.0
  %7967 = vmatpush2.xpose.msra.mxu0 0.0
  %7968 = vmatprep.subr.mxu0 0.0
  %7969 = vmatpush2.xpose.msra.mxu0 0.0
  %7970 = vmatprep.subr.mxu0 0.0
  %7971 = vmatpush2.xpose.msra.mxu0 0.0
  %7972 = vmatprep.subr.mxu0 0.0
  %7973 = vmatpush2.xpose.msra.mxu0 0.0
  %7974 = vmatprep.subr.mxu0 0.0
  %7975 = vmatpush2.xpose.msra.mxu0 0.0
  %7976 = vmatprep.subr.mxu0 0.0
  %7977 = vmatpush2.xpose.msra.mxu0 0.0
  %7978 = vmatprep.subr.mxu0 0.0
  %7979 = vmatpush2.xpose.msra.mxu0 0.0
  %7980 = vmatprep.subr.mxu0 0.0
  %7981 = vmatpush2.xpose.msra.mxu0 0.0
  %7982 = vmatprep.mubr.f32.mxu0 0.0
  %7983 = vmatmul.mubr.f32.gmra.mxu0 %v7901
  %v7984 = vpop.f32.mrf.mxu0
  %v7985 = vadd.f32 0.0, %v7984
  %v7986 = vpop.f32.mrf.mxu0
  %7987 = vmatprep.mubr.f32.mxu0 0.0
  %7988 = vmatmul.mubr.f32.gmra.mxu0 %v7904
  %v7989 = vpop.f32.mrf.mxu0
  %v7990 = vadd.f32 0.0, %v7989
  %v7991 = vpop.f32.mrf.mxu0
  %7992 = vmatprep.mubr.f32.mxu0 0.0
  %7993 = vmatmul.mubr.f32.gmra.mxu0 %v7907
  %v7994 = vpop.f32.mrf.mxu0
  %v7995 = vadd.f32 0.0, %v7994
  %v7996 = vpop.f32.mrf.mxu0
  %7997 = vdwg.mxu0
  %v7999 = vsel %vm1356, %v7002, 0
  %v8002 = vsel %vm1356, %v7007, 0
  %v8005 = vsel %vm1356, %v7012, 0
  %v8008 = vsel %vm1356, %v7192, 0
  %v8011 = vsel %vm1356, %v7197, 0
  %v8014 = vsel %vm1356, %v7202, 0
  %8016 = vmatprep.subr.mxu0 0.0
  %8017 = vmatpush1.xpose.msra.mxu0 0.0
  %8018 = vmatprep.subr.mxu0 0.0
  %8019 = vmatpush1.xpose.msra.mxu0 0.0
  %8020 = vmatprep.subr.mxu0 0.0
  %8021 = vmatpush1.xpose.msra.mxu0 0.0
  %8022 = vmatprep.subr.mxu0 0.0
  %8023 = vmatpush1.xpose.msra.mxu0 0.0
  %8024 = vmatprep.subr.mxu0 0.0
  %8025 = vmatpush1.xpose.msra.mxu0 0.0
  %8026 = vmatprep.subr.mxu0 0.0
  %8027 = vmatpush1.xpose.msra.mxu0 0.0
  %8028 = vmatprep.subr.mxu0 0.0
  %8029 = vmatpush1.xpose.msra.mxu0 0.0
  %8030 = vmatprep.subr.mxu0 0.0
  %8031 = vmatpush1.xpose.msra.mxu0 0.0
  %8032 = vmatprep.subr.mxu0 0.0
  %8033 = vmatpush1.xpose.msra.mxu0 0.0
  %8034 = vmatprep.subr.mxu0 0.0
  %8035 = vmatpush1.xpose.msra.mxu0 0.0
  %8036 = vmatprep.subr.mxu0 0.0
  %8037 = vmatpush1.xpose.msra.mxu0 0.0
  %8038 = vmatprep.subr.mxu0 0.0
  %8039 = vmatpush1.xpose.msra.mxu0 0.0
  %8040 = vmatprep.subr.mxu0 0.0
  %8041 = vmatpush1.xpose.msra.mxu0 0.0
  %8042 = vmatprep.subr.mxu0 0.0
  %8043 = vmatpush1.xpose.msra.mxu0 %v8014
  %8044 = vmatprep.subr.mxu0 0.0
  %8045 = vmatpush1.xpose.msra.mxu0 %v8011
  %8046 = vmatprep.subr.mxu0 0.0
  %8047 = vmatpush1.xpose.msra.mxu0 %v8008
  %8048 = vmatprep.subr.mxu0 0.0
  %8049 = vmatpush2.xpose.msra.mxu0 0.0
  %8050 = vmatprep.subr.mxu0 0.0
  %8051 = vmatpush2.xpose.msra.mxu0 0.0
  %8052 = vmatprep.subr.mxu0 0.0
  %8053 = vmatpush2.xpose.msra.mxu0 0.0
  %8054 = vmatprep.subr.mxu0 0.0
  %8055 = vmatpush2.xpose.msra.mxu0 0.0
  %8056 = vmatprep.subr.mxu0 0.0
  %8057 = vmatpush2.xpose.msra.mxu0 0.0
  %8058 = vmatprep.subr.mxu0 0.0
  %8059 = vmatpush2.xpose.msra.mxu0 0.0
  %8060 = vmatprep.subr.mxu0 0.0
  %8061 = vmatpush2.xpose.msra.mxu0 0.0
  %8062 = vmatprep.subr.mxu0 0.0
  %8063 = vmatpush2.xpose.msra.mxu0 0.0
  %8064 = vmatprep.subr.mxu0 0.0
  %8065 = vmatpush2.xpose.msra.mxu0 0.0
  %8066 = vmatprep.subr.mxu0 0.0
  %8067 = vmatpush2.xpose.msra.mxu0 0.0
  %8068 = vmatprep.subr.mxu0 0.0
  %8069 = vmatpush2.xpose.msra.mxu0 0.0
  %8070 = vmatprep.subr.mxu0 0.0
  %8071 = vmatpush2.xpose.msra.mxu0 0.0
  %8072 = vmatprep.subr.mxu0 0.0
  %8073 = vmatpush2.xpose.msra.mxu0 0.0
  %8074 = vmatprep.subr.mxu0 0.0
  %8075 = vmatpush2.xpose.msra.mxu0 0.0
  %8076 = vmatprep.subr.mxu0 0.0
  %8077 = vmatpush2.xpose.msra.mxu0 0.0
  %8078 = vmatprep.subr.mxu0 0.0
  %8079 = vmatpush2.xpose.msra.mxu0 0.0
  %8080 = vmatprep.mubr.f32.mxu0 0.0
  %8081 = vmatmul.mubr.f32.gmra.mxu0 %v7999
  %v8082 = vpop.f32.mrf.mxu0
  %v8083 = vadd.f32 0.0, %v8082
  %v8084 = vpop.f32.mrf.mxu0
  %8085 = vmatprep.mubr.f32.mxu0 0.0
  %8086 = vmatmul.mubr.f32.gmra.mxu0 %v8002
  %v8087 = vpop.f32.mrf.mxu0
  %v8088 = vadd.f32 0.0, %v8087
  %v8089 = vpop.f32.mrf.mxu0
  %8090 = vmatprep.mubr.f32.mxu0 0.0
  %8091 = vmatmul.mubr.f32.gmra.mxu0 %v8005
  %v8092 = vpop.f32.mrf.mxu0
  %v8093 = vadd.f32 0.0, %v8092
  %v8094 = vpop.f32.mrf.mxu0
  %8095 = vdwg.mxu0
  %v8097 = vsel %vm1356, %v7017, 0
  %v8100 = vsel %vm1356, %v7022, 0
  %v8103 = vsel %vm1356, %v7027, 0
  %v8106 = vsel %vm1356, %v7207, 0
  %v8109 = vsel %vm1356, %v7212, 0
  %v8112 = vsel %vm1356, %v7217, 0
  %8114 = vmatprep.subr.mxu0 0.0
  %8115 = vmatpush1.xpose.msra.mxu0 0.0
  %8116 = vmatprep.subr.mxu0 0.0
  %8117 = vmatpush1.xpose.msra.mxu0 0.0
  %8118 = vmatprep.subr.mxu0 0.0
  %8119 = vmatpush1.xpose.msra.mxu0 0.0
  %8120 = vmatprep.subr.mxu0 0.0
  %8121 = vmatpush1.xpose.msra.mxu0 0.0
  %8122 = vmatprep.subr.mxu0 0.0
  %8123 = vmatpush1.xpose.msra.mxu0 0.0
  %8124 = vmatprep.subr.mxu0 0.0
  %8125 = vmatpush1.xpose.msra.mxu0 0.0
  %8126 = vmatprep.subr.mxu0 0.0
  %8127 = vmatpush1.xpose.msra.mxu0 0.0
  %8128 = vmatprep.subr.mxu0 0.0
  %8129 = vmatpush1.xpose.msra.mxu0 0.0
  %8130 = vmatprep.subr.mxu0 0.0
  %8131 = vmatpush1.xpose.msra.mxu0 0.0
  %8132 = vmatprep.subr.mxu0 0.0
  %8133 = vmatpush1.xpose.msra.mxu0 0.0
  %8134 = vmatprep.subr.mxu0 0.0
  %8135 = vmatpush1.xpose.msra.mxu0 0.0
  %8136 = vmatprep.subr.mxu0 0.0
  %8137 = vmatpush1.xpose.msra.mxu0 0.0
  %8138 = vmatprep.subr.mxu0 0.0
  %8139 = vmatpush1.xpose.msra.mxu0 0.0
  %8140 = vmatprep.subr.mxu0 0.0
  %8141 = vmatpush1.xpose.msra.mxu0 %v8112
  %8142 = vmatprep.subr.mxu0 0.0
  %8143 = vmatpush1.xpose.msra.mxu0 %v8109
  %8144 = vmatprep.subr.mxu0 0.0
  %8145 = vmatpush1.xpose.msra.mxu0 %v8106
  %8146 = vmatprep.subr.mxu0 0.0
  %8147 = vmatpush2.xpose.msra.mxu0 0.0
  %8148 = vmatprep.subr.mxu0 0.0
  %8149 = vmatpush2.xpose.msra.mxu0 0.0
  %8150 = vmatprep.subr.mxu0 0.0
  %8151 = vmatpush2.xpose.msra.mxu0 0.0
  %8152 = vmatprep.subr.mxu0 0.0
  %8153 = vmatpush2.xpose.msra.mxu0 0.0
  %8154 = vmatprep.subr.mxu0 0.0
  %8155 = vmatpush2.xpose.msra.mxu0 0.0
  %8156 = vmatprep.subr.mxu0 0.0
  %8157 = vmatpush2.xpose.msra.mxu0 0.0
  %8158 = vmatprep.subr.mxu0 0.0
  %8159 = vmatpush2.xpose.msra.mxu0 0.0
  %8160 = vmatprep.subr.mxu0 0.0
  %8161 = vmatpush2.xpose.msra.mxu0 0.0
  %8162 = vmatprep.subr.mxu0 0.0
  %8163 = vmatpush2.xpose.msra.mxu0 0.0
  %8164 = vmatprep.subr.mxu0 0.0
  %8165 = vmatpush2.xpose.msra.mxu0 0.0
  %8166 = vmatprep.subr.mxu0 0.0
  %8167 = vmatpush2.xpose.msra.mxu0 0.0
  %8168 = vmatprep.subr.mxu0 0.0
  %8169 = vmatpush2.xpose.msra.mxu0 0.0
  %8170 = vmatprep.subr.mxu0 0.0
  %8171 = vmatpush2.xpose.msra.mxu0 0.0
  %8172 = vmatprep.subr.mxu0 0.0
  %8173 = vmatpush2.xpose.msra.mxu0 0.0
  %8174 = vmatprep.subr.mxu0 0.0
  %8175 = vmatpush2.xpose.msra.mxu0 0.0
  %8176 = vmatprep.subr.mxu0 0.0
  %8177 = vmatpush2.xpose.msra.mxu0 0.0
  %8178 = vmatprep.mubr.f32.mxu0 0.0
  %8179 = vmatmul.mubr.f32.gmra.mxu0 %v8097
  %v8180 = vpop.f32.mrf.mxu0
  %v8181 = vadd.f32 0.0, %v8180
  %v8182 = vpop.f32.mrf.mxu0
  %8183 = vmatprep.mubr.f32.mxu0 0.0
  %8184 = vmatmul.mubr.f32.gmra.mxu0 %v8100
  %v8185 = vpop.f32.mrf.mxu0
  %v8186 = vadd.f32 0.0, %v8185
  %v8187 = vpop.f32.mrf.mxu0
  %8188 = vmatprep.mubr.f32.mxu0 0.0
  %8189 = vmatmul.mubr.f32.gmra.mxu0 %v8103
  %v8190 = vpop.f32.mrf.mxu0
  %v8191 = vadd.f32 0.0, %v8190
  %v8192 = vpop.f32.mrf.mxu0
  %8193 = vdwg.mxu0
  %v8194 = vmul.f32 %v7495, 0.17677669
  %v8195 = vmul.f32 %v7500, 0.17677669
  %v8196 = vmul.f32 %v7505, 0.17677669
  %v8197 = vmul.f32 %v7593, 0.17677669
  %v8198 = vmul.f32 %v7598, 0.17677669
  %v8199 = vmul.f32 %v7603, 0.17677669
  %v8200 = vmul.f32 %v7691, 0.17677669
  %v8201 = vmul.f32 %v7696, 0.17677669
  %v8202 = vmul.f32 %v7701, 0.17677669
  %v8203 = vmul.f32 %v7789, 0.17677669
  %v8204 = vmul.f32 %v7794, 0.17677669
  %v8205 = vmul.f32 %v7799, 0.17677669
  %v8206 = vmul.f32 %v7887, 0.17677669
  %v8207 = vmul.f32 %v7892, 0.17677669
  %v8208 = vmul.f32 %v7897, 0.17677669
  %v8209 = vmul.f32 %v7985, 0.17677669
  %v8210 = vmul.f32 %v7990, 0.17677669
  %v8211 = vmul.f32 %v7995, 0.17677669
  %v8212 = vmul.f32 %v8083, 0.17677669
  %v8213 = vmul.f32 %v8088, 0.17677669
  %v8214 = vmul.f32 %v8093, 0.17677669
  %v8215 = vmul.f32 %v8181, 0.17677669
  %v8216 = vmul.f32 %v8186, 0.17677669
  %v8217 = vmul.f32 %v8191, 0.17677669
  %v8218 = vsel %vm2166, %v8194, -1e+30
  %v8219 = vsel %vm2166, %v8195, -1e+30
  %v8220 = vsel %vm2166, %v8196, -1e+30
  %v8221 = vsel %vm2166, %v8197, -1e+30
  %v8222 = vsel %vm2166, %v8198, -1e+30
  %v8223 = vsel %vm2166, %v8199, -1e+30
  %v8224 = vsel %vm2166, %v8200, -1e+30
  %v8225 = vsel %vm2166, %v8201, -1e+30
  %v8226 = vsel %vm2166, %v8202, -1e+30
  %v8227 = vsel %vm2166, %v8203, -1e+30
  %v8228 = vsel %vm2166, %v8204, -1e+30
  %v8229 = vsel %vm2166, %v8205, -1e+30
  %v8230 = vsel %vm2166, %v8206, -1e+30
  %v8231 = vsel %vm2166, %v8207, -1e+30
  %v8232 = vsel %vm2166, %v8208, -1e+30
  %v8233 = vsel %vm2166, %v8209, -1e+30
  %v8234 = vsel %vm2166, %v8210, -1e+30
  %v8235 = vsel %vm2166, %v8211, -1e+30
  %v8236 = vsel %vm2166, %v8212, -1e+30
  %v8237 = vsel %vm2166, %v8213, -1e+30
  %v8238 = vsel %vm2166, %v8214, -1e+30
  %v8239 = vsel %vm2166, %v8215, -1e+30
  %v8240 = vsel %vm2166, %v8216, -1e+30
  %v8241 = vsel %vm2166, %v8217, -1e+30
  %v8242 = vsel %vm2191, %v8218, -inf
  %8243 = vmax.xlane.f32.xlu0 %v8242
  %v8244 = vpop.xlane.xlu0 %8243
  %v8245 = vsel %vm2191, %v8219, -inf
  %8246 = vmax.xlane.f32.xlu0 %v8245
  %v8247 = vpop.xlane.xlu0 %8246
  %v8248 = vsel %vm2191, %v8220, -inf
  %8249 = vmax.xlane.f32.xlu0 %v8248
  %v8250 = vpop.xlane.xlu0 %8249
  %v8251 = vsel %vm2191, %v8221, -inf
  %8252 = vmax.xlane.f32.xlu0 %v8251
  %v8253 = vpop.xlane.xlu0 %8252
  %v8254 = vsel %vm2191, %v8222, -inf
  %8255 = vmax.xlane.f32.xlu0 %v8254
  %v8256 = vpop.xlane.xlu0 %8255
  %v8257 = vsel %vm2191, %v8223, -inf
  %8258 = vmax.xlane.f32.xlu0 %v8257
  %v8259 = vpop.xlane.xlu0 %8258
  %v8260 = vsel %vm2191, %v8224, -inf
  %8261 = vmax.xlane.f32.xlu0 %v8260
  %v8262 = vpop.xlane.xlu0 %8261
  %v8263 = vsel %vm2191, %v8225, -inf
  %8264 = vmax.xlane.f32.xlu0 %v8263
  %v8265 = vpop.xlane.xlu0 %8264
  %v8266 = vsel %vm2191, %v8226, -inf
  %8267 = vmax.xlane.f32.xlu0 %v8266
  %v8268 = vpop.xlane.xlu0 %8267
  %v8269 = vsel %vm2191, %v8227, -inf
  %8270 = vmax.xlane.f32.xlu0 %v8269
  %v8271 = vpop.xlane.xlu0 %8270
  %v8272 = vsel %vm2191, %v8228, -inf
  %8273 = vmax.xlane.f32.xlu0 %v8272
  %v8274 = vpop.xlane.xlu0 %8273
  %v8275 = vsel %vm2191, %v8229, -inf
  %8276 = vmax.xlane.f32.xlu0 %v8275
  %v8277 = vpop.xlane.xlu0 %8276
  %v8278 = vsel %vm2191, %v8230, -inf
  %8279 = vmax.xlane.f32.xlu0 %v8278
  %v8280 = vpop.xlane.xlu0 %8279
  %v8281 = vsel %vm2191, %v8231, -inf
  %8282 = vmax.xlane.f32.xlu0 %v8281
  %v8283 = vpop.xlane.xlu0 %8282
  %v8284 = vsel %vm2191, %v8232, -inf
  %8285 = vmax.xlane.f32.xlu0 %v8284
  %v8286 = vpop.xlane.xlu0 %8285
  %v8287 = vsel %vm2191, %v8233, -inf
  %8288 = vmax.xlane.f32.xlu0 %v8287
  %v8289 = vpop.xlane.xlu0 %8288
  %v8290 = vsel %vm2191, %v8234, -inf
  %8291 = vmax.xlane.f32.xlu0 %v8290
  %v8292 = vpop.xlane.xlu0 %8291
  %v8293 = vsel %vm2191, %v8235, -inf
  %8294 = vmax.xlane.f32.xlu0 %v8293
  %v8295 = vpop.xlane.xlu0 %8294
  %v8296 = vsel %vm2191, %v8236, -inf
  %8297 = vmax.xlane.f32.xlu0 %v8296
  %v8298 = vpop.xlane.xlu0 %8297
  %v8299 = vsel %vm2191, %v8237, -inf
  %8300 = vmax.xlane.f32.xlu0 %v8299
  %v8301 = vpop.xlane.xlu0 %8300
  %v8302 = vsel %vm2191, %v8238, -inf
  %8303 = vmax.xlane.f32.xlu0 %v8302
  %v8304 = vpop.xlane.xlu0 %8303
  %v8305 = vsel %vm2191, %v8239, -inf
  %8306 = vmax.xlane.f32.xlu0 %v8305
  %v8307 = vpop.xlane.xlu0 %8306
  %v8308 = vsel %vm2191, %v8240, -inf
  %8309 = vmax.xlane.f32.xlu0 %v8308
  %v8310 = vpop.xlane.xlu0 %8309
  %v8311 = vsel %vm2191, %v8241, -inf
  %8312 = vmax.xlane.f32.xlu0 %v8311
  %v8313 = vpop.xlane.xlu0 %8312
  %v8314 = vsub.f32 %v8218, %v8244
  %v8315 = vsub.f32 %v8219, %v8247
  %v8316 = vsub.f32 %v8220, %v8250
  %v8317 = vsub.f32 %v8221, %v8253
  %v8318 = vsub.f32 %v8222, %v8256
  %v8319 = vsub.f32 %v8223, %v8259
  %v8320 = vsub.f32 %v8224, %v8262
  %v8321 = vsub.f32 %v8225, %v8265
  %v8322 = vsub.f32 %v8226, %v8268
  %v8323 = vsub.f32 %v8227, %v8271
  %v8324 = vsub.f32 %v8228, %v8274
  %v8325 = vsub.f32 %v8229, %v8277
  %v8326 = vsub.f32 %v8230, %v8280
  %v8327 = vsub.f32 %v8231, %v8283
  %v8328 = vsub.f32 %v8232, %v8286
  %v8329 = vsub.f32 %v8233, %v8289
  %v8330 = vsub.f32 %v8234, %v8292
  %v8331 = vsub.f32 %v8235, %v8295
  %v8332 = vsub.f32 %v8236, %v8298
  %v8333 = vsub.f32 %v8237, %v8301
  %v8334 = vsub.f32 %v8238, %v8304
  %v8335 = vsub.f32 %v8239, %v8307
  %v8336 = vsub.f32 %v8240, %v8310
  %v8337 = vsub.f32 %v8241, %v8313
  %v8338 = vmul.f32 %v8314, 1.442695
  %v8339 = vpow.pop %v8338
  %v8340 = vmul.f32 %v8315, 1.442695
  %v8341 = vpow.pop %v8340
  %v8342 = vmul.f32 %v8316, 1.442695
  %v8343 = vpow.pop %v8342
  %v8344 = vmul.f32 %v8317, 1.442695
  %v8345 = vpow.pop %v8344
  %v8346 = vmul.f32 %v8318, 1.442695
  %v8347 = vpow.pop %v8346
  %v8348 = vmul.f32 %v8319, 1.442695
  %v8349 = vpow.pop %v8348
  %v8350 = vmul.f32 %v8320, 1.442695
  %v8351 = vpow.pop %v8350
  %v8352 = vmul.f32 %v8321, 1.442695
  %v8353 = vpow.pop %v8352
  %v8354 = vmul.f32 %v8322, 1.442695
  %v8355 = vpow.pop %v8354
  %v8356 = vmul.f32 %v8323, 1.442695
  %v8357 = vpow.pop %v8356
  %v8358 = vmul.f32 %v8324, 1.442695
  %v8359 = vpow.pop %v8358
  %v8360 = vmul.f32 %v8325, 1.442695
  %v8361 = vpow.pop %v8360
  %v8362 = vmul.f32 %v8326, 1.442695
  %v8363 = vpow.pop %v8362
  %v8364 = vmul.f32 %v8327, 1.442695
  %v8365 = vpow.pop %v8364
  %v8366 = vmul.f32 %v8328, 1.442695
  %v8367 = vpow.pop %v8366
  %v8368 = vmul.f32 %v8329, 1.442695
  %v8369 = vpow.pop %v8368
  %v8370 = vmul.f32 %v8330, 1.442695
  %v8371 = vpow.pop %v8370
  %v8372 = vmul.f32 %v8331, 1.442695
  %v8373 = vpow.pop %v8372
  %v8374 = vmul.f32 %v8332, 1.442695
  %v8375 = vpow.pop %v8374
  %v8376 = vmul.f32 %v8333, 1.442695
  %v8377 = vpow.pop %v8376
  %v8378 = vmul.f32 %v8334, 1.442695
  %v8379 = vpow.pop %v8378
  %v8380 = vmul.f32 %v8335, 1.442695
  %v8381 = vpow.pop %v8380
  %v8382 = vmul.f32 %v8336, 1.442695
  %v8383 = vpow.pop %v8382
  %v8384 = vmul.f32 %v8337, 1.442695
  %v8385 = vpow.pop %v8384
  %v8386 = vsel %vm2191, %v8339, 0.0
  %8387 = vadd.xlane.f32.xlu0 %v8386
  %v8388 = vpop.xlane.xlu0 %8387
  %v8389 = vsel %vm2191, %v8341, 0.0
  %8390 = vadd.xlane.f32.xlu0 %v8389
  %v8391 = vpop.xlane.xlu0 %8390
  %v8392 = vsel %vm2191, %v8343, 0.0
  %8393 = vadd.xlane.f32.xlu0 %v8392
  %v8394 = vpop.xlane.xlu0 %8393
  %v8395 = vsel %vm2191, %v8345, 0.0
  %8396 = vadd.xlane.f32.xlu0 %v8395
  %v8397 = vpop.xlane.xlu0 %8396
  %v8398 = vsel %vm2191, %v8347, 0.0
  %8399 = vadd.xlane.f32.xlu0 %v8398
  %v8400 = vpop.xlane.xlu0 %8399
  %v8401 = vsel %vm2191, %v8349, 0.0
  %8402 = vadd.xlane.f32.xlu0 %v8401
  %v8403 = vpop.xlane.xlu0 %8402
  %v8404 = vsel %vm2191, %v8351, 0.0
  %8405 = vadd.xlane.f32.xlu0 %v8404
  %v8406 = vpop.xlane.xlu0 %8405
  %v8407 = vsel %vm2191, %v8353, 0.0
  %8408 = vadd.xlane.f32.xlu0 %v8407
  %v8409 = vpop.xlane.xlu0 %8408
  %v8410 = vsel %vm2191, %v8355, 0.0
  %8411 = vadd.xlane.f32.xlu0 %v8410
  %v8412 = vpop.xlane.xlu0 %8411
  %v8413 = vsel %vm2191, %v8357, 0.0
  %8414 = vadd.xlane.f32.xlu0 %v8413
  %v8415 = vpop.xlane.xlu0 %8414
  %v8416 = vsel %vm2191, %v8359, 0.0
  %8417 = vadd.xlane.f32.xlu0 %v8416
  %v8418 = vpop.xlane.xlu0 %8417
  %v8419 = vsel %vm2191, %v8361, 0.0
  %8420 = vadd.xlane.f32.xlu0 %v8419
  %v8421 = vpop.xlane.xlu0 %8420
  %v8422 = vsel %vm2191, %v8363, 0.0
  %8423 = vadd.xlane.f32.xlu0 %v8422
  %v8424 = vpop.xlane.xlu0 %8423
  %v8425 = vsel %vm2191, %v8365, 0.0
  %8426 = vadd.xlane.f32.xlu0 %v8425
  %v8427 = vpop.xlane.xlu0 %8426
  %v8428 = vsel %vm2191, %v8367, 0.0
  %8429 = vadd.xlane.f32.xlu0 %v8428
  %v8430 = vpop.xlane.xlu0 %8429
  %v8431 = vsel %vm2191, %v8369, 0.0
  %8432 = vadd.xlane.f32.xlu0 %v8431
  %v8433 = vpop.xlane.xlu0 %8432
  %v8434 = vsel %vm2191, %v8371, 0.0
  %8435 = vadd.xlane.f32.xlu0 %v8434
  %v8436 = vpop.xlane.xlu0 %8435
  %v8437 = vsel %vm2191, %v8373, 0.0
  %8438 = vadd.xlane.f32.xlu0 %v8437
  %v8439 = vpop.xlane.xlu0 %8438
  %v8440 = vsel %vm2191, %v8375, 0.0
  %8441 = vadd.xlane.f32.xlu0 %v8440
  %v8442 = vpop.xlane.xlu0 %8441
  %v8443 = vsel %vm2191, %v8377, 0.0
  %8444 = vadd.xlane.f32.xlu0 %v8443
  %v8445 = vpop.xlane.xlu0 %8444
  %v8446 = vsel %vm2191, %v8379, 0.0
  %8447 = vadd.xlane.f32.xlu0 %v8446
  %v8448 = vpop.xlane.xlu0 %8447
  %v8449 = vsel %vm2191, %v8381, 0.0
  %8450 = vadd.xlane.f32.xlu0 %v8449
  %v8451 = vpop.xlane.xlu0 %8450
  %v8452 = vsel %vm2191, %v8383, 0.0
  %8453 = vadd.xlane.f32.xlu0 %v8452
  %v8454 = vpop.xlane.xlu0 %8453
  %v8455 = vsel %vm2191, %v8385, 0.0
  %8456 = vadd.xlane.f32.xlu0 %v8455
  %v8457 = vpop.xlane.xlu0 %8456
  %v8458 = vrcp.pop %v8388
  %v8459 = vrcp.pop %v8391
  %v8460 = vrcp.pop %v8394
  %v8461 = vrcp.pop %v8397
  %v8462 = vrcp.pop %v8400
  %v8463 = vrcp.pop %v8403
  %v8464 = vrcp.pop %v8406
  %v8465 = vrcp.pop %v8409
  %v8466 = vrcp.pop %v8412
  %v8467 = vrcp.pop %v8415
  %v8468 = vrcp.pop %v8418
  %v8469 = vrcp.pop %v8421
  %v8470 = vrcp.pop %v8424
  %v8471 = vrcp.pop %v8427
  %v8472 = vrcp.pop %v8430
  %v8473 = vrcp.pop %v8433
  %v8474 = vrcp.pop %v8436
  %v8475 = vrcp.pop %v8439
  %v8476 = vrcp.pop %v8442
  %v8477 = vrcp.pop %v8445
  %v8478 = vrcp.pop %v8448
  %v8479 = vrcp.pop %v8451
  %v8480 = vrcp.pop %v8454
  %v8481 = vrcp.pop %v8457
  %v8482 = vmul.f32 %v8339, %v8458
  %v8483 = vmul.f32 %v8341, %v8459
  %v8484 = vmul.f32 %v8343, %v8460
  %v8485 = vmul.f32 %v8345, %v8461
  %v8486 = vmul.f32 %v8347, %v8462
  %v8487 = vmul.f32 %v8349, %v8463
  %v8488 = vmul.f32 %v8351, %v8464
  %v8489 = vmul.f32 %v8353, %v8465
  %v8490 = vmul.f32 %v8355, %v8466
  %v8491 = vmul.f32 %v8357, %v8467
  %v8492 = vmul.f32 %v8359, %v8468
  %v8493 = vmul.f32 %v8361, %v8469
  %v8494 = vmul.f32 %v8363, %v8470
  %v8495 = vmul.f32 %v8365, %v8471
  %v8496 = vmul.f32 %v8367, %v8472
  %v8497 = vmul.f32 %v8369, %v8473
  %v8498 = vmul.f32 %v8371, %v8474
  %v8499 = vmul.f32 %v8373, %v8475
  %v8500 = vmul.f32 %v8375, %v8476
  %v8501 = vmul.f32 %v8377, %v8477
  %v8502 = vmul.f32 %v8379, %v8478
  %v8503 = vmul.f32 %v8381, %v8479
  %v8504 = vmul.f32 %v8383, %v8480
  %v8505 = vmul.f32 %v8385, %v8481
  %v8507 = vsel %vm2191, %v8482, 0
  %v8510 = vsel %vm2191, %v8483, 0
  %v8513 = vsel %vm2191, %v8484, 0
  %8515 = vmatprep.subr.mxu0 0.0
  %8516 = vmatpush1.msra.mxu0 0.0
  %8517 = vmatprep.subr.mxu0 0.0
  %8518 = vmatpush1.msra.mxu0 0.0
  %8519 = vmatprep.subr.mxu0 0.0
  %8520 = vmatpush1.msra.mxu0 0.0
  %8521 = vmatprep.subr.mxu0 0.0
  %8522 = vmatpush1.msra.mxu0 0.0
  %8523 = vmatprep.subr.mxu0 0.0
  %8524 = vmatpush1.msra.mxu0 0.0
  %8525 = vmatprep.subr.mxu0 0.0
  %8526 = vmatpush1.msra.mxu0 0.0
  %8527 = vmatprep.subr.mxu0 0.0
  %8528 = vmatpush1.msra.mxu0 0.0
  %8529 = vmatprep.subr.mxu0 0.0
  %8530 = vmatpush1.msra.mxu0 0.0
  %8531 = vmatprep.subr.mxu0 0.0
  %8532 = vmatpush1.msra.mxu0 0.0
  %8533 = vmatprep.subr.mxu0 0.0
  %8534 = vmatpush1.msra.mxu0 0.0
  %8535 = vmatprep.subr.mxu0 0.0
  %8536 = vmatpush1.msra.mxu0 0.0
  %8537 = vmatprep.subr.mxu0 0.0
  %8538 = vmatpush1.msra.mxu0 0.0
  %8539 = vmatprep.subr.mxu0 0.0
  %8540 = vmatpush1.msra.mxu0 0.0
  %8541 = vmatprep.subr.mxu0 0.0
  %8542 = vmatpush1.msra.mxu0 %v7302
  %8543 = vmatprep.subr.mxu0 0.0
  %8544 = vmatpush1.msra.mxu0 %v7297
  %8545 = vmatprep.subr.mxu0 0.0
  %8546 = vmatpush1.msra.mxu0 %v7292
  %8547 = vmatprep.subr.mxu0 0.0
  %8548 = vmatpush2.msra.mxu0 0.0
  %8549 = vmatprep.subr.mxu0 0.0
  %8550 = vmatpush2.msra.mxu0 0.0
  %8551 = vmatprep.subr.mxu0 0.0
  %8552 = vmatpush2.msra.mxu0 0.0
  %8553 = vmatprep.subr.mxu0 0.0
  %8554 = vmatpush2.msra.mxu0 0.0
  %8555 = vmatprep.subr.mxu0 0.0
  %8556 = vmatpush2.msra.mxu0 0.0
  %8557 = vmatprep.subr.mxu0 0.0
  %8558 = vmatpush2.msra.mxu0 0.0
  %8559 = vmatprep.subr.mxu0 0.0
  %8560 = vmatpush2.msra.mxu0 0.0
  %8561 = vmatprep.subr.mxu0 0.0
  %8562 = vmatpush2.msra.mxu0 0.0
  %8563 = vmatprep.subr.mxu0 0.0
  %8564 = vmatpush2.msra.mxu0 0.0
  %8565 = vmatprep.subr.mxu0 0.0
  %8566 = vmatpush2.msra.mxu0 0.0
  %8567 = vmatprep.subr.mxu0 0.0
  %8568 = vmatpush2.msra.mxu0 0.0
  %8569 = vmatprep.subr.mxu0 0.0
  %8570 = vmatpush2.msra.mxu0 0.0
  %8571 = vmatprep.subr.mxu0 0.0
  %8572 = vmatpush2.msra.mxu0 0.0
  %8573 = vmatprep.subr.mxu0 0.0
  %8574 = vmatpush2.msra.mxu0 0.0
  %8575 = vmatprep.subr.mxu0 0.0
  %8576 = vmatpush2.msra.mxu0 0.0
  %8577 = vmatprep.subr.mxu0 0.0
  %8578 = vmatpush2.msra.mxu0 0.0
  %8579 = vmatprep.mubr.f32.mxu0 0.0
  %8580 = vmatmul.mubr.f32.gmra.mxu0 %v8507
  %v8581 = vpop.f32.mrf.mxu0
  %v8582 = vadd.f32 0.0, %v8581
  %v8583 = vpop.f32.mrf.mxu0
  %8584 = vmatprep.mubr.f32.mxu0 0.0
  %8585 = vmatmul.mubr.f32.gmra.mxu0 %v8510
  %v8586 = vpop.f32.mrf.mxu0
  %v8587 = vadd.f32 0.0, %v8586
  %v8588 = vpop.f32.mrf.mxu0
  %8589 = vmatprep.mubr.f32.mxu0 0.0
  %8590 = vmatmul.mubr.f32.gmra.mxu0 %v8513
  %v8591 = vpop.f32.mrf.mxu0
  %v8592 = vadd.f32 0.0, %v8591
  %v8593 = vpop.f32.mrf.mxu0
  %8594 = vdwg.mxu0
  %v8596 = vsel %vm2191, %v8485, 0
  %v8599 = vsel %vm2191, %v8486, 0
  %v8602 = vsel %vm2191, %v8487, 0
  %8604 = vmatprep.subr.mxu0 0.0
  %8605 = vmatpush1.msra.mxu0 0.0
  %8606 = vmatprep.subr.mxu0 0.0
  %8607 = vmatpush1.msra.mxu0 0.0
  %8608 = vmatprep.subr.mxu0 0.0
  %8609 = vmatpush1.msra.mxu0 0.0
  %8610 = vmatprep.subr.mxu0 0.0
  %8611 = vmatpush1.msra.mxu0 0.0
  %8612 = vmatprep.subr.mxu0 0.0
  %8613 = vmatpush1.msra.mxu0 0.0
  %8614 = vmatprep.subr.mxu0 0.0
  %8615 = vmatpush1.msra.mxu0 0.0
  %8616 = vmatprep.subr.mxu0 0.0
  %8617 = vmatpush1.msra.mxu0 0.0
  %8618 = vmatprep.subr.mxu0 0.0
  %8619 = vmatpush1.msra.mxu0 0.0
  %8620 = vmatprep.subr.mxu0 0.0
  %8621 = vmatpush1.msra.mxu0 0.0
  %8622 = vmatprep.subr.mxu0 0.0
  %8623 = vmatpush1.msra.mxu0 0.0
  %8624 = vmatprep.subr.mxu0 0.0
  %8625 = vmatpush1.msra.mxu0 0.0
  %8626 = vmatprep.subr.mxu0 0.0
  %8627 = vmatpush1.msra.mxu0 0.0
  %8628 = vmatprep.subr.mxu0 0.0
  %8629 = vmatpush1.msra.mxu0 0.0
  %8630 = vmatprep.subr.mxu0 0.0
  %8631 = vmatpush1.msra.mxu0 %v7317
  %8632 = vmatprep.subr.mxu0 0.0
  %8633 = vmatpush1.msra.mxu0 %v7312
  %8634 = vmatprep.subr.mxu0 0.0
  %8635 = vmatpush1.msra.mxu0 %v7307
  %8636 = vmatprep.subr.mxu0 0.0
  %8637 = vmatpush2.msra.mxu0 0.0
  %8638 = vmatprep.subr.mxu0 0.0
  %8639 = vmatpush2.msra.mxu0 0.0
  %8640 = vmatprep.subr.mxu0 0.0
  %8641 = vmatpush2.msra.mxu0 0.0
  %8642 = vmatprep.subr.mxu0 0.0
  %8643 = vmatpush2.msra.mxu0 0.0
  %8644 = vmatprep.subr.mxu0 0.0
  %8645 = vmatpush2.msra.mxu0 0.0
  %8646 = vmatprep.subr.mxu0 0.0
  %8647 = vmatpush2.msra.mxu0 0.0
  %8648 = vmatprep.subr.mxu0 0.0
  %8649 = vmatpush2.msra.mxu0 0.0
  %8650 = vmatprep.subr.mxu0 0.0
  %8651 = vmatpush2.msra.mxu0 0.0
  %8652 = vmatprep.subr.mxu0 0.0
  %8653 = vmatpush2.msra.mxu0 0.0
  %8654 = vmatprep.subr.mxu0 0.0
  %8655 = vmatpush2.msra.mxu0 0.0
  %8656 = vmatprep.subr.mxu0 0.0
  %8657 = vmatpush2.msra.mxu0 0.0
  %8658 = vmatprep.subr.mxu0 0.0
  %8659 = vmatpush2.msra.mxu0 0.0
  %8660 = vmatprep.subr.mxu0 0.0
  %8661 = vmatpush2.msra.mxu0 0.0
  %8662 = vmatprep.subr.mxu0 0.0
  %8663 = vmatpush2.msra.mxu0 0.0
  %8664 = vmatprep.subr.mxu0 0.0
  %8665 = vmatpush2.msra.mxu0 0.0
  %8666 = vmatprep.subr.mxu0 0.0
  %8667 = vmatpush2.msra.mxu0 0.0
  %8668 = vmatprep.mubr.f32.mxu0 0.0
  %8669 = vmatmul.mubr.f32.gmra.mxu0 %v8596
  %v8670 = vpop.f32.mrf.mxu0
  %v8671 = vadd.f32 0.0, %v8670
  %v8672 = vpop.f32.mrf.mxu0
  %8673 = vmatprep.mubr.f32.mxu0 0.0
  %8674 = vmatmul.mubr.f32.gmra.mxu0 %v8599
  %v8675 = vpop.f32.mrf.mxu0
  %v8676 = vadd.f32 0.0, %v8675
  %v8677 = vpop.f32.mrf.mxu0
  %8678 = vmatprep.mubr.f32.mxu0 0.0
  %8679 = vmatmul.mubr.f32.gmra.mxu0 %v8602
  %v8680 = vpop.f32.mrf.mxu0
  %v8681 = vadd.f32 0.0, %v8680
  %v8682 = vpop.f32.mrf.mxu0
  %8683 = vdwg.mxu0
  %v8685 = vsel %vm2191, %v8488, 0
  %v8688 = vsel %vm2191, %v8489, 0
  %v8691 = vsel %vm2191, %v8490, 0
  %8693 = vmatprep.subr.mxu0 0.0
  %8694 = vmatpush1.msra.mxu0 0.0
  %8695 = vmatprep.subr.mxu0 0.0
  %8696 = vmatpush1.msra.mxu0 0.0
  %8697 = vmatprep.subr.mxu0 0.0
  %8698 = vmatpush1.msra.mxu0 0.0
  %8699 = vmatprep.subr.mxu0 0.0
  %8700 = vmatpush1.msra.mxu0 0.0
  %8701 = vmatprep.subr.mxu0 0.0
  %8702 = vmatpush1.msra.mxu0 0.0
  %8703 = vmatprep.subr.mxu0 0.0
  %8704 = vmatpush1.msra.mxu0 0.0
  %8705 = vmatprep.subr.mxu0 0.0
  %8706 = vmatpush1.msra.mxu0 0.0
  %8707 = vmatprep.subr.mxu0 0.0
  %8708 = vmatpush1.msra.mxu0 0.0
  %8709 = vmatprep.subr.mxu0 0.0
  %8710 = vmatpush1.msra.mxu0 0.0
  %8711 = vmatprep.subr.mxu0 0.0
  %8712 = vmatpush1.msra.mxu0 0.0
  %8713 = vmatprep.subr.mxu0 0.0
  %8714 = vmatpush1.msra.mxu0 0.0
  %8715 = vmatprep.subr.mxu0 0.0
  %8716 = vmatpush1.msra.mxu0 0.0
  %8717 = vmatprep.subr.mxu0 0.0
  %8718 = vmatpush1.msra.mxu0 0.0
  %8719 = vmatprep.subr.mxu0 0.0
  %8720 = vmatpush1.msra.mxu0 %v7332
  %8721 = vmatprep.subr.mxu0 0.0
  %8722 = vmatpush1.msra.mxu0 %v7327
  %8723 = vmatprep.subr.mxu0 0.0
  %8724 = vmatpush1.msra.mxu0 %v7322
  %8725 = vmatprep.subr.mxu0 0.0
  %8726 = vmatpush2.msra.mxu0 0.0
  %8727 = vmatprep.subr.mxu0 0.0
  %8728 = vmatpush2.msra.mxu0 0.0
  %8729 = vmatprep.subr.mxu0 0.0
  %8730 = vmatpush2.msra.mxu0 0.0
  %8731 = vmatprep.subr.mxu0 0.0
  %8732 = vmatpush2.msra.mxu0 0.0
  %8733 = vmatprep.subr.mxu0 0.0
  %8734 = vmatpush2.msra.mxu0 0.0
  %8735 = vmatprep.subr.mxu0 0.0
  %8736 = vmatpush2.msra.mxu0 0.0
  %8737 = vmatprep.subr.mxu0 0.0
  %8738 = vmatpush2.msra.mxu0 0.0
  %8739 = vmatprep.subr.mxu0 0.0
  %8740 = vmatpush2.msra.mxu0 0.0
  %8741 = vmatprep.subr.mxu0 0.0
  %8742 = vmatpush2.msra.mxu0 0.0
  %8743 = vmatprep.subr.mxu0 0.0
  %8744 = vmatpush2.msra.mxu0 0.0
  %8745 = vmatprep.subr.mxu0 0.0
  %8746 = vmatpush2.msra.mxu0 0.0
  %8747 = vmatprep.subr.mxu0 0.0
  %8748 = vmatpush2.msra.mxu0 0.0
  %8749 = vmatprep.subr.mxu0 0.0
  %8750 = vmatpush2.msra.mxu0 0.0
  %8751 = vmatprep.subr.mxu0 0.0
  %8752 = vmatpush2.msra.mxu0 0.0
  %8753 = vmatprep.subr.mxu0 0.0
  %8754 = vmatpush2.msra.mxu0 0.0
  %8755 = vmatprep.subr.mxu0 0.0
  %8756 = vmatpush2.msra.mxu0 0.0
  %8757 = vmatprep.mubr.f32.mxu0 0.0
  %8758 = vmatmul.mubr.f32.gmra.mxu0 %v8685
  %v8759 = vpop.f32.mrf.mxu0
  %v8760 = vadd.f32 0.0, %v8759
  %v8761 = vpop.f32.mrf.mxu0
  %8762 = vmatprep.mubr.f32.mxu0 0.0
  %8763 = vmatmul.mubr.f32.gmra.mxu0 %v8688
  %v8764 = vpop.f32.mrf.mxu0
  %v8765 = vadd.f32 0.0, %v8764
  %v8766 = vpop.f32.mrf.mxu0
  %8767 = vmatprep.mubr.f32.mxu0 0.0
  %8768 = vmatmul.mubr.f32.gmra.mxu0 %v8691
  %v8769 = vpop.f32.mrf.mxu0
  %v8770 = vadd.f32 0.0, %v8769
  %v8771 = vpop.f32.mrf.mxu0
  %8772 = vdwg.mxu0
  %v8774 = vsel %vm2191, %v8491, 0
  %v8777 = vsel %vm2191, %v8492, 0
  %v8780 = vsel %vm2191, %v8493, 0
  %8782 = vmatprep.subr.mxu0 0.0
  %8783 = vmatpush1.msra.mxu0 0.0
  %8784 = vmatprep.subr.mxu0 0.0
  %8785 = vmatpush1.msra.mxu0 0.0
  %8786 = vmatprep.subr.mxu0 0.0
  %8787 = vmatpush1.msra.mxu0 0.0
  %8788 = vmatprep.subr.mxu0 0.0
  %8789 = vmatpush1.msra.mxu0 0.0
  %8790 = vmatprep.subr.mxu0 0.0
  %8791 = vmatpush1.msra.mxu0 0.0
  %8792 = vmatprep.subr.mxu0 0.0
  %8793 = vmatpush1.msra.mxu0 0.0
  %8794 = vmatprep.subr.mxu0 0.0
  %8795 = vmatpush1.msra.mxu0 0.0
  %8796 = vmatprep.subr.mxu0 0.0
  %8797 = vmatpush1.msra.mxu0 0.0
  %8798 = vmatprep.subr.mxu0 0.0
  %8799 = vmatpush1.msra.mxu0 0.0
  %8800 = vmatprep.subr.mxu0 0.0
  %8801 = vmatpush1.msra.mxu0 0.0
  %8802 = vmatprep.subr.mxu0 0.0
  %8803 = vmatpush1.msra.mxu0 0.0
  %8804 = vmatprep.subr.mxu0 0.0
  %8805 = vmatpush1.msra.mxu0 0.0
  %8806 = vmatprep.subr.mxu0 0.0
  %8807 = vmatpush1.msra.mxu0 0.0
  %8808 = vmatprep.subr.mxu0 0.0
  %8809 = vmatpush1.msra.mxu0 %v7347
  %8810 = vmatprep.subr.mxu0 0.0
  %8811 = vmatpush1.msra.mxu0 %v7342
  %8812 = vmatprep.subr.mxu0 0.0
  %8813 = vmatpush1.msra.mxu0 %v7337
  %8814 = vmatprep.subr.mxu0 0.0
  %8815 = vmatpush2.msra.mxu0 0.0
  %8816 = vmatprep.subr.mxu0 0.0
  %8817 = vmatpush2.msra.mxu0 0.0
  %8818 = vmatprep.subr.mxu0 0.0
  %8819 = vmatpush2.msra.mxu0 0.0
  %8820 = vmatprep.subr.mxu0 0.0
  %8821 = vmatpush2.msra.mxu0 0.0
  %8822 = vmatprep.subr.mxu0 0.0
  %8823 = vmatpush2.msra.mxu0 0.0
  %8824 = vmatprep.subr.mxu0 0.0
  %8825 = vmatpush2.msra.mxu0 0.0
  %8826 = vmatprep.subr.mxu0 0.0
  %8827 = vmatpush2.msra.mxu0 0.0
  %8828 = vmatprep.subr.mxu0 0.0
  %8829 = vmatpush2.msra.mxu0 0.0
  %8830 = vmatprep.subr.mxu0 0.0
  %8831 = vmatpush2.msra.mxu0 0.0
  %8832 = vmatprep.subr.mxu0 0.0
  %8833 = vmatpush2.msra.mxu0 0.0
  %8834 = vmatprep.subr.mxu0 0.0
  %8835 = vmatpush2.msra.mxu0 0.0
  %8836 = vmatprep.subr.mxu0 0.0
  %8837 = vmatpush2.msra.mxu0 0.0
  %8838 = vmatprep.subr.mxu0 0.0
  %8839 = vmatpush2.msra.mxu0 0.0
  %8840 = vmatprep.subr.mxu0 0.0
  %8841 = vmatpush2.msra.mxu0 0.0
  %8842 = vmatprep.subr.mxu0 0.0
  %8843 = vmatpush2.msra.mxu0 0.0
  %8844 = vmatprep.subr.mxu0 0.0
  %8845 = vmatpush2.msra.mxu0 0.0
  %8846 = vmatprep.mubr.f32.mxu0 0.0
  %8847 = vmatmul.mubr.f32.gmra.mxu0 %v8774
  %v8848 = vpop.f32.mrf.mxu0
  %v8849 = vadd.f32 0.0, %v8848
  %v8850 = vpop.f32.mrf.mxu0
  %8851 = vmatprep.mubr.f32.mxu0 0.0
  %8852 = vmatmul.mubr.f32.gmra.mxu0 %v8777
  %v8853 = vpop.f32.mrf.mxu0
  %v8854 = vadd.f32 0.0, %v8853
  %v8855 = vpop.f32.mrf.mxu0
  %8856 = vmatprep.mubr.f32.mxu0 0.0
  %8857 = vmatmul.mubr.f32.gmra.mxu0 %v8780
  %v8858 = vpop.f32.mrf.mxu0
  %v8859 = vadd.f32 0.0, %v8858
  %v8860 = vpop.f32.mrf.mxu0
  %8861 = vdwg.mxu0
  %v8863 = vsel %vm2191, %v8494, 0
  %v8866 = vsel %vm2191, %v8495, 0
  %v8869 = vsel %vm2191, %v8496, 0
  %8871 = vmatprep.subr.mxu0 0.0
  %8872 = vmatpush1.msra.mxu0 0.0
  %8873 = vmatprep.subr.mxu0 0.0
  %8874 = vmatpush1.msra.mxu0 0.0
  %8875 = vmatprep.subr.mxu0 0.0
  %8876 = vmatpush1.msra.mxu0 0.0
  %8877 = vmatprep.subr.mxu0 0.0
  %8878 = vmatpush1.msra.mxu0 0.0
  %8879 = vmatprep.subr.mxu0 0.0
  %8880 = vmatpush1.msra.mxu0 0.0
  %8881 = vmatprep.subr.mxu0 0.0
  %8882 = vmatpush1.msra.mxu0 0.0
  %8883 = vmatprep.subr.mxu0 0.0
  %8884 = vmatpush1.msra.mxu0 0.0
  %8885 = vmatprep.subr.mxu0 0.0
  %8886 = vmatpush1.msra.mxu0 0.0
  %8887 = vmatprep.subr.mxu0 0.0
  %8888 = vmatpush1.msra.mxu0 0.0
  %8889 = vmatprep.subr.mxu0 0.0
  %8890 = vmatpush1.msra.mxu0 0.0
  %8891 = vmatprep.subr.mxu0 0.0
  %8892 = vmatpush1.msra.mxu0 0.0
  %8893 = vmatprep.subr.mxu0 0.0
  %8894 = vmatpush1.msra.mxu0 0.0
  %8895 = vmatprep.subr.mxu0 0.0
  %8896 = vmatpush1.msra.mxu0 0.0
  %8897 = vmatprep.subr.mxu0 0.0
  %8898 = vmatpush1.msra.mxu0 %v7362
  %8899 = vmatprep.subr.mxu0 0.0
  %8900 = vmatpush1.msra.mxu0 %v7357
  %8901 = vmatprep.subr.mxu0 0.0
  %8902 = vmatpush1.msra.mxu0 %v7352
  %8903 = vmatprep.subr.mxu0 0.0
  %8904 = vmatpush2.msra.mxu0 0.0
  %8905 = vmatprep.subr.mxu0 0.0
  %8906 = vmatpush2.msra.mxu0 0.0
  %8907 = vmatprep.subr.mxu0 0.0
  %8908 = vmatpush2.msra.mxu0 0.0
  %8909 = vmatprep.subr.mxu0 0.0
  %8910 = vmatpush2.msra.mxu0 0.0
  %8911 = vmatprep.subr.mxu0 0.0
  %8912 = vmatpush2.msra.mxu0 0.0
  %8913 = vmatprep.subr.mxu0 0.0
  %8914 = vmatpush2.msra.mxu0 0.0
  %8915 = vmatprep.subr.mxu0 0.0
  %8916 = vmatpush2.msra.mxu0 0.0
  %8917 = vmatprep.subr.mxu0 0.0
  %8918 = vmatpush2.msra.mxu0 0.0
  %8919 = vmatprep.subr.mxu0 0.0
  %8920 = vmatpush2.msra.mxu0 0.0
  %8921 = vmatprep.subr.mxu0 0.0
  %8922 = vmatpush2.msra.mxu0 0.0
  %8923 = vmatprep.subr.mxu0 0.0
  %8924 = vmatpush2.msra.mxu0 0.0
  %8925 = vmatprep.subr.mxu0 0.0
  %8926 = vmatpush2.msra.mxu0 0.0
  %8927 = vmatprep.subr.mxu0 0.0
  %8928 = vmatpush2.msra.mxu0 0.0
  %8929 = vmatprep.subr.mxu0 0.0
  %8930 = vmatpush2.msra.mxu0 0.0
  %8931 = vmatprep.subr.mxu0 0.0
  %8932 = vmatpush2.msra.mxu0 0.0
  %8933 = vmatprep.subr.mxu0 0.0
  %8934 = vmatpush2.msra.mxu0 0.0
  %8935 = vmatprep.mubr.f32.mxu0 0.0
  %8936 = vmatmul.mubr.f32.gmra.mxu0 %v8863
  %v8937 = vpop.f32.mrf.mxu0
  %v8938 = vadd.f32 0.0, %v8937
  %v8939 = vpop.f32.mrf.mxu0
  %8940 = vmatprep.mubr.f32.mxu0 0.0
  %8941 = vmatmul.mubr.f32.gmra.mxu0 %v8866
  %v8942 = vpop.f32.mrf.mxu0
  %v8943 = vadd.f32 0.0, %v8942
  %v8944 = vpop.f32.mrf.mxu0
  %8945 = vmatprep.mubr.f32.mxu0 0.0
  %8946 = vmatmul.mubr.f32.gmra.mxu0 %v8869
  %v8947 = vpop.f32.mrf.mxu0
  %v8948 = vadd.f32 0.0, %v8947
  %v8949 = vpop.f32.mrf.mxu0
  %8950 = vdwg.mxu0
  %v8952 = vsel %vm2191, %v8497, 0
  %v8955 = vsel %vm2191, %v8498, 0
  %v8958 = vsel %vm2191, %v8499, 0
  %8960 = vmatprep.subr.mxu0 0.0
  %8961 = vmatpush1.msra.mxu0 0.0
  %8962 = vmatprep.subr.mxu0 0.0
  %8963 = vmatpush1.msra.mxu0 0.0
  %8964 = vmatprep.subr.mxu0 0.0
  %8965 = vmatpush1.msra.mxu0 0.0
  %8966 = vmatprep.subr.mxu0 0.0
  %8967 = vmatpush1.msra.mxu0 0.0
  %8968 = vmatprep.subr.mxu0 0.0
  %8969 = vmatpush1.msra.mxu0 0.0
  %8970 = vmatprep.subr.mxu0 0.0
  %8971 = vmatpush1.msra.mxu0 0.0
  %8972 = vmatprep.subr.mxu0 0.0
  %8973 = vmatpush1.msra.mxu0 0.0
  %8974 = vmatprep.subr.mxu0 0.0
  %8975 = vmatpush1.msra.mxu0 0.0
  %8976 = vmatprep.subr.mxu0 0.0
  %8977 = vmatpush1.msra.mxu0 0.0
  %8978 = vmatprep.subr.mxu0 0.0
  %8979 = vmatpush1.msra.mxu0 0.0
  %8980 = vmatprep.subr.mxu0 0.0
  %8981 = vmatpush1.msra.mxu0 0.0
  %8982 = vmatprep.subr.mxu0 0.0
  %8983 = vmatpush1.msra.mxu0 0.0
  %8984 = vmatprep.subr.mxu0 0.0
  %8985 = vmatpush1.msra.mxu0 0.0
  %8986 = vmatprep.subr.mxu0 0.0
  %8987 = vmatpush1.msra.mxu0 %v7377
  %8988 = vmatprep.subr.mxu0 0.0
  %8989 = vmatpush1.msra.mxu0 %v7372
  %8990 = vmatprep.subr.mxu0 0.0
  %8991 = vmatpush1.msra.mxu0 %v7367
  %8992 = vmatprep.subr.mxu0 0.0
  %8993 = vmatpush2.msra.mxu0 0.0
  %8994 = vmatprep.subr.mxu0 0.0
  %8995 = vmatpush2.msra.mxu0 0.0
  %8996 = vmatprep.subr.mxu0 0.0
  %8997 = vmatpush2.msra.mxu0 0.0
  %8998 = vmatprep.subr.mxu0 0.0
  %8999 = vmatpush2.msra.mxu0 0.0
  %9000 = vmatprep.subr.mxu0 0.0
  %9001 = vmatpush2.msra.mxu0 0.0
  %9002 = vmatprep.subr.mxu0 0.0
  %9003 = vmatpush2.msra.mxu0 0.0
  %9004 = vmatprep.subr.mxu0 0.0
  %9005 = vmatpush2.msra.mxu0 0.0
  %9006 = vmatprep.subr.mxu0 0.0
  %9007 = vmatpush2.msra.mxu0 0.0
  %9008 = vmatprep.subr.mxu0 0.0
  %9009 = vmatpush2.msra.mxu0 0.0
  %9010 = vmatprep.subr.mxu0 0.0
  %9011 = vmatpush2.msra.mxu0 0.0
  %9012 = vmatprep.subr.mxu0 0.0
  %9013 = vmatpush2.msra.mxu0 0.0
  %9014 = vmatprep.subr.mxu0 0.0
  %9015 = vmatpush2.msra.mxu0 0.0
  %9016 = vmatprep.subr.mxu0 0.0
  %9017 = vmatpush2.msra.mxu0 0.0
  %9018 = vmatprep.subr.mxu0 0.0
  %9019 = vmatpush2.msra.mxu0 0.0
  %9020 = vmatprep.subr.mxu0 0.0
  %9021 = vmatpush2.msra.mxu0 0.0
  %9022 = vmatprep.subr.mxu0 0.0
  %9023 = vmatpush2.msra.mxu0 0.0
  %9024 = vmatprep.mubr.f32.mxu0 0.0
  %9025 = vmatmul.mubr.f32.gmra.mxu0 %v8952
  %v9026 = vpop.f32.mrf.mxu0
  %v9027 = vadd.f32 0.0, %v9026
  %v9028 = vpop.f32.mrf.mxu0
  %9029 = vmatprep.mubr.f32.mxu0 0.0
  %9030 = vmatmul.mubr.f32.gmra.mxu0 %v8955
  %v9031 = vpop.f32.mrf.mxu0
  %v9032 = vadd.f32 0.0, %v9031
  %v9033 = vpop.f32.mrf.mxu0
  %9034 = vmatprep.mubr.f32.mxu0 0.0
  %9035 = vmatmul.mubr.f32.gmra.mxu0 %v8958
  %v9036 = vpop.f32.mrf.mxu0
  %v9037 = vadd.f32 0.0, %v9036
  %v9038 = vpop.f32.mrf.mxu0
  %9039 = vdwg.mxu0
  %v9041 = vsel %vm2191, %v8500, 0
  %v9044 = vsel %vm2191, %v8501, 0
  %v9047 = vsel %vm2191, %v8502, 0
  %9049 = vmatprep.subr.mxu0 0.0
  %9050 = vmatpush1.msra.mxu0 0.0
  %9051 = vmatprep.subr.mxu0 0.0
  %9052 = vmatpush1.msra.mxu0 0.0
  %9053 = vmatprep.subr.mxu0 0.0
  %9054 = vmatpush1.msra.mxu0 0.0
  %9055 = vmatprep.subr.mxu0 0.0
  %9056 = vmatpush1.msra.mxu0 0.0
  %9057 = vmatprep.subr.mxu0 0.0
  %9058 = vmatpush1.msra.mxu0 0.0
  %9059 = vmatprep.subr.mxu0 0.0
  %9060 = vmatpush1.msra.mxu0 0.0
  %9061 = vmatprep.subr.mxu0 0.0
  %9062 = vmatpush1.msra.mxu0 0.0
  %9063 = vmatprep.subr.mxu0 0.0
  %9064 = vmatpush1.msra.mxu0 0.0
  %9065 = vmatprep.subr.mxu0 0.0
  %9066 = vmatpush1.msra.mxu0 0.0
  %9067 = vmatprep.subr.mxu0 0.0
  %9068 = vmatpush1.msra.mxu0 0.0
  %9069 = vmatprep.subr.mxu0 0.0
  %9070 = vmatpush1.msra.mxu0 0.0
  %9071 = vmatprep.subr.mxu0 0.0
  %9072 = vmatpush1.msra.mxu0 0.0
  %9073 = vmatprep.subr.mxu0 0.0
  %9074 = vmatpush1.msra.mxu0 0.0
  %9075 = vmatprep.subr.mxu0 0.0
  %9076 = vmatpush1.msra.mxu0 %v7392
  %9077 = vmatprep.subr.mxu0 0.0
  %9078 = vmatpush1.msra.mxu0 %v7387
  %9079 = vmatprep.subr.mxu0 0.0
  %9080 = vmatpush1.msra.mxu0 %v7382
  %9081 = vmatprep.subr.mxu0 0.0
  %9082 = vmatpush2.msra.mxu0 0.0
  %9083 = vmatprep.subr.mxu0 0.0
  %9084 = vmatpush2.msra.mxu0 0.0
  %9085 = vmatprep.subr.mxu0 0.0
  %9086 = vmatpush2.msra.mxu0 0.0
  %9087 = vmatprep.subr.mxu0 0.0
  %9088 = vmatpush2.msra.mxu0 0.0
  %9089 = vmatprep.subr.mxu0 0.0
  %9090 = vmatpush2.msra.mxu0 0.0
  %9091 = vmatprep.subr.mxu0 0.0
  %9092 = vmatpush2.msra.mxu0 0.0
  %9093 = vmatprep.subr.mxu0 0.0
  %9094 = vmatpush2.msra.mxu0 0.0
  %9095 = vmatprep.subr.mxu0 0.0
  %9096 = vmatpush2.msra.mxu0 0.0
  %9097 = vmatprep.subr.mxu0 0.0
  %9098 = vmatpush2.msra.mxu0 0.0
  %9099 = vmatprep.subr.mxu0 0.0
  %9100 = vmatpush2.msra.mxu0 0.0
  %9101 = vmatprep.subr.mxu0 0.0
  %9102 = vmatpush2.msra.mxu0 0.0
  %9103 = vmatprep.subr.mxu0 0.0
  %9104 = vmatpush2.msra.mxu0 0.0
  %9105 = vmatprep.subr.mxu0 0.0
  %9106 = vmatpush2.msra.mxu0 0.0
  %9107 = vmatprep.subr.mxu0 0.0
  %9108 = vmatpush2.msra.mxu0 0.0
  %9109 = vmatprep.subr.mxu0 0.0
  %9110 = vmatpush2.msra.mxu0 0.0
  %9111 = vmatprep.subr.mxu0 0.0
  %9112 = vmatpush2.msra.mxu0 0.0
  %9113 = vmatprep.mubr.f32.mxu0 0.0
  %9114 = vmatmul.mubr.f32.gmra.mxu0 %v9041
  %v9115 = vpop.f32.mrf.mxu0
  %v9116 = vadd.f32 0.0, %v9115
  %v9117 = vpop.f32.mrf.mxu0
  %9118 = vmatprep.mubr.f32.mxu0 0.0
  %9119 = vmatmul.mubr.f32.gmra.mxu0 %v9044
  %v9120 = vpop.f32.mrf.mxu0
  %v9121 = vadd.f32 0.0, %v9120
  %v9122 = vpop.f32.mrf.mxu0
  %9123 = vmatprep.mubr.f32.mxu0 0.0
  %9124 = vmatmul.mubr.f32.gmra.mxu0 %v9047
  %v9125 = vpop.f32.mrf.mxu0
  %v9126 = vadd.f32 0.0, %v9125
  %v9127 = vpop.f32.mrf.mxu0
  %9128 = vdwg.mxu0
  %v9130 = vsel %vm2191, %v8503, 0
  %v9133 = vsel %vm2191, %v8504, 0
  %v9136 = vsel %vm2191, %v8505, 0
  %9138 = vmatprep.subr.mxu0 0.0
  %9139 = vmatpush1.msra.mxu0 0.0
  %9140 = vmatprep.subr.mxu0 0.0
  %9141 = vmatpush1.msra.mxu0 0.0
  %9142 = vmatprep.subr.mxu0 0.0
  %9143 = vmatpush1.msra.mxu0 0.0
  %9144 = vmatprep.subr.mxu0 0.0
  %9145 = vmatpush1.msra.mxu0 0.0
  %9146 = vmatprep.subr.mxu0 0.0
  %9147 = vmatpush1.msra.mxu0 0.0
  %9148 = vmatprep.subr.mxu0 0.0
  %9149 = vmatpush1.msra.mxu0 0.0
  %9150 = vmatprep.subr.mxu0 0.0
  %9151 = vmatpush1.msra.mxu0 0.0
  %9152 = vmatprep.subr.mxu0 0.0
  %9153 = vmatpush1.msra.mxu0 0.0
  %9154 = vmatprep.subr.mxu0 0.0
  %9155 = vmatpush1.msra.mxu0 0.0
  %9156 = vmatprep.subr.mxu0 0.0
  %9157 = vmatpush1.msra.mxu0 0.0
  %9158 = vmatprep.subr.mxu0 0.0
  %9159 = vmatpush1.msra.mxu0 0.0
  %9160 = vmatprep.subr.mxu0 0.0
  %9161 = vmatpush1.msra.mxu0 0.0
  %9162 = vmatprep.subr.mxu0 0.0
  %9163 = vmatpush1.msra.mxu0 0.0
  %9164 = vmatprep.subr.mxu0 0.0
  %9165 = vmatpush1.msra.mxu0 %v7407
  %9166 = vmatprep.subr.mxu0 0.0
  %9167 = vmatpush1.msra.mxu0 %v7402
  %9168 = vmatprep.subr.mxu0 0.0
  %9169 = vmatpush1.msra.mxu0 %v7397
  %9170 = vmatprep.subr.mxu0 0.0
  %9171 = vmatpush2.msra.mxu0 0.0
  %9172 = vmatprep.subr.mxu0 0.0
  %9173 = vmatpush2.msra.mxu0 0.0
  %9174 = vmatprep.subr.mxu0 0.0
  %9175 = vmatpush2.msra.mxu0 0.0
  %9176 = vmatprep.subr.mxu0 0.0
  %9177 = vmatpush2.msra.mxu0 0.0
  %9178 = vmatprep.subr.mxu0 0.0
  %9179 = vmatpush2.msra.mxu0 0.0
  %9180 = vmatprep.subr.mxu0 0.0
  %9181 = vmatpush2.msra.mxu0 0.0
  %9182 = vmatprep.subr.mxu0 0.0
  %9183 = vmatpush2.msra.mxu0 0.0
  %9184 = vmatprep.subr.mxu0 0.0
  %9185 = vmatpush2.msra.mxu0 0.0
  %9186 = vmatprep.subr.mxu0 0.0
  %9187 = vmatpush2.msra.mxu0 0.0
  %9188 = vmatprep.subr.mxu0 0.0
  %9189 = vmatpush2.msra.mxu0 0.0
  %9190 = vmatprep.subr.mxu0 0.0
  %9191 = vmatpush2.msra.mxu0 0.0
  %9192 = vmatprep.subr.mxu0 0.0
  %9193 = vmatpush2.msra.mxu0 0.0
  %9194 = vmatprep.subr.mxu0 0.0
  %9195 = vmatpush2.msra.mxu0 0.0
  %9196 = vmatprep.subr.mxu0 0.0
  %9197 = vmatpush2.msra.mxu0 0.0
  %9198 = vmatprep.subr.mxu0 0.0
  %9199 = vmatpush2.msra.mxu0 0.0
  %9200 = vmatprep.subr.mxu0 0.0
  %9201 = vmatpush2.msra.mxu0 0.0
  %9202 = vmatprep.mubr.f32.mxu0 0.0
  %9203 = vmatmul.mubr.f32.gmra.mxu0 %v9130
  %v9204 = vpop.f32.mrf.mxu0
  %v9205 = vadd.f32 0.0, %v9204
  %v9206 = vpop.f32.mrf.mxu0
  %9207 = vmatprep.mubr.f32.mxu0 0.0
  %9208 = vmatmul.mubr.f32.gmra.mxu0 %v9133
  %v9209 = vpop.f32.mrf.mxu0
  %v9210 = vadd.f32 0.0, %v9209
  %v9211 = vpop.f32.mrf.mxu0
  %9212 = vmatprep.mubr.f32.mxu0 0.0
  %9213 = vmatmul.mubr.f32.gmra.mxu0 %v9136
  %v9214 = vpop.f32.mrf.mxu0
  %v9215 = vadd.f32 0.0, %v9214
  %v9216 = vpop.f32.mrf.mxu0
  %9217 = vdwg.mxu0
  %s9218 = scalar_lea.vmem %s6, 96
  %v9219 = vld [vmem:[%s9218] sm:$0xff]
  %v9220 = vld [vmem:[%s9218 + $0x8] sm:$0xff]
  %v9221 = vld [vmem:[%s9218 + $0x10] sm:$0xff]
  %v9222 = vld [vmem:[%s9218 + $0x18] sm:$0xff]
  %9223 = vmatprep.subr.mxu0 0.0
  %9224 = vmatpush1.msra.mxu0 0.0
  %9225 = vmatprep.subr.mxu0 0.0
  %9226 = vmatpush1.msra.mxu0 0.0
  %9227 = vmatprep.subr.mxu0 0.0
  %9228 = vmatpush1.msra.mxu0 0.0
  %9229 = vmatprep.subr.mxu0 0.0
  %9230 = vmatpush1.msra.mxu0 0.0
  %9231 = vmatprep.subr.mxu0 0.0
  %9232 = vmatpush1.msra.mxu0 0.0
  %9233 = vmatprep.subr.mxu0 0.0
  %9234 = vmatpush1.msra.mxu0 0.0
  %9235 = vmatprep.subr.mxu0 0.0
  %9236 = vmatpush1.msra.mxu0 0.0
  %9237 = vmatprep.subr.mxu0 0.0
  %9238 = vmatpush1.msra.mxu0 0.0
  %9239 = vmatprep.subr.mxu0 0.0
  %9240 = vmatpush1.msra.mxu0 0.0
  %9241 = vmatprep.subr.mxu0 0.0
  %9242 = vmatpush1.msra.mxu0 0.0
  %9243 = vmatprep.subr.mxu0 0.0
  %9244 = vmatpush1.msra.mxu0 0.0
  %9245 = vmatprep.subr.mxu0 0.0
  %9246 = vmatpush1.msra.mxu0 0.0
  %9247 = vmatprep.subr.mxu0 0.0
  %9248 = vmatpush1.msra.mxu0 %v9222
  %9249 = vmatprep.subr.mxu0 0.0
  %9250 = vmatpush1.msra.mxu0 %v9221
  %9251 = vmatprep.subr.mxu0 0.0
  %9252 = vmatpush1.msra.mxu0 %v9220
  %9253 = vmatprep.subr.mxu0 0.0
  %9254 = vmatpush1.msra.mxu0 %v9219
  %9255 = vmatprep.subr.mxu0 0.0
  %9256 = vmatpush2.msra.mxu0 0.0
  %9257 = vmatprep.subr.mxu0 0.0
  %9258 = vmatpush2.msra.mxu0 0.0
  %9259 = vmatprep.subr.mxu0 0.0
  %9260 = vmatpush2.msra.mxu0 0.0
  %9261 = vmatprep.subr.mxu0 0.0
  %9262 = vmatpush2.msra.mxu0 0.0
  %9263 = vmatprep.subr.mxu0 0.0
  %9264 = vmatpush2.msra.mxu0 0.0
  %9265 = vmatprep.subr.mxu0 0.0
  %9266 = vmatpush2.msra.mxu0 0.0
  %9267 = vmatprep.subr.mxu0 0.0
  %9268 = vmatpush2.msra.mxu0 0.0
  %9269 = vmatprep.subr.mxu0 0.0
  %9270 = vmatpush2.msra.mxu0 0.0
  %9271 = vmatprep.subr.mxu0 0.0
  %9272 = vmatpush2.msra.mxu0 0.0
  %9273 = vmatprep.subr.mxu0 0.0
  %9274 = vmatpush2.msra.mxu0 0.0
  %9275 = vmatprep.subr.mxu0 0.0
  %9276 = vmatpush2.msra.mxu0 0.0
  %9277 = vmatprep.subr.mxu0 0.0
  %9278 = vmatpush2.msra.mxu0 0.0
  %9279 = vmatprep.subr.mxu0 0.0
  %9280 = vmatpush2.msra.mxu0 0.0
  %9281 = vmatprep.subr.mxu0 0.0
  %9282 = vmatpush2.msra.mxu0 0.0
  %9283 = vmatprep.subr.mxu0 0.0
  %9284 = vmatpush2.msra.mxu0 0.0
  %9285 = vmatprep.subr.mxu0 0.0
  %9286 = vmatpush2.msra.mxu0 0.0
  %9287 = vmatprep.mubr.f32.mxu0 0.0
  %9288 = vmatmul.mubr.f32.gmra.mxu0 %v6774
  %v9289 = vpop.f32.mrf.mxu0
  %v9290 = vadd.f32 0.0, %v9289
  %v9291 = vpop.f32.mrf.mxu0
  %9292 = vmatprep.mubr.f32.mxu0 0.0
  %9293 = vmatmul.mubr.f32.gmra.mxu0 %v6777
  %v9294 = vpop.f32.mrf.mxu0
  %v9295 = vadd.f32 0.0, %v9294
  %v9296 = vpop.f32.mrf.mxu0
  %9297 = vmatprep.mubr.f32.mxu0 0.0
  %9298 = vmatmul.mubr.f32.gmra.mxu0 %v6780
  %v9299 = vpop.f32.mrf.mxu0
  %v9300 = vadd.f32 0.0, %v9299
  %v9301 = vpop.f32.mrf.mxu0
  %9302 = vmatprep.mubr.f32.mxu0 0.0
  %9303 = vmatmul.mubr.f32.gmra.mxu0 %v6783
  %v9304 = vpop.f32.mrf.mxu0
  %v9305 = vadd.f32 0.0, %v9304
  %v9306 = vpop.f32.mrf.mxu0
  %9307 = vmatprep.mubr.f32.mxu0 0.0
  %9308 = vmatmul.mubr.f32.gmra.mxu0 %v6786
  %v9309 = vpop.f32.mrf.mxu0
  %v9310 = vadd.f32 0.0, %v9309
  %v9311 = vpop.f32.mrf.mxu0
  %9312 = vmatprep.mubr.f32.mxu0 0.0
  %9313 = vmatmul.mubr.f32.gmra.mxu0 %v6789
  %v9314 = vpop.f32.mrf.mxu0
  %v9315 = vadd.f32 0.0, %v9314
  %v9316 = vpop.f32.mrf.mxu0
  %9317 = vmatprep.mubr.f32.mxu0 0.0
  %9318 = vmatmul.mubr.f32.gmra.mxu0 %v6792
  %v9319 = vpop.f32.mrf.mxu0
  %v9320 = vadd.f32 0.0, %v9319
  %v9321 = vpop.f32.mrf.mxu0
  %9322 = vmatprep.mubr.f32.mxu0 0.0
  %9323 = vmatmul.mubr.f32.gmra.mxu0 %v6795
  %v9324 = vpop.f32.mrf.mxu0
  %v9325 = vadd.f32 0.0, %v9324
  %v9326 = vpop.f32.mrf.mxu0
  %9327 = vmatprep.mubr.f32.mxu0 0.0
  %9328 = vmatmul.mubr.f32.gmra.mxu0 %v6798
  %v9329 = vpop.f32.mrf.mxu0
  %v9330 = vadd.f32 0.0, %v9329
  %v9331 = vpop.f32.mrf.mxu0
  %9332 = vmatprep.mubr.f32.mxu0 0.0
  %9333 = vmatmul.mubr.f32.gmra.mxu0 %v6801
  %v9334 = vpop.f32.mrf.mxu0
  %v9335 = vadd.f32 0.0, %v9334
  %v9336 = vpop.f32.mrf.mxu0
  %9337 = vmatprep.mubr.f32.mxu0 0.0
  %9338 = vmatmul.mubr.f32.gmra.mxu0 %v6804
  %v9339 = vpop.f32.mrf.mxu0
  %v9340 = vadd.f32 0.0, %v9339
  %v9341 = vpop.f32.mrf.mxu0
  %9342 = vmatprep.mubr.f32.mxu0 0.0
  %9343 = vmatmul.mubr.f32.gmra.mxu0 %v6807
  %v9344 = vpop.f32.mrf.mxu0
  %v9345 = vadd.f32 0.0, %v9344
  %v9346 = vpop.f32.mrf.mxu0
  %9347 = vmatprep.mubr.f32.mxu0 0.0
  %9348 = vmatmul.mubr.f32.gmra.mxu0 %v6810
  %v9349 = vpop.f32.mrf.mxu0
  %v9350 = vadd.f32 0.0, %v9349
  %v9351 = vpop.f32.mrf.mxu0
  %9352 = vmatprep.mubr.f32.mxu0 0.0
  %9353 = vmatmul.mubr.f32.gmra.mxu0 %v6813
  %v9354 = vpop.f32.mrf.mxu0
  %v9355 = vadd.f32 0.0, %v9354
  %v9356 = vpop.f32.mrf.mxu0
  %9357 = vmatprep.mubr.f32.mxu0 0.0
  %9358 = vmatmul.mubr.f32.gmra.mxu0 %v6816
  %v9359 = vpop.f32.mrf.mxu0
  %v9360 = vadd.f32 0.0, %v9359
  %v9361 = vpop.f32.mrf.mxu0
  %9362 = vmatprep.mubr.f32.mxu0 0.0
  %9363 = vmatmul.mubr.f32.gmra.mxu0 %v6819
  %v9364 = vpop.f32.mrf.mxu0
  %v9365 = vadd.f32 0.0, %v9364
  %v9366 = vpop.f32.mrf.mxu0
  %9367 = vmatprep.mubr.f32.mxu0 0.0
  %9368 = vmatmul.mubr.f32.gmra.mxu0 %v6822
  %v9369 = vpop.f32.mrf.mxu0
  %v9370 = vadd.f32 0.0, %v9369
  %v9371 = vpop.f32.mrf.mxu0
  %9372 = vmatprep.mubr.f32.mxu0 0.0
  %9373 = vmatmul.mubr.f32.gmra.mxu0 %v6825
  %v9374 = vpop.f32.mrf.mxu0
  %v9375 = vadd.f32 0.0, %v9374
  %v9376 = vpop.f32.mrf.mxu0
  %9377 = vmatprep.mubr.f32.mxu0 0.0
  %9378 = vmatmul.mubr.f32.gmra.mxu0 %v6828
  %v9379 = vpop.f32.mrf.mxu0
  %v9380 = vadd.f32 0.0, %v9379
  %v9381 = vpop.f32.mrf.mxu0
  %9382 = vmatprep.mubr.f32.mxu0 0.0
  %9383 = vmatmul.mubr.f32.gmra.mxu0 %v6831
  %v9384 = vpop.f32.mrf.mxu0
  %v9385 = vadd.f32 0.0, %v9384
  %v9386 = vpop.f32.mrf.mxu0
  %9387 = vmatprep.mubr.f32.mxu0 0.0
  %9388 = vmatmul.mubr.f32.gmra.mxu0 %v6834
  %v9389 = vpop.f32.mrf.mxu0
  %v9390 = vadd.f32 0.0, %v9389
  %v9391 = vpop.f32.mrf.mxu0
  %9392 = vmatprep.mubr.f32.mxu0 0.0
  %9393 = vmatmul.mubr.f32.gmra.mxu0 %v6837
  %v9394 = vpop.f32.mrf.mxu0
  %v9395 = vadd.f32 0.0, %v9394
  %v9396 = vpop.f32.mrf.mxu0
  %9397 = vmatprep.mubr.f32.mxu0 0.0
  %9398 = vmatmul.mubr.f32.gmra.mxu0 %v6840
  %v9399 = vpop.f32.mrf.mxu0
  %v9400 = vadd.f32 0.0, %v9399
  %v9401 = vpop.f32.mrf.mxu0
  %9402 = vmatprep.mubr.f32.mxu0 0.0
  %9403 = vmatmul.mubr.f32.gmra.mxu0 %v6843
  %v9404 = vpop.f32.mrf.mxu0
  %v9405 = vadd.f32 0.0, %v9404
  %v9406 = vpop.f32.mrf.mxu0
  %9407 = vdwg.mxu0
  %s9408 = scalar_lea.vmem %s7, 96
  %v9409 = vld [vmem:[%s9408] sm:$0xff]
  %v9410 = vld [vmem:[%s9408 + $0x8] sm:$0xff]
  %v9411 = vld [vmem:[%s9408 + $0x10] sm:$0xff]
  %v9412 = vld [vmem:[%s9408 + $0x18] sm:$0xff]
  %9413 = vmatprep.subr.mxu0 0.0
  %9414 = vmatpush1.msra.mxu0 0.0
  %9415 = vmatprep.subr.mxu0 0.0
  %9416 = vmatpush1.msra.mxu0 0.0
  %9417 = vmatprep.subr.mxu0 0.0
  %9418 = vmatpush1.msra.mxu0 0.0
  %9419 = vmatprep.subr.mxu0 0.0
  %9420 = vmatpush1.msra.mxu0 0.0
  %9421 = vmatprep.subr.mxu0 0.0
  %9422 = vmatpush1.msra.mxu0 0.0
  %9423 = vmatprep.subr.mxu0 0.0
  %9424 = vmatpush1.msra.mxu0 0.0
  %9425 = vmatprep.subr.mxu0 0.0
  %9426 = vmatpush1.msra.mxu0 0.0
  %9427 = vmatprep.subr.mxu0 0.0
  %9428 = vmatpush1.msra.mxu0 0.0
  %9429 = vmatprep.subr.mxu0 0.0
  %9430 = vmatpush1.msra.mxu0 0.0
  %9431 = vmatprep.subr.mxu0 0.0
  %9432 = vmatpush1.msra.mxu0 0.0
  %9433 = vmatprep.subr.mxu0 0.0
  %9434 = vmatpush1.msra.mxu0 0.0
  %9435 = vmatprep.subr.mxu0 0.0
  %9436 = vmatpush1.msra.mxu0 0.0
  %9437 = vmatprep.subr.mxu0 0.0
  %9438 = vmatpush1.msra.mxu0 %v9412
  %9439 = vmatprep.subr.mxu0 0.0
  %9440 = vmatpush1.msra.mxu0 %v9411
  %9441 = vmatprep.subr.mxu0 0.0
  %9442 = vmatpush1.msra.mxu0 %v9410
  %9443 = vmatprep.subr.mxu0 0.0
  %9444 = vmatpush1.msra.mxu0 %v9409
  %9445 = vmatprep.subr.mxu0 0.0
  %9446 = vmatpush2.msra.mxu0 0.0
  %9447 = vmatprep.subr.mxu0 0.0
  %9448 = vmatpush2.msra.mxu0 0.0
  %9449 = vmatprep.subr.mxu0 0.0
  %9450 = vmatpush2.msra.mxu0 0.0
  %9451 = vmatprep.subr.mxu0 0.0
  %9452 = vmatpush2.msra.mxu0 0.0
  %9453 = vmatprep.subr.mxu0 0.0
  %9454 = vmatpush2.msra.mxu0 0.0
  %9455 = vmatprep.subr.mxu0 0.0
  %9456 = vmatpush2.msra.mxu0 0.0
  %9457 = vmatprep.subr.mxu0 0.0
  %9458 = vmatpush2.msra.mxu0 0.0
  %9459 = vmatprep.subr.mxu0 0.0
  %9460 = vmatpush2.msra.mxu0 0.0
  %9461 = vmatprep.subr.mxu0 0.0
  %9462 = vmatpush2.msra.mxu0 0.0
  %9463 = vmatprep.subr.mxu0 0.0
  %9464 = vmatpush2.msra.mxu0 0.0
  %9465 = vmatprep.subr.mxu0 0.0
  %9466 = vmatpush2.msra.mxu0 0.0
  %9467 = vmatprep.subr.mxu0 0.0
  %9468 = vmatpush2.msra.mxu0 0.0
  %9469 = vmatprep.subr.mxu0 0.0
  %9470 = vmatpush2.msra.mxu0 0.0
  %9471 = vmatprep.subr.mxu0 0.0
  %9472 = vmatpush2.msra.mxu0 0.0
  %9473 = vmatprep.subr.mxu0 0.0
  %9474 = vmatpush2.msra.mxu0 0.0
  %9475 = vmatprep.subr.mxu0 0.0
  %9476 = vmatpush2.msra.mxu0 0.0
  %9477 = vmatprep.mubr.f32.mxu0 0.0
  %9478 = vmatmul.mubr.f32.gmra.mxu0 %v6774
  %v9479 = vpop.f32.mrf.mxu0
  %v9480 = vadd.f32 0.0, %v9479
  %v9481 = vpop.f32.mrf.mxu0
  %9482 = vmatprep.mubr.f32.mxu0 0.0
  %9483 = vmatmul.mubr.f32.gmra.mxu0 %v6777
  %v9484 = vpop.f32.mrf.mxu0
  %v9485 = vadd.f32 0.0, %v9484
  %v9486 = vpop.f32.mrf.mxu0
  %9487 = vmatprep.mubr.f32.mxu0 0.0
  %9488 = vmatmul.mubr.f32.gmra.mxu0 %v6780
  %v9489 = vpop.f32.mrf.mxu0
  %v9490 = vadd.f32 0.0, %v9489
  %v9491 = vpop.f32.mrf.mxu0
  %9492 = vmatprep.mubr.f32.mxu0 0.0
  %9493 = vmatmul.mubr.f32.gmra.mxu0 %v6783
  %v9494 = vpop.f32.mrf.mxu0
  %v9495 = vadd.f32 0.0, %v9494
  %v9496 = vpop.f32.mrf.mxu0
  %9497 = vmatprep.mubr.f32.mxu0 0.0
  %9498 = vmatmul.mubr.f32.gmra.mxu0 %v6786
  %v9499 = vpop.f32.mrf.mxu0
  %v9500 = vadd.f32 0.0, %v9499
  %v9501 = vpop.f32.mrf.mxu0
  %9502 = vmatprep.mubr.f32.mxu0 0.0
  %9503 = vmatmul.mubr.f32.gmra.mxu0 %v6789
  %v9504 = vpop.f32.mrf.mxu0
  %v9505 = vadd.f32 0.0, %v9504
  %v9506 = vpop.f32.mrf.mxu0
  %9507 = vmatprep.mubr.f32.mxu0 0.0
  %9508 = vmatmul.mubr.f32.gmra.mxu0 %v6792
  %v9509 = vpop.f32.mrf.mxu0
  %v9510 = vadd.f32 0.0, %v9509
  %v9511 = vpop.f32.mrf.mxu0
  %9512 = vmatprep.mubr.f32.mxu0 0.0
  %9513 = vmatmul.mubr.f32.gmra.mxu0 %v6795
  %v9514 = vpop.f32.mrf.mxu0
  %v9515 = vadd.f32 0.0, %v9514
  %v9516 = vpop.f32.mrf.mxu0
  %9517 = vmatprep.mubr.f32.mxu0 0.0
  %9518 = vmatmul.mubr.f32.gmra.mxu0 %v6798
  %v9519 = vpop.f32.mrf.mxu0
  %v9520 = vadd.f32 0.0, %v9519
  %v9521 = vpop.f32.mrf.mxu0
  %9522 = vmatprep.mubr.f32.mxu0 0.0
  %9523 = vmatmul.mubr.f32.gmra.mxu0 %v6801
  %v9524 = vpop.f32.mrf.mxu0
  %v9525 = vadd.f32 0.0, %v9524
  %v9526 = vpop.f32.mrf.mxu0
  %9527 = vmatprep.mubr.f32.mxu0 0.0
  %9528 = vmatmul.mubr.f32.gmra.mxu0 %v6804
  %v9529 = vpop.f32.mrf.mxu0
  %v9530 = vadd.f32 0.0, %v9529
  %v9531 = vpop.f32.mrf.mxu0
  %9532 = vmatprep.mubr.f32.mxu0 0.0
  %9533 = vmatmul.mubr.f32.gmra.mxu0 %v6807
  %v9534 = vpop.f32.mrf.mxu0
  %v9535 = vadd.f32 0.0, %v9534
  %v9536 = vpop.f32.mrf.mxu0
  %9537 = vmatprep.mubr.f32.mxu0 0.0
  %9538 = vmatmul.mubr.f32.gmra.mxu0 %v6810
  %v9539 = vpop.f32.mrf.mxu0
  %v9540 = vadd.f32 0.0, %v9539
  %v9541 = vpop.f32.mrf.mxu0
  %9542 = vmatprep.mubr.f32.mxu0 0.0
  %9543 = vmatmul.mubr.f32.gmra.mxu0 %v6813
  %v9544 = vpop.f32.mrf.mxu0
  %v9545 = vadd.f32 0.0, %v9544
  %v9546 = vpop.f32.mrf.mxu0
  %9547 = vmatprep.mubr.f32.mxu0 0.0
  %9548 = vmatmul.mubr.f32.gmra.mxu0 %v6816
  %v9549 = vpop.f32.mrf.mxu0
  %v9550 = vadd.f32 0.0, %v9549
  %v9551 = vpop.f32.mrf.mxu0
  %9552 = vmatprep.mubr.f32.mxu0 0.0
  %9553 = vmatmul.mubr.f32.gmra.mxu0 %v6819
  %v9554 = vpop.f32.mrf.mxu0
  %v9555 = vadd.f32 0.0, %v9554
  %v9556 = vpop.f32.mrf.mxu0
  %9557 = vmatprep.mubr.f32.mxu0 0.0
  %9558 = vmatmul.mubr.f32.gmra.mxu0 %v6822
  %v9559 = vpop.f32.mrf.mxu0
  %v9560 = vadd.f32 0.0, %v9559
  %v9561 = vpop.f32.mrf.mxu0
  %9562 = vmatprep.mubr.f32.mxu0 0.0
  %9563 = vmatmul.mubr.f32.gmra.mxu0 %v6825
  %v9564 = vpop.f32.mrf.mxu0
  %v9565 = vadd.f32 0.0, %v9564
  %v9566 = vpop.f32.mrf.mxu0
  %9567 = vmatprep.mubr.f32.mxu0 0.0
  %9568 = vmatmul.mubr.f32.gmra.mxu0 %v6828
  %v9569 = vpop.f32.mrf.mxu0
  %v9570 = vadd.f32 0.0, %v9569
  %v9571 = vpop.f32.mrf.mxu0
  %9572 = vmatprep.mubr.f32.mxu0 0.0
  %9573 = vmatmul.mubr.f32.gmra.mxu0 %v6831
  %v9574 = vpop.f32.mrf.mxu0
  %v9575 = vadd.f32 0.0, %v9574
  %v9576 = vpop.f32.mrf.mxu0
  %9577 = vmatprep.mubr.f32.mxu0 0.0
  %9578 = vmatmul.mubr.f32.gmra.mxu0 %v6834
  %v9579 = vpop.f32.mrf.mxu0
  %v9580 = vadd.f32 0.0, %v9579
  %v9581 = vpop.f32.mrf.mxu0
  %9582 = vmatprep.mubr.f32.mxu0 0.0
  %9583 = vmatmul.mubr.f32.gmra.mxu0 %v6837
  %v9584 = vpop.f32.mrf.mxu0
  %v9585 = vadd.f32 0.0, %v9584
  %v9586 = vpop.f32.mrf.mxu0
  %9587 = vmatprep.mubr.f32.mxu0 0.0
  %9588 = vmatmul.mubr.f32.gmra.mxu0 %v6840
  %v9589 = vpop.f32.mrf.mxu0
  %v9590 = vadd.f32 0.0, %v9589
  %v9591 = vpop.f32.mrf.mxu0
  %9592 = vmatprep.mubr.f32.mxu0 0.0
  %9593 = vmatmul.mubr.f32.gmra.mxu0 %v6843
  %v9594 = vpop.f32.mrf.mxu0
  %v9595 = vadd.f32 0.0, %v9594
  %v9596 = vpop.f32.mrf.mxu0
  %9597 = vdwg.mxu0
  %s9598 = scalar_lea.vmem %s8, 96
  %v9599 = vld [vmem:[%s9598] sm:$0xff]
  %v9600 = vld [vmem:[%s9598 + $0x8] sm:$0xff]
  %v9601 = vld [vmem:[%s9598 + $0x10] sm:$0xff]
  %v9602 = vld [vmem:[%s9598 + $0x18] sm:$0xff]
  %9603 = vmatprep.subr.mxu0 0.0
  %9604 = vmatpush1.msra.mxu0 0.0
  %9605 = vmatprep.subr.mxu0 0.0
  %9606 = vmatpush1.msra.mxu0 0.0
  %9607 = vmatprep.subr.mxu0 0.0
  %9608 = vmatpush1.msra.mxu0 0.0
  %9609 = vmatprep.subr.mxu0 0.0
  %9610 = vmatpush1.msra.mxu0 0.0
  %9611 = vmatprep.subr.mxu0 0.0
  %9612 = vmatpush1.msra.mxu0 0.0
  %9613 = vmatprep.subr.mxu0 0.0
  %9614 = vmatpush1.msra.mxu0 0.0
  %9615 = vmatprep.subr.mxu0 0.0
  %9616 = vmatpush1.msra.mxu0 0.0
  %9617 = vmatprep.subr.mxu0 0.0
  %9618 = vmatpush1.msra.mxu0 0.0
  %9619 = vmatprep.subr.mxu0 0.0
  %9620 = vmatpush1.msra.mxu0 0.0
  %9621 = vmatprep.subr.mxu0 0.0
  %9622 = vmatpush1.msra.mxu0 0.0
  %9623 = vmatprep.subr.mxu0 0.0
  %9624 = vmatpush1.msra.mxu0 0.0
  %9625 = vmatprep.subr.mxu0 0.0
  %9626 = vmatpush1.msra.mxu0 0.0
  %9627 = vmatprep.subr.mxu0 0.0
  %9628 = vmatpush1.msra.mxu0 %v9602
  %9629 = vmatprep.subr.mxu0 0.0
  %9630 = vmatpush1.msra.mxu0 %v9601
  %9631 = vmatprep.subr.mxu0 0.0
  %9632 = vmatpush1.msra.mxu0 %v9600
  %9633 = vmatprep.subr.mxu0 0.0
  %9634 = vmatpush1.msra.mxu0 %v9599
  %9635 = vmatprep.subr.mxu0 0.0
  %9636 = vmatpush2.msra.mxu0 0.0
  %9637 = vmatprep.subr.mxu0 0.0
  %9638 = vmatpush2.msra.mxu0 0.0
  %9639 = vmatprep.subr.mxu0 0.0
  %9640 = vmatpush2.msra.mxu0 0.0
  %9641 = vmatprep.subr.mxu0 0.0
  %9642 = vmatpush2.msra.mxu0 0.0
  %9643 = vmatprep.subr.mxu0 0.0
  %9644 = vmatpush2.msra.mxu0 0.0
  %9645 = vmatprep.subr.mxu0 0.0
  %9646 = vmatpush2.msra.mxu0 0.0
  %9647 = vmatprep.subr.mxu0 0.0
  %9648 = vmatpush2.msra.mxu0 0.0
  %9649 = vmatprep.subr.mxu0 0.0
  %9650 = vmatpush2.msra.mxu0 0.0
  %9651 = vmatprep.subr.mxu0 0.0
  %9652 = vmatpush2.msra.mxu0 0.0
  %9653 = vmatprep.subr.mxu0 0.0
  %9654 = vmatpush2.msra.mxu0 0.0
  %9655 = vmatprep.subr.mxu0 0.0
  %9656 = vmatpush2.msra.mxu0 0.0
  %9657 = vmatprep.subr.mxu0 0.0
  %9658 = vmatpush2.msra.mxu0 0.0
  %9659 = vmatprep.subr.mxu0 0.0
  %9660 = vmatpush2.msra.mxu0 0.0
  %9661 = vmatprep.subr.mxu0 0.0
  %9662 = vmatpush2.msra.mxu0 0.0
  %9663 = vmatprep.subr.mxu0 0.0
  %9664 = vmatpush2.msra.mxu0 0.0
  %9665 = vmatprep.subr.mxu0 0.0
  %9666 = vmatpush2.msra.mxu0 0.0
  %9667 = vmatprep.mubr.f32.mxu0 0.0
  %9668 = vmatmul.mubr.f32.gmra.mxu0 %v6774
  %v9669 = vpop.f32.mrf.mxu0
  %v9670 = vadd.f32 0.0, %v9669
  %v9671 = vpop.f32.mrf.mxu0
  %9672 = vmatprep.mubr.f32.mxu0 0.0
  %9673 = vmatmul.mubr.f32.gmra.mxu0 %v6777
  %v9674 = vpop.f32.mrf.mxu0
  %v9675 = vadd.f32 0.0, %v9674
  %v9676 = vpop.f32.mrf.mxu0
  %9677 = vmatprep.mubr.f32.mxu0 0.0
  %9678 = vmatmul.mubr.f32.gmra.mxu0 %v6780
  %v9679 = vpop.f32.mrf.mxu0
  %v9680 = vadd.f32 0.0, %v9679
  %v9681 = vpop.f32.mrf.mxu0
  %9682 = vmatprep.mubr.f32.mxu0 0.0
  %9683 = vmatmul.mubr.f32.gmra.mxu0 %v6783
  %v9684 = vpop.f32.mrf.mxu0
  %v9685 = vadd.f32 0.0, %v9684
  %v9686 = vpop.f32.mrf.mxu0
  %9687 = vmatprep.mubr.f32.mxu0 0.0
  %9688 = vmatmul.mubr.f32.gmra.mxu0 %v6786
  %v9689 = vpop.f32.mrf.mxu0
  %v9690 = vadd.f32 0.0, %v9689
  %v9691 = vpop.f32.mrf.mxu0
  %9692 = vmatprep.mubr.f32.mxu0 0.0
  %9693 = vmatmul.mubr.f32.gmra.mxu0 %v6789
  %v9694 = vpop.f32.mrf.mxu0
  %v9695 = vadd.f32 0.0, %v9694
  %v9696 = vpop.f32.mrf.mxu0
  %9697 = vmatprep.mubr.f32.mxu0 0.0
  %9698 = vmatmul.mubr.f32.gmra.mxu0 %v6792
  %v9699 = vpop.f32.mrf.mxu0
  %v9700 = vadd.f32 0.0, %v9699
  %v9701 = vpop.f32.mrf.mxu0
  %9702 = vmatprep.mubr.f32.mxu0 0.0
  %9703 = vmatmul.mubr.f32.gmra.mxu0 %v6795
  %v9704 = vpop.f32.mrf.mxu0
  %v9705 = vadd.f32 0.0, %v9704
  %v9706 = vpop.f32.mrf.mxu0
  %9707 = vmatprep.mubr.f32.mxu0 0.0
  %9708 = vmatmul.mubr.f32.gmra.mxu0 %v6798
  %v9709 = vpop.f32.mrf.mxu0
  %v9710 = vadd.f32 0.0, %v9709
  %v9711 = vpop.f32.mrf.mxu0
  %9712 = vmatprep.mubr.f32.mxu0 0.0
  %9713 = vmatmul.mubr.f32.gmra.mxu0 %v6801
  %v9714 = vpop.f32.mrf.mxu0
  %v9715 = vadd.f32 0.0, %v9714
  %v9716 = vpop.f32.mrf.mxu0
  %9717 = vmatprep.mubr.f32.mxu0 0.0
  %9718 = vmatmul.mubr.f32.gmra.mxu0 %v6804
  %v9719 = vpop.f32.mrf.mxu0
  %v9720 = vadd.f32 0.0, %v9719
  %v9721 = vpop.f32.mrf.mxu0
  %9722 = vmatprep.mubr.f32.mxu0 0.0
  %9723 = vmatmul.mubr.f32.gmra.mxu0 %v6807
  %v9724 = vpop.f32.mrf.mxu0
  %v9725 = vadd.f32 0.0, %v9724
  %v9726 = vpop.f32.mrf.mxu0
  %9727 = vmatprep.mubr.f32.mxu0 0.0
  %9728 = vmatmul.mubr.f32.gmra.mxu0 %v6810
  %v9729 = vpop.f32.mrf.mxu0
  %v9730 = vadd.f32 0.0, %v9729
  %v9731 = vpop.f32.mrf.mxu0
  %9732 = vmatprep.mubr.f32.mxu0 0.0
  %9733 = vmatmul.mubr.f32.gmra.mxu0 %v6813
  %v9734 = vpop.f32.mrf.mxu0
  %v9735 = vadd.f32 0.0, %v9734
  %v9736 = vpop.f32.mrf.mxu0
  %9737 = vmatprep.mubr.f32.mxu0 0.0
  %9738 = vmatmul.mubr.f32.gmra.mxu0 %v6816
  %v9739 = vpop.f32.mrf.mxu0
  %v9740 = vadd.f32 0.0, %v9739
  %v9741 = vpop.f32.mrf.mxu0
  %9742 = vmatprep.mubr.f32.mxu0 0.0
  %9743 = vmatmul.mubr.f32.gmra.mxu0 %v6819
  %v9744 = vpop.f32.mrf.mxu0
  %v9745 = vadd.f32 0.0, %v9744
  %v9746 = vpop.f32.mrf.mxu0
  %9747 = vmatprep.mubr.f32.mxu0 0.0
  %9748 = vmatmul.mubr.f32.gmra.mxu0 %v6822
  %v9749 = vpop.f32.mrf.mxu0
  %v9750 = vadd.f32 0.0, %v9749
  %v9751 = vpop.f32.mrf.mxu0
  %9752 = vmatprep.mubr.f32.mxu0 0.0
  %9753 = vmatmul.mubr.f32.gmra.mxu0 %v6825
  %v9754 = vpop.f32.mrf.mxu0
  %v9755 = vadd.f32 0.0, %v9754
  %v9756 = vpop.f32.mrf.mxu0
  %9757 = vmatprep.mubr.f32.mxu0 0.0
  %9758 = vmatmul.mubr.f32.gmra.mxu0 %v6828
  %v9759 = vpop.f32.mrf.mxu0
  %v9760 = vadd.f32 0.0, %v9759
  %v9761 = vpop.f32.mrf.mxu0
  %9762 = vmatprep.mubr.f32.mxu0 0.0
  %9763 = vmatmul.mubr.f32.gmra.mxu0 %v6831
  %v9764 = vpop.f32.mrf.mxu0
  %v9765 = vadd.f32 0.0, %v9764
  %v9766 = vpop.f32.mrf.mxu0
  %9767 = vmatprep.mubr.f32.mxu0 0.0
  %9768 = vmatmul.mubr.f32.gmra.mxu0 %v6834
  %v9769 = vpop.f32.mrf.mxu0
  %v9770 = vadd.f32 0.0, %v9769
  %v9771 = vpop.f32.mrf.mxu0
  %9772 = vmatprep.mubr.f32.mxu0 0.0
  %9773 = vmatmul.mubr.f32.gmra.mxu0 %v6837
  %v9774 = vpop.f32.mrf.mxu0
  %v9775 = vadd.f32 0.0, %v9774
  %v9776 = vpop.f32.mrf.mxu0
  %9777 = vmatprep.mubr.f32.mxu0 0.0
  %9778 = vmatmul.mubr.f32.gmra.mxu0 %v6840
  %v9779 = vpop.f32.mrf.mxu0
  %v9780 = vadd.f32 0.0, %v9779
  %v9781 = vpop.f32.mrf.mxu0
  %9782 = vmatprep.mubr.f32.mxu0 0.0
  %9783 = vmatmul.mubr.f32.gmra.mxu0 %v6843
  %v9784 = vpop.f32.mrf.mxu0
  %v9785 = vadd.f32 0.0, %v9784
  %v9786 = vpop.f32.mrf.mxu0
  %9787 = vdwg.mxu0
  %v9789 = vsel %vm1356, %v9290, 0
  %v9792 = vsel %vm1356, %v9295, 0
  %v9795 = vsel %vm1356, %v9300, 0
  %v9798 = vsel %vm1356, %v9480, 0
  %v9801 = vsel %vm1356, %v9485, 0
  %v9804 = vsel %vm1356, %v9490, 0
  %9806 = vmatprep.subr.mxu0 0.0
  %9807 = vmatpush1.xpose.msra.mxu0 0.0
  %9808 = vmatprep.subr.mxu0 0.0
  %9809 = vmatpush1.xpose.msra.mxu0 0.0
  %9810 = vmatprep.subr.mxu0 0.0
  %9811 = vmatpush1.xpose.msra.mxu0 0.0
  %9812 = vmatprep.subr.mxu0 0.0
  %9813 = vmatpush1.xpose.msra.mxu0 0.0
  %9814 = vmatprep.subr.mxu0 0.0
  %9815 = vmatpush1.xpose.msra.mxu0 0.0
  %9816 = vmatprep.subr.mxu0 0.0
  %9817 = vmatpush1.xpose.msra.mxu0 0.0
  %9818 = vmatprep.subr.mxu0 0.0
  %9819 = vmatpush1.xpose.msra.mxu0 0.0
  %9820 = vmatprep.subr.mxu0 0.0
  %9821 = vmatpush1.xpose.msra.mxu0 0.0
  %9822 = vmatprep.subr.mxu0 0.0
  %9823 = vmatpush1.xpose.msra.mxu0 0.0
  %9824 = vmatprep.subr.mxu0 0.0
  %9825 = vmatpush1.xpose.msra.mxu0 0.0
  %9826 = vmatprep.subr.mxu0 0.0
  %9827 = vmatpush1.xpose.msra.mxu0 0.0
  %9828 = vmatprep.subr.mxu0 0.0
  %9829 = vmatpush1.xpose.msra.mxu0 0.0
  %9830 = vmatprep.subr.mxu0 0.0
  %9831 = vmatpush1.xpose.msra.mxu0 0.0
  %9832 = vmatprep.subr.mxu0 0.0
  %9833 = vmatpush1.xpose.msra.mxu0 %v9804
  %9834 = vmatprep.subr.mxu0 0.0
  %9835 = vmatpush1.xpose.msra.mxu0 %v9801
  %9836 = vmatprep.subr.mxu0 0.0
  %9837 = vmatpush1.xpose.msra.mxu0 %v9798
  %9838 = vmatprep.subr.mxu0 0.0
  %9839 = vmatpush2.xpose.msra.mxu0 0.0
  %9840 = vmatprep.subr.mxu0 0.0
  %9841 = vmatpush2.xpose.msra.mxu0 0.0
  %9842 = vmatprep.subr.mxu0 0.0
  %9843 = vmatpush2.xpose.msra.mxu0 0.0
  %9844 = vmatprep.subr.mxu0 0.0
  %9845 = vmatpush2.xpose.msra.mxu0 0.0
  %9846 = vmatprep.subr.mxu0 0.0
  %9847 = vmatpush2.xpose.msra.mxu0 0.0
  %9848 = vmatprep.subr.mxu0 0.0
  %9849 = vmatpush2.xpose.msra.mxu0 0.0
  %9850 = vmatprep.subr.mxu0 0.0
  %9851 = vmatpush2.xpose.msra.mxu0 0.0
  %9852 = vmatprep.subr.mxu0 0.0
  %9853 = vmatpush2.xpose.msra.mxu0 0.0
  %9854 = vmatprep.subr.mxu0 0.0
  %9855 = vmatpush2.xpose.msra.mxu0 0.0
  %9856 = vmatprep.subr.mxu0 0.0
  %9857 = vmatpush2.xpose.msra.mxu0 0.0
  %9858 = vmatprep.subr.mxu0 0.0
  %9859 = vmatpush2.xpose.msra.mxu0 0.0
  %9860 = vmatprep.subr.mxu0 0.0
  %9861 = vmatpush2.xpose.msra.mxu0 0.0
  %9862 = vmatprep.subr.mxu0 0.0
  %9863 = vmatpush2.xpose.msra.mxu0 0.0
  %9864 = vmatprep.subr.mxu0 0.0
  %9865 = vmatpush2.xpose.msra.mxu0 0.0
  %9866 = vmatprep.subr.mxu0 0.0
  %9867 = vmatpush2.xpose.msra.mxu0 0.0
  %9868 = vmatprep.subr.mxu0 0.0
  %9869 = vmatpush2.xpose.msra.mxu0 0.0
  %9870 = vmatprep.mubr.f32.mxu0 0.0
  %9871 = vmatmul.mubr.f32.gmra.mxu0 %v9789
  %v9872 = vpop.f32.mrf.mxu0
  %v9873 = vadd.f32 0.0, %v9872
  %v9874 = vpop.f32.mrf.mxu0
  %9875 = vmatprep.mubr.f32.mxu0 0.0
  %9876 = vmatmul.mubr.f32.gmra.mxu0 %v9792
  %v9877 = vpop.f32.mrf.mxu0
  %v9878 = vadd.f32 0.0, %v9877
  %v9879 = vpop.f32.mrf.mxu0
  %9880 = vmatprep.mubr.f32.mxu0 0.0
  %9881 = vmatmul.mubr.f32.gmra.mxu0 %v9795
  %v9882 = vpop.f32.mrf.mxu0
  %v9883 = vadd.f32 0.0, %v9882
  %v9884 = vpop.f32.mrf.mxu0
  %9885 = vdwg.mxu0
  %v9887 = vsel %vm1356, %v9305, 0
  %v9890 = vsel %vm1356, %v9310, 0
  %v9893 = vsel %vm1356, %v9315, 0
  %v9896 = vsel %vm1356, %v9495, 0
  %v9899 = vsel %vm1356, %v9500, 0
  %v9902 = vsel %vm1356, %v9505, 0
  %9904 = vmatprep.subr.mxu0 0.0
  %9905 = vmatpush1.xpose.msra.mxu0 0.0
  %9906 = vmatprep.subr.mxu0 0.0
  %9907 = vmatpush1.xpose.msra.mxu0 0.0
  %9908 = vmatprep.subr.mxu0 0.0
  %9909 = vmatpush1.xpose.msra.mxu0 0.0
  %9910 = vmatprep.subr.mxu0 0.0
  %9911 = vmatpush1.xpose.msra.mxu0 0.0
  %9912 = vmatprep.subr.mxu0 0.0
  %9913 = vmatpush1.xpose.msra.mxu0 0.0
  %9914 = vmatprep.subr.mxu0 0.0
  %9915 = vmatpush1.xpose.msra.mxu0 0.0
  %9916 = vmatprep.subr.mxu0 0.0
  %9917 = vmatpush1.xpose.msra.mxu0 0.0
  %9918 = vmatprep.subr.mxu0 0.0
  %9919 = vmatpush1.xpose.msra.mxu0 0.0
  %9920 = vmatprep.subr.mxu0 0.0
  %9921 = vmatpush1.xpose.msra.mxu0 0.0
  %9922 = vmatprep.subr.mxu0 0.0
  %9923 = vmatpush1.xpose.msra.mxu0 0.0
  %9924 = vmatprep.subr.mxu0 0.0
  %9925 = vmatpush1.xpose.msra.mxu0 0.0
  %9926 = vmatprep.subr.mxu0 0.0
  %9927 = vmatpush1.xpose.msra.mxu0 0.0
  %9928 = vmatprep.subr.mxu0 0.0
  %9929 = vmatpush1.xpose.msra.mxu0 0.0
  %9930 = vmatprep.subr.mxu0 0.0
  %9931 = vmatpush1.xpose.msra.mxu0 %v9902
  %9932 = vmatprep.subr.mxu0 0.0
  %9933 = vmatpush1.xpose.msra.mxu0 %v9899
  %9934 = vmatprep.subr.mxu0 0.0
  %9935 = vmatpush1.xpose.msra.mxu0 %v9896
  %9936 = vmatprep.subr.mxu0 0.0
  %9937 = vmatpush2.xpose.msra.mxu0 0.0
  %9938 = vmatprep.subr.mxu0 0.0
  %9939 = vmatpush2.xpose.msra.mxu0 0.0
  %9940 = vmatprep.subr.mxu0 0.0
  %9941 = vmatpush2.xpose.msra.mxu0 0.0
  %9942 = vmatprep.subr.mxu0 0.0
  %9943 = vmatpush2.xpose.msra.mxu0 0.0
  %9944 = vmatprep.subr.mxu0 0.0
  %9945 = vmatpush2.xpose.msra.mxu0 0.0
  %9946 = vmatprep.subr.mxu0 0.0
  %9947 = vmatpush2.xpose.msra.mxu0 0.0
  %9948 = vmatprep.subr.mxu0 0.0
  %9949 = vmatpush2.xpose.msra.mxu0 0.0
  %9950 = vmatprep.subr.mxu0 0.0
  %9951 = vmatpush2.xpose.msra.mxu0 0.0
  %9952 = vmatprep.subr.mxu0 0.0
  %9953 = vmatpush2.xpose.msra.mxu0 0.0
  %9954 = vmatprep.subr.mxu0 0.0
  %9955 = vmatpush2.xpose.msra.mxu0 0.0
  %9956 = vmatprep.subr.mxu0 0.0
  %9957 = vmatpush2.xpose.msra.mxu0 0.0
  %9958 = vmatprep.subr.mxu0 0.0
  %9959 = vmatpush2.xpose.msra.mxu0 0.0
  %9960 = vmatprep.subr.mxu0 0.0
  %9961 = vmatpush2.xpose.msra.mxu0 0.0
  %9962 = vmatprep.subr.mxu0 0.0
  %9963 = vmatpush2.xpose.msra.mxu0 0.0
  %9964 = vmatprep.subr.mxu0 0.0
  %9965 = vmatpush2.xpose.msra.mxu0 0.0
  %9966 = vmatprep.subr.mxu0 0.0
  %9967 = vmatpush2.xpose.msra.mxu0 0.0
  %9968 = vmatprep.mubr.f32.mxu0 0.0
  %9969 = vmatmul.mubr.f32.gmra.mxu0 %v9887
  %v9970 = vpop.f32.mrf.mxu0
  %v9971 = vadd.f32 0.0, %v9970
  %v9972 = vpop.f32.mrf.mxu0
  %9973 = vmatprep.mubr.f32.mxu0 0.0
  %9974 = vmatmul.mubr.f32.gmra.mxu0 %v9890
  %v9975 = vpop.f32.mrf.mxu0
  %v9976 = vadd.f32 0.0, %v9975
  %v9977 = vpop.f32.mrf.mxu0
  %9978 = vmatprep.mubr.f32.mxu0 0.0
  %9979 = vmatmul.mubr.f32.gmra.mxu0 %v9893
  %v9980 = vpop.f32.mrf.mxu0
  %v9981 = vadd.f32 0.0, %v9980
  %v9982 = vpop.f32.mrf.mxu0
  %9983 = vdwg.mxu0
  %v9985 = vsel %vm1356, %v9320, 0
  %v9988 = vsel %vm1356, %v9325, 0
  %v9991 = vsel %vm1356, %v9330, 0
  %v9994 = vsel %vm1356, %v9510, 0
  %v9997 = vsel %vm1356, %v9515, 0
  %v10000 = vsel %vm1356, %v9520, 0
  %10002 = vmatprep.subr.mxu0 0.0
  %10003 = vmatpush1.xpose.msra.mxu0 0.0
  %10004 = vmatprep.subr.mxu0 0.0
  %10005 = vmatpush1.xpose.msra.mxu0 0.0
  %10006 = vmatprep.subr.mxu0 0.0
  %10007 = vmatpush1.xpose.msra.mxu0 0.0
  %10008 = vmatprep.subr.mxu0 0.0
  %10009 = vmatpush1.xpose.msra.mxu0 0.0
  %10010 = vmatprep.subr.mxu0 0.0
  %10011 = vmatpush1.xpose.msra.mxu0 0.0
  %10012 = vmatprep.subr.mxu0 0.0
  %10013 = vmatpush1.xpose.msra.mxu0 0.0
  %10014 = vmatprep.subr.mxu0 0.0
  %10015 = vmatpush1.xpose.msra.mxu0 0.0
  %10016 = vmatprep.subr.mxu0 0.0
  %10017 = vmatpush1.xpose.msra.mxu0 0.0
  %10018 = vmatprep.subr.mxu0 0.0
  %10019 = vmatpush1.xpose.msra.mxu0 0.0
  %10020 = vmatprep.subr.mxu0 0.0
  %10021 = vmatpush1.xpose.msra.mxu0 0.0
  %10022 = vmatprep.subr.mxu0 0.0
  %10023 = vmatpush1.xpose.msra.mxu0 0.0
  %10024 = vmatprep.subr.mxu0 0.0
  %10025 = vmatpush1.xpose.msra.mxu0 0.0
  %10026 = vmatprep.subr.mxu0 0.0
  %10027 = vmatpush1.xpose.msra.mxu0 0.0
  %10028 = vmatprep.subr.mxu0 0.0
  %10029 = vmatpush1.xpose.msra.mxu0 %v10000
  %10030 = vmatprep.subr.mxu0 0.0
  %10031 = vmatpush1.xpose.msra.mxu0 %v9997
  %10032 = vmatprep.subr.mxu0 0.0
  %10033 = vmatpush1.xpose.msra.mxu0 %v9994
  %10034 = vmatprep.subr.mxu0 0.0
  %10035 = vmatpush2.xpose.msra.mxu0 0.0
  %10036 = vmatprep.subr.mxu0 0.0
  %10037 = vmatpush2.xpose.msra.mxu0 0.0
  %10038 = vmatprep.subr.mxu0 0.0
  %10039 = vmatpush2.xpose.msra.mxu0 0.0
  %10040 = vmatprep.subr.mxu0 0.0
  %10041 = vmatpush2.xpose.msra.mxu0 0.0
  %10042 = vmatprep.subr.mxu0 0.0
  %10043 = vmatpush2.xpose.msra.mxu0 0.0
  %10044 = vmatprep.subr.mxu0 0.0
  %10045 = vmatpush2.xpose.msra.mxu0 0.0
  %10046 = vmatprep.subr.mxu0 0.0
  %10047 = vmatpush2.xpose.msra.mxu0 0.0
  %10048 = vmatprep.subr.mxu0 0.0
  %10049 = vmatpush2.xpose.msra.mxu0 0.0
  %10050 = vmatprep.subr.mxu0 0.0
  %10051 = vmatpush2.xpose.msra.mxu0 0.0
  %10052 = vmatprep.subr.mxu0 0.0
  %10053 = vmatpush2.xpose.msra.mxu0 0.0
  %10054 = vmatprep.subr.mxu0 0.0
  %10055 = vmatpush2.xpose.msra.mxu0 0.0
  %10056 = vmatprep.subr.mxu0 0.0
  %10057 = vmatpush2.xpose.msra.mxu0 0.0
  %10058 = vmatprep.subr.mxu0 0.0
  %10059 = vmatpush2.xpose.msra.mxu0 0.0
  %10060 = vmatprep.subr.mxu0 0.0
  %10061 = vmatpush2.xpose.msra.mxu0 0.0
  %10062 = vmatprep.subr.mxu0 0.0
  %10063 = vmatpush2.xpose.msra.mxu0 0.0
  %10064 = vmatprep.subr.mxu0 0.0
  %10065 = vmatpush2.xpose.msra.mxu0 0.0
  %10066 = vmatprep.mubr.f32.mxu0 0.0
  %10067 = vmatmul.mubr.f32.gmra.mxu0 %v9985
  %v10068 = vpop.f32.mrf.mxu0
  %v10069 = vadd.f32 0.0, %v10068
  %v10070 = vpop.f32.mrf.mxu0
  %10071 = vmatprep.mubr.f32.mxu0 0.0
  %10072 = vmatmul.mubr.f32.gmra.mxu0 %v9988
  %v10073 = vpop.f32.mrf.mxu0
  %v10074 = vadd.f32 0.0, %v10073
  %v10075 = vpop.f32.mrf.mxu0
  %10076 = vmatprep.mubr.f32.mxu0 0.0
  %10077 = vmatmul.mubr.f32.gmra.mxu0 %v9991
  %v10078 = vpop.f32.mrf.mxu0
  %v10079 = vadd.f32 0.0, %v10078
  %v10080 = vpop.f32.mrf.mxu0
  %10081 = vdwg.mxu0
  %v10083 = vsel %vm1356, %v9335, 0
  %v10086 = vsel %vm1356, %v9340, 0
  %v10089 = vsel %vm1356, %v9345, 0
  %v10092 = vsel %vm1356, %v9525, 0
  %v10095 = vsel %vm1356, %v9530, 0
  %v10098 = vsel %vm1356, %v9535, 0
  %10100 = vmatprep.subr.mxu0 0.0
  %10101 = vmatpush1.xpose.msra.mxu0 0.0
  %10102 = vmatprep.subr.mxu0 0.0
  %10103 = vmatpush1.xpose.msra.mxu0 0.0
  %10104 = vmatprep.subr.mxu0 0.0
  %10105 = vmatpush1.xpose.msra.mxu0 0.0
  %10106 = vmatprep.subr.mxu0 0.0
  %10107 = vmatpush1.xpose.msra.mxu0 0.0
  %10108 = vmatprep.subr.mxu0 0.0
  %10109 = vmatpush1.xpose.msra.mxu0 0.0
  %10110 = vmatprep.subr.mxu0 0.0
  %10111 = vmatpush1.xpose.msra.mxu0 0.0
  %10112 = vmatprep.subr.mxu0 0.0
  %10113 = vmatpush1.xpose.msra.mxu0 0.0
  %10114 = vmatprep.subr.mxu0 0.0
  %10115 = vmatpush1.xpose.msra.mxu0 0.0
  %10116 = vmatprep.subr.mxu0 0.0
  %10117 = vmatpush1.xpose.msra.mxu0 0.0
  %10118 = vmatprep.subr.mxu0 0.0
  %10119 = vmatpush1.xpose.msra.mxu0 0.0
  %10120 = vmatprep.subr.mxu0 0.0
  %10121 = vmatpush1.xpose.msra.mxu0 0.0
  %10122 = vmatprep.subr.mxu0 0.0
  %10123 = vmatpush1.xpose.msra.mxu0 0.0
  %10124 = vmatprep.subr.mxu0 0.0
  %10125 = vmatpush1.xpose.msra.mxu0 0.0
  %10126 = vmatprep.subr.mxu0 0.0
  %10127 = vmatpush1.xpose.msra.mxu0 %v10098
  %10128 = vmatprep.subr.mxu0 0.0
  %10129 = vmatpush1.xpose.msra.mxu0 %v10095
  %10130 = vmatprep.subr.mxu0 0.0
  %10131 = vmatpush1.xpose.msra.mxu0 %v10092
  %10132 = vmatprep.subr.mxu0 0.0
  %10133 = vmatpush2.xpose.msra.mxu0 0.0
  %10134 = vmatprep.subr.mxu0 0.0
  %10135 = vmatpush2.xpose.msra.mxu0 0.0
  %10136 = vmatprep.subr.mxu0 0.0
  %10137 = vmatpush2.xpose.msra.mxu0 0.0
  %10138 = vmatprep.subr.mxu0 0.0
  %10139 = vmatpush2.xpose.msra.mxu0 0.0
  %10140 = vmatprep.subr.mxu0 0.0
  %10141 = vmatpush2.xpose.msra.mxu0 0.0
  %10142 = vmatprep.subr.mxu0 0.0
  %10143 = vmatpush2.xpose.msra.mxu0 0.0
  %10144 = vmatprep.subr.mxu0 0.0
  %10145 = vmatpush2.xpose.msra.mxu0 0.0
  %10146 = vmatprep.subr.mxu0 0.0
  %10147 = vmatpush2.xpose.msra.mxu0 0.0
  %10148 = vmatprep.subr.mxu0 0.0
  %10149 = vmatpush2.xpose.msra.mxu0 0.0
  %10150 = vmatprep.subr.mxu0 0.0
  %10151 = vmatpush2.xpose.msra.mxu0 0.0
  %10152 = vmatprep.subr.mxu0 0.0
  %10153 = vmatpush2.xpose.msra.mxu0 0.0
  %10154 = vmatprep.subr.mxu0 0.0
  %10155 = vmatpush2.xpose.msra.mxu0 0.0
  %10156 = vmatprep.subr.mxu0 0.0
  %10157 = vmatpush2.xpose.msra.mxu0 0.0
  %10158 = vmatprep.subr.mxu0 0.0
  %10159 = vmatpush2.xpose.msra.mxu0 0.0
  %10160 = vmatprep.subr.mxu0 0.0
  %10161 = vmatpush2.xpose.msra.mxu0 0.0
  %10162 = vmatprep.subr.mxu0 0.0
  %10163 = vmatpush2.xpose.msra.mxu0 0.0
  %10164 = vmatprep.mubr.f32.mxu0 0.0
  %10165 = vmatmul.mubr.f32.gmra.mxu0 %v10083
  %v10166 = vpop.f32.mrf.mxu0
  %v10167 = vadd.f32 0.0, %v10166
  %v10168 = vpop.f32.mrf.mxu0
  %10169 = vmatprep.mubr.f32.mxu0 0.0
  %10170 = vmatmul.mubr.f32.gmra.mxu0 %v10086
  %v10171 = vpop.f32.mrf.mxu0
  %v10172 = vadd.f32 0.0, %v10171
  %v10173 = vpop.f32.mrf.mxu0
  %10174 = vmatprep.mubr.f32.mxu0 0.0
  %10175 = vmatmul.mubr.f32.gmra.mxu0 %v10089
  %v10176 = vpop.f32.mrf.mxu0
  %v10177 = vadd.f32 0.0, %v10176
  %v10178 = vpop.f32.mrf.mxu0
  %10179 = vdwg.mxu0
  %v10181 = vsel %vm1356, %v9350, 0
  %v10184 = vsel %vm1356, %v9355, 0
  %v10187 = vsel %vm1356, %v9360, 0
  %v10190 = vsel %vm1356, %v9540, 0
  %v10193 = vsel %vm1356, %v9545, 0
  %v10196 = vsel %vm1356, %v9550, 0
  %10198 = vmatprep.subr.mxu0 0.0
  %10199 = vmatpush1.xpose.msra.mxu0 0.0
  %10200 = vmatprep.subr.mxu0 0.0
  %10201 = vmatpush1.xpose.msra.mxu0 0.0
  %10202 = vmatprep.subr.mxu0 0.0
  %10203 = vmatpush1.xpose.msra.mxu0 0.0
  %10204 = vmatprep.subr.mxu0 0.0
  %10205 = vmatpush1.xpose.msra.mxu0 0.0
  %10206 = vmatprep.subr.mxu0 0.0
  %10207 = vmatpush1.xpose.msra.mxu0 0.0
  %10208 = vmatprep.subr.mxu0 0.0
  %10209 = vmatpush1.xpose.msra.mxu0 0.0
  %10210 = vmatprep.subr.mxu0 0.0
  %10211 = vmatpush1.xpose.msra.mxu0 0.0
  %10212 = vmatprep.subr.mxu0 0.0
  %10213 = vmatpush1.xpose.msra.mxu0 0.0
  %10214 = vmatprep.subr.mxu0 0.0
  %10215 = vmatpush1.xpose.msra.mxu0 0.0
  %10216 = vmatprep.subr.mxu0 0.0
  %10217 = vmatpush1.xpose.msra.mxu0 0.0
  %10218 = vmatprep.subr.mxu0 0.0
  %10219 = vmatpush1.xpose.msra.mxu0 0.0
  %10220 = vmatprep.subr.mxu0 0.0
  %10221 = vmatpush1.xpose.msra.mxu0 0.0
  %10222 = vmatprep.subr.mxu0 0.0
  %10223 = vmatpush1.xpose.msra.mxu0 0.0
  %10224 = vmatprep.subr.mxu0 0.0
  %10225 = vmatpush1.xpose.msra.mxu0 %v10196
  %10226 = vmatprep.subr.mxu0 0.0
  %10227 = vmatpush1.xpose.msra.mxu0 %v10193
  %10228 = vmatprep.subr.mxu0 0.0
  %10229 = vmatpush1.xpose.msra.mxu0 %v10190
  %10230 = vmatprep.subr.mxu0 0.0
  %10231 = vmatpush2.xpose.msra.mxu0 0.0
  %10232 = vmatprep.subr.mxu0 0.0
  %10233 = vmatpush2.xpose.msra.mxu0 0.0
  %10234 = vmatprep.subr.mxu0 0.0
  %10235 = vmatpush2.xpose.msra.mxu0 0.0
  %10236 = vmatprep.subr.mxu0 0.0
  %10237 = vmatpush2.xpose.msra.mxu0 0.0
  %10238 = vmatprep.subr.mxu0 0.0
  %10239 = vmatpush2.xpose.msra.mxu0 0.0
  %10240 = vmatprep.subr.mxu0 0.0
  %10241 = vmatpush2.xpose.msra.mxu0 0.0
  %10242 = vmatprep.subr.mxu0 0.0
  %10243 = vmatpush2.xpose.msra.mxu0 0.0
  %10244 = vmatprep.subr.mxu0 0.0
  %10245 = vmatpush2.xpose.msra.mxu0 0.0
  %10246 = vmatprep.subr.mxu0 0.0
  %10247 = vmatpush2.xpose.msra.mxu0 0.0
  %10248 = vmatprep.subr.mxu0 0.0
  %10249 = vmatpush2.xpose.msra.mxu0 0.0
  %10250 = vmatprep.subr.mxu0 0.0
  %10251 = vmatpush2.xpose.msra.mxu0 0.0
  %10252 = vmatprep.subr.mxu0 0.0
  %10253 = vmatpush2.xpose.msra.mxu0 0.0
  %10254 = vmatprep.subr.mxu0 0.0
  %10255 = vmatpush2.xpose.msra.mxu0 0.0
  %10256 = vmatprep.subr.mxu0 0.0
  %10257 = vmatpush2.xpose.msra.mxu0 0.0
  %10258 = vmatprep.subr.mxu0 0.0
  %10259 = vmatpush2.xpose.msra.mxu0 0.0
  %10260 = vmatprep.subr.mxu0 0.0
  %10261 = vmatpush2.xpose.msra.mxu0 0.0
  %10262 = vmatprep.mubr.f32.mxu0 0.0
  %10263 = vmatmul.mubr.f32.gmra.mxu0 %v10181
  %v10264 = vpop.f32.mrf.mxu0
  %v10265 = vadd.f32 0.0, %v10264
  %v10266 = vpop.f32.mrf.mxu0
  %10267 = vmatprep.mubr.f32.mxu0 0.0
  %10268 = vmatmul.mubr.f32.gmra.mxu0 %v10184
  %v10269 = vpop.f32.mrf.mxu0
  %v10270 = vadd.f32 0.0, %v10269
  %v10271 = vpop.f32.mrf.mxu0
  %10272 = vmatprep.mubr.f32.mxu0 0.0
  %10273 = vmatmul.mubr.f32.gmra.mxu0 %v10187
  %v10274 = vpop.f32.mrf.mxu0
  %v10275 = vadd.f32 0.0, %v10274
  %v10276 = vpop.f32.mrf.mxu0
  %10277 = vdwg.mxu0
  %v10279 = vsel %vm1356, %v9365, 0
  %v10282 = vsel %vm1356, %v9370, 0
  %v10285 = vsel %vm1356, %v9375, 0
  %v10288 = vsel %vm1356, %v9555, 0
  %v10291 = vsel %vm1356, %v9560, 0
  %v10294 = vsel %vm1356, %v9565, 0
  %10296 = vmatprep.subr.mxu0 0.0
  %10297 = vmatpush1.xpose.msra.mxu0 0.0
  %10298 = vmatprep.subr.mxu0 0.0
  %10299 = vmatpush1.xpose.msra.mxu0 0.0
  %10300 = vmatprep.subr.mxu0 0.0
  %10301 = vmatpush1.xpose.msra.mxu0 0.0
  %10302 = vmatprep.subr.mxu0 0.0
  %10303 = vmatpush1.xpose.msra.mxu0 0.0
  %10304 = vmatprep.subr.mxu0 0.0
  %10305 = vmatpush1.xpose.msra.mxu0 0.0
  %10306 = vmatprep.subr.mxu0 0.0
  %10307 = vmatpush1.xpose.msra.mxu0 0.0
  %10308 = vmatprep.subr.mxu0 0.0
  %10309 = vmatpush1.xpose.msra.mxu0 0.0
  %10310 = vmatprep.subr.mxu0 0.0
  %10311 = vmatpush1.xpose.msra.mxu0 0.0
  %10312 = vmatprep.subr.mxu0 0.0
  %10313 = vmatpush1.xpose.msra.mxu0 0.0
  %10314 = vmatprep.subr.mxu0 0.0
  %10315 = vmatpush1.xpose.msra.mxu0 0.0
  %10316 = vmatprep.subr.mxu0 0.0
  %10317 = vmatpush1.xpose.msra.mxu0 0.0
  %10318 = vmatprep.subr.mxu0 0.0
  %10319 = vmatpush1.xpose.msra.mxu0 0.0
  %10320 = vmatprep.subr.mxu0 0.0
  %10321 = vmatpush1.xpose.msra.mxu0 0.0
  %10322 = vmatprep.subr.mxu0 0.0
  %10323 = vmatpush1.xpose.msra.mxu0 %v10294
  %10324 = vmatprep.subr.mxu0 0.0
  %10325 = vmatpush1.xpose.msra.mxu0 %v10291
  %10326 = vmatprep.subr.mxu0 0.0
  %10327 = vmatpush1.xpose.msra.mxu0 %v10288
  %10328 = vmatprep.subr.mxu0 0.0
  %10329 = vmatpush2.xpose.msra.mxu0 0.0
  %10330 = vmatprep.subr.mxu0 0.0
  %10331 = vmatpush2.xpose.msra.mxu0 0.0
  %10332 = vmatprep.subr.mxu0 0.0
  %10333 = vmatpush2.xpose.msra.mxu0 0.0
  %10334 = vmatprep.subr.mxu0 0.0
  %10335 = vmatpush2.xpose.msra.mxu0 0.0
  %10336 = vmatprep.subr.mxu0 0.0
  %10337 = vmatpush2.xpose.msra.mxu0 0.0
  %10338 = vmatprep.subr.mxu0 0.0
  %10339 = vmatpush2.xpose.msra.mxu0 0.0
  %10340 = vmatprep.subr.mxu0 0.0
  %10341 = vmatpush2.xpose.msra.mxu0 0.0
  %10342 = vmatprep.subr.mxu0 0.0
  %10343 = vmatpush2.xpose.msra.mxu0 0.0
  %10344 = vmatprep.subr.mxu0 0.0
  %10345 = vmatpush2.xpose.msra.mxu0 0.0
  %10346 = vmatprep.subr.mxu0 0.0
  %10347 = vmatpush2.xpose.msra.mxu0 0.0
  %10348 = vmatprep.subr.mxu0 0.0
  %10349 = vmatpush2.xpose.msra.mxu0 0.0
  %10350 = vmatprep.subr.mxu0 0.0
  %10351 = vmatpush2.xpose.msra.mxu0 0.0
  %10352 = vmatprep.subr.mxu0 0.0
  %10353 = vmatpush2.xpose.msra.mxu0 0.0
  %10354 = vmatprep.subr.mxu0 0.0
  %10355 = vmatpush2.xpose.msra.mxu0 0.0
  %10356 = vmatprep.subr.mxu0 0.0
  %10357 = vmatpush2.xpose.msra.mxu0 0.0
  %10358 = vmatprep.subr.mxu0 0.0
  %10359 = vmatpush2.xpose.msra.mxu0 0.0
  %10360 = vmatprep.mubr.f32.mxu0 0.0
  %10361 = vmatmul.mubr.f32.gmra.mxu0 %v10279
  %v10362 = vpop.f32.mrf.mxu0
  %v10363 = vadd.f32 0.0, %v10362
  %v10364 = vpop.f32.mrf.mxu0
  %10365 = vmatprep.mubr.f32.mxu0 0.0
  %10366 = vmatmul.mubr.f32.gmra.mxu0 %v10282
  %v10367 = vpop.f32.mrf.mxu0
  %v10368 = vadd.f32 0.0, %v10367
  %v10369 = vpop.f32.mrf.mxu0
  %10370 = vmatprep.mubr.f32.mxu0 0.0
  %10371 = vmatmul.mubr.f32.gmra.mxu0 %v10285
  %v10372 = vpop.f32.mrf.mxu0
  %v10373 = vadd.f32 0.0, %v10372
  %v10374 = vpop.f32.mrf.mxu0
  %10375 = vdwg.mxu0
  %v10377 = vsel %vm1356, %v9380, 0
  %v10380 = vsel %vm1356, %v9385, 0
  %v10383 = vsel %vm1356, %v9390, 0
  %v10386 = vsel %vm1356, %v9570, 0
  %v10389 = vsel %vm1356, %v9575, 0
  %v10392 = vsel %vm1356, %v9580, 0
  %10394 = vmatprep.subr.mxu0 0.0
  %10395 = vmatpush1.xpose.msra.mxu0 0.0
  %10396 = vmatprep.subr.mxu0 0.0
  %10397 = vmatpush1.xpose.msra.mxu0 0.0
  %10398 = vmatprep.subr.mxu0 0.0
  %10399 = vmatpush1.xpose.msra.mxu0 0.0
  %10400 = vmatprep.subr.mxu0 0.0
  %10401 = vmatpush1.xpose.msra.mxu0 0.0
  %10402 = vmatprep.subr.mxu0 0.0
  %10403 = vmatpush1.xpose.msra.mxu0 0.0
  %10404 = vmatprep.subr.mxu0 0.0
  %10405 = vmatpush1.xpose.msra.mxu0 0.0
  %10406 = vmatprep.subr.mxu0 0.0
  %10407 = vmatpush1.xpose.msra.mxu0 0.0
  %10408 = vmatprep.subr.mxu0 0.0
  %10409 = vmatpush1.xpose.msra.mxu0 0.0
  %10410 = vmatprep.subr.mxu0 0.0
  %10411 = vmatpush1.xpose.msra.mxu0 0.0
  %10412 = vmatprep.subr.mxu0 0.0
  %10413 = vmatpush1.xpose.msra.mxu0 0.0
  %10414 = vmatprep.subr.mxu0 0.0
  %10415 = vmatpush1.xpose.msra.mxu0 0.0
  %10416 = vmatprep.subr.mxu0 0.0
  %10417 = vmatpush1.xpose.msra.mxu0 0.0
  %10418 = vmatprep.subr.mxu0 0.0
  %10419 = vmatpush1.xpose.msra.mxu0 0.0
  %10420 = vmatprep.subr.mxu0 0.0
  %10421 = vmatpush1.xpose.msra.mxu0 %v10392
  %10422 = vmatprep.subr.mxu0 0.0
  %10423 = vmatpush1.xpose.msra.mxu0 %v10389
  %10424 = vmatprep.subr.mxu0 0.0
  %10425 = vmatpush1.xpose.msra.mxu0 %v10386
  %10426 = vmatprep.subr.mxu0 0.0
  %10427 = vmatpush2.xpose.msra.mxu0 0.0
  %10428 = vmatprep.subr.mxu0 0.0
  %10429 = vmatpush2.xpose.msra.mxu0 0.0
  %10430 = vmatprep.subr.mxu0 0.0
  %10431 = vmatpush2.xpose.msra.mxu0 0.0
  %10432 = vmatprep.subr.mxu0 0.0
  %10433 = vmatpush2.xpose.msra.mxu0 0.0
  %10434 = vmatprep.subr.mxu0 0.0
  %10435 = vmatpush2.xpose.msra.mxu0 0.0
  %10436 = vmatprep.subr.mxu0 0.0
  %10437 = vmatpush2.xpose.msra.mxu0 0.0
  %10438 = vmatprep.subr.mxu0 0.0
  %10439 = vmatpush2.xpose.msra.mxu0 0.0
  %10440 = vmatprep.subr.mxu0 0.0
  %10441 = vmatpush2.xpose.msra.mxu0 0.0
  %10442 = vmatprep.subr.mxu0 0.0
  %10443 = vmatpush2.xpose.msra.mxu0 0.0
  %10444 = vmatprep.subr.mxu0 0.0
  %10445 = vmatpush2.xpose.msra.mxu0 0.0
  %10446 = vmatprep.subr.mxu0 0.0
  %10447 = vmatpush2.xpose.msra.mxu0 0.0
  %10448 = vmatprep.subr.mxu0 0.0
  %10449 = vmatpush2.xpose.msra.mxu0 0.0
  %10450 = vmatprep.subr.mxu0 0.0
  %10451 = vmatpush2.xpose.msra.mxu0 0.0
  %10452 = vmatprep.subr.mxu0 0.0
  %10453 = vmatpush2.xpose.msra.mxu0 0.0
  %10454 = vmatprep.subr.mxu0 0.0
  %10455 = vmatpush2.xpose.msra.mxu0 0.0
  %10456 = vmatprep.subr.mxu0 0.0
  %10457 = vmatpush2.xpose.msra.mxu0 0.0
  %10458 = vmatprep.mubr.f32.mxu0 0.0
  %10459 = vmatmul.mubr.f32.gmra.mxu0 %v10377
  %v10460 = vpop.f32.mrf.mxu0
  %v10461 = vadd.f32 0.0, %v10460
  %v10462 = vpop.f32.mrf.mxu0
  %10463 = vmatprep.mubr.f32.mxu0 0.0
  %10464 = vmatmul.mubr.f32.gmra.mxu0 %v10380
  %v10465 = vpop.f32.mrf.mxu0
  %v10466 = vadd.f32 0.0, %v10465
  %v10467 = vpop.f32.mrf.mxu0
  %10468 = vmatprep.mubr.f32.mxu0 0.0
  %10469 = vmatmul.mubr.f32.gmra.mxu0 %v10383
  %v10470 = vpop.f32.mrf.mxu0
  %v10471 = vadd.f32 0.0, %v10470
  %v10472 = vpop.f32.mrf.mxu0
  %10473 = vdwg.mxu0
  %v10475 = vsel %vm1356, %v9395, 0
  %v10478 = vsel %vm1356, %v9400, 0
  %v10481 = vsel %vm1356, %v9405, 0
  %v10484 = vsel %vm1356, %v9585, 0
  %v10487 = vsel %vm1356, %v9590, 0
  %v10490 = vsel %vm1356, %v9595, 0
  %10492 = vmatprep.subr.mxu0 0.0
  %10493 = vmatpush1.xpose.msra.mxu0 0.0
  %10494 = vmatprep.subr.mxu0 0.0
  %10495 = vmatpush1.xpose.msra.mxu0 0.0
  %10496 = vmatprep.subr.mxu0 0.0
  %10497 = vmatpush1.xpose.msra.mxu0 0.0
  %10498 = vmatprep.subr.mxu0 0.0
  %10499 = vmatpush1.xpose.msra.mxu0 0.0
  %10500 = vmatprep.subr.mxu0 0.0
  %10501 = vmatpush1.xpose.msra.mxu0 0.0
  %10502 = vmatprep.subr.mxu0 0.0
  %10503 = vmatpush1.xpose.msra.mxu0 0.0
  %10504 = vmatprep.subr.mxu0 0.0
  %10505 = vmatpush1.xpose.msra.mxu0 0.0
  %10506 = vmatprep.subr.mxu0 0.0
  %10507 = vmatpush1.xpose.msra.mxu0 0.0
  %10508 = vmatprep.subr.mxu0 0.0
  %10509 = vmatpush1.xpose.msra.mxu0 0.0
  %10510 = vmatprep.subr.mxu0 0.0
  %10511 = vmatpush1.xpose.msra.mxu0 0.0
  %10512 = vmatprep.subr.mxu0 0.0
  %10513 = vmatpush1.xpose.msra.mxu0 0.0
  %10514 = vmatprep.subr.mxu0 0.0
  %10515 = vmatpush1.xpose.msra.mxu0 0.0
  %10516 = vmatprep.subr.mxu0 0.0
  %10517 = vmatpush1.xpose.msra.mxu0 0.0
  %10518 = vmatprep.subr.mxu0 0.0
  %10519 = vmatpush1.xpose.msra.mxu0 %v10490
  %10520 = vmatprep.subr.mxu0 0.0
  %10521 = vmatpush1.xpose.msra.mxu0 %v10487
  %10522 = vmatprep.subr.mxu0 0.0
  %10523 = vmatpush1.xpose.msra.mxu0 %v10484
  %10524 = vmatprep.subr.mxu0 0.0
  %10525 = vmatpush2.xpose.msra.mxu0 0.0
  %10526 = vmatprep.subr.mxu0 0.0
  %10527 = vmatpush2.xpose.msra.mxu0 0.0
  %10528 = vmatprep.subr.mxu0 0.0
  %10529 = vmatpush2.xpose.msra.mxu0 0.0
  %10530 = vmatprep.subr.mxu0 0.0
  %10531 = vmatpush2.xpose.msra.mxu0 0.0
  %10532 = vmatprep.subr.mxu0 0.0
  %10533 = vmatpush2.xpose.msra.mxu0 0.0
  %10534 = vmatprep.subr.mxu0 0.0
  %10535 = vmatpush2.xpose.msra.mxu0 0.0
  %10536 = vmatprep.subr.mxu0 0.0
  %10537 = vmatpush2.xpose.msra.mxu0 0.0
  %10538 = vmatprep.subr.mxu0 0.0
  %10539 = vmatpush2.xpose.msra.mxu0 0.0
  %10540 = vmatprep.subr.mxu0 0.0
  %10541 = vmatpush2.xpose.msra.mxu0 0.0
  %10542 = vmatprep.subr.mxu0 0.0
  %10543 = vmatpush2.xpose.msra.mxu0 0.0
  %10544 = vmatprep.subr.mxu0 0.0
  %10545 = vmatpush2.xpose.msra.mxu0 0.0
  %10546 = vmatprep.subr.mxu0 0.0
  %10547 = vmatpush2.xpose.msra.mxu0 0.0
  %10548 = vmatprep.subr.mxu0 0.0
  %10549 = vmatpush2.xpose.msra.mxu0 0.0
  %10550 = vmatprep.subr.mxu0 0.0
  %10551 = vmatpush2.xpose.msra.mxu0 0.0
  %10552 = vmatprep.subr.mxu0 0.0
  %10553 = vmatpush2.xpose.msra.mxu0 0.0
  %10554 = vmatprep.subr.mxu0 0.0
  %10555 = vmatpush2.xpose.msra.mxu0 0.0
  %10556 = vmatprep.mubr.f32.mxu0 0.0
  %10557 = vmatmul.mubr.f32.gmra.mxu0 %v10475
  %v10558 = vpop.f32.mrf.mxu0
  %v10559 = vadd.f32 0.0, %v10558
  %v10560 = vpop.f32.mrf.mxu0
  %10561 = vmatprep.mubr.f32.mxu0 0.0
  %10562 = vmatmul.mubr.f32.gmra.mxu0 %v10478
  %v10563 = vpop.f32.mrf.mxu0
  %v10564 = vadd.f32 0.0, %v10563
  %v10565 = vpop.f32.mrf.mxu0
  %10566 = vmatprep.mubr.f32.mxu0 0.0
  %10567 = vmatmul.mubr.f32.gmra.mxu0 %v10481
  %v10568 = vpop.f32.mrf.mxu0
  %v10569 = vadd.f32 0.0, %v10568
  %v10570 = vpop.f32.mrf.mxu0
  %10571 = vdwg.mxu0
  %v10572 = vmul.f32 %v9873, 0.17677669
  %v10573 = vmul.f32 %v9878, 0.17677669
  %v10574 = vmul.f32 %v9883, 0.17677669
  %v10575 = vmul.f32 %v9971, 0.17677669
  %v10576 = vmul.f32 %v9976, 0.17677669
  %v10577 = vmul.f32 %v9981, 0.17677669
  %v10578 = vmul.f32 %v10069, 0.17677669
  %v10579 = vmul.f32 %v10074, 0.17677669
  %v10580 = vmul.f32 %v10079, 0.17677669
  %v10581 = vmul.f32 %v10167, 0.17677669
  %v10582 = vmul.f32 %v10172, 0.17677669
  %v10583 = vmul.f32 %v10177, 0.17677669
  %v10584 = vmul.f32 %v10265, 0.17677669
  %v10585 = vmul.f32 %v10270, 0.17677669
  %v10586 = vmul.f32 %v10275, 0.17677669
  %v10587 = vmul.f32 %v10363, 0.17677669
  %v10588 = vmul.f32 %v10368, 0.17677669
  %v10589 = vmul.f32 %v10373, 0.17677669
  %v10590 = vmul.f32 %v10461, 0.17677669
  %v10591 = vmul.f32 %v10466, 0.17677669
  %v10592 = vmul.f32 %v10471, 0.17677669
  %v10593 = vmul.f32 %v10559, 0.17677669
  %v10594 = vmul.f32 %v10564, 0.17677669
  %v10595 = vmul.f32 %v10569, 0.17677669
  %v10596 = vsel %vm2166, %v10572, -1e+30
  %v10597 = vsel %vm2166, %v10573, -1e+30
  %v10598 = vsel %vm2166, %v10574, -1e+30
  %v10599 = vsel %vm2166, %v10575, -1e+30
  %v10600 = vsel %vm2166, %v10576, -1e+30
  %v10601 = vsel %vm2166, %v10577, -1e+30
  %v10602 = vsel %vm2166, %v10578, -1e+30
  %v10603 = vsel %vm2166, %v10579, -1e+30
  %v10604 = vsel %vm2166, %v10580, -1e+30
  %v10605 = vsel %vm2166, %v10581, -1e+30
  %v10606 = vsel %vm2166, %v10582, -1e+30
  %v10607 = vsel %vm2166, %v10583, -1e+30
  %v10608 = vsel %vm2166, %v10584, -1e+30
  %v10609 = vsel %vm2166, %v10585, -1e+30
  %v10610 = vsel %vm2166, %v10586, -1e+30
  %v10611 = vsel %vm2166, %v10587, -1e+30
  %v10612 = vsel %vm2166, %v10588, -1e+30
  %v10613 = vsel %vm2166, %v10589, -1e+30
  %v10614 = vsel %vm2166, %v10590, -1e+30
  %v10615 = vsel %vm2166, %v10591, -1e+30
  %v10616 = vsel %vm2166, %v10592, -1e+30
  %v10617 = vsel %vm2166, %v10593, -1e+30
  %v10618 = vsel %vm2166, %v10594, -1e+30
  %v10619 = vsel %vm2166, %v10595, -1e+30
  %v10620 = vsel %vm2191, %v10596, -inf
  %10621 = vmax.xlane.f32.xlu0 %v10620
  %v10622 = vpop.xlane.xlu0 %10621
  %v10623 = vsel %vm2191, %v10597, -inf
  %10624 = vmax.xlane.f32.xlu0 %v10623
  %v10625 = vpop.xlane.xlu0 %10624
  %v10626 = vsel %vm2191, %v10598, -inf
  %10627 = vmax.xlane.f32.xlu0 %v10626
  %v10628 = vpop.xlane.xlu0 %10627
  %v10629 = vsel %vm2191, %v10599, -inf
  %10630 = vmax.xlane.f32.xlu0 %v10629
  %v10631 = vpop.xlane.xlu0 %10630
  %v10632 = vsel %vm2191, %v10600, -inf
  %10633 = vmax.xlane.f32.xlu0 %v10632
  %v10634 = vpop.xlane.xlu0 %10633
  %v10635 = vsel %vm2191, %v10601, -inf
  %10636 = vmax.xlane.f32.xlu0 %v10635
  %v10637 = vpop.xlane.xlu0 %10636
  %v10638 = vsel %vm2191, %v10602, -inf
  %10639 = vmax.xlane.f32.xlu0 %v10638
  %v10640 = vpop.xlane.xlu0 %10639
  %v10641 = vsel %vm2191, %v10603, -inf
  %10642 = vmax.xlane.f32.xlu0 %v10641
  %v10643 = vpop.xlane.xlu0 %10642
  %v10644 = vsel %vm2191, %v10604, -inf
  %10645 = vmax.xlane.f32.xlu0 %v10644
  %v10646 = vpop.xlane.xlu0 %10645
  %v10647 = vsel %vm2191, %v10605, -inf
  %10648 = vmax.xlane.f32.xlu0 %v10647
  %v10649 = vpop.xlane.xlu0 %10648
  %v10650 = vsel %vm2191, %v10606, -inf
  %10651 = vmax.xlane.f32.xlu0 %v10650
  %v10652 = vpop.xlane.xlu0 %10651
  %v10653 = vsel %vm2191, %v10607, -inf
  %10654 = vmax.xlane.f32.xlu0 %v10653
  %v10655 = vpop.xlane.xlu0 %10654
  %v10656 = vsel %vm2191, %v10608, -inf
  %10657 = vmax.xlane.f32.xlu0 %v10656
  %v10658 = vpop.xlane.xlu0 %10657
  %v10659 = vsel %vm2191, %v10609, -inf
  %10660 = vmax.xlane.f32.xlu0 %v10659
  %v10661 = vpop.xlane.xlu0 %10660
  %v10662 = vsel %vm2191, %v10610, -inf
  %10663 = vmax.xlane.f32.xlu0 %v10662
  %v10664 = vpop.xlane.xlu0 %10663
  %v10665 = vsel %vm2191, %v10611, -inf
  %10666 = vmax.xlane.f32.xlu0 %v10665
  %v10667 = vpop.xlane.xlu0 %10666
  %v10668 = vsel %vm2191, %v10612, -inf
  %10669 = vmax.xlane.f32.xlu0 %v10668
  %v10670 = vpop.xlane.xlu0 %10669
  %v10671 = vsel %vm2191, %v10613, -inf
  %10672 = vmax.xlane.f32.xlu0 %v10671
  %v10673 = vpop.xlane.xlu0 %10672
  %v10674 = vsel %vm2191, %v10614, -inf
  %10675 = vmax.xlane.f32.xlu0 %v10674
  %v10676 = vpop.xlane.xlu0 %10675
  %v10677 = vsel %vm2191, %v10615, -inf
  %10678 = vmax.xlane.f32.xlu0 %v10677
  %v10679 = vpop.xlane.xlu0 %10678
  %v10680 = vsel %vm2191, %v10616, -inf
  %10681 = vmax.xlane.f32.xlu0 %v10680
  %v10682 = vpop.xlane.xlu0 %10681
  %v10683 = vsel %vm2191, %v10617, -inf
  %10684 = vmax.xlane.f32.xlu0 %v10683
  %v10685 = vpop.xlane.xlu0 %10684
  %v10686 = vsel %vm2191, %v10618, -inf
  %10687 = vmax.xlane.f32.xlu0 %v10686
  %v10688 = vpop.xlane.xlu0 %10687
  %v10689 = vsel %vm2191, %v10619, -inf
  %10690 = vmax.xlane.f32.xlu0 %v10689
  %v10691 = vpop.xlane.xlu0 %10690
  %v10692 = vsub.f32 %v10596, %v10622
  %v10693 = vsub.f32 %v10597, %v10625
  %v10694 = vsub.f32 %v10598, %v10628
  %v10695 = vsub.f32 %v10599, %v10631
  %v10696 = vsub.f32 %v10600, %v10634
  %v10697 = vsub.f32 %v10601, %v10637
  %v10698 = vsub.f32 %v10602, %v10640
  %v10699 = vsub.f32 %v10603, %v10643
  %v10700 = vsub.f32 %v10604, %v10646
  %v10701 = vsub.f32 %v10605, %v10649
  %v10702 = vsub.f32 %v10606, %v10652
  %v10703 = vsub.f32 %v10607, %v10655
  %v10704 = vsub.f32 %v10608, %v10658
  %v10705 = vsub.f32 %v10609, %v10661
  %v10706 = vsub.f32 %v10610, %v10664
  %v10707 = vsub.f32 %v10611, %v10667
  %v10708 = vsub.f32 %v10612, %v10670
  %v10709 = vsub.f32 %v10613, %v10673
  %v10710 = vsub.f32 %v10614, %v10676
  %v10711 = vsub.f32 %v10615, %v10679
  %v10712 = vsub.f32 %v10616, %v10682
  %v10713 = vsub.f32 %v10617, %v10685
  %v10714 = vsub.f32 %v10618, %v10688
  %v10715 = vsub.f32 %v10619, %v10691
  %v10716 = vmul.f32 %v10692, 1.442695
  %v10717 = vpow.pop %v10716
  %v10718 = vmul.f32 %v10693, 1.442695
  %v10719 = vpow.pop %v10718
  %v10720 = vmul.f32 %v10694, 1.442695
  %v10721 = vpow.pop %v10720
  %v10722 = vmul.f32 %v10695, 1.442695
  %v10723 = vpow.pop %v10722
  %v10724 = vmul.f32 %v10696, 1.442695
  %v10725 = vpow.pop %v10724
  %v10726 = vmul.f32 %v10697, 1.442695
  %v10727 = vpow.pop %v10726
  %v10728 = vmul.f32 %v10698, 1.442695
  %v10729 = vpow.pop %v10728
  %v10730 = vmul.f32 %v10699, 1.442695
  %v10731 = vpow.pop %v10730
  %v10732 = vmul.f32 %v10700, 1.442695
  %v10733 = vpow.pop %v10732
  %v10734 = vmul.f32 %v10701, 1.442695
  %v10735 = vpow.pop %v10734
  %v10736 = vmul.f32 %v10702, 1.442695
  %v10737 = vpow.pop %v10736
  %v10738 = vmul.f32 %v10703, 1.442695
  %v10739 = vpow.pop %v10738
  %v10740 = vmul.f32 %v10704, 1.442695
  %v10741 = vpow.pop %v10740
  %v10742 = vmul.f32 %v10705, 1.442695
  %v10743 = vpow.pop %v10742
  %v10744 = vmul.f32 %v10706, 1.442695
  %v10745 = vpow.pop %v10744
  %v10746 = vmul.f32 %v10707, 1.442695
  %v10747 = vpow.pop %v10746
  %v10748 = vmul.f32 %v10708, 1.442695
  %v10749 = vpow.pop %v10748
  %v10750 = vmul.f32 %v10709, 1.442695
  %v10751 = vpow.pop %v10750
  %v10752 = vmul.f32 %v10710, 1.442695
  %v10753 = vpow.pop %v10752
  %v10754 = vmul.f32 %v10711, 1.442695
  %v10755 = vpow.pop %v10754
  %v10756 = vmul.f32 %v10712, 1.442695
  %v10757 = vpow.pop %v10756
  %v10758 = vmul.f32 %v10713, 1.442695
  %v10759 = vpow.pop %v10758
  %v10760 = vmul.f32 %v10714, 1.442695
  %v10761 = vpow.pop %v10760
  %v10762 = vmul.f32 %v10715, 1.442695
  %v10763 = vpow.pop %v10762
  %v10764 = vsel %vm2191, %v10717, 0.0
  %10765 = vadd.xlane.f32.xlu0 %v10764
  %v10766 = vpop.xlane.xlu0 %10765
  %v10767 = vsel %vm2191, %v10719, 0.0
  %10768 = vadd.xlane.f32.xlu0 %v10767
  %v10769 = vpop.xlane.xlu0 %10768
  %v10770 = vsel %vm2191, %v10721, 0.0
  %10771 = vadd.xlane.f32.xlu0 %v10770
  %v10772 = vpop.xlane.xlu0 %10771
  %v10773 = vsel %vm2191, %v10723, 0.0
  %10774 = vadd.xlane.f32.xlu0 %v10773
  %v10775 = vpop.xlane.xlu0 %10774
  %v10776 = vsel %vm2191, %v10725, 0.0
  %10777 = vadd.xlane.f32.xlu0 %v10776
  %v10778 = vpop.xlane.xlu0 %10777
  %v10779 = vsel %vm2191, %v10727, 0.0
  %10780 = vadd.xlane.f32.xlu0 %v10779
  %v10781 = vpop.xlane.xlu0 %10780
  %v10782 = vsel %vm2191, %v10729, 0.0
  %10783 = vadd.xlane.f32.xlu0 %v10782
  %v10784 = vpop.xlane.xlu0 %10783
  %v10785 = vsel %vm2191, %v10731, 0.0
  %10786 = vadd.xlane.f32.xlu0 %v10785
  %v10787 = vpop.xlane.xlu0 %10786
  %v10788 = vsel %vm2191, %v10733, 0.0
  %10789 = vadd.xlane.f32.xlu0 %v10788
  %v10790 = vpop.xlane.xlu0 %10789
  %v10791 = vsel %vm2191, %v10735, 0.0
  %10792 = vadd.xlane.f32.xlu0 %v10791
  %v10793 = vpop.xlane.xlu0 %10792
  %v10794 = vsel %vm2191, %v10737, 0.0
  %10795 = vadd.xlane.f32.xlu0 %v10794
  %v10796 = vpop.xlane.xlu0 %10795
  %v10797 = vsel %vm2191, %v10739, 0.0
  %10798 = vadd.xlane.f32.xlu0 %v10797
  %v10799 = vpop.xlane.xlu0 %10798
  %v10800 = vsel %vm2191, %v10741, 0.0
  %10801 = vadd.xlane.f32.xlu0 %v10800
  %v10802 = vpop.xlane.xlu0 %10801
  %v10803 = vsel %vm2191, %v10743, 0.0
  %10804 = vadd.xlane.f32.xlu0 %v10803
  %v10805 = vpop.xlane.xlu0 %10804
  %v10806 = vsel %vm2191, %v10745, 0.0
  %10807 = vadd.xlane.f32.xlu0 %v10806
  %v10808 = vpop.xlane.xlu0 %10807
  %v10809 = vsel %vm2191, %v10747, 0.0
  %10810 = vadd.xlane.f32.xlu0 %v10809
  %v10811 = vpop.xlane.xlu0 %10810
  %v10812 = vsel %vm2191, %v10749, 0.0
  %10813 = vadd.xlane.f32.xlu0 %v10812
  %v10814 = vpop.xlane.xlu0 %10813
  %v10815 = vsel %vm2191, %v10751, 0.0
  %10816 = vadd.xlane.f32.xlu0 %v10815
  %v10817 = vpop.xlane.xlu0 %10816
  %v10818 = vsel %vm2191, %v10753, 0.0
  %10819 = vadd.xlane.f32.xlu0 %v10818
  %v10820 = vpop.xlane.xlu0 %10819
  %v10821 = vsel %vm2191, %v10755, 0.0
  %10822 = vadd.xlane.f32.xlu0 %v10821
  %v10823 = vpop.xlane.xlu0 %10822
  %v10824 = vsel %vm2191, %v10757, 0.0
  %10825 = vadd.xlane.f32.xlu0 %v10824
  %v10826 = vpop.xlane.xlu0 %10825
  %v10827 = vsel %vm2191, %v10759, 0.0
  %10828 = vadd.xlane.f32.xlu0 %v10827
  %v10829 = vpop.xlane.xlu0 %10828
  %v10830 = vsel %vm2191, %v10761, 0.0
  %10831 = vadd.xlane.f32.xlu0 %v10830
  %v10832 = vpop.xlane.xlu0 %10831
  %v10833 = vsel %vm2191, %v10763, 0.0
  %10834 = vadd.xlane.f32.xlu0 %v10833
  %v10835 = vpop.xlane.xlu0 %10834
  %v10836 = vrcp.pop %v10766
  %v10837 = vrcp.pop %v10769
  %v10838 = vrcp.pop %v10772
  %v10839 = vrcp.pop %v10775
  %v10840 = vrcp.pop %v10778
  %v10841 = vrcp.pop %v10781
  %v10842 = vrcp.pop %v10784
  %v10843 = vrcp.pop %v10787
  %v10844 = vrcp.pop %v10790
  %v10845 = vrcp.pop %v10793
  %v10846 = vrcp.pop %v10796
  %v10847 = vrcp.pop %v10799
  %v10848 = vrcp.pop %v10802
  %v10849 = vrcp.pop %v10805
  %v10850 = vrcp.pop %v10808
  %v10851 = vrcp.pop %v10811
  %v10852 = vrcp.pop %v10814
  %v10853 = vrcp.pop %v10817
  %v10854 = vrcp.pop %v10820
  %v10855 = vrcp.pop %v10823
  %v10856 = vrcp.pop %v10826
  %v10857 = vrcp.pop %v10829
  %v10858 = vrcp.pop %v10832
  %v10859 = vrcp.pop %v10835
  %v10860 = vmul.f32 %v10717, %v10836
  %v10861 = vmul.f32 %v10719, %v10837
  %v10862 = vmul.f32 %v10721, %v10838
  %v10863 = vmul.f32 %v10723, %v10839
  %v10864 = vmul.f32 %v10725, %v10840
  %v10865 = vmul.f32 %v10727, %v10841
  %v10866 = vmul.f32 %v10729, %v10842
  %v10867 = vmul.f32 %v10731, %v10843
  %v10868 = vmul.f32 %v10733, %v10844
  %v10869 = vmul.f32 %v10735, %v10845
  %v10870 = vmul.f32 %v10737, %v10846
  %v10871 = vmul.f32 %v10739, %v10847
  %v10872 = vmul.f32 %v10741, %v10848
  %v10873 = vmul.f32 %v10743, %v10849
  %v10874 = vmul.f32 %v10745, %v10850
  %v10875 = vmul.f32 %v10747, %v10851
  %v10876 = vmul.f32 %v10749, %v10852
  %v10877 = vmul.f32 %v10751, %v10853
  %v10878 = vmul.f32 %v10753, %v10854
  %v10879 = vmul.f32 %v10755, %v10855
  %v10880 = vmul.f32 %v10757, %v10856
  %v10881 = vmul.f32 %v10759, %v10857
  %v10882 = vmul.f32 %v10761, %v10858
  %v10883 = vmul.f32 %v10763, %v10859
  %v10885 = vsel %vm2191, %v10860, 0
  %v10888 = vsel %vm2191, %v10861, 0
  %v10891 = vsel %vm2191, %v10862, 0
  %10893 = vmatprep.subr.mxu0 0.0
  %10894 = vmatpush1.msra.mxu0 0.0
  %10895 = vmatprep.subr.mxu0 0.0
  %10896 = vmatpush1.msra.mxu0 0.0
  %10897 = vmatprep.subr.mxu0 0.0
  %10898 = vmatpush1.msra.mxu0 0.0
  %10899 = vmatprep.subr.mxu0 0.0
  %10900 = vmatpush1.msra.mxu0 0.0
  %10901 = vmatprep.subr.mxu0 0.0
  %10902 = vmatpush1.msra.mxu0 0.0
  %10903 = vmatprep.subr.mxu0 0.0
  %10904 = vmatpush1.msra.mxu0 0.0
  %10905 = vmatprep.subr.mxu0 0.0
  %10906 = vmatpush1.msra.mxu0 0.0
  %10907 = vmatprep.subr.mxu0 0.0
  %10908 = vmatpush1.msra.mxu0 0.0
  %10909 = vmatprep.subr.mxu0 0.0
  %10910 = vmatpush1.msra.mxu0 0.0
  %10911 = vmatprep.subr.mxu0 0.0
  %10912 = vmatpush1.msra.mxu0 0.0
  %10913 = vmatprep.subr.mxu0 0.0
  %10914 = vmatpush1.msra.mxu0 0.0
  %10915 = vmatprep.subr.mxu0 0.0
  %10916 = vmatpush1.msra.mxu0 0.0
  %10917 = vmatprep.subr.mxu0 0.0
  %10918 = vmatpush1.msra.mxu0 0.0
  %10919 = vmatprep.subr.mxu0 0.0
  %10920 = vmatpush1.msra.mxu0 %v9680
  %10921 = vmatprep.subr.mxu0 0.0
  %10922 = vmatpush1.msra.mxu0 %v9675
  %10923 = vmatprep.subr.mxu0 0.0
  %10924 = vmatpush1.msra.mxu0 %v9670
  %10925 = vmatprep.subr.mxu0 0.0
  %10926 = vmatpush2.msra.mxu0 0.0
  %10927 = vmatprep.subr.mxu0 0.0
  %10928 = vmatpush2.msra.mxu0 0.0
  %10929 = vmatprep.subr.mxu0 0.0
  %10930 = vmatpush2.msra.mxu0 0.0
  %10931 = vmatprep.subr.mxu0 0.0
  %10932 = vmatpush2.msra.mxu0 0.0
  %10933 = vmatprep.subr.mxu0 0.0
  %10934 = vmatpush2.msra.mxu0 0.0
  %10935 = vmatprep.subr.mxu0 0.0
  %10936 = vmatpush2.msra.mxu0 0.0
  %10937 = vmatprep.subr.mxu0 0.0
  %10938 = vmatpush2.msra.mxu0 0.0
  %10939 = vmatprep.subr.mxu0 0.0
  %10940 = vmatpush2.msra.mxu0 0.0
  %10941 = vmatprep.subr.mxu0 0.0
  %10942 = vmatpush2.msra.mxu0 0.0
  %10943 = vmatprep.subr.mxu0 0.0
  %10944 = vmatpush2.msra.mxu0 0.0
  %10945 = vmatprep.subr.mxu0 0.0
  %10946 = vmatpush2.msra.mxu0 0.0
  %10947 = vmatprep.subr.mxu0 0.0
  %10948 = vmatpush2.msra.mxu0 0.0
  %10949 = vmatprep.subr.mxu0 0.0
  %10950 = vmatpush2.msra.mxu0 0.0
  %10951 = vmatprep.subr.mxu0 0.0
  %10952 = vmatpush2.msra.mxu0 0.0
  %10953 = vmatprep.subr.mxu0 0.0
  %10954 = vmatpush2.msra.mxu0 0.0
  %10955 = vmatprep.subr.mxu0 0.0
  %10956 = vmatpush2.msra.mxu0 0.0
  %10957 = vmatprep.mubr.f32.mxu0 0.0
  %10958 = vmatmul.mubr.f32.gmra.mxu0 %v10885
  %v10959 = vpop.f32.mrf.mxu0
  %v10960 = vadd.f32 0.0, %v10959
  %v10961 = vpop.f32.mrf.mxu0
  %10962 = vmatprep.mubr.f32.mxu0 0.0
  %10963 = vmatmul.mubr.f32.gmra.mxu0 %v10888
  %v10964 = vpop.f32.mrf.mxu0
  %v10965 = vadd.f32 0.0, %v10964
  %v10966 = vpop.f32.mrf.mxu0
  %10967 = vmatprep.mubr.f32.mxu0 0.0
  %10968 = vmatmul.mubr.f32.gmra.mxu0 %v10891
  %v10969 = vpop.f32.mrf.mxu0
  %v10970 = vadd.f32 0.0, %v10969
  %v10971 = vpop.f32.mrf.mxu0
  %10972 = vdwg.mxu0
  %v10974 = vsel %vm2191, %v10863, 0
  %v10977 = vsel %vm2191, %v10864, 0
  %v10980 = vsel %vm2191, %v10865, 0
  %10982 = vmatprep.subr.mxu0 0.0
  %10983 = vmatpush1.msra.mxu0 0.0
  %10984 = vmatprep.subr.mxu0 0.0
  %10985 = vmatpush1.msra.mxu0 0.0
  %10986 = vmatprep.subr.mxu0 0.0
  %10987 = vmatpush1.msra.mxu0 0.0
  %10988 = vmatprep.subr.mxu0 0.0
  %10989 = vmatpush1.msra.mxu0 0.0
  %10990 = vmatprep.subr.mxu0 0.0
  %10991 = vmatpush1.msra.mxu0 0.0
  %10992 = vmatprep.subr.mxu0 0.0
  %10993 = vmatpush1.msra.mxu0 0.0
  %10994 = vmatprep.subr.mxu0 0.0
  %10995 = vmatpush1.msra.mxu0 0.0
  %10996 = vmatprep.subr.mxu0 0.0
  %10997 = vmatpush1.msra.mxu0 0.0
  %10998 = vmatprep.subr.mxu0 0.0
  %10999 = vmatpush1.msra.mxu0 0.0
  %11000 = vmatprep.subr.mxu0 0.0
  %11001 = vmatpush1.msra.mxu0 0.0
  %11002 = vmatprep.subr.mxu0 0.0
  %11003 = vmatpush1.msra.mxu0 0.0
  %11004 = vmatprep.subr.mxu0 0.0
  %11005 = vmatpush1.msra.mxu0 0.0
  %11006 = vmatprep.subr.mxu0 0.0
  %11007 = vmatpush1.msra.mxu0 0.0
  %11008 = vmatprep.subr.mxu0 0.0
  %11009 = vmatpush1.msra.mxu0 %v9695
  %11010 = vmatprep.subr.mxu0 0.0
  %11011 = vmatpush1.msra.mxu0 %v9690
  %11012 = vmatprep.subr.mxu0 0.0
  %11013 = vmatpush1.msra.mxu0 %v9685
  %11014 = vmatprep.subr.mxu0 0.0
  %11015 = vmatpush2.msra.mxu0 0.0
  %11016 = vmatprep.subr.mxu0 0.0
  %11017 = vmatpush2.msra.mxu0 0.0
  %11018 = vmatprep.subr.mxu0 0.0
  %11019 = vmatpush2.msra.mxu0 0.0
  %11020 = vmatprep.subr.mxu0 0.0
  %11021 = vmatpush2.msra.mxu0 0.0
  %11022 = vmatprep.subr.mxu0 0.0
  %11023 = vmatpush2.msra.mxu0 0.0
  %11024 = vmatprep.subr.mxu0 0.0
  %11025 = vmatpush2.msra.mxu0 0.0
  %11026 = vmatprep.subr.mxu0 0.0
  %11027 = vmatpush2.msra.mxu0 0.0
  %11028 = vmatprep.subr.mxu0 0.0
  %11029 = vmatpush2.msra.mxu0 0.0
  %11030 = vmatprep.subr.mxu0 0.0
  %11031 = vmatpush2.msra.mxu0 0.0
  %11032 = vmatprep.subr.mxu0 0.0
  %11033 = vmatpush2.msra.mxu0 0.0
  %11034 = vmatprep.subr.mxu0 0.0
  %11035 = vmatpush2.msra.mxu0 0.0
  %11036 = vmatprep.subr.mxu0 0.0
  %11037 = vmatpush2.msra.mxu0 0.0
  %11038 = vmatprep.subr.mxu0 0.0
  %11039 = vmatpush2.msra.mxu0 0.0
  %11040 = vmatprep.subr.mxu0 0.0
  %11041 = vmatpush2.msra.mxu0 0.0
  %11042 = vmatprep.subr.mxu0 0.0
  %11043 = vmatpush2.msra.mxu0 0.0
  %11044 = vmatprep.subr.mxu0 0.0
  %11045 = vmatpush2.msra.mxu0 0.0
  %11046 = vmatprep.mubr.f32.mxu0 0.0
  %11047 = vmatmul.mubr.f32.gmra.mxu0 %v10974
  %v11048 = vpop.f32.mrf.mxu0
  %v11049 = vadd.f32 0.0, %v11048
  %v11050 = vpop.f32.mrf.mxu0
  %11051 = vmatprep.mubr.f32.mxu0 0.0
  %11052 = vmatmul.mubr.f32.gmra.mxu0 %v10977
  %v11053 = vpop.f32.mrf.mxu0
  %v11054 = vadd.f32 0.0, %v11053
  %v11055 = vpop.f32.mrf.mxu0
  %11056 = vmatprep.mubr.f32.mxu0 0.0
  %11057 = vmatmul.mubr.f32.gmra.mxu0 %v10980
  %v11058 = vpop.f32.mrf.mxu0
  %v11059 = vadd.f32 0.0, %v11058
  %v11060 = vpop.f32.mrf.mxu0
  %11061 = vdwg.mxu0
  %v11063 = vsel %vm2191, %v10866, 0
  %v11066 = vsel %vm2191, %v10867, 0
  %v11069 = vsel %vm2191, %v10868, 0
  %11071 = vmatprep.subr.mxu0 0.0
  %11072 = vmatpush1.msra.mxu0 0.0
  %11073 = vmatprep.subr.mxu0 0.0
  %11074 = vmatpush1.msra.mxu0 0.0
  %11075 = vmatprep.subr.mxu0 0.0
  %11076 = vmatpush1.msra.mxu0 0.0
  %11077 = vmatprep.subr.mxu0 0.0
  %11078 = vmatpush1.msra.mxu0 0.0
  %11079 = vmatprep.subr.mxu0 0.0
  %11080 = vmatpush1.msra.mxu0 0.0
  %11081 = vmatprep.subr.mxu0 0.0
  %11082 = vmatpush1.msra.mxu0 0.0
  %11083 = vmatprep.subr.mxu0 0.0
  %11084 = vmatpush1.msra.mxu0 0.0
  %11085 = vmatprep.subr.mxu0 0.0
  %11086 = vmatpush1.msra.mxu0 0.0
  %11087 = vmatprep.subr.mxu0 0.0
  %11088 = vmatpush1.msra.mxu0 0.0
  %11089 = vmatprep.subr.mxu0 0.0
  %11090 = vmatpush1.msra.mxu0 0.0
  %11091 = vmatprep.subr.mxu0 0.0
  %11092 = vmatpush1.msra.mxu0 0.0
  %11093 = vmatprep.subr.mxu0 0.0
  %11094 = vmatpush1.msra.mxu0 0.0
  %11095 = vmatprep.subr.mxu0 0.0
  %11096 = vmatpush1.msra.mxu0 0.0
  %11097 = vmatprep.subr.mxu0 0.0
  %11098 = vmatpush1.msra.mxu0 %v9710
  %11099 = vmatprep.subr.mxu0 0.0
  %11100 = vmatpush1.msra.mxu0 %v9705
  %11101 = vmatprep.subr.mxu0 0.0
  %11102 = vmatpush1.msra.mxu0 %v9700
  %11103 = vmatprep.subr.mxu0 0.0
  %11104 = vmatpush2.msra.mxu0 0.0
  %11105 = vmatprep.subr.mxu0 0.0
  %11106 = vmatpush2.msra.mxu0 0.0
  %11107 = vmatprep.subr.mxu0 0.0
  %11108 = vmatpush2.msra.mxu0 0.0
  %11109 = vmatprep.subr.mxu0 0.0
  %11110 = vmatpush2.msra.mxu0 0.0
  %11111 = vmatprep.subr.mxu0 0.0
  %11112 = vmatpush2.msra.mxu0 0.0
  %11113 = vmatprep.subr.mxu0 0.0
  %11114 = vmatpush2.msra.mxu0 0.0
  %11115 = vmatprep.subr.mxu0 0.0
  %11116 = vmatpush2.msra.mxu0 0.0
  %11117 = vmatprep.subr.mxu0 0.0
  %11118 = vmatpush2.msra.mxu0 0.0
  %11119 = vmatprep.subr.mxu0 0.0
  %11120 = vmatpush2.msra.mxu0 0.0
  %11121 = vmatprep.subr.mxu0 0.0
  %11122 = vmatpush2.msra.mxu0 0.0
  %11123 = vmatprep.subr.mxu0 0.0
  %11124 = vmatpush2.msra.mxu0 0.0
  %11125 = vmatprep.subr.mxu0 0.0
  %11126 = vmatpush2.msra.mxu0 0.0
  %11127 = vmatprep.subr.mxu0 0.0
  %11128 = vmatpush2.msra.mxu0 0.0
  %11129 = vmatprep.subr.mxu0 0.0
  %11130 = vmatpush2.msra.mxu0 0.0
  %11131 = vmatprep.subr.mxu0 0.0
  %11132 = vmatpush2.msra.mxu0 0.0
  %11133 = vmatprep.subr.mxu0 0.0
  %11134 = vmatpush2.msra.mxu0 0.0
  %11135 = vmatprep.mubr.f32.mxu0 0.0
  %11136 = vmatmul.mubr.f32.gmra.mxu0 %v11063
  %v11137 = vpop.f32.mrf.mxu0
  %v11138 = vadd.f32 0.0, %v11137
  %v11139 = vpop.f32.mrf.mxu0
  %11140 = vmatprep.mubr.f32.mxu0 0.0
  %11141 = vmatmul.mubr.f32.gmra.mxu0 %v11066
  %v11142 = vpop.f32.mrf.mxu0
  %v11143 = vadd.f32 0.0, %v11142
  %v11144 = vpop.f32.mrf.mxu0
  %11145 = vmatprep.mubr.f32.mxu0 0.0
  %11146 = vmatmul.mubr.f32.gmra.mxu0 %v11069
  %v11147 = vpop.f32.mrf.mxu0
  %v11148 = vadd.f32 0.0, %v11147
  %v11149 = vpop.f32.mrf.mxu0
  %11150 = vdwg.mxu0
  %v11152 = vsel %vm2191, %v10869, 0
  %v11155 = vsel %vm2191, %v10870, 0
  %v11158 = vsel %vm2191, %v10871, 0
  %11160 = vmatprep.subr.mxu0 0.0
  %11161 = vmatpush1.msra.mxu0 0.0
  %11162 = vmatprep.subr.mxu0 0.0
  %11163 = vmatpush1.msra.mxu0 0.0
  %11164 = vmatprep.subr.mxu0 0.0
  %11165 = vmatpush1.msra.mxu0 0.0
  %11166 = vmatprep.subr.mxu0 0.0
  %11167 = vmatpush1.msra.mxu0 0.0
  %11168 = vmatprep.subr.mxu0 0.0
  %11169 = vmatpush1.msra.mxu0 0.0
  %11170 = vmatprep.subr.mxu0 0.0
  %11171 = vmatpush1.msra.mxu0 0.0
  %11172 = vmatprep.subr.mxu0 0.0
  %11173 = vmatpush1.msra.mxu0 0.0
  %11174 = vmatprep.subr.mxu0 0.0
  %11175 = vmatpush1.msra.mxu0 0.0
  %11176 = vmatprep.subr.mxu0 0.0
  %11177 = vmatpush1.msra.mxu0 0.0
  %11178 = vmatprep.subr.mxu0 0.0
  %11179 = vmatpush1.msra.mxu0 0.0
  %11180 = vmatprep.subr.mxu0 0.0
  %11181 = vmatpush1.msra.mxu0 0.0
  %11182 = vmatprep.subr.mxu0 0.0
  %11183 = vmatpush1.msra.mxu0 0.0
  %11184 = vmatprep.subr.mxu0 0.0
  %11185 = vmatpush1.msra.mxu0 0.0
  %11186 = vmatprep.subr.mxu0 0.0
  %11187 = vmatpush1.msra.mxu0 %v9725
  %11188 = vmatprep.subr.mxu0 0.0
  %11189 = vmatpush1.msra.mxu0 %v9720
  %11190 = vmatprep.subr.mxu0 0.0
  %11191 = vmatpush1.msra.mxu0 %v9715
  %11192 = vmatprep.subr.mxu0 0.0
  %11193 = vmatpush2.msra.mxu0 0.0
  %11194 = vmatprep.subr.mxu0 0.0
  %11195 = vmatpush2.msra.mxu0 0.0
  %11196 = vmatprep.subr.mxu0 0.0
  %11197 = vmatpush2.msra.mxu0 0.0
  %11198 = vmatprep.subr.mxu0 0.0
  %11199 = vmatpush2.msra.mxu0 0.0
  %11200 = vmatprep.subr.mxu0 0.0
  %11201 = vmatpush2.msra.mxu0 0.0
  %11202 = vmatprep.subr.mxu0 0.0
  %11203 = vmatpush2.msra.mxu0 0.0
  %11204 = vmatprep.subr.mxu0 0.0
  %11205 = vmatpush2.msra.mxu0 0.0
  %11206 = vmatprep.subr.mxu0 0.0
  %11207 = vmatpush2.msra.mxu0 0.0
  %11208 = vmatprep.subr.mxu0 0.0
  %11209 = vmatpush2.msra.mxu0 0.0
  %11210 = vmatprep.subr.mxu0 0.0
  %11211 = vmatpush2.msra.mxu0 0.0
  %11212 = vmatprep.subr.mxu0 0.0
  %11213 = vmatpush2.msra.mxu0 0.0
  %11214 = vmatprep.subr.mxu0 0.0
  %11215 = vmatpush2.msra.mxu0 0.0
  %11216 = vmatprep.subr.mxu0 0.0
  %11217 = vmatpush2.msra.mxu0 0.0
  %11218 = vmatprep.subr.mxu0 0.0
  %11219 = vmatpush2.msra.mxu0 0.0
  %11220 = vmatprep.subr.mxu0 0.0
  %11221 = vmatpush2.msra.mxu0 0.0
  %11222 = vmatprep.subr.mxu0 0.0
  %11223 = vmatpush2.msra.mxu0 0.0
  %11224 = vmatprep.mubr.f32.mxu0 0.0
  %11225 = vmatmul.mubr.f32.gmra.mxu0 %v11152
  %v11226 = vpop.f32.mrf.mxu0
  %v11227 = vadd.f32 0.0, %v11226
  %v11228 = vpop.f32.mrf.mxu0
  %11229 = vmatprep.mubr.f32.mxu0 0.0
  %11230 = vmatmul.mubr.f32.gmra.mxu0 %v11155
  %v11231 = vpop.f32.mrf.mxu0
  %v11232 = vadd.f32 0.0, %v11231
  %v11233 = vpop.f32.mrf.mxu0
  %11234 = vmatprep.mubr.f32.mxu0 0.0
  %11235 = vmatmul.mubr.f32.gmra.mxu0 %v11158
  %v11236 = vpop.f32.mrf.mxu0
  %v11237 = vadd.f32 0.0, %v11236
  %v11238 = vpop.f32.mrf.mxu0
  %11239 = vdwg.mxu0
  %v11241 = vsel %vm2191, %v10872, 0
  %v11244 = vsel %vm2191, %v10873, 0
  %v11247 = vsel %vm2191, %v10874, 0
  %11249 = vmatprep.subr.mxu0 0.0
  %11250 = vmatpush1.msra.mxu0 0.0
  %11251 = vmatprep.subr.mxu0 0.0
  %11252 = vmatpush1.msra.mxu0 0.0
  %11253 = vmatprep.subr.mxu0 0.0
  %11254 = vmatpush1.msra.mxu0 0.0
  %11255 = vmatprep.subr.mxu0 0.0
  %11256 = vmatpush1.msra.mxu0 0.0
  %11257 = vmatprep.subr.mxu0 0.0
  %11258 = vmatpush1.msra.mxu0 0.0
  %11259 = vmatprep.subr.mxu0 0.0
  %11260 = vmatpush1.msra.mxu0 0.0
  %11261 = vmatprep.subr.mxu0 0.0
  %11262 = vmatpush1.msra.mxu0 0.0
  %11263 = vmatprep.subr.mxu0 0.0
  %11264 = vmatpush1.msra.mxu0 0.0
  %11265 = vmatprep.subr.mxu0 0.0
  %11266 = vmatpush1.msra.mxu0 0.0
  %11267 = vmatprep.subr.mxu0 0.0
  %11268 = vmatpush1.msra.mxu0 0.0
  %11269 = vmatprep.subr.mxu0 0.0
  %11270 = vmatpush1.msra.mxu0 0.0
  %11271 = vmatprep.subr.mxu0 0.0
  %11272 = vmatpush1.msra.mxu0 0.0
  %11273 = vmatprep.subr.mxu0 0.0
  %11274 = vmatpush1.msra.mxu0 0.0
  %11275 = vmatprep.subr.mxu0 0.0
  %11276 = vmatpush1.msra.mxu0 %v9740
  %11277 = vmatprep.subr.mxu0 0.0
  %11278 = vmatpush1.msra.mxu0 %v9735
  %11279 = vmatprep.subr.mxu0 0.0
  %11280 = vmatpush1.msra.mxu0 %v9730
  %11281 = vmatprep.subr.mxu0 0.0
  %11282 = vmatpush2.msra.mxu0 0.0
  %11283 = vmatprep.subr.mxu0 0.0
  %11284 = vmatpush2.msra.mxu0 0.0
  %11285 = vmatprep.subr.mxu0 0.0
  %11286 = vmatpush2.msra.mxu0 0.0
  %11287 = vmatprep.subr.mxu0 0.0
  %11288 = vmatpush2.msra.mxu0 0.0
  %11289 = vmatprep.subr.mxu0 0.0
  %11290 = vmatpush2.msra.mxu0 0.0
  %11291 = vmatprep.subr.mxu0 0.0
  %11292 = vmatpush2.msra.mxu0 0.0
  %11293 = vmatprep.subr.mxu0 0.0
  %11294 = vmatpush2.msra.mxu0 0.0
  %11295 = vmatprep.subr.mxu0 0.0
  %11296 = vmatpush2.msra.mxu0 0.0
  %11297 = vmatprep.subr.mxu0 0.0
  %11298 = vmatpush2.msra.mxu0 0.0
  %11299 = vmatprep.subr.mxu0 0.0
  %11300 = vmatpush2.msra.mxu0 0.0
  %11301 = vmatprep.subr.mxu0 0.0
  %11302 = vmatpush2.msra.mxu0 0.0
  %11303 = vmatprep.subr.mxu0 0.0
  %11304 = vmatpush2.msra.mxu0 0.0
  %11305 = vmatprep.subr.mxu0 0.0
  %11306 = vmatpush2.msra.mxu0 0.0
  %11307 = vmatprep.subr.mxu0 0.0
  %11308 = vmatpush2.msra.mxu0 0.0
  %11309 = vmatprep.subr.mxu0 0.0
  %11310 = vmatpush2.msra.mxu0 0.0
  %11311 = vmatprep.subr.mxu0 0.0
  %11312 = vmatpush2.msra.mxu0 0.0
  %11313 = vmatprep.mubr.f32.mxu0 0.0
  %11314 = vmatmul.mubr.f32.gmra.mxu0 %v11241
  %v11315 = vpop.f32.mrf.mxu0
  %v11316 = vadd.f32 0.0, %v11315
  %v11317 = vpop.f32.mrf.mxu0
  %11318 = vmatprep.mubr.f32.mxu0 0.0
  %11319 = vmatmul.mubr.f32.gmra.mxu0 %v11244
  %v11320 = vpop.f32.mrf.mxu0
  %v11321 = vadd.f32 0.0, %v11320
  %v11322 = vpop.f32.mrf.mxu0
  %11323 = vmatprep.mubr.f32.mxu0 0.0
  %11324 = vmatmul.mubr.f32.gmra.mxu0 %v11247
  %v11325 = vpop.f32.mrf.mxu0
  %v11326 = vadd.f32 0.0, %v11325
  %v11327 = vpop.f32.mrf.mxu0
  %11328 = vdwg.mxu0
  %v11330 = vsel %vm2191, %v10875, 0
  %v11333 = vsel %vm2191, %v10876, 0
  %v11336 = vsel %vm2191, %v10877, 0
  %11338 = vmatprep.subr.mxu0 0.0
  %11339 = vmatpush1.msra.mxu0 0.0
  %11340 = vmatprep.subr.mxu0 0.0
  %11341 = vmatpush1.msra.mxu0 0.0
  %11342 = vmatprep.subr.mxu0 0.0
  %11343 = vmatpush1.msra.mxu0 0.0
  %11344 = vmatprep.subr.mxu0 0.0
  %11345 = vmatpush1.msra.mxu0 0.0
  %11346 = vmatprep.subr.mxu0 0.0
  %11347 = vmatpush1.msra.mxu0 0.0
  %11348 = vmatprep.subr.mxu0 0.0
  %11349 = vmatpush1.msra.mxu0 0.0
  %11350 = vmatprep.subr.mxu0 0.0
  %11351 = vmatpush1.msra.mxu0 0.0
  %11352 = vmatprep.subr.mxu0 0.0
  %11353 = vmatpush1.msra.mxu0 0.0
  %11354 = vmatprep.subr.mxu0 0.0
  %11355 = vmatpush1.msra.mxu0 0.0
  %11356 = vmatprep.subr.mxu0 0.0
  %11357 = vmatpush1.msra.mxu0 0.0
  %11358 = vmatprep.subr.mxu0 0.0
  %11359 = vmatpush1.msra.mxu0 0.0
  %11360 = vmatprep.subr.mxu0 0.0
  %11361 = vmatpush1.msra.mxu0 0.0
  %11362 = vmatprep.subr.mxu0 0.0
  %11363 = vmatpush1.msra.mxu0 0.0
  %11364 = vmatprep.subr.mxu0 0.0
  %11365 = vmatpush1.msra.mxu0 %v9755
  %11366 = vmatprep.subr.mxu0 0.0
  %11367 = vmatpush1.msra.mxu0 %v9750
  %11368 = vmatprep.subr.mxu0 0.0
  %11369 = vmatpush1.msra.mxu0 %v9745
  %11370 = vmatprep.subr.mxu0 0.0
  %11371 = vmatpush2.msra.mxu0 0.0
  %11372 = vmatprep.subr.mxu0 0.0
  %11373 = vmatpush2.msra.mxu0 0.0
  %11374 = vmatprep.subr.mxu0 0.0
  %11375 = vmatpush2.msra.mxu0 0.0
  %11376 = vmatprep.subr.mxu0 0.0
  %11377 = vmatpush2.msra.mxu0 0.0
  %11378 = vmatprep.subr.mxu0 0.0
  %11379 = vmatpush2.msra.mxu0 0.0
  %11380 = vmatprep.subr.mxu0 0.0
  %11381 = vmatpush2.msra.mxu0 0.0
  %11382 = vmatprep.subr.mxu0 0.0
  %11383 = vmatpush2.msra.mxu0 0.0
  %11384 = vmatprep.subr.mxu0 0.0
  %11385 = vmatpush2.msra.mxu0 0.0
  %11386 = vmatprep.subr.mxu0 0.0
  %11387 = vmatpush2.msra.mxu0 0.0
  %11388 = vmatprep.subr.mxu0 0.0
  %11389 = vmatpush2.msra.mxu0 0.0
  %11390 = vmatprep.subr.mxu0 0.0
  %11391 = vmatpush2.msra.mxu0 0.0
  %11392 = vmatprep.subr.mxu0 0.0
  %11393 = vmatpush2.msra.mxu0 0.0
  %11394 = vmatprep.subr.mxu0 0.0
  %11395 = vmatpush2.msra.mxu0 0.0
  %11396 = vmatprep.subr.mxu0 0.0
  %11397 = vmatpush2.msra.mxu0 0.0
  %11398 = vmatprep.subr.mxu0 0.0
  %11399 = vmatpush2.msra.mxu0 0.0
  %11400 = vmatprep.subr.mxu0 0.0
  %11401 = vmatpush2.msra.mxu0 0.0
  %11402 = vmatprep.mubr.f32.mxu0 0.0
  %11403 = vmatmul.mubr.f32.gmra.mxu0 %v11330
  %v11404 = vpop.f32.mrf.mxu0
  %v11405 = vadd.f32 0.0, %v11404
  %v11406 = vpop.f32.mrf.mxu0
  %11407 = vmatprep.mubr.f32.mxu0 0.0
  %11408 = vmatmul.mubr.f32.gmra.mxu0 %v11333
  %v11409 = vpop.f32.mrf.mxu0
  %v11410 = vadd.f32 0.0, %v11409
  %v11411 = vpop.f32.mrf.mxu0
  %11412 = vmatprep.mubr.f32.mxu0 0.0
  %11413 = vmatmul.mubr.f32.gmra.mxu0 %v11336
  %v11414 = vpop.f32.mrf.mxu0
  %v11415 = vadd.f32 0.0, %v11414
  %v11416 = vpop.f32.mrf.mxu0
  %11417 = vdwg.mxu0
  %v11419 = vsel %vm2191, %v10878, 0
  %v11422 = vsel %vm2191, %v10879, 0
  %v11425 = vsel %vm2191, %v10880, 0
  %11427 = vmatprep.subr.mxu0 0.0
  %11428 = vmatpush1.msra.mxu0 0.0
  %11429 = vmatprep.subr.mxu0 0.0
  %11430 = vmatpush1.msra.mxu0 0.0
  %11431 = vmatprep.subr.mxu0 0.0
  %11432 = vmatpush1.msra.mxu0 0.0
  %11433 = vmatprep.subr.mxu0 0.0
  %11434 = vmatpush1.msra.mxu0 0.0
  %11435 = vmatprep.subr.mxu0 0.0
  %11436 = vmatpush1.msra.mxu0 0.0
  %11437 = vmatprep.subr.mxu0 0.0
  %11438 = vmatpush1.msra.mxu0 0.0
  %11439 = vmatprep.subr.mxu0 0.0
  %11440 = vmatpush1.msra.mxu0 0.0
  %11441 = vmatprep.subr.mxu0 0.0
  %11442 = vmatpush1.msra.mxu0 0.0
  %11443 = vmatprep.subr.mxu0 0.0
  %11444 = vmatpush1.msra.mxu0 0.0
  %11445 = vmatprep.subr.mxu0 0.0
  %11446 = vmatpush1.msra.mxu0 0.0
  %11447 = vmatprep.subr.mxu0 0.0
  %11448 = vmatpush1.msra.mxu0 0.0
  %11449 = vmatprep.subr.mxu0 0.0
  %11450 = vmatpush1.msra.mxu0 0.0
  %11451 = vmatprep.subr.mxu0 0.0
  %11452 = vmatpush1.msra.mxu0 0.0
  %11453 = vmatprep.subr.mxu0 0.0
  %11454 = vmatpush1.msra.mxu0 %v9770
  %11455 = vmatprep.subr.mxu0 0.0
  %11456 = vmatpush1.msra.mxu0 %v9765
  %11457 = vmatprep.subr.mxu0 0.0
  %11458 = vmatpush1.msra.mxu0 %v9760
  %11459 = vmatprep.subr.mxu0 0.0
  %11460 = vmatpush2.msra.mxu0 0.0
  %11461 = vmatprep.subr.mxu0 0.0
  %11462 = vmatpush2.msra.mxu0 0.0
  %11463 = vmatprep.subr.mxu0 0.0
  %11464 = vmatpush2.msra.mxu0 0.0
  %11465 = vmatprep.subr.mxu0 0.0
  %11466 = vmatpush2.msra.mxu0 0.0
  %11467 = vmatprep.subr.mxu0 0.0
  %11468 = vmatpush2.msra.mxu0 0.0
  %11469 = vmatprep.subr.mxu0 0.0
  %11470 = vmatpush2.msra.mxu0 0.0
  %11471 = vmatprep.subr.mxu0 0.0
  %11472 = vmatpush2.msra.mxu0 0.0
  %11473 = vmatprep.subr.mxu0 0.0
  %11474 = vmatpush2.msra.mxu0 0.0
  %11475 = vmatprep.subr.mxu0 0.0
  %11476 = vmatpush2.msra.mxu0 0.0
  %11477 = vmatprep.subr.mxu0 0.0
  %11478 = vmatpush2.msra.mxu0 0.0
  %11479 = vmatprep.subr.mxu0 0.0
  %11480 = vmatpush2.msra.mxu0 0.0
  %11481 = vmatprep.subr.mxu0 0.0
  %11482 = vmatpush2.msra.mxu0 0.0
  %11483 = vmatprep.subr.mxu0 0.0
  %11484 = vmatpush2.msra.mxu0 0.0
  %11485 = vmatprep.subr.mxu0 0.0
  %11486 = vmatpush2.msra.mxu0 0.0
  %11487 = vmatprep.subr.mxu0 0.0
  %11488 = vmatpush2.msra.mxu0 0.0
  %11489 = vmatprep.subr.mxu0 0.0
  %11490 = vmatpush2.msra.mxu0 0.0
  %11491 = vmatprep.mubr.f32.mxu0 0.0
  %11492 = vmatmul.mubr.f32.gmra.mxu0 %v11419
  %v11493 = vpop.f32.mrf.mxu0
  %v11494 = vadd.f32 0.0, %v11493
  %v11495 = vpop.f32.mrf.mxu0
  %11496 = vmatprep.mubr.f32.mxu0 0.0
  %11497 = vmatmul.mubr.f32.gmra.mxu0 %v11422
  %v11498 = vpop.f32.mrf.mxu0
  %v11499 = vadd.f32 0.0, %v11498
  %v11500 = vpop.f32.mrf.mxu0
  %11501 = vmatprep.mubr.f32.mxu0 0.0
  %11502 = vmatmul.mubr.f32.gmra.mxu0 %v11425
  %v11503 = vpop.f32.mrf.mxu0
  %v11504 = vadd.f32 0.0, %v11503
  %v11505 = vpop.f32.mrf.mxu0
  %11506 = vdwg.mxu0
  %v11508 = vsel %vm2191, %v10881, 0
  %v11511 = vsel %vm2191, %v10882, 0
  %v11514 = vsel %vm2191, %v10883, 0
  %11516 = vmatprep.subr.mxu0 0.0
  %11517 = vmatpush1.msra.mxu0 0.0
  %11518 = vmatprep.subr.mxu0 0.0
  %11519 = vmatpush1.msra.mxu0 0.0
  %11520 = vmatprep.subr.mxu0 0.0
  %11521 = vmatpush1.msra.mxu0 0.0
  %11522 = vmatprep.subr.mxu0 0.0
  %11523 = vmatpush1.msra.mxu0 0.0
  %11524 = vmatprep.subr.mxu0 0.0
  %11525 = vmatpush1.msra.mxu0 0.0
  %11526 = vmatprep.subr.mxu0 0.0
  %11527 = vmatpush1.msra.mxu0 0.0
  %11528 = vmatprep.subr.mxu0 0.0
  %11529 = vmatpush1.msra.mxu0 0.0
  %11530 = vmatprep.subr.mxu0 0.0
  %11531 = vmatpush1.msra.mxu0 0.0
  %11532 = vmatprep.subr.mxu0 0.0
  %11533 = vmatpush1.msra.mxu0 0.0
  %11534 = vmatprep.subr.mxu0 0.0
  %11535 = vmatpush1.msra.mxu0 0.0
  %11536 = vmatprep.subr.mxu0 0.0
  %11537 = vmatpush1.msra.mxu0 0.0
  %11538 = vmatprep.subr.mxu0 0.0
  %11539 = vmatpush1.msra.mxu0 0.0
  %11540 = vmatprep.subr.mxu0 0.0
  %11541 = vmatpush1.msra.mxu0 0.0
  %11542 = vmatprep.subr.mxu0 0.0
  %11543 = vmatpush1.msra.mxu0 %v9785
  %11544 = vmatprep.subr.mxu0 0.0
  %11545 = vmatpush1.msra.mxu0 %v9780
  %11546 = vmatprep.subr.mxu0 0.0
  %11547 = vmatpush1.msra.mxu0 %v9775
  %11548 = vmatprep.subr.mxu0 0.0
  %11549 = vmatpush2.msra.mxu0 0.0
  %11550 = vmatprep.subr.mxu0 0.0
  %11551 = vmatpush2.msra.mxu0 0.0
  %11552 = vmatprep.subr.mxu0 0.0
  %11553 = vmatpush2.msra.mxu0 0.0
  %11554 = vmatprep.subr.mxu0 0.0
  %11555 = vmatpush2.msra.mxu0 0.0
  %11556 = vmatprep.subr.mxu0 0.0
  %11557 = vmatpush2.msra.mxu0 0.0
  %11558 = vmatprep.subr.mxu0 0.0
  %11559 = vmatpush2.msra.mxu0 0.0
  %11560 = vmatprep.subr.mxu0 0.0
  %11561 = vmatpush2.msra.mxu0 0.0
  %11562 = vmatprep.subr.mxu0 0.0
  %11563 = vmatpush2.msra.mxu0 0.0
  %11564 = vmatprep.subr.mxu0 0.0
  %11565 = vmatpush2.msra.mxu0 0.0
  %11566 = vmatprep.subr.mxu0 0.0
  %11567 = vmatpush2.msra.mxu0 0.0
  %11568 = vmatprep.subr.mxu0 0.0
  %11569 = vmatpush2.msra.mxu0 0.0
  %11570 = vmatprep.subr.mxu0 0.0
  %11571 = vmatpush2.msra.mxu0 0.0
  %11572 = vmatprep.subr.mxu0 0.0
  %11573 = vmatpush2.msra.mxu0 0.0
  %11574 = vmatprep.subr.mxu0 0.0
  %11575 = vmatpush2.msra.mxu0 0.0
  %11576 = vmatprep.subr.mxu0 0.0
  %11577 = vmatpush2.msra.mxu0 0.0
  %11578 = vmatprep.subr.mxu0 0.0
  %11579 = vmatpush2.msra.mxu0 0.0
  %11580 = vmatprep.mubr.f32.mxu0 0.0
  %11581 = vmatmul.mubr.f32.gmra.mxu0 %v11508
  %v11582 = vpop.f32.mrf.mxu0
  %v11583 = vadd.f32 0.0, %v11582
  %v11584 = vpop.f32.mrf.mxu0
  %11585 = vmatprep.mubr.f32.mxu0 0.0
  %11586 = vmatmul.mubr.f32.gmra.mxu0 %v11511
  %v11587 = vpop.f32.mrf.mxu0
  %v11588 = vadd.f32 0.0, %v11587
  %v11589 = vpop.f32.mrf.mxu0
  %11590 = vmatprep.mubr.f32.mxu0 0.0
  %11591 = vmatmul.mubr.f32.gmra.mxu0 %v11514
  %v11592 = vpop.f32.mrf.mxu0
  %v11593 = vadd.f32 0.0, %v11592
  %v11594 = vpop.f32.mrf.mxu0
  %11595 = vdwg.mxu0
  %11620 = vrot.lane.b32.xlu0 %v10960, 16
  %v11621 = vpop.permute.xlu0 %11620
  %11622 = vrot.lane.b32.xlu0 %v10965, 16
  %v11623 = vpop.permute.xlu0 %11622
  %11624 = vrot.lane.b32.xlu0 %v10970, 16
  %v11625 = vpop.permute.xlu0 %11624
  %11626 = vrot.lane.b32.xlu0 %v11049, 16
  %v11627 = vpop.permute.xlu0 %11626
  %11628 = vrot.lane.b32.xlu0 %v11054, 16
  %v11629 = vpop.permute.xlu0 %11628
  %11630 = vrot.lane.b32.xlu0 %v11059, 16
  %v11631 = vpop.permute.xlu0 %11630
  %11632 = vrot.lane.b32.xlu0 %v11138, 16
  %v11633 = vpop.permute.xlu0 %11632
  %11634 = vrot.lane.b32.xlu0 %v11143, 16
  %v11635 = vpop.permute.xlu0 %11634
  %11636 = vrot.lane.b32.xlu0 %v11148, 16
  %v11637 = vpop.permute.xlu0 %11636
  %11638 = vrot.lane.b32.xlu0 %v11227, 16
  %v11639 = vpop.permute.xlu0 %11638
  %11640 = vrot.lane.b32.xlu0 %v11232, 16
  %v11641 = vpop.permute.xlu0 %11640
  %11642 = vrot.lane.b32.xlu0 %v11237, 16
  %v11643 = vpop.permute.xlu0 %11642
  %11644 = vrot.lane.b32.xlu0 %v11316, 16
  %v11645 = vpop.permute.xlu0 %11644
  %11646 = vrot.lane.b32.xlu0 %v11321, 16
  %v11647 = vpop.permute.xlu0 %11646
  %11648 = vrot.lane.b32.xlu0 %v11326, 16
  %v11649 = vpop.permute.xlu0 %11648
  %11650 = vrot.lane.b32.xlu0 %v11405, 16
  %v11651 = vpop.permute.xlu0 %11650
  %11652 = vrot.lane.b32.xlu0 %v11410, 16
  %v11653 = vpop.permute.xlu0 %11652
  %11654 = vrot.lane.b32.xlu0 %v11415, 16
  %v11655 = vpop.permute.xlu0 %11654
  %11656 = vrot.lane.b32.xlu0 %v11494, 16
  %v11657 = vpop.permute.xlu0 %11656
  %11658 = vrot.lane.b32.xlu0 %v11499, 16
  %v11659 = vpop.permute.xlu0 %11658
  %11660 = vrot.lane.b32.xlu0 %v11504, 16
  %v11661 = vpop.permute.xlu0 %11660
  %11662 = vrot.lane.b32.xlu0 %v11583, 16
  %v11663 = vpop.permute.xlu0 %11662
  %11664 = vrot.lane.b32.xlu0 %v11588, 16
  %v11665 = vpop.permute.xlu0 %11664
  %11666 = vrot.lane.b32.xlu0 %v11593, 16
  %v11667 = vpop.permute.xlu0 %11666
  %v11692 = vsel %vm1356, %v8582, %v11621
  %v11693 = vsel %vm1356, %v8587, %v11623
  %v11694 = vsel %vm1356, %v8592, %v11625
  %v11695 = vsel %vm1356, %v8671, %v11627
  %v11696 = vsel %vm1356, %v8676, %v11629
  %v11697 = vsel %vm1356, %v8681, %v11631
  %v11698 = vsel %vm1356, %v8760, %v11633
  %v11699 = vsel %vm1356, %v8765, %v11635
  %v11700 = vsel %vm1356, %v8770, %v11637
  %v11701 = vsel %vm1356, %v8849, %v11639
  %v11702 = vsel %vm1356, %v8854, %v11641
  %v11703 = vsel %vm1356, %v8859, %v11643
  %v11704 = vsel %vm1356, %v8938, %v11645
  %v11705 = vsel %vm1356, %v8943, %v11647
  %v11706 = vsel %vm1356, %v8948, %v11649
  %v11707 = vsel %vm1356, %v9027, %v11651
  %v11708 = vsel %vm1356, %v9032, %v11653
  %v11709 = vsel %vm1356, %v9037, %v11655
  %v11710 = vsel %vm1356, %v9116, %v11657
  %v11711 = vsel %vm1356, %v9121, %v11659
  %v11712 = vsel %vm1356, %v9126, %v11661
  %v11713 = vsel %vm1356, %v9205, %v11663
  %v11714 = vsel %vm1356, %v9210, %v11665
  %v11715 = vsel %vm1356, %v9215, %v11667
  %v11716 = vadd.f32 %v11692, %v6374
  %v11717 = vadd.f32 %v11693, %v6375
  %v11718 = vadd.f32 %v11694, %v6376
  %v11719 = vadd.f32 %v11695, %v6377
  %v11720 = vadd.f32 %v11696, %v6378
  %v11721 = vadd.f32 %v11697, %v6379
  %v11722 = vadd.f32 %v11698, %v6380
  %v11723 = vadd.f32 %v11699, %v6381
  %v11724 = vadd.f32 %v11700, %v6382
  %v11725 = vadd.f32 %v11701, %v6383
  %v11726 = vadd.f32 %v11702, %v6384
  %v11727 = vadd.f32 %v11703, %v6385
  %v11728 = vadd.f32 %v11704, %v6386
  %v11729 = vadd.f32 %v11705, %v6387
  %v11730 = vadd.f32 %v11706, %v6388
  %v11731 = vadd.f32 %v11707, %v6389
  %v11732 = vadd.f32 %v11708, %v6390
  %v11733 = vadd.f32 %v11709, %v6391
  %v11734 = vadd.f32 %v11710, %v6392
  %v11735 = vadd.f32 %v11711, %v6393
  %v11736 = vadd.f32 %v11712, %v6394
  %v11737 = vadd.f32 %v11713, %v6395
  %v11738 = vadd.f32 %v11714, %v6396
  %v11739 = vadd.f32 %v11715, %v6397
  %v11740 = vmax.f32 %v11716, 0.0
  %v11741 = vmax.f32 %v11717, 0.0
  %v11742 = vmax.f32 %v11718, 0.0
  %v11743 = vmax.f32 %v11719, 0.0
  %v11744 = vmax.f32 %v11720, 0.0
  %v11745 = vmax.f32 %v11721, 0.0
  %v11746 = vmax.f32 %v11722, 0.0
  %v11747 = vmax.f32 %v11723, 0.0
  %v11748 = vmax.f32 %v11724, 0.0
  %v11749 = vmax.f32 %v11725, 0.0
  %v11750 = vmax.f32 %v11726, 0.0
  %v11751 = vmax.f32 %v11727, 0.0
  %v11752 = vmax.f32 %v11728, 0.0
  %v11753 = vmax.f32 %v11729, 0.0
  %v11754 = vmax.f32 %v11730, 0.0
  %v11755 = vmax.f32 %v11731, 0.0
  %v11756 = vmax.f32 %v11732, 0.0
  %v11757 = vmax.f32 %v11733, 0.0
  %v11758 = vmax.f32 %v11734, 0.0
  %v11759 = vmax.f32 %v11735, 0.0
  %v11760 = vmax.f32 %v11736, 0.0
  %v11761 = vmax.f32 %v11737, 0.0
  %v11762 = vmax.f32 %v11738, 0.0
  %v11763 = vmax.f32 %v11739, 0.0
  %v11764 = vld [vmem:[%s9 + $0x1] sm:$0x1]
  %v11765 = vld [vmem:[%s10 + $0x1] sm:$0x1]
  %v11766 = vsel %vm294, %v11740, 0.0
  %11767 = vadd.xlane.f32.xlu0 %v11766
  %v11768 = vpop.xlane.xlu0 %11767
  %v11769 = vsel %vm294, %v11741, 0.0
  %11770 = vadd.xlane.f32.xlu0 %v11769
  %v11771 = vpop.xlane.xlu0 %11770
  %v11772 = vsel %vm294, %v11742, 0.0
  %11773 = vadd.xlane.f32.xlu0 %v11772
  %v11774 = vpop.xlane.xlu0 %11773
  %v11775 = vsel %vm294, %v11743, 0.0
  %11776 = vadd.xlane.f32.xlu0 %v11775
  %v11777 = vpop.xlane.xlu0 %11776
  %v11778 = vsel %vm294, %v11744, 0.0
  %11779 = vadd.xlane.f32.xlu0 %v11778
  %v11780 = vpop.xlane.xlu0 %11779
  %v11781 = vsel %vm294, %v11745, 0.0
  %11782 = vadd.xlane.f32.xlu0 %v11781
  %v11783 = vpop.xlane.xlu0 %11782
  %v11784 = vsel %vm294, %v11746, 0.0
  %11785 = vadd.xlane.f32.xlu0 %v11784
  %v11786 = vpop.xlane.xlu0 %11785
  %v11787 = vsel %vm294, %v11747, 0.0
  %11788 = vadd.xlane.f32.xlu0 %v11787
  %v11789 = vpop.xlane.xlu0 %11788
  %v11790 = vsel %vm294, %v11748, 0.0
  %11791 = vadd.xlane.f32.xlu0 %v11790
  %v11792 = vpop.xlane.xlu0 %11791
  %v11793 = vsel %vm294, %v11749, 0.0
  %11794 = vadd.xlane.f32.xlu0 %v11793
  %v11795 = vpop.xlane.xlu0 %11794
  %v11796 = vsel %vm294, %v11750, 0.0
  %11797 = vadd.xlane.f32.xlu0 %v11796
  %v11798 = vpop.xlane.xlu0 %11797
  %v11799 = vsel %vm294, %v11751, 0.0
  %11800 = vadd.xlane.f32.xlu0 %v11799
  %v11801 = vpop.xlane.xlu0 %11800
  %v11802 = vsel %vm294, %v11752, 0.0
  %11803 = vadd.xlane.f32.xlu0 %v11802
  %v11804 = vpop.xlane.xlu0 %11803
  %v11805 = vsel %vm294, %v11753, 0.0
  %11806 = vadd.xlane.f32.xlu0 %v11805
  %v11807 = vpop.xlane.xlu0 %11806
  %v11808 = vsel %vm294, %v11754, 0.0
  %11809 = vadd.xlane.f32.xlu0 %v11808
  %v11810 = vpop.xlane.xlu0 %11809
  %v11811 = vsel %vm294, %v11755, 0.0
  %11812 = vadd.xlane.f32.xlu0 %v11811
  %v11813 = vpop.xlane.xlu0 %11812
  %v11814 = vsel %vm294, %v11756, 0.0
  %11815 = vadd.xlane.f32.xlu0 %v11814
  %v11816 = vpop.xlane.xlu0 %11815
  %v11817 = vsel %vm294, %v11757, 0.0
  %11818 = vadd.xlane.f32.xlu0 %v11817
  %v11819 = vpop.xlane.xlu0 %11818
  %v11820 = vsel %vm294, %v11758, 0.0
  %11821 = vadd.xlane.f32.xlu0 %v11820
  %v11822 = vpop.xlane.xlu0 %11821
  %v11823 = vsel %vm294, %v11759, 0.0
  %11824 = vadd.xlane.f32.xlu0 %v11823
  %v11825 = vpop.xlane.xlu0 %11824
  %v11826 = vsel %vm294, %v11760, 0.0
  %11827 = vadd.xlane.f32.xlu0 %v11826
  %v11828 = vpop.xlane.xlu0 %11827
  %v11829 = vsel %vm294, %v11761, 0.0
  %11830 = vadd.xlane.f32.xlu0 %v11829
  %v11831 = vpop.xlane.xlu0 %11830
  %v11832 = vsel %vm294, %v11762, 0.0
  %11833 = vadd.xlane.f32.xlu0 %v11832
  %v11834 = vpop.xlane.xlu0 %11833
  %v11835 = vsel %vm294, %v11763, 0.0
  %11836 = vadd.xlane.f32.xlu0 %v11835
  %v11837 = vpop.xlane.xlu0 %11836
  %v11838 = vmul.f32 %v11768, %v420
  %v11839 = vmul.f32 %v11771, %v420
  %v11840 = vmul.f32 %v11774, %v420
  %v11841 = vmul.f32 %v11777, %v420
  %v11842 = vmul.f32 %v11780, %v420
  %v11843 = vmul.f32 %v11783, %v420
  %v11844 = vmul.f32 %v11786, %v420
  %v11845 = vmul.f32 %v11789, %v420
  %v11846 = vmul.f32 %v11792, %v420
  %v11847 = vmul.f32 %v11795, %v420
  %v11848 = vmul.f32 %v11798, %v420
  %v11849 = vmul.f32 %v11801, %v420
  %v11850 = vmul.f32 %v11804, %v420
  %v11851 = vmul.f32 %v11807, %v420
  %v11852 = vmul.f32 %v11810, %v420
  %v11853 = vmul.f32 %v11813, %v420
  %v11854 = vmul.f32 %v11816, %v420
  %v11855 = vmul.f32 %v11819, %v420
  %v11856 = vmul.f32 %v11822, %v420
  %v11857 = vmul.f32 %v11825, %v420
  %v11858 = vmul.f32 %v11828, %v420
  %v11859 = vmul.f32 %v11831, %v420
  %v11860 = vmul.f32 %v11834, %v420
  %v11861 = vmul.f32 %v11837, %v420
  %v11862 = vsub.f32 %v11740, %v11838
  %v11863 = vsub.f32 %v11741, %v11839
  %v11864 = vsub.f32 %v11742, %v11840
  %v11865 = vsub.f32 %v11743, %v11841
  %v11866 = vsub.f32 %v11744, %v11842
  %v11867 = vsub.f32 %v11745, %v11843
  %v11868 = vsub.f32 %v11746, %v11844
  %v11869 = vsub.f32 %v11747, %v11845
  %v11870 = vsub.f32 %v11748, %v11846
  %v11871 = vsub.f32 %v11749, %v11847
  %v11872 = vsub.f32 %v11750, %v11848
  %v11873 = vsub.f32 %v11751, %v11849
  %v11874 = vsub.f32 %v11752, %v11850
  %v11875 = vsub.f32 %v11753, %v11851
  %v11876 = vsub.f32 %v11754, %v11852
  %v11877 = vsub.f32 %v11755, %v11853
  %v11878 = vsub.f32 %v11756, %v11854
  %v11879 = vsub.f32 %v11757, %v11855
  %v11880 = vsub.f32 %v11758, %v11856
  %v11881 = vsub.f32 %v11759, %v11857
  %v11882 = vsub.f32 %v11760, %v11858
  %v11883 = vsub.f32 %v11761, %v11859
  %v11884 = vsub.f32 %v11762, %v11860
  %v11885 = vsub.f32 %v11763, %v11861
  %v11886 = vmul.f32 %v11862, %v11862
  %v11887 = vmul.f32 %v11863, %v11863
  %v11888 = vmul.f32 %v11864, %v11864
  %v11889 = vmul.f32 %v11865, %v11865
  %v11890 = vmul.f32 %v11866, %v11866
  %v11891 = vmul.f32 %v11867, %v11867
  %v11892 = vmul.f32 %v11868, %v11868
  %v11893 = vmul.f32 %v11869, %v11869
  %v11894 = vmul.f32 %v11870, %v11870
  %v11895 = vmul.f32 %v11871, %v11871
  %v11896 = vmul.f32 %v11872, %v11872
  %v11897 = vmul.f32 %v11873, %v11873
  %v11898 = vmul.f32 %v11874, %v11874
  %v11899 = vmul.f32 %v11875, %v11875
  %v11900 = vmul.f32 %v11876, %v11876
  %v11901 = vmul.f32 %v11877, %v11877
  %v11902 = vmul.f32 %v11878, %v11878
  %v11903 = vmul.f32 %v11879, %v11879
  %v11904 = vmul.f32 %v11880, %v11880
  %v11905 = vmul.f32 %v11881, %v11881
  %v11906 = vmul.f32 %v11882, %v11882
  %v11907 = vmul.f32 %v11883, %v11883
  %v11908 = vmul.f32 %v11884, %v11884
  %v11909 = vmul.f32 %v11885, %v11885
  %v11910 = vsel %vm294, %v11886, 0.0
  %11911 = vadd.xlane.f32.xlu0 %v11910
  %v11912 = vpop.xlane.xlu0 %11911
  %v11913 = vsel %vm294, %v11887, 0.0
  %11914 = vadd.xlane.f32.xlu0 %v11913
  %v11915 = vpop.xlane.xlu0 %11914
  %v11916 = vsel %vm294, %v11888, 0.0
  %11917 = vadd.xlane.f32.xlu0 %v11916
  %v11918 = vpop.xlane.xlu0 %11917
  %v11919 = vsel %vm294, %v11889, 0.0
  %11920 = vadd.xlane.f32.xlu0 %v11919
  %v11921 = vpop.xlane.xlu0 %11920
  %v11922 = vsel %vm294, %v11890, 0.0
  %11923 = vadd.xlane.f32.xlu0 %v11922
  %v11924 = vpop.xlane.xlu0 %11923
  %v11925 = vsel %vm294, %v11891, 0.0
  %11926 = vadd.xlane.f32.xlu0 %v11925
  %v11927 = vpop.xlane.xlu0 %11926
  %v11928 = vsel %vm294, %v11892, 0.0
  %11929 = vadd.xlane.f32.xlu0 %v11928
  %v11930 = vpop.xlane.xlu0 %11929
  %v11931 = vsel %vm294, %v11893, 0.0
  %11932 = vadd.xlane.f32.xlu0 %v11931
  %v11933 = vpop.xlane.xlu0 %11932
  %v11934 = vsel %vm294, %v11894, 0.0
  %11935 = vadd.xlane.f32.xlu0 %v11934
  %v11936 = vpop.xlane.xlu0 %11935
  %v11937 = vsel %vm294, %v11895, 0.0
  %11938 = vadd.xlane.f32.xlu0 %v11937
  %v11939 = vpop.xlane.xlu0 %11938
  %v11940 = vsel %vm294, %v11896, 0.0
  %11941 = vadd.xlane.f32.xlu0 %v11940
  %v11942 = vpop.xlane.xlu0 %11941
  %v11943 = vsel %vm294, %v11897, 0.0
  %11944 = vadd.xlane.f32.xlu0 %v11943
  %v11945 = vpop.xlane.xlu0 %11944
  %v11946 = vsel %vm294, %v11898, 0.0
  %11947 = vadd.xlane.f32.xlu0 %v11946
  %v11948 = vpop.xlane.xlu0 %11947
  %v11949 = vsel %vm294, %v11899, 0.0
  %11950 = vadd.xlane.f32.xlu0 %v11949
  %v11951 = vpop.xlane.xlu0 %11950
  %v11952 = vsel %vm294, %v11900, 0.0
  %11953 = vadd.xlane.f32.xlu0 %v11952
  %v11954 = vpop.xlane.xlu0 %11953
  %v11955 = vsel %vm294, %v11901, 0.0
  %11956 = vadd.xlane.f32.xlu0 %v11955
  %v11957 = vpop.xlane.xlu0 %11956
  %v11958 = vsel %vm294, %v11902, 0.0
  %11959 = vadd.xlane.f32.xlu0 %v11958
  %v11960 = vpop.xlane.xlu0 %11959
  %v11961 = vsel %vm294, %v11903, 0.0
  %11962 = vadd.xlane.f32.xlu0 %v11961
  %v11963 = vpop.xlane.xlu0 %11962
  %v11964 = vsel %vm294, %v11904, 0.0
  %11965 = vadd.xlane.f32.xlu0 %v11964
  %v11966 = vpop.xlane.xlu0 %11965
  %v11967 = vsel %vm294, %v11905, 0.0
  %11968 = vadd.xlane.f32.xlu0 %v11967
  %v11969 = vpop.xlane.xlu0 %11968
  %v11970 = vsel %vm294, %v11906, 0.0
  %11971 = vadd.xlane.f32.xlu0 %v11970
  %v11972 = vpop.xlane.xlu0 %11971
  %v11973 = vsel %vm294, %v11907, 0.0
  %11974 = vadd.xlane.f32.xlu0 %v11973
  %v11975 = vpop.xlane.xlu0 %11974
  %v11976 = vsel %vm294, %v11908, 0.0
  %11977 = vadd.xlane.f32.xlu0 %v11976
  %v11978 = vpop.xlane.xlu0 %11977
  %v11979 = vsel %vm294, %v11909, 0.0
  %11980 = vadd.xlane.f32.xlu0 %v11979
  %v11981 = vpop.xlane.xlu0 %11980
  %v11982 = vmul.f32 %v11912, %v420
  %v11983 = vmul.f32 %v11915, %v420
  %v11984 = vmul.f32 %v11918, %v420
  %v11985 = vmul.f32 %v11921, %v420
  %v11986 = vmul.f32 %v11924, %v420
  %v11987 = vmul.f32 %v11927, %v420
  %v11988 = vmul.f32 %v11930, %v420
  %v11989 = vmul.f32 %v11933, %v420
  %v11990 = vmul.f32 %v11936, %v420
  %v11991 = vmul.f32 %v11939, %v420
  %v11992 = vmul.f32 %v11942, %v420
  %v11993 = vmul.f32 %v11945, %v420
  %v11994 = vmul.f32 %v11948, %v420
  %v11995 = vmul.f32 %v11951, %v420
  %v11996 = vmul.f32 %v11954, %v420
  %v11997 = vmul.f32 %v11957, %v420
  %v11998 = vmul.f32 %v11960, %v420
  %v11999 = vmul.f32 %v11963, %v420
  %v12000 = vmul.f32 %v11966, %v420
  %v12001 = vmul.f32 %v11969, %v420
  %v12002 = vmul.f32 %v11972, %v420
  %v12003 = vmul.f32 %v11975, %v420
  %v12004 = vmul.f32 %v11978, %v420
  %v12005 = vmul.f32 %v11981, %v420
  %v12006 = vadd.f32 %v11982, 1e-05
  %v12007 = vadd.f32 %v11983, 1e-05
  %v12008 = vadd.f32 %v11984, 1e-05
  %v12009 = vadd.f32 %v11985, 1e-05
  %v12010 = vadd.f32 %v11986, 1e-05
  %v12011 = vadd.f32 %v11987, 1e-05
  %v12012 = vadd.f32 %v11988, 1e-05
  %v12013 = vadd.f32 %v11989, 1e-05
  %v12014 = vadd.f32 %v11990, 1e-05
  %v12015 = vadd.f32 %v11991, 1e-05
  %v12016 = vadd.f32 %v11992, 1e-05
  %v12017 = vadd.f32 %v11993, 1e-05
  %v12018 = vadd.f32 %v11994, 1e-05
  %v12019 = vadd.f32 %v11995, 1e-05
  %v12020 = vadd.f32 %v11996, 1e-05
  %v12021 = vadd.f32 %v11997, 1e-05
  %v12022 = vadd.f32 %v11998, 1e-05
  %v12023 = vadd.f32 %v11999, 1e-05
  %v12024 = vadd.f32 %v12000, 1e-05
  %v12025 = vadd.f32 %v12001, 1e-05
  %v12026 = vadd.f32 %v12002, 1e-05
  %v12027 = vadd.f32 %v12003, 1e-05
  %v12028 = vadd.f32 %v12004, 1e-05
  %v12029 = vadd.f32 %v12005, 1e-05
  %v12030 = vrsqrt.pop %v12006
  %v12031 = vrsqrt.pop %v12007
  %v12032 = vrsqrt.pop %v12008
  %v12033 = vrsqrt.pop %v12009
  %v12034 = vrsqrt.pop %v12010
  %v12035 = vrsqrt.pop %v12011
  %v12036 = vrsqrt.pop %v12012
  %v12037 = vrsqrt.pop %v12013
  %v12038 = vrsqrt.pop %v12014
  %v12039 = vrsqrt.pop %v12015
  %v12040 = vrsqrt.pop %v12016
  %v12041 = vrsqrt.pop %v12017
  %v12042 = vrsqrt.pop %v12018
  %v12043 = vrsqrt.pop %v12019
  %v12044 = vrsqrt.pop %v12020
  %v12045 = vrsqrt.pop %v12021
  %v12046 = vrsqrt.pop %v12022
  %v12047 = vrsqrt.pop %v12023
  %v12048 = vrsqrt.pop %v12024
  %v12049 = vrsqrt.pop %v12025
  %v12050 = vrsqrt.pop %v12026
  %v12051 = vrsqrt.pop %v12027
  %v12052 = vrsqrt.pop %v12028
  %v12053 = vrsqrt.pop %v12029
  %v12054 = vmul.f32 %v11862, %v12030
  %v12055 = vmul.f32 %v11863, %v12031
  %v12056 = vmul.f32 %v11864, %v12032
  %v12057 = vmul.f32 %v11865, %v12033
  %v12058 = vmul.f32 %v11866, %v12034
  %v12059 = vmul.f32 %v11867, %v12035
  %v12060 = vmul.f32 %v11868, %v12036
  %v12061 = vmul.f32 %v11869, %v12037
  %v12062 = vmul.f32 %v11870, %v12038
  %v12063 = vmul.f32 %v11871, %v12039
  %v12064 = vmul.f32 %v11872, %v12040
  %v12065 = vmul.f32 %v11873, %v12041
  %v12066 = vmul.f32 %v11874, %v12042
  %v12067 = vmul.f32 %v11875, %v12043
  %v12068 = vmul.f32 %v11876, %v12044
  %v12069 = vmul.f32 %v11877, %v12045
  %v12070 = vmul.f32 %v11878, %v12046
  %v12071 = vmul.f32 %v11879, %v12047
  %v12072 = vmul.f32 %v11880, %v12048
  %v12073 = vmul.f32 %v11881, %v12049
  %v12074 = vmul.f32 %v11882, %v12050
  %v12075 = vmul.f32 %v11883, %v12051
  %v12076 = vmul.f32 %v11884, %v12052
  %v12077 = vmul.f32 %v11885, %v12053
  %v12078 = vlaneseq
  %v12079 = vshrl.u32 %v12078, 7
  %v12080 = vsub.s32 0, %v12079
  %v12081 = vrot.slane %v11764, %v12080
  %v12082 = vmul.f32 %v12054, %v12081
  %v12083 = vmul.f32 %v12055, %v12081
  %v12084 = vmul.f32 %v12056, %v12081
  %v12085 = vmul.f32 %v12057, %v12081
  %v12086 = vmul.f32 %v12058, %v12081
  %v12087 = vmul.f32 %v12059, %v12081
  %v12088 = vmul.f32 %v12060, %v12081
  %v12089 = vmul.f32 %v12061, %v12081
  %v12090 = vmul.f32 %v12062, %v12081
  %v12091 = vmul.f32 %v12063, %v12081
  %v12092 = vmul.f32 %v12064, %v12081
  %v12093 = vmul.f32 %v12065, %v12081
  %v12094 = vmul.f32 %v12066, %v12081
  %v12095 = vmul.f32 %v12067, %v12081
  %v12096 = vmul.f32 %v12068, %v12081
  %v12097 = vmul.f32 %v12069, %v12081
  %v12098 = vmul.f32 %v12070, %v12081
  %v12099 = vmul.f32 %v12071, %v12081
  %v12100 = vmul.f32 %v12072, %v12081
  %v12101 = vmul.f32 %v12073, %v12081
  %v12102 = vmul.f32 %v12074, %v12081
  %v12103 = vmul.f32 %v12075, %v12081
  %v12104 = vmul.f32 %v12076, %v12081
  %v12105 = vmul.f32 %v12077, %v12081
  %v12106 = vlaneseq
  %v12107 = vshrl.u32 %v12106, 7
  %v12108 = vsub.s32 0, %v12107
  %v12109 = vrot.slane %v11765, %v12108
  %v12110 = vadd.f32 %v12082, %v12109
  %v12111 = vadd.f32 %v12083, %v12109
  %v12112 = vadd.f32 %v12084, %v12109
  %v12113 = vadd.f32 %v12085, %v12109
  %v12114 = vadd.f32 %v12086, %v12109
  %v12115 = vadd.f32 %v12087, %v12109
  %v12116 = vadd.f32 %v12088, %v12109
  %v12117 = vadd.f32 %v12089, %v12109
  %v12118 = vadd.f32 %v12090, %v12109
  %v12119 = vadd.f32 %v12091, %v12109
  %v12120 = vadd.f32 %v12092, %v12109
  %v12121 = vadd.f32 %v12093, %v12109
  %v12122 = vadd.f32 %v12094, %v12109
  %v12123 = vadd.f32 %v12095, %v12109
  %v12124 = vadd.f32 %v12096, %v12109
  %v12125 = vadd.f32 %v12097, %v12109
  %v12126 = vadd.f32 %v12098, %v12109
  %v12127 = vadd.f32 %v12099, %v12109
  %v12128 = vadd.f32 %v12100, %v12109
  %v12129 = vadd.f32 %v12101, %v12109
  %v12130 = vadd.f32 %v12102, %v12109
  %v12131 = vadd.f32 %v12103, %v12109
  %v12132 = vadd.f32 %v12104, %v12109
  %v12133 = vadd.f32 %v12105, %v12109
  %s12134 = scalar_lea.vmem %s11, 32
  %v12135 = vld [vmem:[%s12134] sm:$0xff]
  %v12136 = vld [vmem:[%s12134 + $0x8] sm:$0xff]
  %v12137 = vld [vmem:[%s12134 + $0x10] sm:$0xff]
  %v12138 = vld [vmem:[%s12134 + $0x18] sm:$0xff]
  %v12139 = vld [vmem:[%s12 + $0x1] sm:$0x1]
  %v12140 = vlaneseq
  %v12141 = vshrl.u32 %v12140, 7
  %v12142 = vsub.s32 0, %v12141
  %v12143 = vrot.slane %v12139, %v12142
  %v12145 = vsel %vm294, %v12110, 0
  %v12148 = vsel %vm294, %v12111, 0
  %v12151 = vsel %vm294, %v12112, 0
  %v12154 = vsel %vm294, %v12113, 0
  %v12157 = vsel %vm294, %v12114, 0
  %v12160 = vsel %vm294, %v12115, 0
  %v12163 = vsel %vm294, %v12116, 0
  %v12166 = vsel %vm294, %v12117, 0
  %v12169 = vsel %vm294, %v12118, 0
  %v12172 = vsel %vm294, %v12119, 0
  %v12175 = vsel %vm294, %v12120, 0
  %v12178 = vsel %vm294, %v12121, 0
  %v12181 = vsel %vm294, %v12122, 0
  %v12184 = vsel %vm294, %v12123, 0
  %v12187 = vsel %vm294, %v12124, 0
  %v12190 = vsel %vm294, %v12125, 0
  %v12193 = vsel %vm294, %v12126, 0
  %v12196 = vsel %vm294, %v12127, 0
  %v12199 = vsel %vm294, %v12128, 0
  %v12202 = vsel %vm294, %v12129, 0
  %v12205 = vsel %vm294, %v12130, 0
  %v12208 = vsel %vm294, %v12131, 0
  %v12211 = vsel %vm294, %v12132, 0
  %v12214 = vsel %vm294, %v12133, 0
  %12216 = vmatprep.subr.mxu0 0.0
  %12217 = vmatpush1.msra.mxu0 0.0
  %12218 = vmatprep.subr.mxu0 0.0
  %12219 = vmatpush1.msra.mxu0 0.0
  %12220 = vmatprep.subr.mxu0 0.0
  %12221 = vmatpush1.msra.mxu0 0.0
  %12222 = vmatprep.subr.mxu0 0.0
  %12223 = vmatpush1.msra.mxu0 0.0
  %12224 = vmatprep.subr.mxu0 0.0
  %12225 = vmatpush1.msra.mxu0 0.0
  %12226 = vmatprep.subr.mxu0 0.0
  %12227 = vmatpush1.msra.mxu0 0.0
  %12228 = vmatprep.subr.mxu0 0.0
  %12229 = vmatpush1.msra.mxu0 0.0
  %12230 = vmatprep.subr.mxu0 0.0
  %12231 = vmatpush1.msra.mxu0 0.0
  %12232 = vmatprep.subr.mxu0 0.0
  %12233 = vmatpush1.msra.mxu0 0.0
  %12234 = vmatprep.subr.mxu0 0.0
  %12235 = vmatpush1.msra.mxu0 0.0
  %12236 = vmatprep.subr.mxu0 0.0
  %12237 = vmatpush1.msra.mxu0 0.0
  %12238 = vmatprep.subr.mxu0 0.0
  %12239 = vmatpush1.msra.mxu0 0.0
  %12240 = vmatprep.subr.mxu0 0.0
  %12241 = vmatpush1.msra.mxu0 %v12138
  %12242 = vmatprep.subr.mxu0 0.0
  %12243 = vmatpush1.msra.mxu0 %v12137
  %12244 = vmatprep.subr.mxu0 0.0
  %12245 = vmatpush1.msra.mxu0 %v12136
  %12246 = vmatprep.subr.mxu0 0.0
  %12247 = vmatpush1.msra.mxu0 %v12135
  %12248 = vmatprep.subr.mxu0 0.0
  %12249 = vmatpush2.msra.mxu0 0.0
  %12250 = vmatprep.subr.mxu0 0.0
  %12251 = vmatpush2.msra.mxu0 0.0
  %12252 = vmatprep.subr.mxu0 0.0
  %12253 = vmatpush2.msra.mxu0 0.0
  %12254 = vmatprep.subr.mxu0 0.0
  %12255 = vmatpush2.msra.mxu0 0.0
  %12256 = vmatprep.subr.mxu0 0.0
  %12257 = vmatpush2.msra.mxu0 0.0
  %12258 = vmatprep.subr.mxu0 0.0
  %12259 = vmatpush2.msra.mxu0 0.0
  %12260 = vmatprep.subr.mxu0 0.0
  %12261 = vmatpush2.msra.mxu0 0.0
  %12262 = vmatprep.subr.mxu0 0.0
  %12263 = vmatpush2.msra.mxu0 0.0
  %12264 = vmatprep.subr.mxu0 0.0
  %12265 = vmatpush2.msra.mxu0 0.0
  %12266 = vmatprep.subr.mxu0 0.0
  %12267 = vmatpush2.msra.mxu0 0.0
  %12268 = vmatprep.subr.mxu0 0.0
  %12269 = vmatpush2.msra.mxu0 0.0
  %12270 = vmatprep.subr.mxu0 0.0
  %12271 = vmatpush2.msra.mxu0 0.0
  %12272 = vmatprep.subr.mxu0 0.0
  %12273 = vmatpush2.msra.mxu0 0.0
  %12274 = vmatprep.subr.mxu0 0.0
  %12275 = vmatpush2.msra.mxu0 0.0
  %12276 = vmatprep.subr.mxu0 0.0
  %12277 = vmatpush2.msra.mxu0 0.0
  %12278 = vmatprep.subr.mxu0 0.0
  %12279 = vmatpush2.msra.mxu0 0.0
  %12280 = vmatprep.mubr.f32.mxu0 0.0
  %12281 = vmatmul.mubr.f32.gmra.mxu0 %v12145
  %v12282 = vpop.f32.mrf.mxu0
  %v12283 = vpop.f32.mrf.mxu0
  %12284 = vmatprep.mubr.f32.mxu0 0.0
  %12285 = vmatmul.mubr.f32.gmra.mxu0 %v12148
  %v12286 = vpop.f32.mrf.mxu0
  %v12287 = vpop.f32.mrf.mxu0
  %12288 = vmatprep.mubr.f32.mxu0 0.0
  %12289 = vmatmul.mubr.f32.gmra.mxu0 %v12151
  %v12290 = vpop.f32.mrf.mxu0
  %v12291 = vadd.f32 %v12143, %v12290
  %v12292 = vpop.f32.mrf.mxu0
  %12293 = vmatprep.mubr.f32.mxu0 0.0
  %12294 = vmatmul.mubr.f32.gmra.mxu0 %v12154
  %v12295 = vpop.f32.mrf.mxu0
  %v12296 = vpop.f32.mrf.mxu0
  %12297 = vmatprep.mubr.f32.mxu0 0.0
  %12298 = vmatmul.mubr.f32.gmra.mxu0 %v12157
  %v12299 = vpop.f32.mrf.mxu0
  %v12300 = vpop.f32.mrf.mxu0
  %12301 = vmatprep.mubr.f32.mxu0 0.0
  %12302 = vmatmul.mubr.f32.gmra.mxu0 %v12160
  %v12303 = vpop.f32.mrf.mxu0
  %v12304 = vadd.f32 %v12143, %v12303
  %v12305 = vpop.f32.mrf.mxu0
  %12306 = vmatprep.mubr.f32.mxu0 0.0
  %12307 = vmatmul.mubr.f32.gmra.mxu0 %v12163
  %v12308 = vpop.f32.mrf.mxu0
  %v12309 = vpop.f32.mrf.mxu0
  %12310 = vmatprep.mubr.f32.mxu0 0.0
  %12311 = vmatmul.mubr.f32.gmra.mxu0 %v12166
  %v12312 = vpop.f32.mrf.mxu0
  %v12313 = vpop.f32.mrf.mxu0
  %12314 = vmatprep.mubr.f32.mxu0 0.0
  %12315 = vmatmul.mubr.f32.gmra.mxu0 %v12169
  %v12316 = vpop.f32.mrf.mxu0
  %v12317 = vadd.f32 %v12143, %v12316
  %v12318 = vpop.f32.mrf.mxu0
  %12319 = vmatprep.mubr.f32.mxu0 0.0
  %12320 = vmatmul.mubr.f32.gmra.mxu0 %v12172
  %v12321 = vpop.f32.mrf.mxu0
  %v12322 = vpop.f32.mrf.mxu0
  %12323 = vmatprep.mubr.f32.mxu0 0.0
  %12324 = vmatmul.mubr.f32.gmra.mxu0 %v12175
  %v12325 = vpop.f32.mrf.mxu0
  %v12326 = vpop.f32.mrf.mxu0
  %12327 = vmatprep.mubr.f32.mxu0 0.0
  %12328 = vmatmul.mubr.f32.gmra.mxu0 %v12178
  %v12329 = vpop.f32.mrf.mxu0
  %v12330 = vadd.f32 %v12143, %v12329
  %v12331 = vpop.f32.mrf.mxu0
  %12332 = vmatprep.mubr.f32.mxu0 0.0
  %12333 = vmatmul.mubr.f32.gmra.mxu0 %v12181
  %v12334 = vpop.f32.mrf.mxu0
  %v12335 = vpop.f32.mrf.mxu0
  %12336 = vmatprep.mubr.f32.mxu0 0.0
  %12337 = vmatmul.mubr.f32.gmra.mxu0 %v12184
  %v12338 = vpop.f32.mrf.mxu0
  %v12339 = vpop.f32.mrf.mxu0
  %12340 = vmatprep.mubr.f32.mxu0 0.0
  %12341 = vmatmul.mubr.f32.gmra.mxu0 %v12187
  %v12342 = vpop.f32.mrf.mxu0
  %v12343 = vadd.f32 %v12143, %v12342
  %v12344 = vpop.f32.mrf.mxu0
  %12345 = vmatprep.mubr.f32.mxu0 0.0
  %12346 = vmatmul.mubr.f32.gmra.mxu0 %v12190
  %v12347 = vpop.f32.mrf.mxu0
  %v12348 = vpop.f32.mrf.mxu0
  %12349 = vmatprep.mubr.f32.mxu0 0.0
  %12350 = vmatmul.mubr.f32.gmra.mxu0 %v12193
  %v12351 = vpop.f32.mrf.mxu0
  %v12352 = vpop.f32.mrf.mxu0
  %12353 = vmatprep.mubr.f32.mxu0 0.0
  %12354 = vmatmul.mubr.f32.gmra.mxu0 %v12196
  %v12355 = vpop.f32.mrf.mxu0
  %v12356 = vadd.f32 %v12143, %v12355
  %v12357 = vpop.f32.mrf.mxu0
  %12358 = vmatprep.mubr.f32.mxu0 0.0
  %12359 = vmatmul.mubr.f32.gmra.mxu0 %v12199
  %v12360 = vpop.f32.mrf.mxu0
  %v12361 = vpop.f32.mrf.mxu0
  %12362 = vmatprep.mubr.f32.mxu0 0.0
  %12363 = vmatmul.mubr.f32.gmra.mxu0 %v12202
  %v12364 = vpop.f32.mrf.mxu0
  %v12365 = vpop.f32.mrf.mxu0
  %12366 = vmatprep.mubr.f32.mxu0 0.0
  %12367 = vmatmul.mubr.f32.gmra.mxu0 %v12205
  %v12368 = vpop.f32.mrf.mxu0
  %v12369 = vadd.f32 %v12143, %v12368
  %v12370 = vpop.f32.mrf.mxu0
  %12371 = vmatprep.mubr.f32.mxu0 0.0
  %12372 = vmatmul.mubr.f32.gmra.mxu0 %v12208
  %v12373 = vpop.f32.mrf.mxu0
  %v12374 = vpop.f32.mrf.mxu0
  %12375 = vmatprep.mubr.f32.mxu0 0.0
  %12376 = vmatmul.mubr.f32.gmra.mxu0 %v12211
  %v12377 = vpop.f32.mrf.mxu0
  %v12378 = vpop.f32.mrf.mxu0
  %12379 = vmatprep.mubr.f32.mxu0 0.0
  %12380 = vmatmul.mubr.f32.gmra.mxu0 %v12214
  %v12381 = vpop.f32.mrf.mxu0
  %v12382 = vadd.f32 %v12143, %v12381
  %v12383 = vpop.f32.mrf.mxu0
  %12384 = vdwg.mxu0
  %v12385 = vadd.f32 %v12291, %v11742
  %v12386 = vadd.f32 %v12304, %v11745
  %v12387 = vadd.f32 %v12317, %v11748
  %v12388 = vadd.f32 %v12330, %v11751
  %v12389 = vadd.f32 %v12343, %v11754
  %v12390 = vadd.f32 %v12356, %v11757
  %v12391 = vadd.f32 %v12369, %v11760
  %v12392 = vadd.f32 %v12382, %v11763
  %v12393 = vmax.f32 %v12385, 0.0
  %v12394 = vmax.f32 %v12386, 0.0
  %v12395 = vmax.f32 %v12387, 0.0
  %v12396 = vmax.f32 %v12388, 0.0
  %v12397 = vmax.f32 %v12389, 0.0
  %v12398 = vmax.f32 %v12390, 0.0
  %v12399 = vmax.f32 %v12391, 0.0
  %v12400 = vmax.f32 %v12392, 0.0
  %v12401 = vld [vmem:[%s13] sm:$0xff]
  %v12402 = vld [vmem:[%s13 + $0x8] sm:$0xff]
  %v12403 = vld [vmem:[%s13 + $0x10] sm:$0xff]
  %v12404 = vld [vmem:[%s13 + $0x18] sm:$0xff]
  %v12405 = vld [vmem:[%s14] sm:$0x1]
  %v12407 = vlaneseq
  %v12408 = vshrl.u32 %v12407, 7
  %v12409 = vsub.s32 0, %v12408
  %v12410 = vrot.slane %v12405, %v12409
  %v12420 = vrot.slane %v12394, 7
  %vm12421 = vcmask 1041409
  %v12422 = vsel %vm12421, %v12420, %v12393
  %v12423 = vrot.slane %v12395, 6
  %vm12424 = vcmask 1042434
  %v12425 = vsel %vm12424, %v12423, %v12422
  %v12426 = vrot.slane %v12396, 5
  %vm12427 = vcmask 1043459
  %v12428 = vsel %vm12427, %v12426, %v12425
  %v12429 = vrot.slane %v12397, 4
  %vm12430 = vcmask 1044484
  %v12431 = vsel %vm12430, %v12429, %v12428
  %v12432 = vrot.slane %v12398, 3
  %vm12433 = vcmask 1045509
  %v12434 = vsel %vm12433, %v12432, %v12431
  %v12435 = vrot.slane %v12399, 2
  %vm12436 = vcmask 1046534
  %v12437 = vsel %vm12436, %v12435, %v12434
  %v12438 = vrot.slane %v12400, 1
  %vm12439 = vcmask 1047559
  %v12440 = vsel %vm12439, %v12438, %v12437
  %v12441 = vsel %vm294, %v12440, 0
  %12443 = vmatprep.subr.mxu0 0.0
  %12444 = vmatpush1.msra.mxu0 0.0
  %12445 = vmatprep.subr.mxu0 0.0
  %12446 = vmatpush1.msra.mxu0 0.0
  %12447 = vmatprep.subr.mxu0 0.0
  %12448 = vmatpush1.msra.mxu0 0.0
  %12449 = vmatprep.subr.mxu0 0.0
  %12450 = vmatpush1.msra.mxu0 0.0
  %12451 = vmatprep.subr.mxu0 0.0
  %12452 = vmatpush1.msra.mxu0 0.0
  %12453 = vmatprep.subr.mxu0 0.0
  %12454 = vmatpush1.msra.mxu0 0.0
  %12455 = vmatprep.subr.mxu0 0.0
  %12456 = vmatpush1.msra.mxu0 0.0
  %12457 = vmatprep.subr.mxu0 0.0
  %12458 = vmatpush1.msra.mxu0 0.0
  %12459 = vmatprep.subr.mxu0 0.0
  %12460 = vmatpush1.msra.mxu0 0.0
  %12461 = vmatprep.subr.mxu0 0.0
  %12462 = vmatpush1.msra.mxu0 0.0
  %12463 = vmatprep.subr.mxu0 0.0
  %12464 = vmatpush1.msra.mxu0 0.0
  %12465 = vmatprep.subr.mxu0 0.0
  %12466 = vmatpush1.msra.mxu0 0.0
  %12467 = vmatprep.subr.mxu0 0.0
  %12468 = vmatpush1.msra.mxu0 %v12404
  %12469 = vmatprep.subr.mxu0 0.0
  %12470 = vmatpush1.msra.mxu0 %v12403
  %12471 = vmatprep.subr.mxu0 0.0
  %12472 = vmatpush1.msra.mxu0 %v12402
  %12473 = vmatprep.subr.mxu0 0.0
  %12474 = vmatpush1.msra.mxu0 %v12401
  %12475 = vmatprep.subr.mxu0 0.0
  %12476 = vmatpush2.msra.mxu0 0.0
  %12477 = vmatprep.subr.mxu0 0.0
  %12478 = vmatpush2.msra.mxu0 0.0
  %12479 = vmatprep.subr.mxu0 0.0
  %12480 = vmatpush2.msra.mxu0 0.0
  %12481 = vmatprep.subr.mxu0 0.0
  %12482 = vmatpush2.msra.mxu0 0.0
  %12483 = vmatprep.subr.mxu0 0.0
  %12484 = vmatpush2.msra.mxu0 0.0
  %12485 = vmatprep.subr.mxu0 0.0
  %12486 = vmatpush2.msra.mxu0 0.0
  %12487 = vmatprep.subr.mxu0 0.0
  %12488 = vmatpush2.msra.mxu0 0.0
  %12489 = vmatprep.subr.mxu0 0.0
  %12490 = vmatpush2.msra.mxu0 0.0
  %12491 = vmatprep.subr.mxu0 0.0
  %12492 = vmatpush2.msra.mxu0 0.0
  %12493 = vmatprep.subr.mxu0 0.0
  %12494 = vmatpush2.msra.mxu0 0.0
  %12495 = vmatprep.subr.mxu0 0.0
  %12496 = vmatpush2.msra.mxu0 0.0
  %12497 = vmatprep.subr.mxu0 0.0
  %12498 = vmatpush2.msra.mxu0 0.0
  %12499 = vmatprep.subr.mxu0 0.0
  %12500 = vmatpush2.msra.mxu0 0.0
  %12501 = vmatprep.subr.mxu0 0.0
  %12502 = vmatpush2.msra.mxu0 0.0
  %12503 = vmatprep.subr.mxu0 0.0
  %12504 = vmatpush2.msra.mxu0 0.0
  %12505 = vmatprep.subr.mxu0 0.0
  %12506 = vmatpush2.msra.mxu0 0.0
  %12507 = vmatprep.mubr.f32.mxu0 0.0
  %12508 = vmatmul.mubr.f32.gmra.mxu0 %v12441
  %v12509 = vpop.f32.mrf.mxu0
  %v12510 = vadd.f32 %v12410, %v12509
  %v12511 = vpop.f32.mrf.mxu0
  %12512 = vdwg.mxu0
  %12513 = vst [vmem:[%s15] sm:$0xff] %v12510
  // Predicated region
  $region62: #{mnist_transformer.1} parent=0 // pred_check
    _
  $region63: #{mnist_transformer.1} parent=0 // pred_check_branch
    %12515 = sbr.rel (0) target = $region65
  $region64: #{mnist_transformer.1} parent=0 // pred_region
    _
  $region65: #{mnist_transformer.1} parent=0 // pred_fallthru
    _
  // Predicated region
  $region66: #{mnist_transformer.1} parent=0 // pred_check
    _
  $region67: #{mnist_transformer.1} parent=0 // pred_check_branch
    %12517 = sbr.rel (0) target = $region69
  $region68: #{mnist_transformer.1} parent=0 // pred_region
    _
  $region69: #{mnist_transformer.1} parent=0 // pred_fallthru
    _

</llo_original>
